<compile_context>
chip_gen: v6e
topology: v6e:2x2x1
jax: 0.10.0
libtpu: 0.0.40
codegen_flags: <defaults>
</compile_context>

<pallas_src>
import functools
import math

import jax
import jax.numpy as jnp
from jax import lax
from jax.experimental import pallas as pl
from jax.experimental.pallas import tpu as pltpu


def _cross_attn_kernel(xq_ref, xkv_ref, wq_ref, bq_ref, wkv_ref, bkv_ref,
                       wo_ref, bo_ref, mask_ref, o_ref,
                       q_scr, m_scr, l_scr, acc_scr,
                       *, heads, head_dim, scale, compute_dtype):
    """One (batch, q-tile, kv-tile) grid step."""
    H, E = heads, head_dim
    D = H * E
    ki = pl.program_id(2)

    # --- once per query tile: Q projection (+ scale) and online-softmax init.
    @pl.when(ki == 0)
    def _init():
        xq = xq_ref[0].astype(compute_dtype)                            # (tq, D)
        q = jnp.dot(xq, wq_ref[...], preferred_element_type=jnp.float32)
        q = (q + bq_ref[...]) * scale                                   # fold 1/sqrt(E) into Q once
        q_scr[...] = q.astype(compute_dtype)
        m_scr[...] = jnp.full_like(m_scr, -1e30)
        l_scr[...] = jnp.zeros_like(l_scr)
        acc_scr[...] = jnp.zeros_like(acc_scr)

    # --- fused K|V projection for this KV tile: one (tk, D) @ (D, 2D) MXU matmul.
    xkv = xkv_ref[0].astype(compute_dtype)                              # (tk, D)
    kv = jnp.dot(xkv, wkv_ref[...], preferred_element_type=jnp.float32)
    kv = (kv + bkv_ref[...]).astype(compute_dtype)                      # (tk, 2D): [0,D)=K, [D,2D)=V

    # --- per-head online-softmax update (heads stay at static lane offsets;
    #     no transposes, no concatenates, no K^T materialization).
    for h in range(H):                                                  # static unroll; H is small
        lo, hi = h * E, (h + 1) * E
        q_h = q_scr[:, lo:hi]                                           # (tq, E)
        k_h = kv[:, lo:hi]                                              # (tk, E)
        v_h = kv[:, D + lo:D + hi]                                      # (tk, E)

        # scores: contract the E axes directly (MXU consumes K un-transposed).
        s = lax.dot_general(q_h, k_h,
                            dimension_numbers=(((1,), (1,)), ((), ())),
                            preferred_element_type=jnp.float32)         # (tq, tk)
        s = s + mask_ref[0, h].astype(jnp.float32)

        m_prev = m_scr[:, h:h + 1]                                      # (tq, 1)
        m_new = jnp.maximum(m_prev, jnp.max(s, axis=-1, keepdims=True))
        alpha = jnp.exp(m_prev - m_new)
        p = jnp.exp(s - m_new)                                          # (tq, tk) f32
        l_scr[:, h:h + 1] = alpha * l_scr[:, h:h + 1] + jnp.sum(p, axis=-1, keepdims=True)
        pv = jnp.dot(p.astype(compute_dtype), v_h,
                     preferred_element_type=jnp.float32)                # (tq, E)
        acc_scr[:, lo:hi] = alpha * acc_scr[:, lo:hi] + pv
        m_scr[:, h:h + 1] = m_new

    # --- once per query tile: normalize, output projection, lane-dense store.
    @pl.when(ki == pl.num_programs(2) - 1)
    def _finalize():
        for h in range(H):
            lo, hi = h * E, (h + 1) * E
            inv_l = pl.reciprocal(l_scr[:, h:h + 1], approx=True)       # EUP slot
            acc_scr[:, lo:hi] = acc_scr[:, lo:hi] * inv_l
        attn = acc_scr[...].astype(compute_dtype)                       # (tq, D)
        out = jnp.dot(attn, wo_ref[...], preferred_element_type=jnp.float32) + bo_ref[...]
        o_ref[0] = out.astype(o_ref.dtype)


def cross_attention_pallas(x, y, mask, params, *, heads,
                           q_block=128, kv_block=128,
                           compute_dtype=jnp.bfloat16,
                           vmem_limit_bytes=48 * 1024 * 1024):
    """x: (B, T, D); y: (B, S, D) [unused — reference forward projects K/V from x];
    mask: additive float attention bias of shape (B, H, T, T).
    Weights are pre-transposed to (D_in, D_out); biases are (1, D)."""
    del y  # the reference PyTorch forward never uses y
    B, T, D = x.shape
    H = heads
    assert D % H == 0, "embedding_dimension must be divisible by heads"
    E = D // H
    assert mask.shape == (B, H, T, T)

    tq = min(q_block, T)
    tk = min(kv_block, T)
    # TODO(synk): support T not divisible by the tile sizes (needs tail masking).
    assert T % tq == 0 and T % tk == 0, "T must be divisible by the q/kv tile sizes"

    wq, bq, wk, bk, wv, bv, wo, bo = params

    # Fuse K|V projections into a single (D, 2D) matmul.  Weights are cast to
    # the MXU input dtype (halves weight DMA/VMEM on the bf16 path — the
    # preferred alternative to Buffered(1) on the 64 MiB-VMEM v7x).  Biases
    # stay f32 (added to f32 accumulators).  The mask is streamed tile-by-tile
    # in whatever dtype the caller provides (pass bf16 for minimum HBM traffic).
    wkv = jnp.concatenate([wk, wv], axis=1).astype(compute_dtype)
    bkv = jnp.concatenate([bk, bv], axis=1).astype(jnp.float32)
    wq_c = wq.astype(compute_dtype)
    wo_c = wo.astype(compute_dtype)
    bq_c = bq.astype(jnp.float32)
    bo_c = bo.astype(jnp.float32)

    kernel = functools.partial(_cross_attn_kernel, heads=H, head_dim=E,
                               scale=1.0 / math.sqrt(E),
                               compute_dtype=compute_dtype)

    return pl.pallas_call(
        kernel,
        out_shape=jax.ShapeDtypeStruct((B, T, D), x.dtype),
        grid_spec=pltpu.PrefetchScalarGridSpec(
            num_scalar_prefetch=0,
            grid=(B, T // tq, T // tk),
            in_specs=[
                pl.BlockSpec((1, tq, D), lambda b, qi, ki: (b, qi, 0)),        # x: query rows
                pl.BlockSpec((1, tk, D), lambda b, qi, ki: (b, ki, 0)),        # x: key/value rows
                pl.BlockSpec((D, D), lambda b, qi, ki: (0, 0)),                # wq
                pl.BlockSpec((1, D), lambda b, qi, ki: (0, 0)),                # bq
                pl.BlockSpec((D, 2 * D), lambda b, qi, ki: (0, 0)),            # wkv (fused K|V)
                pl.BlockSpec((1, 2 * D), lambda b, qi, ki: (0, 0)),            # bkv
                pl.BlockSpec((D, D), lambda b, qi, ki: (0, 0)),                # wo
                pl.BlockSpec((1, D), lambda b, qi, ki: (0, 0)),                # bo
                pl.BlockSpec((1, H, tq, tk), lambda b, qi, ki: (b, 0, qi, ki)),  # mask tile
            ],
            out_specs=pl.BlockSpec((1, tq, D), lambda b, qi, ki: (b, qi, 0)),
            scratch_shapes=[
                pltpu.VMEM((tq, D), compute_dtype),   # scaled Q (cached per q-tile)
                pltpu.VMEM((tq, H), jnp.float32),     # running row max per head
                pltpu.VMEM((tq, H), jnp.float32),     # running softmax denom per head
                pltpu.VMEM((tq, D), jnp.float32),     # unnormalized output accumulator
            ],
        ),
        compiler_params=pltpu.CompilerParams(
            dimension_semantics=("parallel", "parallel", "arbitrary"),
            vmem_limit_bytes=vmem_limit_bytes,
        ),
    )(x, x, wq_c, bq_c, wkv, bkv, wo_c, bo_c, mask)


def _reference(x, mask, params, heads):
    """Pure-JAX f32 reference mirroring the PyTorch forward."""
    B, T, D = x.shape
    E = D // heads
    wq, bq, wk, bk, wv, bv, wo, bo = params
    q = (x @ wq + bq).reshape(B, T, heads, E).transpose(0, 2, 1, 3)
    k = (x @ wk + bk).reshape(B, T, heads, E).transpose(0, 2, 1, 3)
    v = (x @ wv + bv).reshape(B, T, heads, E).transpose(0, 2, 1, 3)
    s = jnp.einsum("bhte,bhse->bhts", q, k) / math.sqrt(E) + mask
    p = jax.nn.softmax(s, axis=-1)
    o = jnp.einsum("bhts,bhse->bhte", p, v)
    o = o.transpose(0, 2, 1, 3).reshape(B, T, D)
    return o @ wo + bo


def _make_case(key, *, B, T, S, D, H):
    ks = jax.random.split(key, 11)
    x = jax.random.normal(ks[0], (B, T, D), dtype=jnp.float32)
    y = jax.random.normal(ks[1], (B, S, D), dtype=jnp.float32)   # unused by the forward
    mask = 0.1 * jax.random.normal(ks[2], (B, H, T, T), dtype=jnp.float32)

    def lin(kw, kb):
        w = 0.05 * jax.random.normal(kw, (D, D), dtype=jnp.float32)
        b = 0.05 * jax.random.normal(kb, (1, D), dtype=jnp.float32)
        return w, b

    wq, bq = lin(ks[3], ks[4])
    wk, bk = lin(ks[5], ks[6])
    wv, bv = lin(ks[7], ks[8])
    wo, bo = lin(ks[9], ks[10])
    return x, y, mask, (wq, bq, wk, bk, wv, bv, wo, bo)


if __name__ == "__main__":
    root = jax.random.PRNGKey(0)
    k1, k2 = jax.random.split(root)

    # Case 1: multi-tile grid (2, 2, 2) — exercises online-softmax accumulation
    # across KV tiles and both parallel axes.
    B, T, S, D, H = 2, 256, 320, 256, 4
    x, y, mask, params = _make_case(k1, B=B, T=T, S=S, D=D, H=H)
    ref = _reference(x, mask, params, H)

    out_f32 = jax.block_until_ready(
        cross_attention_pallas(x, y, mask, params, heads=H,
                               compute_dtype=jnp.float32))
    assert out_f32.shape == (B, T, D)
    err = float(jnp.max(jnp.abs(out_f32 - ref)))
    assert jnp.allclose(out_f32, ref, atol=2e-2, rtol=2e-2), f"f32 mismatch, max|diff|={err}"

    out_bf16 = jax.block_until_ready(
        cross_attention_pallas(x, y, mask, params, heads=H,
                               compute_dtype=jnp.bfloat16))
    err = float(jnp.max(jnp.abs(out_bf16 - ref)))
    assert jnp.allclose(out_bf16, ref, atol=1e-1, rtol=1e-1), f"bf16 mismatch, max|diff|={err}"

    # Case 2: single-tile path (tq = tk = T), smaller shapes.
    B, T, S, D, H = 1, 64, 96, 128, 4
    x, y, mask, params = _make_case(k2, B=B, T=T, S=S, D=D, H=H)
    ref = _reference(x, mask, params, H)
    out = jax.block_until_ready(
        cross_attention_pallas(x, y, mask, params, heads=H,
                               compute_dtype=jnp.float32))
    err = float(jnp.max(jnp.abs(out - ref)))
    assert jnp.allclose(out, ref, atol=2e-2, rtol=2e-2), f"single-tile mismatch, max|diff|={err}"

    print("KERNEL_OK")
</pallas_src>

<mosaic_0001>
module attributes {stable_mosaic.version = 11 : i64} {
  func.func @_cross_attn_kernel(%arg0: i32, %arg1: i32, %arg2: i32, %arg3: memref<1x128x256xf32, #tpu.memory_space<vmem>>, %arg4: memref<1x128x256xf32, #tpu.memory_space<vmem>>, %arg5: memref<256x256xf32, #tpu.memory_space<vmem>>, %arg6: memref<1x256xf32, #tpu.memory_space<vmem>>, %arg7: memref<256x512xf32, #tpu.memory_space<vmem>>, %arg8: memref<1x512xf32, #tpu.memory_space<vmem>>, %arg9: memref<256x256xf32, #tpu.memory_space<vmem>>, %arg10: memref<1x256xf32, #tpu.memory_space<vmem>>, %arg11: memref<1x4x128x128xf32, #tpu.memory_space<vmem>>, %arg12: memref<1x128x256xf32, #tpu.memory_space<vmem>>, %arg13: memref<128x256xf32, #tpu.memory_space<vmem>>, %arg14: memref<128x4xf32, #tpu.memory_space<vmem>>, %arg15: memref<128x4xf32, #tpu.memory_space<vmem>>, %arg16: memref<128x256xf32, #tpu.memory_space<vmem>>) attributes {dimension_semantics = [#tpu.dimension_semantics<parallel>, #tpu.dimension_semantics<parallel>, #tpu.dimension_semantics<arbitrary>], iteration_bounds = array<i64: 2, 2, 2>, scalar_prefetch = 0 : i64, scratch_operands = 4 : i64, tpu.core_type = #tpu.core_type<tc>, window_params = [{transform_indices = @transform_0, window_bounds = array<i64: 1, 128, 256>}, {transform_indices = @transform_1, window_bounds = array<i64: 1, 128, 256>}, {pipeline_mode = #tpu.pipeline_mode<synchronous>, transform_indices = @transform_2, window_bounds = array<i64: 256, 256>}, {pipeline_mode = #tpu.pipeline_mode<synchronous>, transform_indices = @transform_3, window_bounds = array<i64: 1, 256>}, {pipeline_mode = #tpu.pipeline_mode<synchronous>, transform_indices = @transform_4, window_bounds = array<i64: 256, 512>}, {pipeline_mode = #tpu.pipeline_mode<synchronous>, transform_indices = @transform_5, window_bounds = array<i64: 1, 512>}, {pipeline_mode = #tpu.pipeline_mode<synchronous>, transform_indices = @transform_6, window_bounds = array<i64: 256, 256>}, {pipeline_mode = #tpu.pipeline_mode<synchronous>, transform_indices = @transform_7, window_bounds = array<i64: 1, 256>}, {transform_indices = @transform_8, window_bounds = array<i64: 1, 4, 128, 128>}, {transform_indices = @transform_9, window_bounds = array<i64: 1, 128, 256>}]} {
    %c0_i32 = arith.constant 0 : i32
    %0 = arith.cmpi eq, %arg2, %c0_i32 : i32
    %1 = arith.extui %0 : i1 to i32
    %c0_i32_0 = arith.constant 0 : i32
    %2 = arith.cmpi ne, %1, %c0_i32_0 : i32
    scf.if %2 {
      %c0_90 = arith.constant 0 : index
      %c0_91 = arith.constant 0 : index
      %c0_92 = arith.constant 0 : index
      %129 = vector.load %arg3[%c0_90, %c0_91, %c0_92] : memref<1x128x256xf32, #tpu.memory_space<vmem>>, vector<1x128x256xf32>
      %130 = vector.shape_cast %129 : vector<1x128x256xf32> to vector<128x256xf32>
      %c0_93 = arith.constant 0 : index
      %c0_94 = arith.constant 0 : index
      %131 = vector.load %arg5[%c0_93, %c0_94] : memref<256x256xf32, #tpu.memory_space<vmem>>, vector<256x256xf32>
      %cst_95 = arith.constant dense<0.000000e+00> : vector<128x256xf32>
      %132 = tpu.matmul %130, %131, %cst_95 {dimension_numbers = #tpu.dot_dimension_numbers<[1], [0], [0], [1], [0, 0, 1, 1], [], []>} : vector<128x256xf32>, vector<256x256xf32>, vector<128x256xf32> -> vector<128x256xf32>
      %c0_96 = arith.constant 0 : index
      %c0_97 = arith.constant 0 : index
      %133 = vector.load %arg6[%c0_96, %c0_97] : memref<1x256xf32, #tpu.memory_space<vmem>>, vector<1x256xf32>
      %134 = vector.broadcast %133 : vector<1x256xf32> to vector<128x256xf32>
      %135 = arith.addf %132, %134 : vector<128x256xf32>
      %cst_98 = arith.constant 1.250000e-01 : f32
      %136 = vector.broadcast %cst_98 : f32 to vector<128x256xf32>
      %137 = arith.mulf %135, %136 : vector<128x256xf32>
      %c0_99 = arith.constant 0 : index
      %c0_100 = arith.constant 0 : index
      %138 = vector.load %arg13[%c0_99, %c0_100] : memref<128x256xf32, #tpu.memory_space<vmem>>, vector<128x256xf32>
      tpu.vector_store %arg13[%c0_99, %c0_100], %137 {strides = array<i32>} : memref<128x256xf32, #tpu.memory_space<vmem>>, vector<128x256xf32>,
      %cst_101 = arith.constant -1.000000e+30 : f32
      %139 = vector.broadcast %cst_101 : f32 to vector<128x4xf32>
      %c0_102 = arith.constant 0 : index
      %c0_103 = arith.constant 0 : index
      %140 = vector.load %arg14[%c0_102, %c0_103] : memref<128x4xf32, #tpu.memory_space<vmem>>, vector<128x4xf32>
      tpu.vector_store %arg14[%c0_102, %c0_103], %139 {strides = array<i32>} : memref<128x4xf32, #tpu.memory_space<vmem>>, vector<128x4xf32>,
      %cst_104 = arith.constant 0.000000e+00 : f32
      %141 = vector.broadcast %cst_104 : f32 to vector<128x4xf32>
      %c0_105 = arith.constant 0 : index
      %c0_106 = arith.constant 0 : index
      %142 = vector.load %arg15[%c0_105, %c0_106] : memref<128x4xf32, #tpu.memory_space<vmem>>, vector<128x4xf32>
      tpu.vector_store %arg15[%c0_105, %c0_106], %141 {strides = array<i32>} : memref<128x4xf32, #tpu.memory_space<vmem>>, vector<128x4xf32>,
      %cst_107 = arith.constant 0.000000e+00 : f32
      %143 = vector.broadcast %cst_107 : f32 to vector<128x256xf32>
      %c0_108 = arith.constant 0 : index
      %c0_109 = arith.constant 0 : index
      %144 = vector.load %arg16[%c0_108, %c0_109] : memref<128x256xf32, #tpu.memory_space<vmem>>, vector<128x256xf32>
      tpu.vector_store %arg16[%c0_108, %c0_109], %143 {strides = array<i32>} : memref<128x256xf32, #tpu.memory_space<vmem>>, vector<128x256xf32>,
    } else {
    }
    %c0 = arith.constant 0 : index
    %c0_1 = arith.constant 0 : index
    %c0_2 = arith.constant 0 : index
    %3 = vector.load %arg4[%c0, %c0_1, %c0_2] : memref<1x128x256xf32, #tpu.memory_space<vmem>>, vector<1x128x256xf32>
    %4 = vector.shape_cast %3 : vector<1x128x256xf32> to vector<128x256xf32>
    %c0_3 = arith.constant 0 : index
    %c0_4 = arith.constant 0 : index
    %5 = vector.load %arg7[%c0_3, %c0_4] : memref<256x512xf32, #tpu.memory_space<vmem>>, vector<256x512xf32>
    %cst = arith.constant dense<0.000000e+00> : vector<128x512xf32>
    %6 = tpu.matmul %4, %5, %cst {dimension_numbers = #tpu.dot_dimension_numbers<[1], [0], [0], [1], [0, 0, 1, 1], [], []>} : vector<128x256xf32>, vector<256x512xf32>, vector<128x512xf32> -> vector<128x512xf32>
    %c0_5 = arith.constant 0 : index
    %c0_6 = arith.constant 0 : index
    %7 = vector.load %arg8[%c0_5, %c0_6] : memref<1x512xf32, #tpu.memory_space<vmem>>, vector<1x512xf32>
    %8 = vector.broadcast %7 : vector<1x512xf32> to vector<128x512xf32>
    %9 = arith.addf %6, %8 : vector<128x512xf32>
    %c0_7 = arith.constant 0 : index
    %c0_8 = arith.constant 0 : index
    %10 = vector.load %arg13[%c0_7, %c0_8] : memref<128x256xf32, #tpu.memory_space<vmem>>, vector<128x64xf32>
    %11 = vector.extract_strided_slice %9 {offsets = [0, 0], sizes = [128, 64], strides = [1, 1]} : vector<128x512xf32> to vector<128x64xf32>
    %12 = vector.extract_strided_slice %9 {offsets = [0, 256], sizes = [128, 64], strides = [1, 1]} : vector<128x512xf32> to vector<128x64xf32>
    %cst_9 = arith.constant dense<0.000000e+00> : vector<128x128xf32>
    %13 = tpu.matmul %10, %11, %cst_9 {dimension_numbers = #tpu.dot_dimension_numbers<[1], [1], [0], [0], [0, 0, 1, 0], [], []>} : vector<128x64xf32>, vector<128x64xf32>, vector<128x128xf32> -> vector<128x128xf32>
    %c0_10 = arith.constant 0 : index
    %c0_11 = arith.constant 0 : index
    %c0_12 = arith.constant 0 : index
    %c0_13 = arith.constant 0 : index
    %14 = vector.load %arg11[%c0_10, %c0_11, %c0_12, %c0_13] : memref<1x4x128x128xf32, #tpu.memory_space<vmem>>, vector<1x1x128x128xf32>
    %15 = vector.shape_cast %14 : vector<1x1x128x128xf32> to vector<128x128xf32>
    %16 = arith.addf %13, %15 : vector<128x128xf32>
    %c0_14 = arith.constant 0 : index
    %c0_15 = arith.constant 0 : index
    %17 = vector.load %arg14[%c0_14, %c0_15] : memref<128x4xf32, #tpu.memory_space<vmem>>, vector<128x1xf32>
    %cst_16 = arith.constant dense<0xFF800000> : vector<128xf32>
    %18 = vector.multi_reduction <maximumf>, %16, %cst_16 [1] : vector<128x128xf32> to vector<128xf32>
    %19 = vector.shape_cast %18 : vector<128xf32> to vector<128x1xf32>
    %20 = arith.maximumf %17, %19 : vector<128x1xf32>
    %21 = arith.subf %17, %20 : vector<128x1xf32>
    %22 = math.exp %21 : vector<128x1xf32>
    %23 = vector.broadcast %20 : vector<128x1xf32> to vector<128x128xf32>
    %24 = arith.subf %16, %23 : vector<128x128xf32>
    %25 = math.exp %24 : vector<128x128xf32>
    %c0_17 = arith.constant 0 : index
    %c0_18 = arith.constant 0 : index
    %26 = vector.load %arg15[%c0_17, %c0_18] : memref<128x4xf32, #tpu.memory_space<vmem>>, vector<128x1xf32>
    %27 = arith.mulf %22, %26 : vector<128x1xf32>
    %cst_19 = arith.constant dense<0.000000e+00> : vector<128xf32>
    %28 = vector.multi_reduction <add>, %25, %cst_19 [1] : vector<128x128xf32> to vector<128xf32>
    %29 = vector.shape_cast %28 : vector<128xf32> to vector<128x1xf32>
    %30 = arith.addf %27, %29 : vector<128x1xf32>
    %c0_20 = arith.constant 0 : index
    %c0_21 = arith.constant 0 : index
    %31 = vector.load %arg15[%c0_20, %c0_21] : memref<128x4xf32, #tpu.memory_space<vmem>>, vector<128x1xf32>
    tpu.vector_store %arg15[%c0_20, %c0_21], %30 {strides = array<i32>} : memref<128x4xf32, #tpu.memory_space<vmem>>, vector<128x1xf32>,
    %cst_22 = arith.constant dense<0.000000e+00> : vector<128x64xf32>
    %32 = tpu.matmul %25, %12, %cst_22 {dimension_numbers = #tpu.dot_dimension_numbers<[1], [0], [0], [1], [0, 0, 1, 1], [], []>} : vector<128x128xf32>, vector<128x64xf32>, vector<128x64xf32> -> vector<128x64xf32>
    %c0_23 = arith.constant 0 : index
    %c0_24 = arith.constant 0 : index
    %33 = vector.load %arg16[%c0_23, %c0_24] : memref<128x256xf32, #tpu.memory_space<vmem>>, vector<128x64xf32>
    %34 = vector.broadcast %22 : vector<128x1xf32> to vector<128x64xf32>
    %35 = arith.mulf %34, %33 : vector<128x64xf32>
    %36 = arith.addf %35, %32 : vector<128x64xf32>
    %c0_25 = arith.constant 0 : index
    %c0_26 = arith.constant 0 : index
    %37 = vector.load %arg16[%c0_25, %c0_26] : memref<128x256xf32, #tpu.memory_space<vmem>>, vector<128x64xf32>
    tpu.vector_store %arg16[%c0_25, %c0_26], %36 {strides = array<i32>} : memref<128x256xf32, #tpu.memory_space<vmem>>, vector<128x64xf32>,
    %c0_27 = arith.constant 0 : index
    %c0_28 = arith.constant 0 : index
    %38 = vector.load %arg14[%c0_27, %c0_28] : memref<128x4xf32, #tpu.memory_space<vmem>>, vector<128x1xf32>
    tpu.vector_store %arg14[%c0_27, %c0_28], %20 {strides = array<i32>} : memref<128x4xf32, #tpu.memory_space<vmem>>, vector<128x1xf32>,
    %c0_29 = arith.constant 0 : index
    %c64 = arith.constant 64 : index
    %39 = vector.load %arg13[%c0_29, %c64] : memref<128x256xf32, #tpu.memory_space<vmem>>, vector<128x64xf32>
    %40 = vector.extract_strided_slice %9 {offsets = [0, 64], sizes = [128, 64], strides = [1, 1]} : vector<128x512xf32> to vector<128x64xf32>
    %41 = vector.extract_strided_slice %9 {offsets = [0, 320], sizes = [128, 64], strides = [1, 1]} : vector<128x512xf32> to vector<128x64xf32>
    %cst_30 = arith.constant dense<0.000000e+00> : vector<128x128xf32>
    %42 = tpu.matmul %39, %40, %cst_30 {dimension_numbers = #tpu.dot_dimension_numbers<[1], [1], [0], [0], [0, 0, 1, 0], [], []>} : vector<128x64xf32>, vector<128x64xf32>, vector<128x128xf32> -> vector<128x128xf32>
    %c0_31 = arith.constant 0 : index
    %c1 = arith.constant 1 : index
    %c0_32 = arith.constant 0 : index
    %c0_33 = arith.constant 0 : index
    %43 = vector.load %arg11[%c0_31, %c1, %c0_32, %c0_33] : memref<1x4x128x128xf32, #tpu.memory_space<vmem>>, vector<1x1x128x128xf32>
    %44 = vector.shape_cast %43 : vector<1x1x128x128xf32> to vector<128x128xf32>
    %45 = arith.addf %42, %44 : vector<128x128xf32>
    %c0_34 = arith.constant 0 : index
    %c1_35 = arith.constant 1 : index
    %46 = vector.load %arg14[%c0_34, %c1_35] : memref<128x4xf32, #tpu.memory_space<vmem>>, vector<128x1xf32>
    %cst_36 = arith.constant dense<0xFF800000> : vector<128xf32>
    %47 = vector.multi_reduction <maximumf>, %45, %cst_36 [1] : vector<128x128xf32> to vector<128xf32>
    %48 = vector.shape_cast %47 : vector<128xf32> to vector<128x1xf32>
    %49 = arith.maximumf %46, %48 : vector<128x1xf32>
    %50 = arith.subf %46, %49 : vector<128x1xf32>
    %51 = math.exp %50 : vector<128x1xf32>
    %52 = vector.broadcast %49 : vector<128x1xf32> to vector<128x128xf32>
    %53 = arith.subf %45, %52 : vector<128x128xf32>
    %54 = math.exp %53 : vector<128x128xf32>
    %c0_37 = arith.constant 0 : index
    %c1_38 = arith.constant 1 : index
    %55 = vector.load %arg15[%c0_37, %c1_38] : memref<128x4xf32, #tpu.memory_space<vmem>>, vector<128x1xf32>
    %56 = arith.mulf %51, %55 : vector<128x1xf32>
    %cst_39 = arith.constant dense<0.000000e+00> : vector<128xf32>
    %57 = vector.multi_reduction <add>, %54, %cst_39 [1] : vector<128x128xf32> to vector<128xf32>
    %58 = vector.shape_cast %57 : vector<128xf32> to vector<128x1xf32>
    %59 = arith.addf %56, %58 : vector<128x1xf32>
    %c0_40 = arith.constant 0 : index
    %c1_41 = arith.constant 1 : index
    %60 = vector.load %arg15[%c0_40, %c1_41] : memref<128x4xf32, #tpu.memory_space<vmem>>, vector<128x1xf32>
    tpu.vector_store %arg15[%c0_40, %c1_41], %59 {strides = array<i32>} : memref<128x4xf32, #tpu.memory_space<vmem>>, vector<128x1xf32>,
    %cst_42 = arith.constant dense<0.000000e+00> : vector<128x64xf32>
    %61 = tpu.matmul %54, %41, %cst_42 {dimension_numbers = #tpu.dot_dimension_numbers<[1], [0], [0], [1], [0, 0, 1, 1], [], []>} : vector<128x128xf32>, vector<128x64xf32>, vector<128x64xf32> -> vector<128x64xf32>
    %c0_43 = arith.constant 0 : index
    %c64_44 = arith.constant 64 : index
    %62 = vector.load %arg16[%c0_43, %c64_44] : memref<128x256xf32, #tpu.memory_space<vmem>>, vector<128x64xf32>
    %63 = vector.broadcast %51 : vector<128x1xf32> to vector<128x64xf32>
    %64 = arith.mulf %63, %62 : vector<128x64xf32>
    %65 = arith.addf %64, %61 : vector<128x64xf32>
    %c0_45 = arith.constant 0 : index
    %c64_46 = arith.constant 64 : index
    %66 = vector.load %arg16[%c0_45, %c64_46] : memref<128x256xf32, #tpu.memory_space<vmem>>, vector<128x64xf32>
    tpu.vector_store %arg16[%c0_45, %c64_46], %65 {strides = array<i32>} : memref<128x256xf32, #tpu.memory_space<vmem>>, vector<128x64xf32>,
    %c0_47 = arith.constant 0 : index
    %c1_48 = arith.constant 1 : index
    %67 = vector.load %arg14[%c0_47, %c1_48] : memref<128x4xf32, #tpu.memory_space<vmem>>, vector<128x1xf32>
    tpu.vector_store %arg14[%c0_47, %c1_48], %49 {strides = array<i32>} : memref<128x4xf32, #tpu.memory_space<vmem>>, vector<128x1xf32>,
    %c0_49 = arith.constant 0 : index
    %c128 = arith.constant 128 : index
    %68 = vector.load %arg13[%c0_49, %c128] : memref<128x256xf32, #tpu.memory_space<vmem>>, vector<128x64xf32>
    %69 = vector.extract_strided_slice %9 {offsets = [0, 128], sizes = [128, 64], strides = [1, 1]} : vector<128x512xf32> to vector<128x64xf32>
    %70 = vector.extract_strided_slice %9 {offsets = [0, 384], sizes = [128, 64], strides = [1, 1]} : vector<128x512xf32> to vector<128x64xf32>
    %cst_50 = arith.constant dense<0.000000e+00> : vector<128x128xf32>
    %71 = tpu.matmul %68, %69, %cst_50 {dimension_numbers = #tpu.dot_dimension_numbers<[1], [1], [0], [0], [0, 0, 1, 0], [], []>} : vector<128x64xf32>, vector<128x64xf32>, vector<128x128xf32> -> vector<128x128xf32>
    %c0_51 = arith.constant 0 : index
    %c2 = arith.constant 2 : index
    %c0_52 = arith.constant 0 : index
    %c0_53 = arith.constant 0 : index
    %72 = vector.load %arg11[%c0_51, %c2, %c0_52, %c0_53] : memref<1x4x128x128xf32, #tpu.memory_space<vmem>>, vector<1x1x128x128xf32>
    %73 = vector.shape_cast %72 : vector<1x1x128x128xf32> to vector<128x128xf32>
    %74 = arith.addf %71, %73 : vector<128x128xf32>
    %c0_54 = arith.constant 0 : index
    %c2_55 = arith.constant 2 : index
    %75 = vector.load %arg14[%c0_54, %c2_55] : memref<128x4xf32, #tpu.memory_space<vmem>>, vector<128x1xf32>
    %cst_56 = arith.constant dense<0xFF800000> : vector<128xf32>
    %76 = vector.multi_reduction <maximumf>, %74, %cst_56 [1] : vector<128x128xf32> to vector<128xf32>
    %77 = vector.shape_cast %76 : vector<128xf32> to vector<128x1xf32>
    %78 = arith.maximumf %75, %77 : vector<128x1xf32>
    %79 = arith.subf %75, %78 : vector<128x1xf32>
    %80 = math.exp %79 : vector<128x1xf32>
    %81 = vector.broadcast %78 : vector<128x1xf32> to vector<128x128xf32>
    %82 = arith.subf %74, %81 : vector<128x128xf32>
    %83 = math.exp %82 : vector<128x128xf32>
    %c0_57 = arith.constant 0 : index
    %c2_58 = arith.constant 2 : index
    %84 = vector.load %arg15[%c0_57, %c2_58] : memref<128x4xf32, #tpu.memory_space<vmem>>, vector<128x1xf32>
    %85 = arith.mulf %80, %84 : vector<128x1xf32>
    %cst_59 = arith.constant dense<0.000000e+00> : vector<128xf32>
    %86 = vector.multi_reduction <add>, %83, %cst_59 [1] : vector<128x128xf32> to vector<128xf32>
    %87 = vector.shape_cast %86 : vector<128xf32> to vector<128x1xf32>
    %88 = arith.addf %85, %87 : vector<128x1xf32>
    %c0_60 = arith.constant 0 : index
    %c2_61 = arith.constant 2 : index
    %89 = vector.load %arg15[%c0_60, %c2_61] : memref<128x4xf32, #tpu.memory_space<vmem>>, vector<128x1xf32>
    tpu.vector_store %arg15[%c0_60, %c2_61], %88 {strides = array<i32>} : memref<128x4xf32, #tpu.memory_space<vmem>>, vector<128x1xf32>,
    %cst_62 = arith.constant dense<0.000000e+00> : vector<128x64xf32>
    %90 = tpu.matmul %83, %70, %cst_62 {dimension_numbers = #tpu.dot_dimension_numbers<[1], [0], [0], [1], [0, 0, 1, 1], [], []>} : vector<128x128xf32>, vector<128x64xf32>, vector<128x64xf32> -> vector<128x64xf32>
    %c0_63 = arith.constant 0 : index
    %c128_64 = arith.constant 128 : index
    %91 = vector.load %arg16[%c0_63, %c128_64] : memref<128x256xf32, #tpu.memory_space<vmem>>, vector<128x64xf32>
    %92 = vector.broadcast %80 : vector<128x1xf32> to vector<128x64xf32>
    %93 = arith.mulf %92, %91 : vector<128x64xf32>
    %94 = arith.addf %93, %90 : vector<128x64xf32>
    %c0_65 = arith.constant 0 : index
    %c128_66 = arith.constant 128 : index
    %95 = vector.load %arg16[%c0_65, %c128_66] : memref<128x256xf32, #tpu.memory_space<vmem>>, vector<128x64xf32>
    tpu.vector_store %arg16[%c0_65, %c128_66], %94 {strides = array<i32>} : memref<128x256xf32, #tpu.memory_space<vmem>>, vector<128x64xf32>,
    %c0_67 = arith.constant 0 : index
    %c2_68 = arith.constant 2 : index
    %96 = vector.load %arg14[%c0_67, %c2_68] : memref<128x4xf32, #tpu.memory_space<vmem>>, vector<128x1xf32>
    tpu.vector_store %arg14[%c0_67, %c2_68], %78 {strides = array<i32>} : memref<128x4xf32, #tpu.memory_space<vmem>>, vector<128x1xf32>,
    %c0_69 = arith.constant 0 : index
    %c192 = arith.constant 192 : index
    %97 = vector.load %arg13[%c0_69, %c192] : memref<128x256xf32, #tpu.memory_space<vmem>>, vector<128x64xf32>
    %98 = vector.extract_strided_slice %9 {offsets = [0, 192], sizes = [128, 64], strides = [1, 1]} : vector<128x512xf32> to vector<128x64xf32>
    %99 = vector.extract_strided_slice %9 {offsets = [0, 448], sizes = [128, 64], strides = [1, 1]} : vector<128x512xf32> to vector<128x64xf32>
    %cst_70 = arith.constant dense<0.000000e+00> : vector<128x128xf32>
    %100 = tpu.matmul %97, %98, %cst_70 {dimension_numbers = #tpu.dot_dimension_numbers<[1], [1], [0], [0], [0, 0, 1, 0], [], []>} : vector<128x64xf32>, vector<128x64xf32>, vector<128x128xf32> -> vector<128x128xf32>
    %c0_71 = arith.constant 0 : index
    %c3 = arith.constant 3 : index
    %c0_72 = arith.constant 0 : index
    %c0_73 = arith.constant 0 : index
    %101 = vector.load %arg11[%c0_71, %c3, %c0_72, %c0_73] : memref<1x4x128x128xf32, #tpu.memory_space<vmem>>, vector<1x1x128x128xf32>
    %102 = vector.shape_cast %101 : vector<1x1x128x128xf32> to vector<128x128xf32>
    %103 = arith.addf %100, %102 : vector<128x128xf32>
    %c0_74 = arith.constant 0 : index
    %c3_75 = arith.constant 3 : index
    %104 = vector.load %arg14[%c0_74, %c3_75] : memref<128x4xf32, #tpu.memory_space<vmem>>, vector<128x1xf32>
    %cst_76 = arith.constant dense<0xFF800000> : vector<128xf32>
    %105 = vector.multi_reduction <maximumf>, %103, %cst_76 [1] : vector<128x128xf32> to vector<128xf32>
    %106 = vector.shape_cast %105 : vector<128xf32> to vector<128x1xf32>
    %107 = arith.maximumf %104, %106 : vector<128x1xf32>
    %108 = arith.subf %104, %107 : vector<128x1xf32>
    %109 = math.exp %108 : vector<128x1xf32>
    %110 = vector.broadcast %107 : vector<128x1xf32> to vector<128x128xf32>
    %111 = arith.subf %103, %110 : vector<128x128xf32>
    %112 = math.exp %111 : vector<128x128xf32>
    %c0_77 = arith.constant 0 : index
    %c3_78 = arith.constant 3 : index
    %113 = vector.load %arg15[%c0_77, %c3_78] : memref<128x4xf32, #tpu.memory_space<vmem>>, vector<128x1xf32>
    %114 = arith.mulf %109, %113 : vector<128x1xf32>
    %cst_79 = arith.constant dense<0.000000e+00> : vector<128xf32>
    %115 = vector.multi_reduction <add>, %112, %cst_79 [1] : vector<128x128xf32> to vector<128xf32>
    %116 = vector.shape_cast %115 : vector<128xf32> to vector<128x1xf32>
    %117 = arith.addf %114, %116 : vector<128x1xf32>
    %c0_80 = arith.constant 0 : index
    %c3_81 = arith.constant 3 : index
    %118 = vector.load %arg15[%c0_80, %c3_81] : memref<128x4xf32, #tpu.memory_space<vmem>>, vector<128x1xf32>
    tpu.vector_store %arg15[%c0_80, %c3_81], %117 {strides = array<i32>} : memref<128x4xf32, #tpu.memory_space<vmem>>, vector<128x1xf32>,
    %cst_82 = arith.constant dense<0.000000e+00> : vector<128x64xf32>
    %119 = tpu.matmul %112, %99, %cst_82 {dimension_numbers = #tpu.dot_dimension_numbers<[1], [0], [0], [1], [0, 0, 1, 1], [], []>} : vector<128x128xf32>, vector<128x64xf32>, vector<128x64xf32> -> vector<128x64xf32>
    %c0_83 = arith.constant 0 : index
    %c192_84 = arith.constant 192 : index
    %120 = vector.load %arg16[%c0_83, %c192_84] : memref<128x256xf32, #tpu.memory_space<vmem>>, vector<128x64xf32>
    %121 = vector.broadcast %109 : vector<128x1xf32> to vector<128x64xf32>
    %122 = arith.mulf %121, %120 : vector<128x64xf32>
    %123 = arith.addf %122, %119 : vector<128x64xf32>
    %c0_85 = arith.constant 0 : index
    %c192_86 = arith.constant 192 : index
    %124 = vector.load %arg16[%c0_85, %c192_86] : memref<128x256xf32, #tpu.memory_space<vmem>>, vector<128x64xf32>
    tpu.vector_store %arg16[%c0_85, %c192_86], %123 {strides = array<i32>} : memref<128x256xf32, #tpu.memory_space<vmem>>, vector<128x64xf32>,
    %c0_87 = arith.constant 0 : index
    %c3_88 = arith.constant 3 : index
    %125 = vector.load %arg14[%c0_87, %c3_88] : memref<128x4xf32, #tpu.memory_space<vmem>>, vector<128x1xf32>
    tpu.vector_store %arg14[%c0_87, %c3_88], %107 {strides = array<i32>} : memref<128x4xf32, #tpu.memory_space<vmem>>, vector<128x1xf32>,
    %c1_i32 = arith.constant 1 : i32
    %126 = arith.cmpi eq, %arg2, %c1_i32 : i32
    %127 = arith.extui %126 : i1 to i32
    %c0_i32_89 = arith.constant 0 : i32
    %128 = arith.cmpi ne, %127, %c0_i32_89 : i32
    scf.if %128 {
      %c0_90 = arith.constant 0 : index
      %c0_91 = arith.constant 0 : index
      %129 = vector.load %arg15[%c0_90, %c0_91] : memref<128x4xf32, #tpu.memory_space<vmem>>, vector<128x1xf32>
      %130 = tpu.reciprocal %129 {approx = true} : vector<128x1xf32> -> vector<128x1xf32>
      %c0_92 = arith.constant 0 : index
      %c0_93 = arith.constant 0 : index
      %131 = vector.load %arg16[%c0_92, %c0_93] : memref<128x256xf32, #tpu.memory_space<vmem>>, vector<128x64xf32>
      %132 = vector.broadcast %130 : vector<128x1xf32> to vector<128x64xf32>
      %133 = arith.mulf %131, %132 : vector<128x64xf32>
      %c0_94 = arith.constant 0 : index
      %c0_95 = arith.constant 0 : index
      %134 = vector.load %arg16[%c0_94, %c0_95] : memref<128x256xf32, #tpu.memory_space<vmem>>, vector<128x64xf32>
      tpu.vector_store %arg16[%c0_94, %c0_95], %133 {strides = array<i32>} : memref<128x256xf32, #tpu.memory_space<vmem>>, vector<128x64xf32>,
      %c0_96 = arith.constant 0 : index
      %c1_97 = arith.constant 1 : index
      %135 = vector.load %arg15[%c0_96, %c1_97] : memref<128x4xf32, #tpu.memory_space<vmem>>, vector<128x1xf32>
      %136 = tpu.reciprocal %135 {approx = true} : vector<128x1xf32> -> vector<128x1xf32>
      %c0_98 = arith.constant 0 : index
      %c64_99 = arith.constant 64 : index
      %137 = vector.load %arg16[%c0_98, %c64_99] : memref<128x256xf32, #tpu.memory_space<vmem>>, vector<128x64xf32>
      %138 = vector.broadcast %136 : vector<128x1xf32> to vector<128x64xf32>
      %139 = arith.mulf %137, %138 : vector<128x64xf32>
      %c0_100 = arith.constant 0 : index
      %c64_101 = arith.constant 64 : index
      %140 = vector.load %arg16[%c0_100, %c64_101] : memref<128x256xf32, #tpu.memory_space<vmem>>, vector<128x64xf32>
      tpu.vector_store %arg16[%c0_100, %c64_101], %139 {strides = array<i32>} : memref<128x256xf32, #tpu.memory_space<vmem>>, vector<128x64xf32>,
      %c0_102 = arith.constant 0 : index
      %c2_103 = arith.constant 2 : index
      %141 = vector.load %arg15[%c0_102, %c2_103] : memref<128x4xf32, #tpu.memory_space<vmem>>, vector<128x1xf32>
      %142 = tpu.reciprocal %141 {approx = true} : vector<128x1xf32> -> vector<128x1xf32>
      %c0_104 = arith.constant 0 : index
      %c128_105 = arith.constant 128 : index
      %143 = vector.load %arg16[%c0_104, %c128_105] : memref<128x256xf32, #tpu.memory_space<vmem>>, vector<128x64xf32>
      %144 = vector.broadcast %142 : vector<128x1xf32> to vector<128x64xf32>
      %145 = arith.mulf %143, %144 : vector<128x64xf32>
      %c0_106 = arith.constant 0 : index
      %c128_107 = arith.constant 128 : index
      %146 = vector.load %arg16[%c0_106, %c128_107] : memref<128x256xf32, #tpu.memory_space<vmem>>, vector<128x64xf32>
      tpu.vector_store %arg16[%c0_106, %c128_107], %145 {strides = array<i32>} : memref<128x256xf32, #tpu.memory_space<vmem>>, vector<128x64xf32>,
      %c0_108 = arith.constant 0 : index
      %c3_109 = arith.constant 3 : index
      %147 = vector.load %arg15[%c0_108, %c3_109] : memref<128x4xf32, #tpu.memory_space<vmem>>, vector<128x1xf32>
      %148 = tpu.reciprocal %147 {approx = true} : vector<128x1xf32> -> vector<128x1xf32>
      %c0_110 = arith.constant 0 : index
      %c192_111 = arith.constant 192 : index
      %149 = vector.load %arg16[%c0_110, %c192_111] : memref<128x256xf32, #tpu.memory_space<vmem>>, vector<128x64xf32>
      %150 = vector.broadcast %148 : vector<128x1xf32> to vector<128x64xf32>
      %151 = arith.mulf %149, %150 : vector<128x64xf32>
      %c0_112 = arith.constant 0 : index
      %c192_113 = arith.constant 192 : index
      %152 = vector.load %arg16[%c0_112, %c192_113] : memref<128x256xf32, #tpu.memory_space<vmem>>, vector<128x64xf32>
      tpu.vector_store %arg16[%c0_112, %c192_113], %151 {strides = array<i32>} : memref<128x256xf32, #tpu.memory_space<vmem>>, vector<128x64xf32>,
      %c0_114 = arith.constant 0 : index
      %c0_115 = arith.constant 0 : index
      %153 = vector.load %arg16[%c0_114, %c0_115] : memref<128x256xf32, #tpu.memory_space<vmem>>, vector<128x256xf32>
      %c0_116 = arith.constant 0 : index
      %c0_117 = arith.constant 0 : index
      %154 = vector.load %arg9[%c0_116, %c0_117] : memref<256x256xf32, #tpu.memory_space<vmem>>, vector<256x256xf32>
      %cst_118 = arith.constant dense<0.000000e+00> : vector<128x256xf32>
      %155 = tpu.matmul %153, %154, %cst_118 {dimension_numbers = #tpu.dot_dimension_numbers<[1], [0], [0], [1], [0, 0, 1, 1], [], []>} : vector<128x256xf32>, vector<256x256xf32>, vector<128x256xf32> -> vector<128x256xf32>
      %c0_119 = arith.constant 0 : index
      %c0_120 = arith.constant 0 : index
      %156 = vector.load %arg10[%c0_119, %c0_120] : memref<1x256xf32, #tpu.memory_space<vmem>>, vector<1x256xf32>
      %157 = vector.broadcast %156 : vector<1x256xf32> to vector<128x256xf32>
      %158 = arith.addf %155, %157 : vector<128x256xf32>
      %c0_121 = arith.constant 0 : index
      %c0_122 = arith.constant 0 : index
      %c0_123 = arith.constant 0 : index
      %159 = vector.load %arg12[%c0_121, %c0_122, %c0_123] : memref<1x128x256xf32, #tpu.memory_space<vmem>>, vector<1x128x256xf32>
      %160 = vector.shape_cast %159 : vector<1x128x256xf32> to vector<128x256xf32>
      %161 = vector.shape_cast %158 : vector<128x256xf32> to vector<1x128x256xf32>
      tpu.vector_store %arg12[%c0_121, %c0_122, %c0_123], %161 {strides = array<i32>} : memref<1x128x256xf32, #tpu.memory_space<vmem>>, vector<1x128x256xf32>,
    } else {
    }
    return
  }
  func.func @transform_0(%arg0: i32, %arg1: i32, %arg2: i32) -> (i32, i32, i32) {
    %c0_i32 = arith.constant 0 : i32
    %c0_i32_0 = arith.constant 0 : i32
    return %arg0, %arg1, %c0_i32 : i32, i32, i32
  }
  func.func @transform_1(%arg0: i32, %arg1: i32, %arg2: i32) -> (i32, i32, i32) {
    %c0_i32 = arith.constant 0 : i32
    %c0_i32_0 = arith.constant 0 : i32
    return %arg0, %arg2, %c0_i32 : i32, i32, i32
  }
  func.func @transform_2(%arg0: i32, %arg1: i32, %arg2: i32) -> (i32, i32) {
    %c0_i32 = arith.constant 0 : i32
    %c0_i32_0 = arith.constant 0 : i32
    %c0_i32_1 = arith.constant 0 : i32
    return %c0_i32, %c0_i32_0 : i32, i32
  }
  func.func @transform_3(%arg0: i32, %arg1: i32, %arg2: i32) -> (i32, i32) {
    %c0_i32 = arith.constant 0 : i32
    %c0_i32_0 = arith.constant 0 : i32
    %c0_i32_1 = arith.constant 0 : i32
    return %c0_i32, %c0_i32_0 : i32, i32
  }
  func.func @transform_4(%arg0: i32, %arg1: i32, %arg2: i32) -> (i32, i32) {
    %c0_i32 = arith.constant 0 : i32
    %c0_i32_0 = arith.constant 0 : i32
    %c0_i32_1 = arith.constant 0 : i32
    return %c0_i32, %c0_i32_0 : i32, i32
  }
  func.func @transform_5(%arg0: i32, %arg1: i32, %arg2: i32) -> (i32, i32) {
    %c0_i32 = arith.constant 0 : i32
    %c0_i32_0 = arith.constant 0 : i32
    %c0_i32_1 = arith.constant 0 : i32
    return %c0_i32, %c0_i32_0 : i32, i32
  }
  func.func @transform_6(%arg0: i32, %arg1: i32, %arg2: i32) -> (i32, i32) {
    %c0_i32 = arith.constant 0 : i32
    %c0_i32_0 = arith.constant 0 : i32
    %c0_i32_1 = arith.constant 0 : i32
    return %c0_i32, %c0_i32_0 : i32, i32
  }
  func.func @transform_7(%arg0: i32, %arg1: i32, %arg2: i32) -> (i32, i32) {
    %c0_i32 = arith.constant 0 : i32
    %c0_i32_0 = arith.constant 0 : i32
    %c0_i32_1 = arith.constant 0 : i32
    return %c0_i32, %c0_i32_0 : i32, i32
  }
  func.func @transform_8(%arg0: i32, %arg1: i32, %arg2: i32) -> (i32, i32, i32, i32) {
    %c0_i32 = arith.constant 0 : i32
    %c0_i32_0 = arith.constant 0 : i32
    return %arg0, %c0_i32, %arg1, %arg2 : i32, i32, i32, i32
  }
  func.func @transform_9(%arg0: i32, %arg1: i32, %arg2: i32) -> (i32, i32, i32) {
    %c0_i32 = arith.constant 0 : i32
    %c0_i32_0 = arith.constant 0 : i32
    return %arg0, %arg1, %c0_i32 : i32, i32, i32
  }
}

</mosaic_0001>

<llo_original>
// kernel: tpu_custom_call.1
$region0: #{tpu_custom_call.1}
  #allocation0 [shape = 'u32[]', space=smem, size = 0x4, offset = 0x4, fixed_abs, tag = 'smem constant byte address 0x4 - core index']
  #allocation1 [shape = 'u32[144,128]{1,0:T(1,128)}', space=vmem, size = 0x12000, scoped, tag = 'internal scratch']
  #allocation2 [shape = 'f32[128,256]{1,0:T(8,128)}', space=vmem, size = 0x20000, scoped, tag = 'scratch operand']
  #allocation3 [shape = 'f32[128,4]{1,0:T(8,128)}', space=vmem, size = 0x10000, scoped, tag = 'scratch operand']
  #allocation4 [shape = 'f32[128,4]{1,0:T(8,128)}', space=vmem, size = 0x10000, scoped, tag = 'scratch operand']
  #allocation5 [shape = 'f32[128,256]{1,0:T(8,128)}', space=vmem, size = 0x20000, scoped, tag = 'scratch operand']
  #allocation22 [shape = 's32[]', space=sflag, size = 0x4, offset = 0, fixed_abs, tag = 'sflag constant byte address 0x0 - dummy sync flag']
  %s0 = inlined_call_operand.hbm [shape: f32[2,256,256], index: 0, kind: input, shape index: {}]
  %s1 = inlined_call_operand.hbm [shape: f32[2,256,256], index: 1, kind: input, shape index: {}]
  %s2 = inlined_call_operand.hbm [shape: f32[256,256], index: 2, kind: input, shape index: {}]
  %s3 = inlined_call_operand.hbm [shape: f32[1,256], index: 3, kind: input, shape index: {}]
  %s4 = inlined_call_operand.hbm [shape: f32[256,512], index: 4, kind: input, shape index: {}]
  %s5 = inlined_call_operand.hbm [shape: f32[1,512], index: 5, kind: input, shape index: {}]
  %s6 = inlined_call_operand.hbm [shape: f32[256,256], index: 6, kind: input, shape index: {}]
  %s7 = inlined_call_operand.hbm [shape: f32[1,256], index: 7, kind: input, shape index: {}]
  %s8 = inlined_call_operand.hbm [shape: f32[2,4,256,256], index: 8, kind: input, shape index: {}]
  %s9 = inlined_call_operand.hbm [shape: f32[2,256,256], index: 9, kind: output, shape index: {}]
  %s10 = sld [smem:[#allocation0]]
  $region113: #{tpu_custom_call.1} parent=0
    _
  %s12 = ssub.s32 1, %s10
  %s13 = scalar_select 0, %s12, %s10
  $region1: #{tpu_custom_call.1} parent=0
    #allocation6 [shape = 'u8[262144]{0}', space=vmem, size = 0x40000, scoped, tag = 'input window, operand 0']
    #allocation7 [shape = 's32[2]{0}', space=sflag, size = 0x8, scoped, tag = 'scoped memory for tpu_custom_call.1']
    #allocation8 [shape = 's32[2]{0}', space=sflag, size = 0x8, scoped, tag = 'scoped memory for tpu_custom_call.1']
    #allocation9 [shape = 'u8[262144]{0}', space=vmem, size = 0x40000, scoped, tag = 'input window, operand 1']
    #allocation10 [shape = 's32[2]{0}', space=sflag, size = 0x8, scoped, tag = 'scoped memory for tpu_custom_call.1']
    #allocation11 [shape = 'u8[262144]{0}', space=vmem, size = 0x40000, scoped, tag = 'input window, operand 2, single buffered']
    #allocation12 [shape = 'u8[1024]{0}', space=vmem, size = 0x400, scoped, tag = 'input window, operand 3, single buffered']
    #allocation13 [shape = 's32[1]{0}', space=sflag, size = 0x4, scoped, tag = 'scoped memory for tpu_custom_call.1']
    #allocation14 [shape = 'u8[524288]{0}', space=vmem, size = 0x80000, scoped, tag = 'input window, operand 4, single buffered']
    #allocation15 [shape = 'u8[2048]{0}', space=vmem, size = 0x800, scoped, tag = 'input window, operand 5, single buffered']
    #allocation16 [shape = 's32[1]{0}', space=sflag, size = 0x4, scoped, tag = 'scoped memory for tpu_custom_call.1']
    #allocation17 [shape = 'u8[262144]{0}', space=vmem, size = 0x40000, scoped, tag = 'input window, operand 6, single buffered']
    #allocation18 [shape = 'u8[1024]{0}', space=vmem, size = 0x400, scoped, tag = 'input window, operand 7, single buffered']
    #allocation19 [shape = 's32[1]{0}', space=sflag, size = 0x4, scoped, tag = 'scoped memory for tpu_custom_call.1']
    #allocation20 [shape = 'u8[524288]{0}', space=vmem, size = 0x80000, scoped, tag = 'input window, operand 8']
    #allocation21 [shape = 'u8[262144]{0}', space=vmem, size = 0x40000, scoped, tag = 'output window, operand 0']
    %14 = vsyncpa [#allocation7], 0
    %s15 = scalar_lea.sflag [#allocation7], 1
    %16 = vsyncpa %s15, 0
    %17 = vsyncpa [#allocation10], 0
    %s18 = scalar_lea.sflag [#allocation10], 1
    %19 = vsyncpa %s18, 0
    %20 = vsyncpa [#allocation13], 0
    %21 = vsyncpa [#allocation16], 0
    %22 = vsyncpa [#allocation19], 0
    %23 = vsyncpa [#allocation8], 0
    %s24 = scalar_lea.sflag [#allocation8], 1
    %25 = vsyncpa %s24, 0
    loop: start=0, step=1, limit=10
    $region2: #{tpu_custom_call.1} parent=1 // loop_pre_header
      _
    $region3: #{tpu_custom_call.1} parent=1 // loop_header
      %s27 = sphi 0, %s31
      %p28 = scmp.ge.s32.totalorder %s27, 10
      %s34 = sphi 0, %s53
      %s35 = sphi 0, %s49
      %s36 = sphi 0, %s45
      %s37 = sphi 0, %s34
      %s38 = sphi 0, %s35
      %s39 = sphi 0, %s36
      %s40 = sphi 0, %s37
      %s41 = sphi 0, %s38
      %s42 = sphi 0, %s39
      %s58 = sphi 0, %s60
      %s61 = sphi 0, %s58
      %s62 = sphi 0, %s61
      %s78 = sphi 0, %s62
      %s86 = sphi 0, %s88
      %s89 = sphi 0, %s86
      %s90 = sphi 0, %s89
      %s106 = sphi 0, %s90
      %s110 = sphi 0, %s110
      %s112 = sphi 0, %s110
      %s113 = sphi 0, %s112
      %s127 = sphi 0, %s113
      %s131 = sphi 0, %s131
      %s133 = sphi 0, %s131
      %s134 = sphi 0, %s133
      %s148 = sphi 0, %s134
      %s152 = sphi 0, %s152
      %s154 = sphi 0, %s152
      %s155 = sphi 0, %s154
      %s169 = sphi 0, %s155
      %s173 = sphi 0, %s173
      %s175 = sphi 0, %s173
      %s176 = sphi 0, %s175
      %s190 = sphi 0, %s176
      %s194 = sphi 0, %s194
      %s196 = sphi 0, %s194
      %s197 = sphi 0, %s196
      %s211 = sphi 0, %s197
      %s215 = sphi 0, %s215
      %s217 = sphi 0, %s215
      %s218 = sphi 0, %s217
      %s232 = sphi 0, %s218
      %s242 = sphi 0, %s244
      %s245 = sphi 0, %s242
      %s246 = sphi 0, %s245
      %s262 = sphi 0, %s246
      %s270 = sphi 0, %s272
      %s273 = sphi 0, %s270
      %s274 = sphi 0, %s273
      %s290 = sphi 0, %s274
    $region4: #{tpu_custom_call.1} parent=1 // loop_header_branch
      %30 = sbr.rel (%p28) target = $region8
    $region5: #{tpu_custom_call.1} parent=1 // loop_body
      %s32 = ssub.s32 %s27, 1
      %s33 = ssub.s32 %s27, 2
      %s43 = sadd.s32 1, %s36
      %p44 = scmp.ge.s32.totalorder %s43, 2
      %s45 = scalar_select %p44, 0, %s43
      %s46 = sadd.s32 1, %s35
      %s47 = scalar_select %p44, %s46, %s35
      %p48 = scmp.ge.s32.totalorder %s47, 2
      %s49 = scalar_select %p48, 0, %s47
      %s50 = sadd.s32 1, %s34
      %s51 = scalar_select %p48, %s50, %s34
      %p52 = scmp.ge.s32.totalorder %s51, 2
      %s53 = scalar_select %p52, 0, %s51
      %s54 = ssub.s32 %s34, %s53
      %s55 = ssub.s32 %s35, %s49
      %s56 = sor.u32 %s54, %s55
      %p57 = scmp.eq.s32.totalorder %s56, 0
      %s59 = sadd.s32 %s58, 1
      %s60 = scalar_select %p57, %s58, %s59
      %p63 = pneg %p57
      %p64 = scmp.eq.s32.totalorder %s27, 7
      %p65 = por %p63, %p64
      %p66 = scmp.ne.s32.totalorder %s58, %s61
      %p67 = scmp.eq.s32.totalorder %s27, 0
      %p68 = por %p66, %p67
      %p69 = scmp.ne.s32.totalorder %s58, %s61
      %p70 = scmp.eq.s32.totalorder %s32, 7
      %p71 = por %p69, %p70
      %p72 = scmp.ne.s32.totalorder %s61, %s62
      %p73 = scmp.eq.s32.totalorder %s32, 0
      %p74 = por %p72, %p73
      %p75 = scmp.ne.s32.totalorder %s61, %s62
      %p76 = scmp.eq.s32.totalorder %s33, 7
      %p77 = por %p75, %p76
      %p79 = scmp.ne.s32.totalorder %s62, %s78
      %p80 = scmp.eq.s32.totalorder %s33, 0
      %p81 = por %p79, %p80
      %s82 = ssub.s32 %s34, %s53
      %s83 = ssub.s32 %s36, %s45
      %s84 = sor.u32 %s82, %s83
      %p85 = scmp.eq.s32.totalorder %s84, 0
      %s87 = sadd.s32 %s86, 1
      %s88 = scalar_select %p85, %s86, %s87
      %p91 = pneg %p85
      %p92 = scmp.eq.s32.totalorder %s27, 7
      %p93 = por %p91, %p92
      %p94 = scmp.ne.s32.totalorder %s86, %s89
      %p95 = scmp.eq.s32.totalorder %s27, 0
      %p96 = por %p94, %p95
      %p97 = scmp.ne.s32.totalorder %s86, %s89
      %p98 = scmp.eq.s32.totalorder %s32, 7
      %p99 = por %p97, %p98
      %p100 = scmp.ne.s32.totalorder %s89, %s90
      %p101 = scmp.eq.s32.totalorder %s32, 0
      %p102 = por %p100, %p101
      %p103 = scmp.ne.s32.totalorder %s89, %s90
      %p104 = scmp.eq.s32.totalorder %s33, 7
      %p105 = por %p103, %p104
      %p107 = scmp.ne.s32.totalorder %s90, %s106
      %p108 = scmp.eq.s32.totalorder %s33, 0
      %p109 = por %p107, %p108
      %s111 = sadd.s32 %s110, 1
      %p114 = scmp.eq.s32.totalorder %s27, 7
      %p115 = scmp.ne.s32.totalorder %s110, %s112
      %p116 = scmp.eq.s32.totalorder %s27, 0
      %p117 = por %p115, %p116
      %p118 = scmp.ne.s32.totalorder %s110, %s112
      %p119 = scmp.eq.s32.totalorder %s32, 7
      %p120 = por %p118, %p119
      %p121 = scmp.ne.s32.totalorder %s112, %s113
      %p122 = scmp.eq.s32.totalorder %s32, 0
      %p123 = por %p121, %p122
      %p124 = scmp.ne.s32.totalorder %s112, %s113
      %p125 = scmp.eq.s32.totalorder %s33, 7
      %p126 = por %p124, %p125
      %p128 = scmp.ne.s32.totalorder %s113, %s127
      %p129 = scmp.eq.s32.totalorder %s33, 0
      %p130 = por %p128, %p129
      %s132 = sadd.s32 %s131, 1
      %p135 = scmp.eq.s32.totalorder %s27, 7
      %p136 = scmp.ne.s32.totalorder %s131, %s133
      %p137 = scmp.eq.s32.totalorder %s27, 0
      %p138 = por %p136, %p137
      %p139 = scmp.ne.s32.totalorder %s131, %s133
      %p140 = scmp.eq.s32.totalorder %s32, 7
      %p141 = por %p139, %p140
      %p142 = scmp.ne.s32.totalorder %s133, %s134
      %p143 = scmp.eq.s32.totalorder %s32, 0
      %p144 = por %p142, %p143
      %p145 = scmp.ne.s32.totalorder %s133, %s134
      %p146 = scmp.eq.s32.totalorder %s33, 7
      %p147 = por %p145, %p146
      %p149 = scmp.ne.s32.totalorder %s134, %s148
      %p150 = scmp.eq.s32.totalorder %s33, 0
      %p151 = por %p149, %p150
      %s153 = sadd.s32 %s152, 1
      %p156 = scmp.eq.s32.totalorder %s27, 7
      %p157 = scmp.ne.s32.totalorder %s152, %s154
      %p158 = scmp.eq.s32.totalorder %s27, 0
      %p159 = por %p157, %p158
      %p160 = scmp.ne.s32.totalorder %s152, %s154
      %p161 = scmp.eq.s32.totalorder %s32, 7
      %p162 = por %p160, %p161
      %p163 = scmp.ne.s32.totalorder %s154, %s155
      %p164 = scmp.eq.s32.totalorder %s32, 0
      %p165 = por %p163, %p164
      %p166 = scmp.ne.s32.totalorder %s154, %s155
      %p167 = scmp.eq.s32.totalorder %s33, 7
      %p168 = por %p166, %p167
      %p170 = scmp.ne.s32.totalorder %s155, %s169
      %p171 = scmp.eq.s32.totalorder %s33, 0
      %p172 = por %p170, %p171
      %s174 = sadd.s32 %s173, 1
      %p177 = scmp.eq.s32.totalorder %s27, 7
      %p178 = scmp.ne.s32.totalorder %s173, %s175
      %p179 = scmp.eq.s32.totalorder %s27, 0
      %p180 = por %p178, %p179
      %p181 = scmp.ne.s32.totalorder %s173, %s175
      %p182 = scmp.eq.s32.totalorder %s32, 7
      %p183 = por %p181, %p182
      %p184 = scmp.ne.s32.totalorder %s175, %s176
      %p185 = scmp.eq.s32.totalorder %s32, 0
      %p186 = por %p184, %p185
      %p187 = scmp.ne.s32.totalorder %s175, %s176
      %p188 = scmp.eq.s32.totalorder %s33, 7
      %p189 = por %p187, %p188
      %p191 = scmp.ne.s32.totalorder %s176, %s190
      %p192 = scmp.eq.s32.totalorder %s33, 0
      %p193 = por %p191, %p192
      %s195 = sadd.s32 %s194, 1
      %p198 = scmp.eq.s32.totalorder %s27, 7
      %p199 = scmp.ne.s32.totalorder %s194, %s196
      %p200 = scmp.eq.s32.totalorder %s27, 0
      %p201 = por %p199, %p200
      %p202 = scmp.ne.s32.totalorder %s194, %s196
      %p203 = scmp.eq.s32.totalorder %s32, 7
      %p204 = por %p202, %p203
      %p205 = scmp.ne.s32.totalorder %s196, %s197
      %p206 = scmp.eq.s32.totalorder %s32, 0
      %p207 = por %p205, %p206
      %p208 = scmp.ne.s32.totalorder %s196, %s197
      %p209 = scmp.eq.s32.totalorder %s33, 7
      %p210 = por %p208, %p209
      %p212 = scmp.ne.s32.totalorder %s197, %s211
      %p213 = scmp.eq.s32.totalorder %s33, 0
      %p214 = por %p212, %p213
      %s216 = sadd.s32 %s215, 1
      %p219 = scmp.eq.s32.totalorder %s27, 7
      %p220 = scmp.ne.s32.totalorder %s215, %s217
      %p221 = scmp.eq.s32.totalorder %s27, 0
      %p222 = por %p220, %p221
      %p223 = scmp.ne.s32.totalorder %s215, %s217
      %p224 = scmp.eq.s32.totalorder %s32, 7
      %p225 = por %p223, %p224
      %p226 = scmp.ne.s32.totalorder %s217, %s218
      %p227 = scmp.eq.s32.totalorder %s32, 0
      %p228 = por %p226, %p227
      %p229 = scmp.ne.s32.totalorder %s217, %s218
      %p230 = scmp.eq.s32.totalorder %s33, 7
      %p231 = por %p229, %p230
      %p233 = scmp.ne.s32.totalorder %s218, %s232
      %p234 = scmp.eq.s32.totalorder %s33, 0
      %p235 = por %p233, %p234
      %s236 = ssub.s32 %s34, %s53
      %s237 = ssub.s32 %s35, %s49
      %s238 = sor.u32 %s236, %s237
      %s239 = ssub.s32 %s36, %s45
      %s240 = sor.u32 %s238, %s239
      %p241 = scmp.eq.s32.totalorder %s240, 0
      %s243 = sadd.s32 %s242, 1
      %s244 = scalar_select %p241, %s242, %s243
      %p247 = pneg %p241
      %p248 = scmp.eq.s32.totalorder %s27, 7
      %p249 = por %p247, %p248
      %p250 = scmp.ne.s32.totalorder %s242, %s245
      %p251 = scmp.eq.s32.totalorder %s27, 0
      %p252 = por %p250, %p251
      %p253 = scmp.ne.s32.totalorder %s242, %s245
      %p254 = scmp.eq.s32.totalorder %s32, 7
      %p255 = por %p253, %p254
      %p256 = scmp.ne.s32.totalorder %s245, %s246
      %p257 = scmp.eq.s32.totalorder %s32, 0
      %p258 = por %p256, %p257
      %p259 = scmp.ne.s32.totalorder %s245, %s246
      %p260 = scmp.eq.s32.totalorder %s33, 7
      %p261 = por %p259, %p260
      %p263 = scmp.ne.s32.totalorder %s246, %s262
      %p264 = scmp.eq.s32.totalorder %s33, 0
      %p265 = por %p263, %p264
      %s266 = ssub.s32 %s34, %s53
      %s267 = ssub.s32 %s35, %s49
      %s268 = sor.u32 %s266, %s267
      %p269 = scmp.eq.s32.totalorder %s268, 0
      %s271 = sadd.s32 %s270, 1
      %s272 = scalar_select %p269, %s270, %s271
      %p275 = pneg %p269
      %p276 = scmp.eq.s32.totalorder %s27, 7
      %p277 = por %p275, %p276
      %p278 = scmp.ne.s32.totalorder %s270, %s273
      %p279 = scmp.eq.s32.totalorder %s27, 0
      %p280 = por %p278, %p279
      %p281 = scmp.ne.s32.totalorder %s270, %s273
      %p282 = scmp.eq.s32.totalorder %s32, 7
      %p283 = por %p281, %p282
      %p284 = scmp.ne.s32.totalorder %s273, %s274
      %p285 = scmp.eq.s32.totalorder %s32, 0
      %p286 = por %p284, %p285
      %p287 = scmp.ne.s32.totalorder %s273, %s274
      %p288 = scmp.eq.s32.totalorder %s33, 7
      %p289 = por %p287, %p288
      %p291 = scmp.ne.s32.totalorder %s274, %s290
      %p292 = scmp.eq.s32.totalorder %s33, 0
      %p293 = por %p291, %p292
      %p294 = scmp.le.s32.totalorder 1, %s27
      %p295 = scmp.lt.s32.totalorder %s27, 9
      %p296 = pnand %p294, %p295
      %p297 = pneg %p296
      // Predicated region
      $region9: #{tpu_custom_call.1} parent=5 // pred_check
        _
      $region10: #{tpu_custom_call.1} parent=5 // pred_check_branch
        %299 = sbr.rel (%p296) target = $region12
      $region11: #{tpu_custom_call.1} parent=5 // pred_region
        %s300 = ssub.s32 %s27, 1
        // Predicated region
        $region13: #{tpu_custom_call.1} parent=11 // pred_check
          %p301 = pneg %p123
        $region14: #{tpu_custom_call.1} parent=11 // pred_check_branch
          %303 = sbr.rel (%p301) target = $region16
        $region15: #{tpu_custom_call.1} parent=11 // pred_region
          %s305 = ssub.s32 8192, 8192
          %306 = vsyncadd [#allocation10], %s305
          %s307 = sshll.u32 [#allocation11], 4
          %s308 = int_to_ptr.vmem [resolvable:$true] %s307
          %313 = dma.hbm_to_vmem [thread:$0]  %s2, 8192, %s308, [#allocation10], 256, 256, 16
        $region16: #{tpu_custom_call.1} parent=11 // pred_fallthru
          _
        // Predicated region
        $region17: #{tpu_custom_call.1} parent=11 // pred_check
          %p314 = pneg %p144
        $region18: #{tpu_custom_call.1} parent=11 // pred_check_branch
          %316 = sbr.rel (%p314) target = $region20
        $region19: #{tpu_custom_call.1} parent=11 // pred_region
          %s318 = ssub.s32 32, 32
          %319 = vsyncadd [#allocation13], %s318
          %s321 = sshll.u32 [#allocation12], 4
          %s322 = int_to_ptr.vmem [resolvable:$true] %s321
          %324 = dma.hbm_to_vmem [thread:$0]  %s3, 32, %s322, [#allocation13]
        $region20: #{tpu_custom_call.1} parent=11 // pred_fallthru
          _
        // Predicated region
        $region21: #{tpu_custom_call.1} parent=11 // pred_check
          %p325 = pneg %p165
        $region22: #{tpu_custom_call.1} parent=11 // pred_check_branch
          %327 = sbr.rel (%p325) target = $region24
        $region23: #{tpu_custom_call.1} parent=11 // pred_region
          %s329 = ssub.s32 16384, 16384
          %330 = vsyncadd [#allocation13], %s329
          %s331 = sshll.u32 [#allocation14], 4
          %s332 = int_to_ptr.vmem [resolvable:$true] %s331
          %337 = dma.hbm_to_vmem [thread:$0]  %s4, 16384, %s332, [#allocation13], 512, 512, 32
        $region24: #{tpu_custom_call.1} parent=11 // pred_fallthru
          _
        // Predicated region
        $region25: #{tpu_custom_call.1} parent=11 // pred_check
          %p338 = pneg %p186
        $region26: #{tpu_custom_call.1} parent=11 // pred_check_branch
          %340 = sbr.rel (%p338) target = $region28
        $region27: #{tpu_custom_call.1} parent=11 // pred_region
          %s342 = ssub.s32 64, 64
          %343 = vsyncadd [#allocation16], %s342
          %s345 = sshll.u32 [#allocation15], 4
          %s346 = int_to_ptr.vmem [resolvable:$true] %s345
          %348 = dma.hbm_to_vmem [thread:$0]  %s5, 64, %s346, [#allocation16]
        $region28: #{tpu_custom_call.1} parent=11 // pred_fallthru
          _
        // Predicated region
        $region29: #{tpu_custom_call.1} parent=11 // pred_check
          %p349 = pneg %p207
        $region30: #{tpu_custom_call.1} parent=11 // pred_check_branch
          %351 = sbr.rel (%p349) target = $region32
        $region31: #{tpu_custom_call.1} parent=11 // pred_region
          %s353 = ssub.s32 8192, 8192
          %354 = vsyncadd [#allocation16], %s353
          %s355 = sshll.u32 [#allocation17], 4
          %s356 = int_to_ptr.vmem [resolvable:$true] %s355
          %361 = dma.hbm_to_vmem [thread:$0]  %s6, 8192, %s356, [#allocation16], 256, 256, 16
        $region32: #{tpu_custom_call.1} parent=11 // pred_fallthru
          _
        // Predicated region
        $region33: #{tpu_custom_call.1} parent=11 // pred_check
          %p362 = pneg %p228
        $region34: #{tpu_custom_call.1} parent=11 // pred_check_branch
          %364 = sbr.rel (%p362) target = $region36
        $region35: #{tpu_custom_call.1} parent=11 // pred_region
          %s366 = ssub.s32 32, 32
          %367 = vsyncadd [#allocation19], %s366
          %s369 = sshll.u32 [#allocation18], 4
          %s370 = int_to_ptr.vmem [resolvable:$true] %s369
          %372 = dma.hbm_to_vmem [thread:$0]  %s7, 32, %s370, [#allocation19]
        $region36: #{tpu_custom_call.1} parent=11 // pred_fallthru
          _
      $region12: #{tpu_custom_call.1} parent=5 // pred_fallthru
        _
      %p373 = scmp.lt.s32.totalorder %s27, 8
      // Predicated region
      $region37: #{tpu_custom_call.1} parent=5 // pred_check
        %p374 = pneg %p373
      $region38: #{tpu_custom_call.1} parent=5 // pred_check_branch
        %376 = sbr.rel (%p374) target = $region40
      $region39: #{tpu_custom_call.1} parent=5 // pred_region
        // Predicated region
        $region41: #{tpu_custom_call.1} parent=39 // pred_check
          %p377 = pneg %p68
        $region42: #{tpu_custom_call.1} parent=39 // pred_check_branch
          %379 = sbr.rel (%p377) target = $region44
        $region43: #{tpu_custom_call.1} parent=39 // pred_region
          %s380 = sand.u32 %s27, 1
          %s381 = scalar_lea.sflag [#allocation7], %s380
          %s382 = sand.u32 %s58, 1
          %s383 = smul.addr %s382, 256
          %s384 = scalar_lea.vmem [#allocation6], %s383
          %s385 = smul.u32 16, %s35
          %s387 = ssub.s32 4096, 4096
          %388 = vsyncadd %s381, %s387
          %s389 = smul.addr %s385, 2
          %s390 = smul.addr %s34, 64
          %s391 = sadd.s32 %s389, %s390
          %s392 = smul.addr %s391, 128
          %s393 = scalar_lea.hbm %s0, %s392
          %s394 = sshll.u32 %s384, 4
          %s395 = int_to_ptr.vmem [resolvable:$true] %s394
          %400 = dma.hbm_to_vmem [thread:$0]  %s393, 4096, %s395, %s381, 256, 256, 16
        $region44: #{tpu_custom_call.1} parent=39 // pred_fallthru
          _
        // Predicated region
        $region45: #{tpu_custom_call.1} parent=39 // pred_check
          %p401 = pneg %p96
        $region46: #{tpu_custom_call.1} parent=39 // pred_check_branch
          %403 = sbr.rel (%p401) target = $region48
        $region47: #{tpu_custom_call.1} parent=39 // pred_region
          %s404 = sand.u32 %s27, 1
          %s405 = scalar_lea.sflag [#allocation10], %s404
          %s406 = sand.u32 %s86, 1
          %s407 = smul.addr %s406, 256
          %s408 = scalar_lea.vmem [#allocation9], %s407
          %s409 = smul.u32 16, %s36
          %s411 = ssub.s32 4096, 4096
          %412 = vsyncadd %s405, %s411
          %s413 = smul.addr %s409, 2
          %s414 = smul.addr %s34, 64
          %s415 = sadd.s32 %s413, %s414
          %s416 = smul.addr %s415, 128
          %s417 = scalar_lea.hbm %s1, %s416
          %s418 = sshll.u32 %s408, 4
          %s419 = int_to_ptr.vmem [resolvable:$true] %s418
          %424 = dma.hbm_to_vmem [thread:$0]  %s417, 4096, %s419, %s405, 256, 256, 16
        $region48: #{tpu_custom_call.1} parent=39 // pred_fallthru
          _
        // Predicated region
        $region49: #{tpu_custom_call.1} parent=39 // pred_check
          %p425 = pneg %p252
        $region50: #{tpu_custom_call.1} parent=39 // pred_check_branch
          %427 = sbr.rel (%p425) target = $region52
        $region51: #{tpu_custom_call.1} parent=39 // pred_region
          #allocation23 [shape = 'u32[6]{0}', space=smem, size = 0x18, scoped, tag = 'DMA stride descriptor']
          %s428 = sand.u32 %s27, 1
          %s429 = scalar_lea.sflag [#allocation7], %s428
          %s430 = sand.u32 %s242, 1
          %s431 = smul.addr %s430, 512
          %s432 = scalar_lea.vmem [#allocation20], %s431
          %s433 = smul.u32 16, %s35
          %s435 = ssub.s32 8192, 8192
          %436 = vsyncadd %s429, %s435
          %s437 = smul.addr %s433, 2
          %s438 = sadd.s32 %s36, %s437
          %s439 = smul.addr %s34, 256
          %s440 = sadd.s32 %s438, %s439
          %s441 = smul.addr %s440, 128
          %s442 = scalar_lea.hbm %s8, %s441
          %s444 = sshll.u32 1, 14
          %s445 = sxor.u32 4294967295, %s444
          %s447 = sld [smem:[#allocation0]]
          %s448 = sadd.s32 2, %s447
          %s450 = sshll.u32 7, 26
          %s451 = sxor.u32 4294967295, %s450
          %s452 = sand.u32 0, %s451
          %s453 = sshll.u32 %s448, 26
          %s454 = sor.u32 %s452, %s453
          %s455 = sshll.u32 %s432, 4
          %s456 = int_to_ptr.vmem [resolvable:$true] %s455
          %462 = sst [smem:[#allocation23]] 8192
          %s463 = scalar_lea.smem [#allocation23], 1
          %464 = sst [smem:[%s463]] 2048
          %s465 = scalar_lea.smem [#allocation23], 2
          %466 = sst [smem:[%s465]] 16
          %s467 = scalar_lea.smem [#allocation23], 3
          %468 = sst [smem:[%s467]] 256
          %s469 = scalar_lea.smem [#allocation23], 4
          %470 = sst [smem:[%s469]] 128
          %s471 = scalar_lea.smem [#allocation23], 5
          %472 = sst [smem:[%s471]] 8
          %474 = dma.general %s442, 8192, %s456, %s429, 131072, [#allocation23], %s454, 0
        $region52: #{tpu_custom_call.1} parent=39 // pred_fallthru
          _
      $region40: #{tpu_custom_call.1} parent=5 // pred_fallthru
        _
      %p475 = scmp.le.s32.totalorder 1, %s27
      %p476 = scmp.lt.s32.totalorder %s27, 9
      %p477 = pnand %p475, %p476
      %p478 = pneg %p477
      // Predicated region
      $region53: #{tpu_custom_call.1} parent=5 // pred_check
        _
      $region54: #{tpu_custom_call.1} parent=5 // pred_check_branch
        %480 = sbr.rel (%p477) target = $region56
      $region55: #{tpu_custom_call.1} parent=5 // pred_region
        %s481 = ssub.s32 %s27, 1
        %s482 = sand.u32 %s32, 1
        %s483 = scalar_lea.sflag [#allocation7], %s482
        %s484 = sand.u32 %s61, 1
        %s485 = smul.addr %s484, 256
        %s486 = scalar_lea.vmem [#allocation6], %s485
        // Predicated region
        $region57: #{tpu_custom_call.1} parent=55 // pred_check
          %p487 = pneg %p74
        $region58: #{tpu_custom_call.1} parent=55 // pred_check_branch
          %489 = sbr.rel (%p487) target = $region60
        $region59: #{tpu_custom_call.1} parent=55 // pred_region
          %490 = dma.done %s483, 4096
        $region60: #{tpu_custom_call.1} parent=55 // pred_fallthru
          _
        %s491 = sand.u32 %s32, 1
        %s492 = scalar_lea.sflag [#allocation10], %s491
        %s493 = sand.u32 %s89, 1
        %s494 = smul.addr %s493, 256
        %s495 = scalar_lea.vmem [#allocation9], %s494
        // Predicated region
        $region61: #{tpu_custom_call.1} parent=55 // pred_check
          %p496 = pneg %p102
        $region62: #{tpu_custom_call.1} parent=55 // pred_check_branch
          %498 = sbr.rel (%p496) target = $region64
        $region63: #{tpu_custom_call.1} parent=55 // pred_region
          %499 = dma.done %s492, 4096
        $region64: #{tpu_custom_call.1} parent=55 // pred_fallthru
          _
        // Predicated region
        $region65: #{tpu_custom_call.1} parent=55 // pred_check
          %p500 = pneg %p123
        $region66: #{tpu_custom_call.1} parent=55 // pred_check_branch
          %502 = sbr.rel (%p500) target = $region68
        $region67: #{tpu_custom_call.1} parent=55 // pred_region
          %503 = dma.done [#allocation10], 8192
        $region68: #{tpu_custom_call.1} parent=55 // pred_fallthru
          _
        // Predicated region
        $region69: #{tpu_custom_call.1} parent=55 // pred_check
          %p504 = pneg %p144
        $region70: #{tpu_custom_call.1} parent=55 // pred_check_branch
          %506 = sbr.rel (%p504) target = $region72
        $region71: #{tpu_custom_call.1} parent=55 // pred_region
          %507 = dma.done [#allocation13], 32
        $region72: #{tpu_custom_call.1} parent=55 // pred_fallthru
          _
        // Predicated region
        $region73: #{tpu_custom_call.1} parent=55 // pred_check
          %p508 = pneg %p165
        $region74: #{tpu_custom_call.1} parent=55 // pred_check_branch
          %510 = sbr.rel (%p508) target = $region76
        $region75: #{tpu_custom_call.1} parent=55 // pred_region
          %511 = dma.done [#allocation13], 16384
        $region76: #{tpu_custom_call.1} parent=55 // pred_fallthru
          _
        // Predicated region
        $region77: #{tpu_custom_call.1} parent=55 // pred_check
          %p512 = pneg %p186
        $region78: #{tpu_custom_call.1} parent=55 // pred_check_branch
          %514 = sbr.rel (%p512) target = $region80
        $region79: #{tpu_custom_call.1} parent=55 // pred_region
          %515 = dma.done [#allocation16], 64
        $region80: #{tpu_custom_call.1} parent=55 // pred_fallthru
          _
        // Predicated region
        $region81: #{tpu_custom_call.1} parent=55 // pred_check
          %p516 = pneg %p207
        $region82: #{tpu_custom_call.1} parent=55 // pred_check_branch
          %518 = sbr.rel (%p516) target = $region84
        $region83: #{tpu_custom_call.1} parent=55 // pred_region
          %519 = dma.done [#allocation16], 8192
        $region84: #{tpu_custom_call.1} parent=55 // pred_fallthru
          _
        // Predicated region
        $region85: #{tpu_custom_call.1} parent=55 // pred_check
          %p520 = pneg %p228
        $region86: #{tpu_custom_call.1} parent=55 // pred_check_branch
          %522 = sbr.rel (%p520) target = $region88
        $region87: #{tpu_custom_call.1} parent=55 // pred_region
          %523 = dma.done [#allocation19], 32
        $region88: #{tpu_custom_call.1} parent=55 // pred_fallthru
          _
        %s524 = sand.u32 %s32, 1
        %s525 = scalar_lea.sflag [#allocation7], %s524
        %s526 = sand.u32 %s245, 1
        %s527 = smul.addr %s526, 512
        %s528 = scalar_lea.vmem [#allocation20], %s527
        // Predicated region
        $region89: #{tpu_custom_call.1} parent=55 // pred_check
          %p529 = pneg %p258
        $region90: #{tpu_custom_call.1} parent=55 // pred_check_branch
          %531 = sbr.rel (%p529) target = $region92
        $region91: #{tpu_custom_call.1} parent=55 // pred_region
          %532 = dma.done %s525, 8192
        $region92: #{tpu_custom_call.1} parent=55 // pred_fallthru
          _
        %s533 = sand.u32 %s32, 1
        %s534 = scalar_lea.sflag [#allocation7], %s533
        %s535 = sand.u32 %s61, 1
        %s536 = smul.addr %s535, 256
        %s537 = scalar_lea.vmem [#allocation6], %s536
        %p538 = pneg %p74
        %p539 = pneg %p71
        %s540 = sand.u32 %s32, 1
        %s541 = scalar_lea.sflag [#allocation10], %s540
        %s542 = sand.u32 %s89, 1
        %s543 = smul.addr %s542, 256
        %s544 = scalar_lea.vmem [#allocation9], %s543
        %p545 = pneg %p102
        %p546 = pneg %p99
        %p547 = pneg %p123
        %p548 = pneg %p120
        %p549 = pneg %p144
        %p550 = pneg %p141
        %p551 = pneg %p165
        %p552 = pneg %p162
        %p553 = pneg %p186
        %p554 = pneg %p183
        %p555 = pneg %p207
        %p556 = pneg %p204
        %p557 = pneg %p228
        %p558 = pneg %p225
        %s559 = sand.u32 %s32, 1
        %s560 = scalar_lea.sflag [#allocation7], %s559
        %s561 = sand.u32 %s245, 1
        %s562 = smul.addr %s561, 512
        %s563 = scalar_lea.vmem [#allocation20], %s562
        %p564 = pneg %p258
        %p565 = pneg %p255
        %p566 = pneg %p286
        %p567 = pneg %p283
        %s568 = sand.u32 %s273, 1
        %s569 = scalar_lea.sflag [#allocation8], %s568
        %s570 = sand.u32 %s273, 1
        %s571 = smul.addr %s570, 256
        %s572 = scalar_lea.vmem [#allocation21], %s571
        %s573 = smul.u32 16, %s38
        %s574 = smul.u32 16, %s39
        %s575 = smul.u32 16, %s38
        %s576 = smul.u32 16, %s38
        %p577 = scmp.eq.s32.totalorder %s39, 0
        // Predicated region
        $region93: #{tpu_custom_call.1} parent=55 // pred_check
          %p578 = pneg %p577
        $region94: #{tpu_custom_call.1} parent=55 // pred_check_branch
          %580 = sbr.rel (%p578) target = $region96
        $region95: #{tpu_custom_call.1} parent=55 // pred_region
          %v581 = vld [vmem:[%s486] sm:$0xff]
          %v582 = vld [vmem:[%s486 + $0x8] sm:$0xff]
          %v583 = vld [vmem:[%s486 + $0x10] sm:$0xff]
          %v584 = vld [vmem:[%s486 + $0x18] sm:$0xff]
          %v585 = vld [vmem:[%s486 + $0x20] sm:$0xff]
          %v586 = vld [vmem:[%s486 + $0x28] sm:$0xff]
          %v587 = vld [vmem:[%s486 + $0x30] sm:$0xff]
          %v588 = vld [vmem:[%s486 + $0x38] sm:$0xff]
          %v589 = vld [vmem:[%s486 + $0x40] sm:$0xff]
          %v590 = vld [vmem:[%s486 + $0x48] sm:$0xff]
          %v591 = vld [vmem:[%s486 + $0x50] sm:$0xff]
          %v592 = vld [vmem:[%s486 + $0x58] sm:$0xff]
          %v593 = vld [vmem:[%s486 + $0x60] sm:$0xff]
          %v594 = vld [vmem:[%s486 + $0x68] sm:$0xff]
          %v595 = vld [vmem:[%s486 + $0x70] sm:$0xff]
          %v596 = vld [vmem:[%s486 + $0x78] sm:$0xff]
          %v597 = vld [vmem:[%s486 + $0x80] sm:$0xff]
          %v598 = vld [vmem:[%s486 + $0x88] sm:$0xff]
          %v599 = vld [vmem:[%s486 + $0x90] sm:$0xff]
          %v600 = vld [vmem:[%s486 + $0x98] sm:$0xff]
          %v601 = vld [vmem:[%s486 + $0xa0] sm:$0xff]
          %v602 = vld [vmem:[%s486 + $0xa8] sm:$0xff]
          %v603 = vld [vmem:[%s486 + $0xb0] sm:$0xff]
          %v604 = vld [vmem:[%s486 + $0xb8] sm:$0xff]
          %v605 = vld [vmem:[%s486 + $0xc0] sm:$0xff]
          %v606 = vld [vmem:[%s486 + $0xc8] sm:$0xff]
          %v607 = vld [vmem:[%s486 + $0xd0] sm:$0xff]
          %v608 = vld [vmem:[%s486 + $0xd8] sm:$0xff]
          %v609 = vld [vmem:[%s486 + $0xe0] sm:$0xff]
          %v610 = vld [vmem:[%s486 + $0xe8] sm:$0xff]
          %v611 = vld [vmem:[%s486 + $0xf0] sm:$0xff]
          %v612 = vld [vmem:[%s486 + $0xf8] sm:$0xff]
          %v613 = vld [vmem:[#allocation11] sm:$0xff]
          %v614 = vld [vmem:[#allocation11 + $0x8] sm:$0xff]
          %v615 = vld [vmem:[#allocation11 + $0x10] sm:$0xff]
          %v616 = vld [vmem:[#allocation11 + $0x18] sm:$0xff]
          %v617 = vld [vmem:[#allocation11 + $0x20] sm:$0xff]
          %v618 = vld [vmem:[#allocation11 + $0x28] sm:$0xff]
          %v619 = vld [vmem:[#allocation11 + $0x30] sm:$0xff]
          %v620 = vld [vmem:[#allocation11 + $0x38] sm:$0xff]
          %v621 = vld [vmem:[#allocation11 + $0x40] sm:$0xff]
          %v622 = vld [vmem:[#allocation11 + $0x48] sm:$0xff]
          %v623 = vld [vmem:[#allocation11 + $0x50] sm:$0xff]
          %v624 = vld [vmem:[#allocation11 + $0x58] sm:$0xff]
          %v625 = vld [vmem:[#allocation11 + $0x60] sm:$0xff]
          %v626 = vld [vmem:[#allocation11 + $0x68] sm:$0xff]
          %v627 = vld [vmem:[#allocation11 + $0x70] sm:$0xff]
          %v628 = vld [vmem:[#allocation11 + $0x78] sm:$0xff]
          %v629 = vld [vmem:[#allocation11 + $0x80] sm:$0xff]
          %v630 = vld [vmem:[#allocation11 + $0x88] sm:$0xff]
          %v631 = vld [vmem:[#allocation11 + $0x90] sm:$0xff]
          %v632 = vld [vmem:[#allocation11 + $0x98] sm:$0xff]
          %v633 = vld [vmem:[#allocation11 + $0xa0] sm:$0xff]
          %v634 = vld [vmem:[#allocation11 + $0xa8] sm:$0xff]
          %v635 = vld [vmem:[#allocation11 + $0xb0] sm:$0xff]
          %v636 = vld [vmem:[#allocation11 + $0xb8] sm:$0xff]
          %v637 = vld [vmem:[#allocation11 + $0xc0] sm:$0xff]
          %v638 = vld [vmem:[#allocation11 + $0xc8] sm:$0xff]
          %v639 = vld [vmem:[#allocation11 + $0xd0] sm:$0xff]
          %v640 = vld [vmem:[#allocation11 + $0xd8] sm:$0xff]
          %v641 = vld [vmem:[#allocation11 + $0xe0] sm:$0xff]
          %v642 = vld [vmem:[#allocation11 + $0xe8] sm:$0xff]
          %v643 = vld [vmem:[#allocation11 + $0xf0] sm:$0xff]
          %v644 = vld [vmem:[#allocation11 + $0xf8] sm:$0xff]
          %v645 = vld [vmem:[#allocation11 + $0x100] sm:$0xff]
          %v646 = vld [vmem:[#allocation11 + $0x108] sm:$0xff]
          %v647 = vld [vmem:[#allocation11 + $0x110] sm:$0xff]
          %v648 = vld [vmem:[#allocation11 + $0x118] sm:$0xff]
          %v649 = vld [vmem:[#allocation11 + $0x120] sm:$0xff]
          %v650 = vld [vmem:[#allocation11 + $0x128] sm:$0xff]
          %v651 = vld [vmem:[#allocation11 + $0x130] sm:$0xff]
          %v652 = vld [vmem:[#allocation11 + $0x138] sm:$0xff]
          %v653 = vld [vmem:[#allocation11 + $0x140] sm:$0xff]
          %v654 = vld [vmem:[#allocation11 + $0x148] sm:$0xff]
          %v655 = vld [vmem:[#allocation11 + $0x150] sm:$0xff]
          %v656 = vld [vmem:[#allocation11 + $0x158] sm:$0xff]
          %v657 = vld [vmem:[#allocation11 + $0x160] sm:$0xff]
          %v658 = vld [vmem:[#allocation11 + $0x168] sm:$0xff]
          %v659 = vld [vmem:[#allocation11 + $0x170] sm:$0xff]
          %v660 = vld [vmem:[#allocation11 + $0x178] sm:$0xff]
          %v661 = vld [vmem:[#allocation11 + $0x180] sm:$0xff]
          %v662 = vld [vmem:[#allocation11 + $0x188] sm:$0xff]
          %v663 = vld [vmem:[#allocation11 + $0x190] sm:$0xff]
          %v664 = vld [vmem:[#allocation11 + $0x198] sm:$0xff]
          %v665 = vld [vmem:[#allocation11 + $0x1a0] sm:$0xff]
          %v666 = vld [vmem:[#allocation11 + $0x1a8] sm:$0xff]
          %v667 = vld [vmem:[#allocation11 + $0x1b0] sm:$0xff]
          %v668 = vld [vmem:[#allocation11 + $0x1b8] sm:$0xff]
          %v669 = vld [vmem:[#allocation11 + $0x1c0] sm:$0xff]
          %v670 = vld [vmem:[#allocation11 + $0x1c8] sm:$0xff]
          %v671 = vld [vmem:[#allocation11 + $0x1d0] sm:$0xff]
          %v672 = vld [vmem:[#allocation11 + $0x1d8] sm:$0xff]
          %v673 = vld [vmem:[#allocation11 + $0x1e0] sm:$0xff]
          %v674 = vld [vmem:[#allocation11 + $0x1e8] sm:$0xff]
          %v675 = vld [vmem:[#allocation11 + $0x1f0] sm:$0xff]
          %v676 = vld [vmem:[#allocation11 + $0x1f8] sm:$0xff]
          %v677 = vld [vmem:[#allocation12] sm:$0x3]
          %v679 = vlaneseq
          %v680 = vshrl.u32 %v679, 7
          %v681 = vsub.s32 0, %v680
          %v682 = vrot.slane %v677, %v681
          %v683 = vlaneseq
          %v684 = vshrl.u32 %v683, 7
          %v685 = vsub.s32 1, %v684
          %v686 = vrot.slane %v677, %v685
          %689 = vmatprep.subr.mxu0 %v644
          %690 = vmatpush1.msra.mxu0 %v643
          %691 = vmatprep.subr.mxu0 %v642
          %692 = vmatpush1.msra.mxu0 %v641
          %693 = vmatprep.subr.mxu0 %v640
          %694 = vmatpush1.msra.mxu0 %v639
          %695 = vmatprep.subr.mxu0 %v638
          %696 = vmatpush1.msra.mxu0 %v637
          %697 = vmatprep.subr.mxu0 %v636
          %698 = vmatpush1.msra.mxu0 %v635
          %699 = vmatprep.subr.mxu0 %v634
          %700 = vmatpush1.msra.mxu0 %v633
          %701 = vmatprep.subr.mxu0 %v632
          %702 = vmatpush1.msra.mxu0 %v631
          %703 = vmatprep.subr.mxu0 %v630
          %704 = vmatpush1.msra.mxu0 %v629
          %705 = vmatprep.subr.mxu0 %v628
          %706 = vmatpush1.msra.mxu0 %v627
          %707 = vmatprep.subr.mxu0 %v626
          %708 = vmatpush1.msra.mxu0 %v625
          %709 = vmatprep.subr.mxu0 %v624
          %710 = vmatpush1.msra.mxu0 %v623
          %711 = vmatprep.subr.mxu0 %v622
          %712 = vmatpush1.msra.mxu0 %v621
          %713 = vmatprep.subr.mxu0 %v620
          %714 = vmatpush1.msra.mxu0 %v619
          %715 = vmatprep.subr.mxu0 %v618
          %716 = vmatpush1.msra.mxu0 %v617
          %717 = vmatprep.subr.mxu0 %v616
          %718 = vmatpush1.msra.mxu0 %v615
          %719 = vmatprep.subr.mxu0 %v614
          %720 = vmatpush1.msra.mxu0 %v613
          %721 = vmatprep.subr.mxu0 %v676
          %722 = vmatpush2.msra.mxu0 %v675
          %723 = vmatprep.subr.mxu0 %v674
          %724 = vmatpush2.msra.mxu0 %v673
          %725 = vmatprep.subr.mxu0 %v672
          %726 = vmatpush2.msra.mxu0 %v671
          %727 = vmatprep.subr.mxu0 %v670
          %728 = vmatpush2.msra.mxu0 %v669
          %729 = vmatprep.subr.mxu0 %v668
          %730 = vmatpush2.msra.mxu0 %v667
          %731 = vmatprep.subr.mxu0 %v666
          %732 = vmatpush2.msra.mxu0 %v665
          %733 = vmatprep.subr.mxu0 %v664
          %734 = vmatpush2.msra.mxu0 %v663
          %735 = vmatprep.subr.mxu0 %v662
          %736 = vmatpush2.msra.mxu0 %v661
          %737 = vmatprep.subr.mxu0 %v660
          %738 = vmatpush2.msra.mxu0 %v659
          %739 = vmatprep.subr.mxu0 %v658
          %740 = vmatpush2.msra.mxu0 %v657
          %741 = vmatprep.subr.mxu0 %v656
          %742 = vmatpush2.msra.mxu0 %v655
          %743 = vmatprep.subr.mxu0 %v654
          %744 = vmatpush2.msra.mxu0 %v653
          %745 = vmatprep.subr.mxu0 %v652
          %746 = vmatpush2.msra.mxu0 %v651
          %747 = vmatprep.subr.mxu0 %v650
          %748 = vmatpush2.msra.mxu0 %v649
          %749 = vmatprep.subr.mxu0 %v648
          %750 = vmatpush2.msra.mxu0 %v647
          %751 = vmatprep.subr.mxu0 %v646
          %752 = vmatpush2.msra.mxu0 %v645
          %753 = vmatprep.mubr.f32.mxu0 %v582
          %754 = vmatmul.mubr.f32.gmra.mxu0 %v581
          %v755 = vpop.f32.mrf.mxu0
          %v756 = vadd.f32 %v682, %v755
          %v757 = vpop.f32.mrf.mxu0
          %v758 = vadd.f32 %v686, %v757
          %759 = vmatprep.mubr.f32.mxu0 %v584
          %760 = vmatmul.mubr.f32.gmra.mxu0 %v583
          %v761 = vpop.f32.mrf.mxu0
          %v762 = vadd.f32 %v682, %v761
          %v763 = vpop.f32.mrf.mxu0
          %v764 = vadd.f32 %v686, %v763
          %765 = vmatprep.mubr.f32.mxu0 %v586
          %766 = vmatmul.mubr.f32.gmra.mxu0 %v585
          %v767 = vpop.f32.mrf.mxu0
          %v768 = vadd.f32 %v682, %v767
          %v769 = vpop.f32.mrf.mxu0
          %v770 = vadd.f32 %v686, %v769
          %771 = vmatprep.mubr.f32.mxu0 %v588
          %772 = vmatmul.mubr.f32.gmra.mxu0 %v587
          %v773 = vpop.f32.mrf.mxu0
          %v774 = vadd.f32 %v682, %v773
          %v775 = vpop.f32.mrf.mxu0
          %v776 = vadd.f32 %v686, %v775
          %777 = vmatprep.mubr.f32.mxu0 %v590
          %778 = vmatmul.mubr.f32.gmra.mxu0 %v589
          %v779 = vpop.f32.mrf.mxu0
          %v780 = vadd.f32 %v682, %v779
          %v781 = vpop.f32.mrf.mxu0
          %v782 = vadd.f32 %v686, %v781
          %783 = vmatprep.mubr.f32.mxu0 %v592
          %784 = vmatmul.mubr.f32.gmra.mxu0 %v591
          %v785 = vpop.f32.mrf.mxu0
          %v786 = vadd.f32 %v682, %v785
          %v787 = vpop.f32.mrf.mxu0
          %v788 = vadd.f32 %v686, %v787
          %789 = vmatprep.mubr.f32.mxu0 %v594
          %790 = vmatmul.mubr.f32.gmra.mxu0 %v593
          %v791 = vpop.f32.mrf.mxu0
          %v792 = vadd.f32 %v682, %v791
          %v793 = vpop.f32.mrf.mxu0
          %v794 = vadd.f32 %v686, %v793
          %795 = vmatprep.mubr.f32.mxu0 %v596
          %796 = vmatmul.mubr.f32.gmra.mxu0 %v595
          %v797 = vpop.f32.mrf.mxu0
          %v798 = vadd.f32 %v682, %v797
          %v799 = vpop.f32.mrf.mxu0
          %v800 = vadd.f32 %v686, %v799
          %801 = vmatprep.mubr.f32.mxu0 %v598
          %802 = vmatmul.mubr.f32.gmra.mxu0 %v597
          %v803 = vpop.f32.mrf.mxu0
          %v804 = vadd.f32 %v682, %v803
          %v805 = vpop.f32.mrf.mxu0
          %v806 = vadd.f32 %v686, %v805
          %807 = vmatprep.mubr.f32.mxu0 %v600
          %808 = vmatmul.mubr.f32.gmra.mxu0 %v599
          %v809 = vpop.f32.mrf.mxu0
          %v810 = vadd.f32 %v682, %v809
          %v811 = vpop.f32.mrf.mxu0
          %v812 = vadd.f32 %v686, %v811
          %813 = vmatprep.mubr.f32.mxu0 %v602
          %814 = vmatmul.mubr.f32.gmra.mxu0 %v601
          %v815 = vpop.f32.mrf.mxu0
          %v816 = vadd.f32 %v682, %v815
          %v817 = vpop.f32.mrf.mxu0
          %v818 = vadd.f32 %v686, %v817
          %819 = vmatprep.mubr.f32.mxu0 %v604
          %820 = vmatmul.mubr.f32.gmra.mxu0 %v603
          %v821 = vpop.f32.mrf.mxu0
          %v822 = vadd.f32 %v682, %v821
          %v823 = vpop.f32.mrf.mxu0
          %v824 = vadd.f32 %v686, %v823
          %825 = vmatprep.mubr.f32.mxu0 %v606
          %826 = vmatmul.mubr.f32.gmra.mxu0 %v605
          %v827 = vpop.f32.mrf.mxu0
          %v828 = vadd.f32 %v682, %v827
          %v829 = vpop.f32.mrf.mxu0
          %v830 = vadd.f32 %v686, %v829
          %831 = vmatprep.mubr.f32.mxu0 %v608
          %832 = vmatmul.mubr.f32.gmra.mxu0 %v607
          %v833 = vpop.f32.mrf.mxu0
          %v834 = vadd.f32 %v682, %v833
          %v835 = vpop.f32.mrf.mxu0
          %v836 = vadd.f32 %v686, %v835
          %837 = vmatprep.mubr.f32.mxu0 %v610
          %838 = vmatmul.mubr.f32.gmra.mxu0 %v609
          %v839 = vpop.f32.mrf.mxu0
          %v840 = vadd.f32 %v682, %v839
          %v841 = vpop.f32.mrf.mxu0
          %v842 = vadd.f32 %v686, %v841
          %843 = vmatprep.mubr.f32.mxu0 %v612
          %844 = vmatmul.mubr.f32.gmra.mxu0 %v611
          %v845 = vpop.f32.mrf.mxu0
          %v846 = vadd.f32 %v682, %v845
          %v847 = vpop.f32.mrf.mxu0
          %v848 = vadd.f32 %v686, %v847
          %849 = vdwg.mxu0
          %v850 = vmul.f32 %v756, 0.125
          %v851 = vmul.f32 %v758, 0.125
          %v852 = vmul.f32 %v762, 0.125
          %v853 = vmul.f32 %v764, 0.125
          %v854 = vmul.f32 %v768, 0.125
          %v855 = vmul.f32 %v770, 0.125
          %v856 = vmul.f32 %v774, 0.125
          %v857 = vmul.f32 %v776, 0.125
          %v858 = vmul.f32 %v780, 0.125
          %v859 = vmul.f32 %v782, 0.125
          %v860 = vmul.f32 %v786, 0.125
          %v861 = vmul.f32 %v788, 0.125
          %v862 = vmul.f32 %v792, 0.125
          %v863 = vmul.f32 %v794, 0.125
          %v864 = vmul.f32 %v798, 0.125
          %v865 = vmul.f32 %v800, 0.125
          %v866 = vmul.f32 %v804, 0.125
          %v867 = vmul.f32 %v806, 0.125
          %v868 = vmul.f32 %v810, 0.125
          %v869 = vmul.f32 %v812, 0.125
          %v870 = vmul.f32 %v816, 0.125
          %v871 = vmul.f32 %v818, 0.125
          %v872 = vmul.f32 %v822, 0.125
          %v873 = vmul.f32 %v824, 0.125
          %v874 = vmul.f32 %v828, 0.125
          %v875 = vmul.f32 %v830, 0.125
          %v876 = vmul.f32 %v834, 0.125
          %v877 = vmul.f32 %v836, 0.125
          %v878 = vmul.f32 %v840, 0.125
          %v879 = vmul.f32 %v842, 0.125
          %v880 = vmul.f32 %v846, 0.125
          %v881 = vmul.f32 %v848, 0.125
          %882 = vst [vmem:[#allocation2] sm:$0xff] %v850
          %883 = vst [vmem:[#allocation2 + $0x8] sm:$0xff] %v851
          %884 = vst [vmem:[#allocation2 + $0x10] sm:$0xff] %v852
          %885 = vst [vmem:[#allocation2 + $0x18] sm:$0xff] %v853
          %886 = vst [vmem:[#allocation2 + $0x20] sm:$0xff] %v854
          %887 = vst [vmem:[#allocation2 + $0x28] sm:$0xff] %v855
          %888 = vst [vmem:[#allocation2 + $0x30] sm:$0xff] %v856
          %889 = vst [vmem:[#allocation2 + $0x38] sm:$0xff] %v857
          %890 = vst [vmem:[#allocation2 + $0x40] sm:$0xff] %v858
          %891 = vst [vmem:[#allocation2 + $0x48] sm:$0xff] %v859
          %892 = vst [vmem:[#allocation2 + $0x50] sm:$0xff] %v860
          %893 = vst [vmem:[#allocation2 + $0x58] sm:$0xff] %v861
          %894 = vst [vmem:[#allocation2 + $0x60] sm:$0xff] %v862
          %895 = vst [vmem:[#allocation2 + $0x68] sm:$0xff] %v863
          %896 = vst [vmem:[#allocation2 + $0x70] sm:$0xff] %v864
          %897 = vst [vmem:[#allocation2 + $0x78] sm:$0xff] %v865
          %898 = vst [vmem:[#allocation2 + $0x80] sm:$0xff] %v866
          %899 = vst [vmem:[#allocation2 + $0x88] sm:$0xff] %v867
          %900 = vst [vmem:[#allocation2 + $0x90] sm:$0xff] %v868
          %901 = vst [vmem:[#allocation2 + $0x98] sm:$0xff] %v869
          %902 = vst [vmem:[#allocation2 + $0xa0] sm:$0xff] %v870
          %903 = vst [vmem:[#allocation2 + $0xa8] sm:$0xff] %v871
          %904 = vst [vmem:[#allocation2 + $0xb0] sm:$0xff] %v872
          %905 = vst [vmem:[#allocation2 + $0xb8] sm:$0xff] %v873
          %906 = vst [vmem:[#allocation2 + $0xc0] sm:$0xff] %v874
          %907 = vst [vmem:[#allocation2 + $0xc8] sm:$0xff] %v875
          %908 = vst [vmem:[#allocation2 + $0xd0] sm:$0xff] %v876
          %909 = vst [vmem:[#allocation2 + $0xd8] sm:$0xff] %v877
          %910 = vst [vmem:[#allocation2 + $0xe0] sm:$0xff] %v878
          %911 = vst [vmem:[#allocation2 + $0xe8] sm:$0xff] %v879
          %912 = vst [vmem:[#allocation2 + $0xf0] sm:$0xff] %v880
          %913 = vst [vmem:[#allocation2 + $0xf8] sm:$0xff] %v881
          %vm914 = vcmask 31744
          %915 = vst.msk [vmem:[#allocation3] sm:$0xff] %vm914, -1e+30
          %916 = vst.msk [vmem:[#allocation3 + $0x8] sm:$0xff] %vm914, -1e+30
          %917 = vst.msk [vmem:[#allocation3 + $0x10] sm:$0xff] %vm914, -1e+30
          %918 = vst.msk [vmem:[#allocation3 + $0x18] sm:$0xff] %vm914, -1e+30
          %919 = vst.msk [vmem:[#allocation3 + $0x20] sm:$0xff] %vm914, -1e+30
          %920 = vst.msk [vmem:[#allocation3 + $0x28] sm:$0xff] %vm914, -1e+30
          %921 = vst.msk [vmem:[#allocation3 + $0x30] sm:$0xff] %vm914, -1e+30
          %922 = vst.msk [vmem:[#allocation3 + $0x38] sm:$0xff] %vm914, -1e+30
          %923 = vst.msk [vmem:[#allocation3 + $0x40] sm:$0xff] %vm914, -1e+30
          %924 = vst.msk [vmem:[#allocation3 + $0x48] sm:$0xff] %vm914, -1e+30
          %925 = vst.msk [vmem:[#allocation3 + $0x50] sm:$0xff] %vm914, -1e+30
          %926 = vst.msk [vmem:[#allocation3 + $0x58] sm:$0xff] %vm914, -1e+30
          %927 = vst.msk [vmem:[#allocation3 + $0x60] sm:$0xff] %vm914, -1e+30
          %928 = vst.msk [vmem:[#allocation3 + $0x68] sm:$0xff] %vm914, -1e+30
          %929 = vst.msk [vmem:[#allocation3 + $0x70] sm:$0xff] %vm914, -1e+30
          %930 = vst.msk [vmem:[#allocation3 + $0x78] sm:$0xff] %vm914, -1e+30
          %931 = vst.msk [vmem:[#allocation4] sm:$0xff] %vm914, 0.0
          %932 = vst.msk [vmem:[#allocation4 + $0x8] sm:$0xff] %vm914, 0.0
          %933 = vst.msk [vmem:[#allocation4 + $0x10] sm:$0xff] %vm914, 0.0
          %934 = vst.msk [vmem:[#allocation4 + $0x18] sm:$0xff] %vm914, 0.0
          %935 = vst.msk [vmem:[#allocation4 + $0x20] sm:$0xff] %vm914, 0.0
          %936 = vst.msk [vmem:[#allocation4 + $0x28] sm:$0xff] %vm914, 0.0
          %937 = vst.msk [vmem:[#allocation4 + $0x30] sm:$0xff] %vm914, 0.0
          %938 = vst.msk [vmem:[#allocation4 + $0x38] sm:$0xff] %vm914, 0.0
          %939 = vst.msk [vmem:[#allocation4 + $0x40] sm:$0xff] %vm914, 0.0
          %940 = vst.msk [vmem:[#allocation4 + $0x48] sm:$0xff] %vm914, 0.0
          %941 = vst.msk [vmem:[#allocation4 + $0x50] sm:$0xff] %vm914, 0.0
          %942 = vst.msk [vmem:[#allocation4 + $0x58] sm:$0xff] %vm914, 0.0
          %943 = vst.msk [vmem:[#allocation4 + $0x60] sm:$0xff] %vm914, 0.0
          %944 = vst.msk [vmem:[#allocation4 + $0x68] sm:$0xff] %vm914, 0.0
          %945 = vst.msk [vmem:[#allocation4 + $0x70] sm:$0xff] %vm914, 0.0
          %946 = vst.msk [vmem:[#allocation4 + $0x78] sm:$0xff] %vm914, 0.0
          %947 = vst [vmem:[#allocation5] sm:$0xff] 0.0
          %948 = vst [vmem:[#allocation5 + $0x8] sm:$0xff] 0.0
          %949 = vst [vmem:[#allocation5 + $0x10] sm:$0xff] 0.0
          %950 = vst [vmem:[#allocation5 + $0x18] sm:$0xff] 0.0
          %951 = vst [vmem:[#allocation5 + $0x20] sm:$0xff] 0.0
          %952 = vst [vmem:[#allocation5 + $0x28] sm:$0xff] 0.0
          %953 = vst [vmem:[#allocation5 + $0x30] sm:$0xff] 0.0
          %954 = vst [vmem:[#allocation5 + $0x38] sm:$0xff] 0.0
          %955 = vst [vmem:[#allocation5 + $0x40] sm:$0xff] 0.0
          %956 = vst [vmem:[#allocation5 + $0x48] sm:$0xff] 0.0
          %957 = vst [vmem:[#allocation5 + $0x50] sm:$0xff] 0.0
          %958 = vst [vmem:[#allocation5 + $0x58] sm:$0xff] 0.0
          %959 = vst [vmem:[#allocation5 + $0x60] sm:$0xff] 0.0
          %960 = vst [vmem:[#allocation5 + $0x68] sm:$0xff] 0.0
          %961 = vst [vmem:[#allocation5 + $0x70] sm:$0xff] 0.0
          %962 = vst [vmem:[#allocation5 + $0x78] sm:$0xff] 0.0
          %963 = vst [vmem:[#allocation5 + $0x80] sm:$0xff] 0.0
          %964 = vst [vmem:[#allocation5 + $0x88] sm:$0xff] 0.0
          %965 = vst [vmem:[#allocation5 + $0x90] sm:$0xff] 0.0
          %966 = vst [vmem:[#allocation5 + $0x98] sm:$0xff] 0.0
          %967 = vst [vmem:[#allocation5 + $0xa0] sm:$0xff] 0.0
          %968 = vst [vmem:[#allocation5 + $0xa8] sm:$0xff] 0.0
          %969 = vst [vmem:[#allocation5 + $0xb0] sm:$0xff] 0.0
          %970 = vst [vmem:[#allocation5 + $0xb8] sm:$0xff] 0.0
          %971 = vst [vmem:[#allocation5 + $0xc0] sm:$0xff] 0.0
          %972 = vst [vmem:[#allocation5 + $0xc8] sm:$0xff] 0.0
          %973 = vst [vmem:[#allocation5 + $0xd0] sm:$0xff] 0.0
          %974 = vst [vmem:[#allocation5 + $0xd8] sm:$0xff] 0.0
          %975 = vst [vmem:[#allocation5 + $0xe0] sm:$0xff] 0.0
          %976 = vst [vmem:[#allocation5 + $0xe8] sm:$0xff] 0.0
          %977 = vst [vmem:[#allocation5 + $0xf0] sm:$0xff] 0.0
          %978 = vst [vmem:[#allocation5 + $0xf8] sm:$0xff] 0.0
        $region96: #{tpu_custom_call.1} parent=55 // pred_fallthru
          _
        %v979 = vld [vmem:[%s495] sm:$0xff]
        %v980 = vld [vmem:[%s495 + $0x8] sm:$0xff]
        %v981 = vld [vmem:[%s495 + $0x10] sm:$0xff]
        %v982 = vld [vmem:[%s495 + $0x18] sm:$0xff]
        %v983 = vld [vmem:[%s495 + $0x20] sm:$0xff]
        %v984 = vld [vmem:[%s495 + $0x28] sm:$0xff]
        %v985 = vld [vmem:[%s495 + $0x30] sm:$0xff]
        %v986 = vld [vmem:[%s495 + $0x38] sm:$0xff]
        %v987 = vld [vmem:[%s495 + $0x40] sm:$0xff]
        %v988 = vld [vmem:[%s495 + $0x48] sm:$0xff]
        %v989 = vld [vmem:[%s495 + $0x50] sm:$0xff]
        %v990 = vld [vmem:[%s495 + $0x58] sm:$0xff]
        %v991 = vld [vmem:[%s495 + $0x60] sm:$0xff]
        %v992 = vld [vmem:[%s495 + $0x68] sm:$0xff]
        %v993 = vld [vmem:[%s495 + $0x70] sm:$0xff]
        %v994 = vld [vmem:[%s495 + $0x78] sm:$0xff]
        %v995 = vld [vmem:[%s495 + $0x80] sm:$0xff]
        %v996 = vld [vmem:[%s495 + $0x88] sm:$0xff]
        %v997 = vld [vmem:[%s495 + $0x90] sm:$0xff]
        %v998 = vld [vmem:[%s495 + $0x98] sm:$0xff]
        %v999 = vld [vmem:[%s495 + $0xa0] sm:$0xff]
        %v1000 = vld [vmem:[%s495 + $0xa8] sm:$0xff]
        %v1001 = vld [vmem:[%s495 + $0xb0] sm:$0xff]
        %v1002 = vld [vmem:[%s495 + $0xb8] sm:$0xff]
        %v1003 = vld [vmem:[%s495 + $0xc0] sm:$0xff]
        %v1004 = vld [vmem:[%s495 + $0xc8] sm:$0xff]
        %v1005 = vld [vmem:[%s495 + $0xd0] sm:$0xff]
        %v1006 = vld [vmem:[%s495 + $0xd8] sm:$0xff]
        %v1007 = vld [vmem:[%s495 + $0xe0] sm:$0xff]
        %v1008 = vld [vmem:[%s495 + $0xe8] sm:$0xff]
        %v1009 = vld [vmem:[%s495 + $0xf0] sm:$0xff]
        %v1010 = vld [vmem:[%s495 + $0xf8] sm:$0xff]
        %v1011 = vld [vmem:[#allocation14] sm:$0xff]
        %v1012 = vld [vmem:[#allocation14 + $0x8] sm:$0xff]
        %v1013 = vld [vmem:[#allocation14 + $0x10] sm:$0xff]
        %v1014 = vld [vmem:[#allocation14 + $0x18] sm:$0xff]
        %v1015 = vld [vmem:[#allocation14 + $0x20] sm:$0xff]
        %v1016 = vld [vmem:[#allocation14 + $0x28] sm:$0xff]
        %v1017 = vld [vmem:[#allocation14 + $0x30] sm:$0xff]
        %v1018 = vld [vmem:[#allocation14 + $0x38] sm:$0xff]
        %v1019 = vld [vmem:[#allocation14 + $0x40] sm:$0xff]
        %v1020 = vld [vmem:[#allocation14 + $0x48] sm:$0xff]
        %v1021 = vld [vmem:[#allocation14 + $0x50] sm:$0xff]
        %v1022 = vld [vmem:[#allocation14 + $0x58] sm:$0xff]
        %v1023 = vld [vmem:[#allocation14 + $0x60] sm:$0xff]
        %v1024 = vld [vmem:[#allocation14 + $0x68] sm:$0xff]
        %v1025 = vld [vmem:[#allocation14 + $0x70] sm:$0xff]
        %v1026 = vld [vmem:[#allocation14 + $0x78] sm:$0xff]
        %v1027 = vld [vmem:[#allocation14 + $0x80] sm:$0xff]
        %v1028 = vld [vmem:[#allocation14 + $0x88] sm:$0xff]
        %v1029 = vld [vmem:[#allocation14 + $0x90] sm:$0xff]
        %v1030 = vld [vmem:[#allocation14 + $0x98] sm:$0xff]
        %v1031 = vld [vmem:[#allocation14 + $0xa0] sm:$0xff]
        %v1032 = vld [vmem:[#allocation14 + $0xa8] sm:$0xff]
        %v1033 = vld [vmem:[#allocation14 + $0xb0] sm:$0xff]
        %v1034 = vld [vmem:[#allocation14 + $0xb8] sm:$0xff]
        %v1035 = vld [vmem:[#allocation14 + $0xc0] sm:$0xff]
        %v1036 = vld [vmem:[#allocation14 + $0xc8] sm:$0xff]
        %v1037 = vld [vmem:[#allocation14 + $0xd0] sm:$0xff]
        %v1038 = vld [vmem:[#allocation14 + $0xd8] sm:$0xff]
        %v1039 = vld [vmem:[#allocation14 + $0xe0] sm:$0xff]
        %v1040 = vld [vmem:[#allocation14 + $0xe8] sm:$0xff]
        %v1041 = vld [vmem:[#allocation14 + $0xf0] sm:$0xff]
        %v1042 = vld [vmem:[#allocation14 + $0xf8] sm:$0xff]
        %v1043 = vld [vmem:[#allocation14 + $0x100] sm:$0xff]
        %v1044 = vld [vmem:[#allocation14 + $0x108] sm:$0xff]
        %v1045 = vld [vmem:[#allocation14 + $0x110] sm:$0xff]
        %v1046 = vld [vmem:[#allocation14 + $0x118] sm:$0xff]
        %v1047 = vld [vmem:[#allocation14 + $0x120] sm:$0xff]
        %v1048 = vld [vmem:[#allocation14 + $0x128] sm:$0xff]
        %v1049 = vld [vmem:[#allocation14 + $0x130] sm:$0xff]
        %v1050 = vld [vmem:[#allocation14 + $0x138] sm:$0xff]
        %v1051 = vld [vmem:[#allocation14 + $0x140] sm:$0xff]
        %v1052 = vld [vmem:[#allocation14 + $0x148] sm:$0xff]
        %v1053 = vld [vmem:[#allocation14 + $0x150] sm:$0xff]
        %v1054 = vld [vmem:[#allocation14 + $0x158] sm:$0xff]
        %v1055 = vld [vmem:[#allocation14 + $0x160] sm:$0xff]
        %v1056 = vld [vmem:[#allocation14 + $0x168] sm:$0xff]
        %v1057 = vld [vmem:[#allocation14 + $0x170] sm:$0xff]
        %v1058 = vld [vmem:[#allocation14 + $0x178] sm:$0xff]
        %v1059 = vld [vmem:[#allocation14 + $0x180] sm:$0xff]
        %v1060 = vld [vmem:[#allocation14 + $0x188] sm:$0xff]
        %v1061 = vld [vmem:[#allocation14 + $0x190] sm:$0xff]
        %v1062 = vld [vmem:[#allocation14 + $0x198] sm:$0xff]
        %v1063 = vld [vmem:[#allocation14 + $0x1a0] sm:$0xff]
        %v1064 = vld [vmem:[#allocation14 + $0x1a8] sm:$0xff]
        %v1065 = vld [vmem:[#allocation14 + $0x1b0] sm:$0xff]
        %v1066 = vld [vmem:[#allocation14 + $0x1b8] sm:$0xff]
        %v1067 = vld [vmem:[#allocation14 + $0x1c0] sm:$0xff]
        %v1068 = vld [vmem:[#allocation14 + $0x1c8] sm:$0xff]
        %v1069 = vld [vmem:[#allocation14 + $0x1d0] sm:$0xff]
        %v1070 = vld [vmem:[#allocation14 + $0x1d8] sm:$0xff]
        %v1071 = vld [vmem:[#allocation14 + $0x1e0] sm:$0xff]
        %v1072 = vld [vmem:[#allocation14 + $0x1e8] sm:$0xff]
        %v1073 = vld [vmem:[#allocation14 + $0x1f0] sm:$0xff]
        %v1074 = vld [vmem:[#allocation14 + $0x1f8] sm:$0xff]
        %v1075 = vld [vmem:[#allocation14 + $0x200] sm:$0xff]
        %v1076 = vld [vmem:[#allocation14 + $0x208] sm:$0xff]
        %v1077 = vld [vmem:[#allocation14 + $0x210] sm:$0xff]
        %v1078 = vld [vmem:[#allocation14 + $0x218] sm:$0xff]
        %v1079 = vld [vmem:[#allocation14 + $0x220] sm:$0xff]
        %v1080 = vld [vmem:[#allocation14 + $0x228] sm:$0xff]
        %v1081 = vld [vmem:[#allocation14 + $0x230] sm:$0xff]
        %v1082 = vld [vmem:[#allocation14 + $0x238] sm:$0xff]
        %v1083 = vld [vmem:[#allocation14 + $0x240] sm:$0xff]
        %v1084 = vld [vmem:[#allocation14 + $0x248] sm:$0xff]
        %v1085 = vld [vmem:[#allocation14 + $0x250] sm:$0xff]
        %v1086 = vld [vmem:[#allocation14 + $0x258] sm:$0xff]
        %v1087 = vld [vmem:[#allocation14 + $0x260] sm:$0xff]
        %v1088 = vld [vmem:[#allocation14 + $0x268] sm:$0xff]
        %v1089 = vld [vmem:[#allocation14 + $0x270] sm:$0xff]
        %v1090 = vld [vmem:[#allocation14 + $0x278] sm:$0xff]
        %v1091 = vld [vmem:[#allocation14 + $0x280] sm:$0xff]
        %v1092 = vld [vmem:[#allocation14 + $0x288] sm:$0xff]
        %v1093 = vld [vmem:[#allocation14 + $0x290] sm:$0xff]
        %v1094 = vld [vmem:[#allocation14 + $0x298] sm:$0xff]
        %v1095 = vld [vmem:[#allocation14 + $0x2a0] sm:$0xff]
        %v1096 = vld [vmem:[#allocation14 + $0x2a8] sm:$0xff]
        %v1097 = vld [vmem:[#allocation14 + $0x2b0] sm:$0xff]
        %v1098 = vld [vmem:[#allocation14 + $0x2b8] sm:$0xff]
        %v1099 = vld [vmem:[#allocation14 + $0x2c0] sm:$0xff]
        %v1100 = vld [vmem:[#allocation14 + $0x2c8] sm:$0xff]
        %v1101 = vld [vmem:[#allocation14 + $0x2d0] sm:$0xff]
        %v1102 = vld [vmem:[#allocation14 + $0x2d8] sm:$0xff]
        %v1103 = vld [vmem:[#allocation14 + $0x2e0] sm:$0xff]
        %v1104 = vld [vmem:[#allocation14 + $0x2e8] sm:$0xff]
        %v1105 = vld [vmem:[#allocation14 + $0x2f0] sm:$0xff]
        %v1106 = vld [vmem:[#allocation14 + $0x2f8] sm:$0xff]
        %v1107 = vld [vmem:[#allocation14 + $0x300] sm:$0xff]
        %v1108 = vld [vmem:[#allocation14 + $0x308] sm:$0xff]
        %v1109 = vld [vmem:[#allocation14 + $0x310] sm:$0xff]
        %v1110 = vld [vmem:[#allocation14 + $0x318] sm:$0xff]
        %v1111 = vld [vmem:[#allocation14 + $0x320] sm:$0xff]
        %v1112 = vld [vmem:[#allocation14 + $0x328] sm:$0xff]
        %v1113 = vld [vmem:[#allocation14 + $0x330] sm:$0xff]
        %v1114 = vld [vmem:[#allocation14 + $0x338] sm:$0xff]
        %v1115 = vld [vmem:[#allocation14 + $0x340] sm:$0xff]
        %v1116 = vld [vmem:[#allocation14 + $0x348] sm:$0xff]
        %v1117 = vld [vmem:[#allocation14 + $0x350] sm:$0xff]
        %v1118 = vld [vmem:[#allocation14 + $0x358] sm:$0xff]
        %v1119 = vld [vmem:[#allocation14 + $0x360] sm:$0xff]
        %v1120 = vld [vmem:[#allocation14 + $0x368] sm:$0xff]
        %v1121 = vld [vmem:[#allocation14 + $0x370] sm:$0xff]
        %v1122 = vld [vmem:[#allocation14 + $0x378] sm:$0xff]
        %v1123 = vld [vmem:[#allocation14 + $0x380] sm:$0xff]
        %v1124 = vld [vmem:[#allocation14 + $0x388] sm:$0xff]
        %v1125 = vld [vmem:[#allocation14 + $0x390] sm:$0xff]
        %v1126 = vld [vmem:[#allocation14 + $0x398] sm:$0xff]
        %v1127 = vld [vmem:[#allocation14 + $0x3a0] sm:$0xff]
        %v1128 = vld [vmem:[#allocation14 + $0x3a8] sm:$0xff]
        %v1129 = vld [vmem:[#allocation14 + $0x3b0] sm:$0xff]
        %v1130 = vld [vmem:[#allocation14 + $0x3b8] sm:$0xff]
        %v1131 = vld [vmem:[#allocation14 + $0x3c0] sm:$0xff]
        %v1132 = vld [vmem:[#allocation14 + $0x3c8] sm:$0xff]
        %v1133 = vld [vmem:[#allocation14 + $0x3d0] sm:$0xff]
        %v1134 = vld [vmem:[#allocation14 + $0x3d8] sm:$0xff]
        %v1135 = vld [vmem:[#allocation14 + $0x3e0] sm:$0xff]
        %v1136 = vld [vmem:[#allocation14 + $0x3e8] sm:$0xff]
        %v1137 = vld [vmem:[#allocation14 + $0x3f0] sm:$0xff]
        %v1138 = vld [vmem:[#allocation14 + $0x3f8] sm:$0xff]
        %v1139 = vld [vmem:[#allocation15] sm:$0xf]
        %v1141 = vlaneseq
        %v1142 = vshrl.u32 %v1141, 7
        %v1143 = vsub.s32 0, %v1142
        %v1144 = vrot.slane %v1139, %v1143
        %v1145 = vlaneseq
        %v1146 = vshrl.u32 %v1145, 7
        %v1147 = vsub.s32 1, %v1146
        %v1148 = vrot.slane %v1139, %v1147
        %v1149 = vlaneseq
        %v1150 = vshrl.u32 %v1149, 7
        %v1151 = vsub.s32 2, %v1150
        %v1152 = vrot.slane %v1139, %v1151
        %v1153 = vlaneseq
        %v1154 = vshrl.u32 %v1153, 7
        %v1155 = vsub.s32 3, %v1154
        %v1156 = vrot.slane %v1139, %v1155
        %1161 = vmatprep.subr.mxu0 %v1072
        %1162 = vmatpush1.msra.mxu0 %v1071
        %1163 = vmatprep.subr.mxu0 %v1068
        %1164 = vmatpush1.msra.mxu0 %v1067
        %1165 = vmatprep.subr.mxu0 %v1064
        %1166 = vmatpush1.msra.mxu0 %v1063
        %1167 = vmatprep.subr.mxu0 %v1060
        %1168 = vmatpush1.msra.mxu0 %v1059
        %1169 = vmatprep.subr.mxu0 %v1056
        %1170 = vmatpush1.msra.mxu0 %v1055
        %1171 = vmatprep.subr.mxu0 %v1052
        %1172 = vmatpush1.msra.mxu0 %v1051
        %1173 = vmatprep.subr.mxu0 %v1048
        %1174 = vmatpush1.msra.mxu0 %v1047
        %1175 = vmatprep.subr.mxu0 %v1044
        %1176 = vmatpush1.msra.mxu0 %v1043
        %1177 = vmatprep.subr.mxu0 %v1040
        %1178 = vmatpush1.msra.mxu0 %v1039
        %1179 = vmatprep.subr.mxu0 %v1036
        %1180 = vmatpush1.msra.mxu0 %v1035
        %1181 = vmatprep.subr.mxu0 %v1032
        %1182 = vmatpush1.msra.mxu0 %v1031
        %1183 = vmatprep.subr.mxu0 %v1028
        %1184 = vmatpush1.msra.mxu0 %v1027
        %1185 = vmatprep.subr.mxu0 %v1024
        %1186 = vmatpush1.msra.mxu0 %v1023
        %1187 = vmatprep.subr.mxu0 %v1020
        %1188 = vmatpush1.msra.mxu0 %v1019
        %1189 = vmatprep.subr.mxu0 %v1016
        %1190 = vmatpush1.msra.mxu0 %v1015
        %1191 = vmatprep.subr.mxu0 %v1012
        %1192 = vmatpush1.msra.mxu0 %v1011
        %1193 = vmatprep.subr.mxu0 %v1136
        %1194 = vmatpush2.msra.mxu0 %v1135
        %1195 = vmatprep.subr.mxu0 %v1132
        %1196 = vmatpush2.msra.mxu0 %v1131
        %1197 = vmatprep.subr.mxu0 %v1128
        %1198 = vmatpush2.msra.mxu0 %v1127
        %1199 = vmatprep.subr.mxu0 %v1124
        %1200 = vmatpush2.msra.mxu0 %v1123
        %1201 = vmatprep.subr.mxu0 %v1120
        %1202 = vmatpush2.msra.mxu0 %v1119
        %1203 = vmatprep.subr.mxu0 %v1116
        %1204 = vmatpush2.msra.mxu0 %v1115
        %1205 = vmatprep.subr.mxu0 %v1112
        %1206 = vmatpush2.msra.mxu0 %v1111
        %1207 = vmatprep.subr.mxu0 %v1108
        %1208 = vmatpush2.msra.mxu0 %v1107
        %1209 = vmatprep.subr.mxu0 %v1104
        %1210 = vmatpush2.msra.mxu0 %v1103
        %1211 = vmatprep.subr.mxu0 %v1100
        %1212 = vmatpush2.msra.mxu0 %v1099
        %1213 = vmatprep.subr.mxu0 %v1096
        %1214 = vmatpush2.msra.mxu0 %v1095
        %1215 = vmatprep.subr.mxu0 %v1092
        %1216 = vmatpush2.msra.mxu0 %v1091
        %1217 = vmatprep.subr.mxu0 %v1088
        %1218 = vmatpush2.msra.mxu0 %v1087
        %1219 = vmatprep.subr.mxu0 %v1084
        %1220 = vmatpush2.msra.mxu0 %v1083
        %1221 = vmatprep.subr.mxu0 %v1080
        %1222 = vmatpush2.msra.mxu0 %v1079
        %1223 = vmatprep.subr.mxu0 %v1076
        %1224 = vmatpush2.msra.mxu0 %v1075
        %1225 = vmatprep.mubr.f32.mxu0 %v980
        %1226 = vmatmul.mubr.f32.gmra.mxu0 %v979
        %v1227 = vpop.f32.mrf.mxu0
        %v1228 = vadd.f32 %v1144, %v1227
        %v1229 = vpop.f32.mrf.mxu0
        %v1230 = vadd.f32 %v1148, %v1229
        %1231 = vmatprep.mubr.f32.mxu0 %v982
        %1232 = vmatmul.mubr.f32.gmra.mxu0 %v981
        %v1233 = vpop.f32.mrf.mxu0
        %v1234 = vadd.f32 %v1144, %v1233
        %v1235 = vpop.f32.mrf.mxu0
        %v1236 = vadd.f32 %v1148, %v1235
        %1237 = vmatprep.mubr.f32.mxu0 %v984
        %1238 = vmatmul.mubr.f32.gmra.mxu0 %v983
        %v1239 = vpop.f32.mrf.mxu0
        %v1240 = vadd.f32 %v1144, %v1239
        %v1241 = vpop.f32.mrf.mxu0
        %v1242 = vadd.f32 %v1148, %v1241
        %1243 = vmatprep.mubr.f32.mxu0 %v986
        %1244 = vmatmul.mubr.f32.gmra.mxu0 %v985
        %v1245 = vpop.f32.mrf.mxu0
        %v1246 = vadd.f32 %v1144, %v1245
        %v1247 = vpop.f32.mrf.mxu0
        %v1248 = vadd.f32 %v1148, %v1247
        %1249 = vmatprep.mubr.f32.mxu0 %v988
        %1250 = vmatmul.mubr.f32.gmra.mxu0 %v987
        %v1251 = vpop.f32.mrf.mxu0
        %v1252 = vadd.f32 %v1144, %v1251
        %v1253 = vpop.f32.mrf.mxu0
        %v1254 = vadd.f32 %v1148, %v1253
        %1255 = vmatprep.mubr.f32.mxu0 %v990
        %1256 = vmatmul.mubr.f32.gmra.mxu0 %v989
        %v1257 = vpop.f32.mrf.mxu0
        %v1258 = vadd.f32 %v1144, %v1257
        %v1259 = vpop.f32.mrf.mxu0
        %v1260 = vadd.f32 %v1148, %v1259
        %1261 = vmatprep.mubr.f32.mxu0 %v992
        %1262 = vmatmul.mubr.f32.gmra.mxu0 %v991
        %v1263 = vpop.f32.mrf.mxu0
        %v1264 = vadd.f32 %v1144, %v1263
        %v1265 = vpop.f32.mrf.mxu0
        %v1266 = vadd.f32 %v1148, %v1265
        %1267 = vmatprep.mubr.f32.mxu0 %v994
        %1268 = vmatmul.mubr.f32.gmra.mxu0 %v993
        %v1269 = vpop.f32.mrf.mxu0
        %v1270 = vadd.f32 %v1144, %v1269
        %v1271 = vpop.f32.mrf.mxu0
        %v1272 = vadd.f32 %v1148, %v1271
        %1273 = vmatprep.mubr.f32.mxu0 %v996
        %1274 = vmatmul.mubr.f32.gmra.mxu0 %v995
        %v1275 = vpop.f32.mrf.mxu0
        %v1276 = vadd.f32 %v1144, %v1275
        %v1277 = vpop.f32.mrf.mxu0
        %v1278 = vadd.f32 %v1148, %v1277
        %1279 = vmatprep.mubr.f32.mxu0 %v998
        %1280 = vmatmul.mubr.f32.gmra.mxu0 %v997
        %v1281 = vpop.f32.mrf.mxu0
        %v1282 = vadd.f32 %v1144, %v1281
        %v1283 = vpop.f32.mrf.mxu0
        %v1284 = vadd.f32 %v1148, %v1283
        %1285 = vmatprep.mubr.f32.mxu0 %v1000
        %1286 = vmatmul.mubr.f32.gmra.mxu0 %v999
        %v1287 = vpop.f32.mrf.mxu0
        %v1288 = vadd.f32 %v1144, %v1287
        %v1289 = vpop.f32.mrf.mxu0
        %v1290 = vadd.f32 %v1148, %v1289
        %1291 = vmatprep.mubr.f32.mxu0 %v1002
        %1292 = vmatmul.mubr.f32.gmra.mxu0 %v1001
        %v1293 = vpop.f32.mrf.mxu0
        %v1294 = vadd.f32 %v1144, %v1293
        %v1295 = vpop.f32.mrf.mxu0
        %v1296 = vadd.f32 %v1148, %v1295
        %1297 = vmatprep.mubr.f32.mxu0 %v1004
        %1298 = vmatmul.mubr.f32.gmra.mxu0 %v1003
        %v1299 = vpop.f32.mrf.mxu0
        %v1300 = vadd.f32 %v1144, %v1299
        %v1301 = vpop.f32.mrf.mxu0
        %v1302 = vadd.f32 %v1148, %v1301
        %1303 = vmatprep.mubr.f32.mxu0 %v1006
        %1304 = vmatmul.mubr.f32.gmra.mxu0 %v1005
        %v1305 = vpop.f32.mrf.mxu0
        %v1306 = vadd.f32 %v1144, %v1305
        %v1307 = vpop.f32.mrf.mxu0
        %v1308 = vadd.f32 %v1148, %v1307
        %1309 = vmatprep.mubr.f32.mxu0 %v1008
        %1310 = vmatmul.mubr.f32.gmra.mxu0 %v1007
        %v1311 = vpop.f32.mrf.mxu0
        %v1312 = vadd.f32 %v1144, %v1311
        %v1313 = vpop.f32.mrf.mxu0
        %v1314 = vadd.f32 %v1148, %v1313
        %1315 = vmatprep.mubr.f32.mxu0 %v1010
        %1316 = vmatmul.mubr.f32.gmra.mxu0 %v1009
        %v1317 = vpop.f32.mrf.mxu0
        %v1318 = vadd.f32 %v1144, %v1317
        %v1319 = vpop.f32.mrf.mxu0
        %v1320 = vadd.f32 %v1148, %v1319
        %1321 = vdwg.mxu0
        %1322 = vmatprep.subr.mxu0 %v1074
        %1323 = vmatpush1.msra.mxu0 %v1073
        %1324 = vmatprep.subr.mxu0 %v1070
        %1325 = vmatpush1.msra.mxu0 %v1069
        %1326 = vmatprep.subr.mxu0 %v1066
        %1327 = vmatpush1.msra.mxu0 %v1065
        %1328 = vmatprep.subr.mxu0 %v1062
        %1329 = vmatpush1.msra.mxu0 %v1061
        %1330 = vmatprep.subr.mxu0 %v1058
        %1331 = vmatpush1.msra.mxu0 %v1057
        %1332 = vmatprep.subr.mxu0 %v1054
        %1333 = vmatpush1.msra.mxu0 %v1053
        %1334 = vmatprep.subr.mxu0 %v1050
        %1335 = vmatpush1.msra.mxu0 %v1049
        %1336 = vmatprep.subr.mxu0 %v1046
        %1337 = vmatpush1.msra.mxu0 %v1045
        %1338 = vmatprep.subr.mxu0 %v1042
        %1339 = vmatpush1.msra.mxu0 %v1041
        %1340 = vmatprep.subr.mxu0 %v1038
        %1341 = vmatpush1.msra.mxu0 %v1037
        %1342 = vmatprep.subr.mxu0 %v1034
        %1343 = vmatpush1.msra.mxu0 %v1033
        %1344 = vmatprep.subr.mxu0 %v1030
        %1345 = vmatpush1.msra.mxu0 %v1029
        %1346 = vmatprep.subr.mxu0 %v1026
        %1347 = vmatpush1.msra.mxu0 %v1025
        %1348 = vmatprep.subr.mxu0 %v1022
        %1349 = vmatpush1.msra.mxu0 %v1021
        %1350 = vmatprep.subr.mxu0 %v1018
        %1351 = vmatpush1.msra.mxu0 %v1017
        %1352 = vmatprep.subr.mxu0 %v1014
        %1353 = vmatpush1.msra.mxu0 %v1013
        %1354 = vmatprep.subr.mxu0 %v1138
        %1355 = vmatpush2.msra.mxu0 %v1137
        %1356 = vmatprep.subr.mxu0 %v1134
        %1357 = vmatpush2.msra.mxu0 %v1133
        %1358 = vmatprep.subr.mxu0 %v1130
        %1359 = vmatpush2.msra.mxu0 %v1129
        %1360 = vmatprep.subr.mxu0 %v1126
        %1361 = vmatpush2.msra.mxu0 %v1125
        %1362 = vmatprep.subr.mxu0 %v1122
        %1363 = vmatpush2.msra.mxu0 %v1121
        %1364 = vmatprep.subr.mxu0 %v1118
        %1365 = vmatpush2.msra.mxu0 %v1117
        %1366 = vmatprep.subr.mxu0 %v1114
        %1367 = vmatpush2.msra.mxu0 %v1113
        %1368 = vmatprep.subr.mxu0 %v1110
        %1369 = vmatpush2.msra.mxu0 %v1109
        %1370 = vmatprep.subr.mxu0 %v1106
        %1371 = vmatpush2.msra.mxu0 %v1105
        %1372 = vmatprep.subr.mxu0 %v1102
        %1373 = vmatpush2.msra.mxu0 %v1101
        %1374 = vmatprep.subr.mxu0 %v1098
        %1375 = vmatpush2.msra.mxu0 %v1097
        %1376 = vmatprep.subr.mxu0 %v1094
        %1377 = vmatpush2.msra.mxu0 %v1093
        %1378 = vmatprep.subr.mxu0 %v1090
        %1379 = vmatpush2.msra.mxu0 %v1089
        %1380 = vmatprep.subr.mxu0 %v1086
        %1381 = vmatpush2.msra.mxu0 %v1085
        %1382 = vmatprep.subr.mxu0 %v1082
        %1383 = vmatpush2.msra.mxu0 %v1081
        %1384 = vmatprep.subr.mxu0 %v1078
        %1385 = vmatpush2.msra.mxu0 %v1077
        %1386 = vmatprep.mubr.f32.mxu0 %v980
        %1387 = vmatmul.mubr.f32.gmra.mxu0 %v979
        %v1388 = vpop.f32.mrf.mxu0
        %v1389 = vadd.f32 %v1152, %v1388
        %v1390 = vpop.f32.mrf.mxu0
        %v1391 = vadd.f32 %v1156, %v1390
        %1392 = vmatprep.mubr.f32.mxu0 %v982
        %1393 = vmatmul.mubr.f32.gmra.mxu0 %v981
        %v1394 = vpop.f32.mrf.mxu0
        %v1395 = vadd.f32 %v1152, %v1394
        %v1396 = vpop.f32.mrf.mxu0
        %v1397 = vadd.f32 %v1156, %v1396
        %1398 = vmatprep.mubr.f32.mxu0 %v984
        %1399 = vmatmul.mubr.f32.gmra.mxu0 %v983
        %v1400 = vpop.f32.mrf.mxu0
        %v1401 = vadd.f32 %v1152, %v1400
        %v1402 = vpop.f32.mrf.mxu0
        %v1403 = vadd.f32 %v1156, %v1402
        %1404 = vmatprep.mubr.f32.mxu0 %v986
        %1405 = vmatmul.mubr.f32.gmra.mxu0 %v985
        %v1406 = vpop.f32.mrf.mxu0
        %v1407 = vadd.f32 %v1152, %v1406
        %v1408 = vpop.f32.mrf.mxu0
        %v1409 = vadd.f32 %v1156, %v1408
        %1410 = vmatprep.mubr.f32.mxu0 %v988
        %1411 = vmatmul.mubr.f32.gmra.mxu0 %v987
        %v1412 = vpop.f32.mrf.mxu0
        %v1413 = vadd.f32 %v1152, %v1412
        %v1414 = vpop.f32.mrf.mxu0
        %v1415 = vadd.f32 %v1156, %v1414
        %1416 = vmatprep.mubr.f32.mxu0 %v990
        %1417 = vmatmul.mubr.f32.gmra.mxu0 %v989
        %v1418 = vpop.f32.mrf.mxu0
        %v1419 = vadd.f32 %v1152, %v1418
        %v1420 = vpop.f32.mrf.mxu0
        %v1421 = vadd.f32 %v1156, %v1420
        %1422 = vmatprep.mubr.f32.mxu0 %v992
        %1423 = vmatmul.mubr.f32.gmra.mxu0 %v991
        %v1424 = vpop.f32.mrf.mxu0
        %v1425 = vadd.f32 %v1152, %v1424
        %v1426 = vpop.f32.mrf.mxu0
        %v1427 = vadd.f32 %v1156, %v1426
        %1428 = vmatprep.mubr.f32.mxu0 %v994
        %1429 = vmatmul.mubr.f32.gmra.mxu0 %v993
        %v1430 = vpop.f32.mrf.mxu0
        %v1431 = vadd.f32 %v1152, %v1430
        %v1432 = vpop.f32.mrf.mxu0
        %v1433 = vadd.f32 %v1156, %v1432
        %1434 = vmatprep.mubr.f32.mxu0 %v996
        %1435 = vmatmul.mubr.f32.gmra.mxu0 %v995
        %v1436 = vpop.f32.mrf.mxu0
        %v1437 = vadd.f32 %v1152, %v1436
        %v1438 = vpop.f32.mrf.mxu0
        %v1439 = vadd.f32 %v1156, %v1438
        %1440 = vmatprep.mubr.f32.mxu0 %v998
        %1441 = vmatmul.mubr.f32.gmra.mxu0 %v997
        %v1442 = vpop.f32.mrf.mxu0
        %v1443 = vadd.f32 %v1152, %v1442
        %v1444 = vpop.f32.mrf.mxu0
        %v1445 = vadd.f32 %v1156, %v1444
        %1446 = vmatprep.mubr.f32.mxu0 %v1000
        %1447 = vmatmul.mubr.f32.gmra.mxu0 %v999
        %v1448 = vpop.f32.mrf.mxu0
        %v1449 = vadd.f32 %v1152, %v1448
        %v1450 = vpop.f32.mrf.mxu0
        %v1451 = vadd.f32 %v1156, %v1450
        %1452 = vmatprep.mubr.f32.mxu0 %v1002
        %1453 = vmatmul.mubr.f32.gmra.mxu0 %v1001
        %v1454 = vpop.f32.mrf.mxu0
        %v1455 = vadd.f32 %v1152, %v1454
        %v1456 = vpop.f32.mrf.mxu0
        %v1457 = vadd.f32 %v1156, %v1456
        %1458 = vmatprep.mubr.f32.mxu0 %v1004
        %1459 = vmatmul.mubr.f32.gmra.mxu0 %v1003
        %v1460 = vpop.f32.mrf.mxu0
        %v1461 = vadd.f32 %v1152, %v1460
        %v1462 = vpop.f32.mrf.mxu0
        %v1463 = vadd.f32 %v1156, %v1462
        %1464 = vmatprep.mubr.f32.mxu0 %v1006
        %1465 = vmatmul.mubr.f32.gmra.mxu0 %v1005
        %v1466 = vpop.f32.mrf.mxu0
        %v1467 = vadd.f32 %v1152, %v1466
        %v1468 = vpop.f32.mrf.mxu0
        %v1469 = vadd.f32 %v1156, %v1468
        %1470 = vmatprep.mubr.f32.mxu0 %v1008
        %1471 = vmatmul.mubr.f32.gmra.mxu0 %v1007
        %v1472 = vpop.f32.mrf.mxu0
        %v1473 = vadd.f32 %v1152, %v1472
        %v1474 = vpop.f32.mrf.mxu0
        %v1475 = vadd.f32 %v1156, %v1474
        %1476 = vmatprep.mubr.f32.mxu0 %v1010
        %1477 = vmatmul.mubr.f32.gmra.mxu0 %v1009
        %v1478 = vpop.f32.mrf.mxu0
        %v1479 = vadd.f32 %v1152, %v1478
        %v1480 = vpop.f32.mrf.mxu0
        %v1481 = vadd.f32 %v1156, %v1480
        %1482 = vdwg.mxu0
        %v1483 = vld [vmem:[#allocation2] sm:$0xff]
        %v1484 = vld [vmem:[#allocation2 + $0x10] sm:$0xff]
        %v1485 = vld [vmem:[#allocation2 + $0x20] sm:$0xff]
        %v1486 = vld [vmem:[#allocation2 + $0x30] sm:$0xff]
        %v1487 = vld [vmem:[#allocation2 + $0x40] sm:$0xff]
        %v1488 = vld [vmem:[#allocation2 + $0x50] sm:$0xff]
        %v1489 = vld [vmem:[#allocation2 + $0x60] sm:$0xff]
        %v1490 = vld [vmem:[#allocation2 + $0x70] sm:$0xff]
        %v1491 = vld [vmem:[#allocation2 + $0x80] sm:$0xff]
        %v1492 = vld [vmem:[#allocation2 + $0x90] sm:$0xff]
        %v1493 = vld [vmem:[#allocation2 + $0xa0] sm:$0xff]
        %v1494 = vld [vmem:[#allocation2 + $0xb0] sm:$0xff]
        %v1495 = vld [vmem:[#allocation2 + $0xc0] sm:$0xff]
        %v1496 = vld [vmem:[#allocation2 + $0xd0] sm:$0xff]
        %v1497 = vld [vmem:[#allocation2 + $0xe0] sm:$0xff]
        %v1498 = vld [vmem:[#allocation2 + $0xf0] sm:$0xff]
        %v1499 = vld [vmem:[%s528] sm:$0xff]
        %v1500 = vld [vmem:[%s528 + $0x8] sm:$0xff]
        %v1501 = vld [vmem:[%s528 + $0x10] sm:$0xff]
        %v1502 = vld [vmem:[%s528 + $0x18] sm:$0xff]
        %v1503 = vld [vmem:[%s528 + $0x20] sm:$0xff]
        %v1504 = vld [vmem:[%s528 + $0x28] sm:$0xff]
        %v1505 = vld [vmem:[%s528 + $0x30] sm:$0xff]
        %v1506 = vld [vmem:[%s528 + $0x38] sm:$0xff]
        %v1507 = vld [vmem:[%s528 + $0x40] sm:$0xff]
        %v1508 = vld [vmem:[%s528 + $0x48] sm:$0xff]
        %v1509 = vld [vmem:[%s528 + $0x50] sm:$0xff]
        %v1510 = vld [vmem:[%s528 + $0x58] sm:$0xff]
        %v1511 = vld [vmem:[%s528 + $0x60] sm:$0xff]
        %v1512 = vld [vmem:[%s528 + $0x68] sm:$0xff]
        %v1513 = vld [vmem:[%s528 + $0x70] sm:$0xff]
        %v1514 = vld [vmem:[%s528 + $0x78] sm:$0xff]
        %vm1515 = vcmask 523264
        %v1517 = vsel %vm1515, %v1483, 0
        %v1520 = vsel %vm1515, %v1484, 0
        %v1523 = vsel %vm1515, %v1485, 0
        %v1526 = vsel %vm1515, %v1486, 0
        %v1529 = vsel %vm1515, %v1487, 0
        %v1532 = vsel %vm1515, %v1488, 0
        %v1535 = vsel %vm1515, %v1489, 0
        %v1538 = vsel %vm1515, %v1490, 0
        %v1541 = vsel %vm1515, %v1491, 0
        %v1544 = vsel %vm1515, %v1492, 0
        %v1547 = vsel %vm1515, %v1493, 0
        %v1550 = vsel %vm1515, %v1494, 0
        %v1553 = vsel %vm1515, %v1495, 0
        %v1556 = vsel %vm1515, %v1496, 0
        %v1559 = vsel %vm1515, %v1497, 0
        %v1562 = vsel %vm1515, %v1498, 0
        %v1565 = vsel %vm1515, %v1228, 0
        %v1568 = vsel %vm1515, %v1234, 0
        %v1571 = vsel %vm1515, %v1240, 0
        %v1574 = vsel %vm1515, %v1246, 0
        %v1577 = vsel %vm1515, %v1252, 0
        %v1580 = vsel %vm1515, %v1258, 0
        %v1583 = vsel %vm1515, %v1264, 0
        %v1586 = vsel %vm1515, %v1270, 0
        %v1589 = vsel %vm1515, %v1276, 0
        %v1592 = vsel %vm1515, %v1282, 0
        %v1595 = vsel %vm1515, %v1288, 0
        %v1598 = vsel %vm1515, %v1294, 0
        %v1601 = vsel %vm1515, %v1300, 0
        %v1604 = vsel %vm1515, %v1306, 0
        %v1607 = vsel %vm1515, %v1312, 0
        %v1610 = vsel %vm1515, %v1318, 0
        %1612 = vmatprep.subr.mxu0 0.0
        %1613 = vmatpush1.xpose.msra.mxu0 %v1610
        %1614 = vmatprep.subr.mxu0 0.0
        %1615 = vmatpush1.xpose.msra.mxu0 %v1607
        %1616 = vmatprep.subr.mxu0 0.0
        %1617 = vmatpush1.xpose.msra.mxu0 %v1604
        %1618 = vmatprep.subr.mxu0 0.0
        %1619 = vmatpush1.xpose.msra.mxu0 %v1601
        %1620 = vmatprep.subr.mxu0 0.0
        %1621 = vmatpush1.xpose.msra.mxu0 %v1598
        %1622 = vmatprep.subr.mxu0 0.0
        %1623 = vmatpush1.xpose.msra.mxu0 %v1595
        %1624 = vmatprep.subr.mxu0 0.0
        %1625 = vmatpush1.xpose.msra.mxu0 %v1592
        %1626 = vmatprep.subr.mxu0 0.0
        %1627 = vmatpush1.xpose.msra.mxu0 %v1589
        %1628 = vmatprep.subr.mxu0 0.0
        %1629 = vmatpush1.xpose.msra.mxu0 %v1586
        %1630 = vmatprep.subr.mxu0 0.0
        %1631 = vmatpush1.xpose.msra.mxu0 %v1583
        %1632 = vmatprep.subr.mxu0 0.0
        %1633 = vmatpush1.xpose.msra.mxu0 %v1580
        %1634 = vmatprep.subr.mxu0 0.0
        %1635 = vmatpush1.xpose.msra.mxu0 %v1577
        %1636 = vmatprep.subr.mxu0 0.0
        %1637 = vmatpush1.xpose.msra.mxu0 %v1574
        %1638 = vmatprep.subr.mxu0 0.0
        %1639 = vmatpush1.xpose.msra.mxu0 %v1571
        %1640 = vmatprep.subr.mxu0 0.0
        %1641 = vmatpush1.xpose.msra.mxu0 %v1568
        %1642 = vmatprep.subr.mxu0 0.0
        %1643 = vmatpush1.xpose.msra.mxu0 %v1565
        %1644 = vmatprep.subr.mxu0 0.0
        %1645 = vmatpush2.xpose.msra.mxu0 0.0
        %1646 = vmatprep.subr.mxu0 0.0
        %1647 = vmatpush2.xpose.msra.mxu0 0.0
        %1648 = vmatprep.subr.mxu0 0.0
        %1649 = vmatpush2.xpose.msra.mxu0 0.0
        %1650 = vmatprep.subr.mxu0 0.0
        %1651 = vmatpush2.xpose.msra.mxu0 0.0
        %1652 = vmatprep.subr.mxu0 0.0
        %1653 = vmatpush2.xpose.msra.mxu0 0.0
        %1654 = vmatprep.subr.mxu0 0.0
        %1655 = vmatpush2.xpose.msra.mxu0 0.0
        %1656 = vmatprep.subr.mxu0 0.0
        %1657 = vmatpush2.xpose.msra.mxu0 0.0
        %1658 = vmatprep.subr.mxu0 0.0
        %1659 = vmatpush2.xpose.msra.mxu0 0.0
        %1660 = vmatprep.subr.mxu0 0.0
        %1661 = vmatpush2.xpose.msra.mxu0 0.0
        %1662 = vmatprep.subr.mxu0 0.0
        %1663 = vmatpush2.xpose.msra.mxu0 0.0
        %1664 = vmatprep.subr.mxu0 0.0
        %1665 = vmatpush2.xpose.msra.mxu0 0.0
        %1666 = vmatprep.subr.mxu0 0.0
        %1667 = vmatpush2.xpose.msra.mxu0 0.0
        %1668 = vmatprep.subr.mxu0 0.0
        %1669 = vmatpush2.xpose.msra.mxu0 0.0
        %1670 = vmatprep.subr.mxu0 0.0
        %1671 = vmatpush2.xpose.msra.mxu0 0.0
        %1672 = vmatprep.subr.mxu0 0.0
        %1673 = vmatpush2.xpose.msra.mxu0 0.0
        %1674 = vmatprep.subr.mxu0 0.0
        %1675 = vmatpush2.xpose.msra.mxu0 0.0
        %1676 = vmatprep.mubr.f32.mxu0 0.0
        %1677 = vmatmul.mubr.f32.gmra.mxu0 %v1517
        %v1678 = vpop.f32.mrf.mxu0
        %v1679 = vadd.f32 %v1499, %v1678
        %v1680 = vpop.f32.mrf.mxu0
        %1681 = vmatprep.mubr.f32.mxu0 0.0
        %1682 = vmatmul.mubr.f32.gmra.mxu0 %v1520
        %v1683 = vpop.f32.mrf.mxu0
        %v1684 = vadd.f32 %v1500, %v1683
        %v1685 = vpop.f32.mrf.mxu0
        %1686 = vmatprep.mubr.f32.mxu0 0.0
        %1687 = vmatmul.mubr.f32.gmra.mxu0 %v1523
        %v1688 = vpop.f32.mrf.mxu0
        %v1689 = vadd.f32 %v1501, %v1688
        %v1690 = vpop.f32.mrf.mxu0
        %1691 = vmatprep.mubr.f32.mxu0 0.0
        %1692 = vmatmul.mubr.f32.gmra.mxu0 %v1526
        %v1693 = vpop.f32.mrf.mxu0
        %v1694 = vadd.f32 %v1502, %v1693
        %v1695 = vpop.f32.mrf.mxu0
        %1696 = vmatprep.mubr.f32.mxu0 0.0
        %1697 = vmatmul.mubr.f32.gmra.mxu0 %v1529
        %v1698 = vpop.f32.mrf.mxu0
        %v1699 = vadd.f32 %v1503, %v1698
        %v1700 = vpop.f32.mrf.mxu0
        %1701 = vmatprep.mubr.f32.mxu0 0.0
        %1702 = vmatmul.mubr.f32.gmra.mxu0 %v1532
        %v1703 = vpop.f32.mrf.mxu0
        %v1704 = vadd.f32 %v1504, %v1703
        %v1705 = vpop.f32.mrf.mxu0
        %1706 = vmatprep.mubr.f32.mxu0 0.0
        %1707 = vmatmul.mubr.f32.gmra.mxu0 %v1535
        %v1708 = vpop.f32.mrf.mxu0
        %v1709 = vadd.f32 %v1505, %v1708
        %v1710 = vpop.f32.mrf.mxu0
        %1711 = vmatprep.mubr.f32.mxu0 0.0
        %1712 = vmatmul.mubr.f32.gmra.mxu0 %v1538
        %v1713 = vpop.f32.mrf.mxu0
        %v1714 = vadd.f32 %v1506, %v1713
        %v1715 = vpop.f32.mrf.mxu0
        %1716 = vmatprep.mubr.f32.mxu0 0.0
        %1717 = vmatmul.mubr.f32.gmra.mxu0 %v1541
        %v1718 = vpop.f32.mrf.mxu0
        %v1719 = vadd.f32 %v1507, %v1718
        %v1720 = vpop.f32.mrf.mxu0
        %1721 = vmatprep.mubr.f32.mxu0 0.0
        %1722 = vmatmul.mubr.f32.gmra.mxu0 %v1544
        %v1723 = vpop.f32.mrf.mxu0
        %v1724 = vadd.f32 %v1508, %v1723
        %v1725 = vpop.f32.mrf.mxu0
        %1726 = vmatprep.mubr.f32.mxu0 0.0
        %1727 = vmatmul.mubr.f32.gmra.mxu0 %v1547
        %v1728 = vpop.f32.mrf.mxu0
        %v1729 = vadd.f32 %v1509, %v1728
        %v1730 = vpop.f32.mrf.mxu0
        %1731 = vmatprep.mubr.f32.mxu0 0.0
        %1732 = vmatmul.mubr.f32.gmra.mxu0 %v1550
        %v1733 = vpop.f32.mrf.mxu0
        %v1734 = vadd.f32 %v1510, %v1733
        %v1735 = vpop.f32.mrf.mxu0
        %1736 = vmatprep.mubr.f32.mxu0 0.0
        %1737 = vmatmul.mubr.f32.gmra.mxu0 %v1553
        %v1738 = vpop.f32.mrf.mxu0
        %v1739 = vadd.f32 %v1511, %v1738
        %v1740 = vpop.f32.mrf.mxu0
        %1741 = vmatprep.mubr.f32.mxu0 0.0
        %1742 = vmatmul.mubr.f32.gmra.mxu0 %v1556
        %v1743 = vpop.f32.mrf.mxu0
        %v1744 = vadd.f32 %v1512, %v1743
        %v1745 = vpop.f32.mrf.mxu0
        %1746 = vmatprep.mubr.f32.mxu0 0.0
        %1747 = vmatmul.mubr.f32.gmra.mxu0 %v1559
        %v1748 = vpop.f32.mrf.mxu0
        %v1749 = vadd.f32 %v1513, %v1748
        %v1750 = vpop.f32.mrf.mxu0
        %1751 = vmatprep.mubr.f32.mxu0 0.0
        %1752 = vmatmul.mubr.f32.gmra.mxu0 %v1562
        %v1753 = vpop.f32.mrf.mxu0
        %v1754 = vadd.f32 %v1514, %v1753
        %v1755 = vpop.f32.mrf.mxu0
        %1756 = vdwg.mxu0
        %v1757 = vld [vmem:[#allocation3] sm:$0xff]
        %v1758 = vld [vmem:[#allocation3 + $0x8] sm:$0xff]
        %v1759 = vld [vmem:[#allocation3 + $0x10] sm:$0xff]
        %v1760 = vld [vmem:[#allocation3 + $0x18] sm:$0xff]
        %v1761 = vld [vmem:[#allocation3 + $0x20] sm:$0xff]
        %v1762 = vld [vmem:[#allocation3 + $0x28] sm:$0xff]
        %v1763 = vld [vmem:[#allocation3 + $0x30] sm:$0xff]
        %v1764 = vld [vmem:[#allocation3 + $0x38] sm:$0xff]
        %v1765 = vld [vmem:[#allocation3 + $0x40] sm:$0xff]
        %v1766 = vld [vmem:[#allocation3 + $0x48] sm:$0xff]
        %v1767 = vld [vmem:[#allocation3 + $0x50] sm:$0xff]
        %v1768 = vld [vmem:[#allocation3 + $0x58] sm:$0xff]
        %v1769 = vld [vmem:[#allocation3 + $0x60] sm:$0xff]
        %v1770 = vld [vmem:[#allocation3 + $0x68] sm:$0xff]
        %v1771 = vld [vmem:[#allocation3 + $0x70] sm:$0xff]
        %v1772 = vld [vmem:[#allocation3 + $0x78] sm:$0xff]
        %1773 = vmax.xlane.f32.xlu0 %v1679
        %v1774 = vpop.xlane.xlu0 %1773
        %1775 = vmax.xlane.f32.xlu0 %v1684
        %v1776 = vpop.xlane.xlu0 %1775
        %1777 = vmax.xlane.f32.xlu0 %v1689
        %v1778 = vpop.xlane.xlu0 %1777
        %1779 = vmax.xlane.f32.xlu0 %v1694
        %v1780 = vpop.xlane.xlu0 %1779
        %1781 = vmax.xlane.f32.xlu0 %v1699
        %v1782 = vpop.xlane.xlu0 %1781
        %1783 = vmax.xlane.f32.xlu0 %v1704
        %v1784 = vpop.xlane.xlu0 %1783
        %1785 = vmax.xlane.f32.xlu0 %v1709
        %v1786 = vpop.xlane.xlu0 %1785
        %1787 = vmax.xlane.f32.xlu0 %v1714
        %v1788 = vpop.xlane.xlu0 %1787
        %1789 = vmax.xlane.f32.xlu0 %v1719
        %v1790 = vpop.xlane.xlu0 %1789
        %1791 = vmax.xlane.f32.xlu0 %v1724
        %v1792 = vpop.xlane.xlu0 %1791
        %1793 = vmax.xlane.f32.xlu0 %v1729
        %v1794 = vpop.xlane.xlu0 %1793
        %1795 = vmax.xlane.f32.xlu0 %v1734
        %v1796 = vpop.xlane.xlu0 %1795
        %1797 = vmax.xlane.f32.xlu0 %v1739
        %v1798 = vpop.xlane.xlu0 %1797
        %1799 = vmax.xlane.f32.xlu0 %v1744
        %v1800 = vpop.xlane.xlu0 %1799
        %1801 = vmax.xlane.f32.xlu0 %v1749
        %v1802 = vpop.xlane.xlu0 %1801
        %1803 = vmax.xlane.f32.xlu0 %v1754
        %v1804 = vpop.xlane.xlu0 %1803
        %v1805 = vmax.f32 %v1757, %v1774
        %v1806 = vmax.f32 %v1758, %v1776
        %v1807 = vmax.f32 %v1759, %v1778
        %v1808 = vmax.f32 %v1760, %v1780
        %v1809 = vmax.f32 %v1761, %v1782
        %v1810 = vmax.f32 %v1762, %v1784
        %v1811 = vmax.f32 %v1763, %v1786
        %v1812 = vmax.f32 %v1764, %v1788
        %v1813 = vmax.f32 %v1765, %v1790
        %v1814 = vmax.f32 %v1766, %v1792
        %v1815 = vmax.f32 %v1767, %v1794
        %v1816 = vmax.f32 %v1768, %v1796
        %v1817 = vmax.f32 %v1769, %v1798
        %v1818 = vmax.f32 %v1770, %v1800
        %v1819 = vmax.f32 %v1771, %v1802
        %v1820 = vmax.f32 %v1772, %v1804
        %v1821 = vsub.f32 %v1757, %v1805
        %v1822 = vsub.f32 %v1758, %v1806
        %v1823 = vsub.f32 %v1759, %v1807
        %v1824 = vsub.f32 %v1760, %v1808
        %v1825 = vsub.f32 %v1761, %v1809
        %v1826 = vsub.f32 %v1762, %v1810
        %v1827 = vsub.f32 %v1763, %v1811
        %v1828 = vsub.f32 %v1764, %v1812
        %v1829 = vsub.f32 %v1765, %v1813
        %v1830 = vsub.f32 %v1766, %v1814
        %v1831 = vsub.f32 %v1767, %v1815
        %v1832 = vsub.f32 %v1768, %v1816
        %v1833 = vsub.f32 %v1769, %v1817
        %v1834 = vsub.f32 %v1770, %v1818
        %v1835 = vsub.f32 %v1771, %v1819
        %v1836 = vsub.f32 %v1772, %v1820
        %v1837 = vmul.f32 %v1821, 1.442695
        %v1838 = vpow.pop %v1837
        %v1839 = vmul.f32 %v1822, 1.442695
        %v1840 = vpow.pop %v1839
        %v1841 = vmul.f32 %v1823, 1.442695
        %v1842 = vpow.pop %v1841
        %v1843 = vmul.f32 %v1824, 1.442695
        %v1844 = vpow.pop %v1843
        %v1845 = vmul.f32 %v1825, 1.442695
        %v1846 = vpow.pop %v1845
        %v1847 = vmul.f32 %v1826, 1.442695
        %v1848 = vpow.pop %v1847
        %v1849 = vmul.f32 %v1827, 1.442695
        %v1850 = vpow.pop %v1849
        %v1851 = vmul.f32 %v1828, 1.442695
        %v1852 = vpow.pop %v1851
        %v1853 = vmul.f32 %v1829, 1.442695
        %v1854 = vpow.pop %v1853
        %v1855 = vmul.f32 %v1830, 1.442695
        %v1856 = vpow.pop %v1855
        %v1857 = vmul.f32 %v1831, 1.442695
        %v1858 = vpow.pop %v1857
        %v1859 = vmul.f32 %v1832, 1.442695
        %v1860 = vpow.pop %v1859
        %v1861 = vmul.f32 %v1833, 1.442695
        %v1862 = vpow.pop %v1861
        %v1863 = vmul.f32 %v1834, 1.442695
        %v1864 = vpow.pop %v1863
        %v1865 = vmul.f32 %v1835, 1.442695
        %v1866 = vpow.pop %v1865
        %v1867 = vmul.f32 %v1836, 1.442695
        %v1868 = vpow.pop %v1867
        %1870 = vset.pattern.permute.xlu0 0
        %1871 = vperm.xlu0 %1870, %v1805
        %v1872 = vpop.permute.xlu0 %1871
        %1875 = vset.pattern.permute.xlu0 0
        %1876 = vperm.xlu0 %1875, %v1806
        %v1877 = vpop.permute.xlu0 %1876
        %1880 = vset.pattern.permute.xlu0 0
        %1881 = vperm.xlu0 %1880, %v1807
        %v1882 = vpop.permute.xlu0 %1881
        %1885 = vset.pattern.permute.xlu0 0
        %1886 = vperm.xlu0 %1885, %v1808
        %v1887 = vpop.permute.xlu0 %1886
        %1890 = vset.pattern.permute.xlu0 0
        %1891 = vperm.xlu0 %1890, %v1809
        %v1892 = vpop.permute.xlu0 %1891
        %1895 = vset.pattern.permute.xlu0 0
        %1896 = vperm.xlu0 %1895, %v1810
        %v1897 = vpop.permute.xlu0 %1896
        %1900 = vset.pattern.permute.xlu0 0
        %1901 = vperm.xlu0 %1900, %v1811
        %v1902 = vpop.permute.xlu0 %1901
        %1905 = vset.pattern.permute.xlu0 0
        %1906 = vperm.xlu0 %1905, %v1812
        %v1907 = vpop.permute.xlu0 %1906
        %1910 = vset.pattern.permute.xlu0 0
        %1911 = vperm.xlu0 %1910, %v1813
        %v1912 = vpop.permute.xlu0 %1911
        %1915 = vset.pattern.permute.xlu0 0
        %1916 = vperm.xlu0 %1915, %v1814
        %v1917 = vpop.permute.xlu0 %1916
        %1920 = vset.pattern.permute.xlu0 0
        %1921 = vperm.xlu0 %1920, %v1815
        %v1922 = vpop.permute.xlu0 %1921
        %1925 = vset.pattern.permute.xlu0 0
        %1926 = vperm.xlu0 %1925, %v1816
        %v1927 = vpop.permute.xlu0 %1926
        %1930 = vset.pattern.permute.xlu0 0
        %1931 = vperm.xlu0 %1930, %v1817
        %v1932 = vpop.permute.xlu0 %1931
        %1935 = vset.pattern.permute.xlu0 0
        %1936 = vperm.xlu0 %1935, %v1818
        %v1937 = vpop.permute.xlu0 %1936
        %1940 = vset.pattern.permute.xlu0 0
        %1941 = vperm.xlu0 %1940, %v1819
        %v1942 = vpop.permute.xlu0 %1941
        %1945 = vset.pattern.permute.xlu0 0
        %1946 = vperm.xlu0 %1945, %v1820
        %v1947 = vpop.permute.xlu0 %1946
        %v1949 = vsub.f32 %v1679, %v1872
        %v1950 = vsub.f32 %v1684, %v1877
        %v1951 = vsub.f32 %v1689, %v1882
        %v1952 = vsub.f32 %v1694, %v1887
        %v1953 = vsub.f32 %v1699, %v1892
        %v1954 = vsub.f32 %v1704, %v1897
        %v1955 = vsub.f32 %v1709, %v1902
        %v1956 = vsub.f32 %v1714, %v1907
        %v1957 = vsub.f32 %v1719, %v1912
        %v1958 = vsub.f32 %v1724, %v1917
        %v1959 = vsub.f32 %v1729, %v1922
        %v1960 = vsub.f32 %v1734, %v1927
        %v1961 = vsub.f32 %v1739, %v1932
        %v1962 = vsub.f32 %v1744, %v1937
        %v1963 = vsub.f32 %v1749, %v1942
        %v1964 = vsub.f32 %v1754, %v1947
        %v1965 = vmul.f32 %v1949, 1.442695
        %v1966 = vpow.pop %v1965
        %v1967 = vmul.f32 %v1950, 1.442695
        %v1968 = vpow.pop %v1967
        %v1969 = vmul.f32 %v1951, 1.442695
        %v1970 = vpow.pop %v1969
        %v1971 = vmul.f32 %v1952, 1.442695
        %v1972 = vpow.pop %v1971
        %v1973 = vmul.f32 %v1953, 1.442695
        %v1974 = vpow.pop %v1973
        %v1975 = vmul.f32 %v1954, 1.442695
        %v1976 = vpow.pop %v1975
        %v1977 = vmul.f32 %v1955, 1.442695
        %v1978 = vpow.pop %v1977
        %v1979 = vmul.f32 %v1956, 1.442695
        %v1980 = vpow.pop %v1979
        %v1981 = vmul.f32 %v1957, 1.442695
        %v1982 = vpow.pop %v1981
        %v1983 = vmul.f32 %v1958, 1.442695
        %v1984 = vpow.pop %v1983
        %v1985 = vmul.f32 %v1959, 1.442695
        %v1986 = vpow.pop %v1985
        %v1987 = vmul.f32 %v1960, 1.442695
        %v1988 = vpow.pop %v1987
        %v1989 = vmul.f32 %v1961, 1.442695
        %v1990 = vpow.pop %v1989
        %v1991 = vmul.f32 %v1962, 1.442695
        %v1992 = vpow.pop %v1991
        %v1993 = vmul.f32 %v1963, 1.442695
        %v1994 = vpow.pop %v1993
        %v1995 = vmul.f32 %v1964, 1.442695
        %v1996 = vpow.pop %v1995
        %v1997 = vld [vmem:[#allocation4] sm:$0xff]
        %v1998 = vld [vmem:[#allocation4 + $0x8] sm:$0xff]
        %v1999 = vld [vmem:[#allocation4 + $0x10] sm:$0xff]
        %v2000 = vld [vmem:[#allocation4 + $0x18] sm:$0xff]
        %v2001 = vld [vmem:[#allocation4 + $0x20] sm:$0xff]
        %v2002 = vld [vmem:[#allocation4 + $0x28] sm:$0xff]
        %v2003 = vld [vmem:[#allocation4 + $0x30] sm:$0xff]
        %v2004 = vld [vmem:[#allocation4 + $0x38] sm:$0xff]
        %v2005 = vld [vmem:[#allocation4 + $0x40] sm:$0xff]
        %v2006 = vld [vmem:[#allocation4 + $0x48] sm:$0xff]
        %v2007 = vld [vmem:[#allocation4 + $0x50] sm:$0xff]
        %v2008 = vld [vmem:[#allocation4 + $0x58] sm:$0xff]
        %v2009 = vld [vmem:[#allocation4 + $0x60] sm:$0xff]
        %v2010 = vld [vmem:[#allocation4 + $0x68] sm:$0xff]
        %v2011 = vld [vmem:[#allocation4 + $0x70] sm:$0xff]
        %v2012 = vld [vmem:[#allocation4 + $0x78] sm:$0xff]
        %v2013 = vmul.f32 %v1838, %v1997
        %v2014 = vmul.f32 %v1840, %v1998
        %v2015 = vmul.f32 %v1842, %v1999
        %v2016 = vmul.f32 %v1844, %v2000
        %v2017 = vmul.f32 %v1846, %v2001
        %v2018 = vmul.f32 %v1848, %v2002
        %v2019 = vmul.f32 %v1850, %v2003
        %v2020 = vmul.f32 %v1852, %v2004
        %v2021 = vmul.f32 %v1854, %v2005
        %v2022 = vmul.f32 %v1856, %v2006
        %v2023 = vmul.f32 %v1858, %v2007
        %v2024 = vmul.f32 %v1860, %v2008
        %v2025 = vmul.f32 %v1862, %v2009
        %v2026 = vmul.f32 %v1864, %v2010
        %v2027 = vmul.f32 %v1866, %v2011
        %v2028 = vmul.f32 %v1868, %v2012
        %2029 = vadd.xlane.f32.xlu0 %v1966
        %v2030 = vpop.xlane.xlu0 %2029
        %2031 = vadd.xlane.f32.xlu0 %v1968
        %v2032 = vpop.xlane.xlu0 %2031
        %2033 = vadd.xlane.f32.xlu0 %v1970
        %v2034 = vpop.xlane.xlu0 %2033
        %2035 = vadd.xlane.f32.xlu0 %v1972
        %v2036 = vpop.xlane.xlu0 %2035
        %2037 = vadd.xlane.f32.xlu0 %v1974
        %v2038 = vpop.xlane.xlu0 %2037
        %2039 = vadd.xlane.f32.xlu0 %v1976
        %v2040 = vpop.xlane.xlu0 %2039
        %2041 = vadd.xlane.f32.xlu0 %v1978
        %v2042 = vpop.xlane.xlu0 %2041
        %2043 = vadd.xlane.f32.xlu0 %v1980
        %v2044 = vpop.xlane.xlu0 %2043
        %2045 = vadd.xlane.f32.xlu0 %v1982
        %v2046 = vpop.xlane.xlu0 %2045
        %2047 = vadd.xlane.f32.xlu0 %v1984
        %v2048 = vpop.xlane.xlu0 %2047
        %2049 = vadd.xlane.f32.xlu0 %v1986
        %v2050 = vpop.xlane.xlu0 %2049
        %2051 = vadd.xlane.f32.xlu0 %v1988
        %v2052 = vpop.xlane.xlu0 %2051
        %2053 = vadd.xlane.f32.xlu0 %v1990
        %v2054 = vpop.xlane.xlu0 %2053
        %2055 = vadd.xlane.f32.xlu0 %v1992
        %v2056 = vpop.xlane.xlu0 %2055
        %2057 = vadd.xlane.f32.xlu0 %v1994
        %v2058 = vpop.xlane.xlu0 %2057
        %2059 = vadd.xlane.f32.xlu0 %v1996
        %v2060 = vpop.xlane.xlu0 %2059
        %v2061 = vadd.f32 %v2013, %v2030
        %v2062 = vadd.f32 %v2014, %v2032
        %v2063 = vadd.f32 %v2015, %v2034
        %v2064 = vadd.f32 %v2016, %v2036
        %v2065 = vadd.f32 %v2017, %v2038
        %v2066 = vadd.f32 %v2018, %v2040
        %v2067 = vadd.f32 %v2019, %v2042
        %v2068 = vadd.f32 %v2020, %v2044
        %v2069 = vadd.f32 %v2021, %v2046
        %v2070 = vadd.f32 %v2022, %v2048
        %v2071 = vadd.f32 %v2023, %v2050
        %v2072 = vadd.f32 %v2024, %v2052
        %v2073 = vadd.f32 %v2025, %v2054
        %v2074 = vadd.f32 %v2026, %v2056
        %v2075 = vadd.f32 %v2027, %v2058
        %v2076 = vadd.f32 %v2028, %v2060
        %vm2077 = vcmask 7168
        %2078 = vst.msk [vmem:[#allocation4] sm:$0xff] %vm2077, %v2061
        %2079 = vst.msk [vmem:[#allocation4 + $0x8] sm:$0xff] %vm2077, %v2062
        %2080 = vst.msk [vmem:[#allocation4 + $0x10] sm:$0xff] %vm2077, %v2063
        %2081 = vst.msk [vmem:[#allocation4 + $0x18] sm:$0xff] %vm2077, %v2064
        %2082 = vst.msk [vmem:[#allocation4 + $0x20] sm:$0xff] %vm2077, %v2065
        %2083 = vst.msk [vmem:[#allocation4 + $0x28] sm:$0xff] %vm2077, %v2066
        %2084 = vst.msk [vmem:[#allocation4 + $0x30] sm:$0xff] %vm2077, %v2067
        %2085 = vst.msk [vmem:[#allocation4 + $0x38] sm:$0xff] %vm2077, %v2068
        %2086 = vst.msk [vmem:[#allocation4 + $0x40] sm:$0xff] %vm2077, %v2069
        %2087 = vst.msk [vmem:[#allocation4 + $0x48] sm:$0xff] %vm2077, %v2070
        %2088 = vst.msk [vmem:[#allocation4 + $0x50] sm:$0xff] %vm2077, %v2071
        %2089 = vst.msk [vmem:[#allocation4 + $0x58] sm:$0xff] %vm2077, %v2072
        %2090 = vst.msk [vmem:[#allocation4 + $0x60] sm:$0xff] %vm2077, %v2073
        %2091 = vst.msk [vmem:[#allocation4 + $0x68] sm:$0xff] %vm2077, %v2074
        %2092 = vst.msk [vmem:[#allocation4 + $0x70] sm:$0xff] %vm2077, %v2075
        %2093 = vst.msk [vmem:[#allocation4 + $0x78] sm:$0xff] %vm2077, %v2076
        %2094 = vmatprep.subr.mxu0 0.0
        %2095 = vmatpush1.msra.mxu0 %v1479
        %2096 = vmatprep.subr.mxu0 0.0
        %2097 = vmatpush1.msra.mxu0 %v1473
        %2098 = vmatprep.subr.mxu0 0.0
        %2099 = vmatpush1.msra.mxu0 %v1467
        %2100 = vmatprep.subr.mxu0 0.0
        %2101 = vmatpush1.msra.mxu0 %v1461
        %2102 = vmatprep.subr.mxu0 0.0
        %2103 = vmatpush1.msra.mxu0 %v1455
        %2104 = vmatprep.subr.mxu0 0.0
        %2105 = vmatpush1.msra.mxu0 %v1449
        %2106 = vmatprep.subr.mxu0 0.0
        %2107 = vmatpush1.msra.mxu0 %v1443
        %2108 = vmatprep.subr.mxu0 0.0
        %2109 = vmatpush1.msra.mxu0 %v1437
        %2110 = vmatprep.subr.mxu0 0.0
        %2111 = vmatpush1.msra.mxu0 %v1431
        %2112 = vmatprep.subr.mxu0 0.0
        %2113 = vmatpush1.msra.mxu0 %v1425
        %2114 = vmatprep.subr.mxu0 0.0
        %2115 = vmatpush1.msra.mxu0 %v1419
        %2116 = vmatprep.subr.mxu0 0.0
        %2117 = vmatpush1.msra.mxu0 %v1413
        %2118 = vmatprep.subr.mxu0 0.0
        %2119 = vmatpush1.msra.mxu0 %v1407
        %2120 = vmatprep.subr.mxu0 0.0
        %2121 = vmatpush1.msra.mxu0 %v1401
        %2122 = vmatprep.subr.mxu0 0.0
        %2123 = vmatpush1.msra.mxu0 %v1395
        %2124 = vmatprep.subr.mxu0 0.0
        %2125 = vmatpush1.msra.mxu0 %v1389
        %2126 = vmatprep.subr.mxu0 0.0
        %2127 = vmatpush2.msra.mxu0 0.0
        %2128 = vmatprep.subr.mxu0 0.0
        %2129 = vmatpush2.msra.mxu0 0.0
        %2130 = vmatprep.subr.mxu0 0.0
        %2131 = vmatpush2.msra.mxu0 0.0
        %2132 = vmatprep.subr.mxu0 0.0
        %2133 = vmatpush2.msra.mxu0 0.0
        %2134 = vmatprep.subr.mxu0 0.0
        %2135 = vmatpush2.msra.mxu0 0.0
        %2136 = vmatprep.subr.mxu0 0.0
        %2137 = vmatpush2.msra.mxu0 0.0
        %2138 = vmatprep.subr.mxu0 0.0
        %2139 = vmatpush2.msra.mxu0 0.0
        %2140 = vmatprep.subr.mxu0 0.0
        %2141 = vmatpush2.msra.mxu0 0.0
        %2142 = vmatprep.subr.mxu0 0.0
        %2143 = vmatpush2.msra.mxu0 0.0
        %2144 = vmatprep.subr.mxu0 0.0
        %2145 = vmatpush2.msra.mxu0 0.0
        %2146 = vmatprep.subr.mxu0 0.0
        %2147 = vmatpush2.msra.mxu0 0.0
        %2148 = vmatprep.subr.mxu0 0.0
        %2149 = vmatpush2.msra.mxu0 0.0
        %2150 = vmatprep.subr.mxu0 0.0
        %2151 = vmatpush2.msra.mxu0 0.0
        %2152 = vmatprep.subr.mxu0 0.0
        %2153 = vmatpush2.msra.mxu0 0.0
        %2154 = vmatprep.subr.mxu0 0.0
        %2155 = vmatpush2.msra.mxu0 0.0
        %2156 = vmatprep.subr.mxu0 0.0
        %2157 = vmatpush2.msra.mxu0 0.0
        %2158 = vmatprep.mubr.f32.mxu0 0.0
        %2159 = vmatmul.mubr.f32.gmra.mxu0 %v1966
        %v2160 = vpop.f32.mrf.mxu0
        %v2161 = vadd.f32 0.0, %v2160
        %v2162 = vpop.f32.mrf.mxu0
        %2163 = vmatprep.mubr.f32.mxu0 0.0
        %2164 = vmatmul.mubr.f32.gmra.mxu0 %v1968
        %v2165 = vpop.f32.mrf.mxu0
        %v2166 = vadd.f32 0.0, %v2165
        %v2167 = vpop.f32.mrf.mxu0
        %2168 = vmatprep.mubr.f32.mxu0 0.0
        %2169 = vmatmul.mubr.f32.gmra.mxu0 %v1970
        %v2170 = vpop.f32.mrf.mxu0
        %v2171 = vadd.f32 0.0, %v2170
        %v2172 = vpop.f32.mrf.mxu0
        %2173 = vmatprep.mubr.f32.mxu0 0.0
        %2174 = vmatmul.mubr.f32.gmra.mxu0 %v1972
        %v2175 = vpop.f32.mrf.mxu0
        %v2176 = vadd.f32 0.0, %v2175
        %v2177 = vpop.f32.mrf.mxu0
        %2178 = vmatprep.mubr.f32.mxu0 0.0
        %2179 = vmatmul.mubr.f32.gmra.mxu0 %v1974
        %v2180 = vpop.f32.mrf.mxu0
        %v2181 = vadd.f32 0.0, %v2180
        %v2182 = vpop.f32.mrf.mxu0
        %2183 = vmatprep.mubr.f32.mxu0 0.0
        %2184 = vmatmul.mubr.f32.gmra.mxu0 %v1976
        %v2185 = vpop.f32.mrf.mxu0
        %v2186 = vadd.f32 0.0, %v2185
        %v2187 = vpop.f32.mrf.mxu0
        %2188 = vmatprep.mubr.f32.mxu0 0.0
        %2189 = vmatmul.mubr.f32.gmra.mxu0 %v1978
        %v2190 = vpop.f32.mrf.mxu0
        %v2191 = vadd.f32 0.0, %v2190
        %v2192 = vpop.f32.mrf.mxu0
        %2193 = vmatprep.mubr.f32.mxu0 0.0
        %2194 = vmatmul.mubr.f32.gmra.mxu0 %v1980
        %v2195 = vpop.f32.mrf.mxu0
        %v2196 = vadd.f32 0.0, %v2195
        %v2197 = vpop.f32.mrf.mxu0
        %2198 = vmatprep.mubr.f32.mxu0 0.0
        %2199 = vmatmul.mubr.f32.gmra.mxu0 %v1982
        %v2200 = vpop.f32.mrf.mxu0
        %v2201 = vadd.f32 0.0, %v2200
        %v2202 = vpop.f32.mrf.mxu0
        %2203 = vmatprep.mubr.f32.mxu0 0.0
        %2204 = vmatmul.mubr.f32.gmra.mxu0 %v1984
        %v2205 = vpop.f32.mrf.mxu0
        %v2206 = vadd.f32 0.0, %v2205
        %v2207 = vpop.f32.mrf.mxu0
        %2208 = vmatprep.mubr.f32.mxu0 0.0
        %2209 = vmatmul.mubr.f32.gmra.mxu0 %v1986
        %v2210 = vpop.f32.mrf.mxu0
        %v2211 = vadd.f32 0.0, %v2210
        %v2212 = vpop.f32.mrf.mxu0
        %2213 = vmatprep.mubr.f32.mxu0 0.0
        %2214 = vmatmul.mubr.f32.gmra.mxu0 %v1988
        %v2215 = vpop.f32.mrf.mxu0
        %v2216 = vadd.f32 0.0, %v2215
        %v2217 = vpop.f32.mrf.mxu0
        %2218 = vmatprep.mubr.f32.mxu0 0.0
        %2219 = vmatmul.mubr.f32.gmra.mxu0 %v1990
        %v2220 = vpop.f32.mrf.mxu0
        %v2221 = vadd.f32 0.0, %v2220
        %v2222 = vpop.f32.mrf.mxu0
        %2223 = vmatprep.mubr.f32.mxu0 0.0
        %2224 = vmatmul.mubr.f32.gmra.mxu0 %v1992
        %v2225 = vpop.f32.mrf.mxu0
        %v2226 = vadd.f32 0.0, %v2225
        %v2227 = vpop.f32.mrf.mxu0
        %2228 = vmatprep.mubr.f32.mxu0 0.0
        %2229 = vmatmul.mubr.f32.gmra.mxu0 %v1994
        %v2230 = vpop.f32.mrf.mxu0
        %v2231 = vadd.f32 0.0, %v2230
        %v2232 = vpop.f32.mrf.mxu0
        %2233 = vmatprep.mubr.f32.mxu0 0.0
        %2234 = vmatmul.mubr.f32.gmra.mxu0 %v1996
        %v2235 = vpop.f32.mrf.mxu0
        %v2236 = vadd.f32 0.0, %v2235
        %v2237 = vpop.f32.mrf.mxu0
        %2238 = vdwg.mxu0
        %v2239 = vld [vmem:[#allocation5] sm:$0xff]
        %v2240 = vld [vmem:[#allocation5 + $0x10] sm:$0xff]
        %v2241 = vld [vmem:[#allocation5 + $0x20] sm:$0xff]
        %v2242 = vld [vmem:[#allocation5 + $0x30] sm:$0xff]
        %v2243 = vld [vmem:[#allocation5 + $0x40] sm:$0xff]
        %v2244 = vld [vmem:[#allocation5 + $0x50] sm:$0xff]
        %v2245 = vld [vmem:[#allocation5 + $0x60] sm:$0xff]
        %v2246 = vld [vmem:[#allocation5 + $0x70] sm:$0xff]
        %v2247 = vld [vmem:[#allocation5 + $0x80] sm:$0xff]
        %v2248 = vld [vmem:[#allocation5 + $0x90] sm:$0xff]
        %v2249 = vld [vmem:[#allocation5 + $0xa0] sm:$0xff]
        %v2250 = vld [vmem:[#allocation5 + $0xb0] sm:$0xff]
        %v2251 = vld [vmem:[#allocation5 + $0xc0] sm:$0xff]
        %v2252 = vld [vmem:[#allocation5 + $0xd0] sm:$0xff]
        %v2253 = vld [vmem:[#allocation5 + $0xe0] sm:$0xff]
        %v2254 = vld [vmem:[#allocation5 + $0xf0] sm:$0xff]
        %2256 = vset.pattern.permute.xlu0 0
        %2257 = vperm.xlu0 %2256, %v1838
        %v2258 = vpop.permute.xlu0 %2257
        %2261 = vset.pattern.permute.xlu0 0
        %2262 = vperm.xlu0 %2261, %v1840
        %v2263 = vpop.permute.xlu0 %2262
        %2266 = vset.pattern.permute.xlu0 0
        %2267 = vperm.xlu0 %2266, %v1842
        %v2268 = vpop.permute.xlu0 %2267
        %2271 = vset.pattern.permute.xlu0 0
        %2272 = vperm.xlu0 %2271, %v1844
        %v2273 = vpop.permute.xlu0 %2272
        %2276 = vset.pattern.permute.xlu0 0
        %2277 = vperm.xlu0 %2276, %v1846
        %v2278 = vpop.permute.xlu0 %2277
        %2281 = vset.pattern.permute.xlu0 0
        %2282 = vperm.xlu0 %2281, %v1848
        %v2283 = vpop.permute.xlu0 %2282
        %2286 = vset.pattern.permute.xlu0 0
        %2287 = vperm.xlu0 %2286, %v1850
        %v2288 = vpop.permute.xlu0 %2287
        %2291 = vset.pattern.permute.xlu0 0
        %2292 = vperm.xlu0 %2291, %v1852
        %v2293 = vpop.permute.xlu0 %2292
        %2296 = vset.pattern.permute.xlu0 0
        %2297 = vperm.xlu0 %2296, %v1854
        %v2298 = vpop.permute.xlu0 %2297
        %2301 = vset.pattern.permute.xlu0 0
        %2302 = vperm.xlu0 %2301, %v1856
        %v2303 = vpop.permute.xlu0 %2302
        %2306 = vset.pattern.permute.xlu0 0
        %2307 = vperm.xlu0 %2306, %v1858
        %v2308 = vpop.permute.xlu0 %2307
        %2311 = vset.pattern.permute.xlu0 0
        %2312 = vperm.xlu0 %2311, %v1860
        %v2313 = vpop.permute.xlu0 %2312
        %2316 = vset.pattern.permute.xlu0 0
        %2317 = vperm.xlu0 %2316, %v1862
        %v2318 = vpop.permute.xlu0 %2317
        %2321 = vset.pattern.permute.xlu0 0
        %2322 = vperm.xlu0 %2321, %v1864
        %v2323 = vpop.permute.xlu0 %2322
        %2326 = vset.pattern.permute.xlu0 0
        %2327 = vperm.xlu0 %2326, %v1866
        %v2328 = vpop.permute.xlu0 %2327
        %2331 = vset.pattern.permute.xlu0 0
        %2332 = vperm.xlu0 %2331, %v1868
        %v2333 = vpop.permute.xlu0 %2332
        %v2335 = vmul.f32 %v2258, %v2239
        %v2336 = vmul.f32 %v2263, %v2240
        %v2337 = vmul.f32 %v2268, %v2241
        %v2338 = vmul.f32 %v2273, %v2242
        %v2339 = vmul.f32 %v2278, %v2243
        %v2340 = vmul.f32 %v2283, %v2244
        %v2341 = vmul.f32 %v2288, %v2245
        %v2342 = vmul.f32 %v2293, %v2246
        %v2343 = vmul.f32 %v2298, %v2247
        %v2344 = vmul.f32 %v2303, %v2248
        %v2345 = vmul.f32 %v2308, %v2249
        %v2346 = vmul.f32 %v2313, %v2250
        %v2347 = vmul.f32 %v2318, %v2251
        %v2348 = vmul.f32 %v2323, %v2252
        %v2349 = vmul.f32 %v2328, %v2253
        %v2350 = vmul.f32 %v2333, %v2254
        %v2351 = vadd.f32 %v2335, %v2161
        %v2352 = vadd.f32 %v2336, %v2166
        %v2353 = vadd.f32 %v2337, %v2171
        %v2354 = vadd.f32 %v2338, %v2176
        %v2355 = vadd.f32 %v2339, %v2181
        %v2356 = vadd.f32 %v2340, %v2186
        %v2357 = vadd.f32 %v2341, %v2191
        %v2358 = vadd.f32 %v2342, %v2196
        %v2359 = vadd.f32 %v2343, %v2201
        %v2360 = vadd.f32 %v2344, %v2206
        %v2361 = vadd.f32 %v2345, %v2211
        %v2362 = vadd.f32 %v2346, %v2216
        %v2363 = vadd.f32 %v2347, %v2221
        %v2364 = vadd.f32 %v2348, %v2226
        %v2365 = vadd.f32 %v2349, %v2231
        %v2366 = vadd.f32 %v2350, %v2236
        %2367 = vst.msk [vmem:[#allocation5] sm:$0xff] %vm1515, %v2351
        %2368 = vst.msk [vmem:[#allocation5 + $0x10] sm:$0xff] %vm1515, %v2352
        %2369 = vst.msk [vmem:[#allocation5 + $0x20] sm:$0xff] %vm1515, %v2353
        %2370 = vst.msk [vmem:[#allocation5 + $0x30] sm:$0xff] %vm1515, %v2354
        %2371 = vst.msk [vmem:[#allocation5 + $0x40] sm:$0xff] %vm1515, %v2355
        %2372 = vst.msk [vmem:[#allocation5 + $0x50] sm:$0xff] %vm1515, %v2356
        %2373 = vst.msk [vmem:[#allocation5 + $0x60] sm:$0xff] %vm1515, %v2357
        %2374 = vst.msk [vmem:[#allocation5 + $0x70] sm:$0xff] %vm1515, %v2358
        %2375 = vst.msk [vmem:[#allocation5 + $0x80] sm:$0xff] %vm1515, %v2359
        %2376 = vst.msk [vmem:[#allocation5 + $0x90] sm:$0xff] %vm1515, %v2360
        %2377 = vst.msk [vmem:[#allocation5 + $0xa0] sm:$0xff] %vm1515, %v2361
        %2378 = vst.msk [vmem:[#allocation5 + $0xb0] sm:$0xff] %vm1515, %v2362
        %2379 = vst.msk [vmem:[#allocation5 + $0xc0] sm:$0xff] %vm1515, %v2363
        %2380 = vst.msk [vmem:[#allocation5 + $0xd0] sm:$0xff] %vm1515, %v2364
        %2381 = vst.msk [vmem:[#allocation5 + $0xe0] sm:$0xff] %vm1515, %v2365
        %2382 = vst.msk [vmem:[#allocation5 + $0xf0] sm:$0xff] %vm1515, %v2366
        %2383 = vst.msk [vmem:[#allocation3] sm:$0xff] %vm2077, %v1805
        %2384 = vst.msk [vmem:[#allocation3 + $0x8] sm:$0xff] %vm2077, %v1806
        %2385 = vst.msk [vmem:[#allocation3 + $0x10] sm:$0xff] %vm2077, %v1807
        %2386 = vst.msk [vmem:[#allocation3 + $0x18] sm:$0xff] %vm2077, %v1808
        %2387 = vst.msk [vmem:[#allocation3 + $0x20] sm:$0xff] %vm2077, %v1809
        %2388 = vst.msk [vmem:[#allocation3 + $0x28] sm:$0xff] %vm2077, %v1810
        %2389 = vst.msk [vmem:[#allocation3 + $0x30] sm:$0xff] %vm2077, %v1811
        %2390 = vst.msk [vmem:[#allocation3 + $0x38] sm:$0xff] %vm2077, %v1812
        %2391 = vst.msk [vmem:[#allocation3 + $0x40] sm:$0xff] %vm2077, %v1813
        %2392 = vst.msk [vmem:[#allocation3 + $0x48] sm:$0xff] %vm2077, %v1814
        %2393 = vst.msk [vmem:[#allocation3 + $0x50] sm:$0xff] %vm2077, %v1815
        %2394 = vst.msk [vmem:[#allocation3 + $0x58] sm:$0xff] %vm2077, %v1816
        %2395 = vst.msk [vmem:[#allocation3 + $0x60] sm:$0xff] %vm2077, %v1817
        %2396 = vst.msk [vmem:[#allocation3 + $0x68] sm:$0xff] %vm2077, %v1818
        %2397 = vst.msk [vmem:[#allocation3 + $0x70] sm:$0xff] %vm2077, %v1819
        %2398 = vst.msk [vmem:[#allocation3 + $0x78] sm:$0xff] %vm2077, %v1820
        %v2399 = vld [vmem:[#allocation2] sm:$0xff]
        %v2400 = vld [vmem:[#allocation2 + $0x10] sm:$0xff]
        %v2401 = vld [vmem:[#allocation2 + $0x20] sm:$0xff]
        %v2402 = vld [vmem:[#allocation2 + $0x30] sm:$0xff]
        %v2403 = vld [vmem:[#allocation2 + $0x40] sm:$0xff]
        %v2404 = vld [vmem:[#allocation2 + $0x50] sm:$0xff]
        %v2405 = vld [vmem:[#allocation2 + $0x60] sm:$0xff]
        %v2406 = vld [vmem:[#allocation2 + $0x70] sm:$0xff]
        %v2407 = vld [vmem:[#allocation2 + $0x80] sm:$0xff]
        %v2408 = vld [vmem:[#allocation2 + $0x90] sm:$0xff]
        %v2409 = vld [vmem:[#allocation2 + $0xa0] sm:$0xff]
        %v2410 = vld [vmem:[#allocation2 + $0xb0] sm:$0xff]
        %v2411 = vld [vmem:[#allocation2 + $0xc0] sm:$0xff]
        %v2412 = vld [vmem:[#allocation2 + $0xd0] sm:$0xff]
        %v2413 = vld [vmem:[#allocation2 + $0xe0] sm:$0xff]
        %v2414 = vld [vmem:[#allocation2 + $0xf0] sm:$0xff]
        %s2415 = scalar_lea.vmem %s528, 128 [#allocation20]
        %v2416 = vld [vmem:[%s2415] sm:$0xff]
        %v2417 = vld [vmem:[%s2415 + $0x8] sm:$0xff]
        %v2418 = vld [vmem:[%s2415 + $0x10] sm:$0xff]
        %v2419 = vld [vmem:[%s2415 + $0x18] sm:$0xff]
        %v2420 = vld [vmem:[%s2415 + $0x20] sm:$0xff]
        %v2421 = vld [vmem:[%s2415 + $0x28] sm:$0xff]
        %v2422 = vld [vmem:[%s2415 + $0x30] sm:$0xff]
        %v2423 = vld [vmem:[%s2415 + $0x38] sm:$0xff]
        %v2424 = vld [vmem:[%s2415 + $0x40] sm:$0xff]
        %v2425 = vld [vmem:[%s2415 + $0x48] sm:$0xff]
        %v2426 = vld [vmem:[%s2415 + $0x50] sm:$0xff]
        %v2427 = vld [vmem:[%s2415 + $0x58] sm:$0xff]
        %v2428 = vld [vmem:[%s2415 + $0x60] sm:$0xff]
        %v2429 = vld [vmem:[%s2415 + $0x68] sm:$0xff]
        %v2430 = vld [vmem:[%s2415 + $0x70] sm:$0xff]
        %v2431 = vld [vmem:[%s2415 + $0x78] sm:$0xff]
        %2448 = vrot.lane.b32.xlu0 %v2399, 64
        %v2449 = vpop.permute.xlu0 %2448
        %2450 = vrot.lane.b32.xlu0 %v2400, 64
        %v2451 = vpop.permute.xlu0 %2450
        %2452 = vrot.lane.b32.xlu0 %v2401, 64
        %v2453 = vpop.permute.xlu0 %2452
        %2454 = vrot.lane.b32.xlu0 %v2402, 64
        %v2455 = vpop.permute.xlu0 %2454
        %2456 = vrot.lane.b32.xlu0 %v2403, 64
        %v2457 = vpop.permute.xlu0 %2456
        %2458 = vrot.lane.b32.xlu0 %v2404, 64
        %v2459 = vpop.permute.xlu0 %2458
        %2460 = vrot.lane.b32.xlu0 %v2405, 64
        %v2461 = vpop.permute.xlu0 %2460
        %2462 = vrot.lane.b32.xlu0 %v2406, 64
        %v2463 = vpop.permute.xlu0 %2462
        %2464 = vrot.lane.b32.xlu0 %v2407, 64
        %v2465 = vpop.permute.xlu0 %2464
        %2466 = vrot.lane.b32.xlu0 %v2408, 64
        %v2467 = vpop.permute.xlu0 %2466
        %2468 = vrot.lane.b32.xlu0 %v2409, 64
        %v2469 = vpop.permute.xlu0 %2468
        %2470 = vrot.lane.b32.xlu0 %v2410, 64
        %v2471 = vpop.permute.xlu0 %2470
        %2472 = vrot.lane.b32.xlu0 %v2411, 64
        %v2473 = vpop.permute.xlu0 %2472
        %2474 = vrot.lane.b32.xlu0 %v2412, 64
        %v2475 = vpop.permute.xlu0 %2474
        %2476 = vrot.lane.b32.xlu0 %v2413, 64
        %v2477 = vpop.permute.xlu0 %2476
        %2478 = vrot.lane.b32.xlu0 %v2414, 64
        %v2479 = vpop.permute.xlu0 %2478
        %2480 = vrot.lane.b32.xlu0 %v1228, 64
        %v2481 = vpop.permute.xlu0 %2480
        %2482 = vrot.lane.b32.xlu0 %v1234, 64
        %v2483 = vpop.permute.xlu0 %2482
        %2484 = vrot.lane.b32.xlu0 %v1240, 64
        %v2485 = vpop.permute.xlu0 %2484
        %2486 = vrot.lane.b32.xlu0 %v1246, 64
        %v2487 = vpop.permute.xlu0 %2486
        %2488 = vrot.lane.b32.xlu0 %v1252, 64
        %v2489 = vpop.permute.xlu0 %2488
        %2490 = vrot.lane.b32.xlu0 %v1258, 64
        %v2491 = vpop.permute.xlu0 %2490
        %2492 = vrot.lane.b32.xlu0 %v1264, 64
        %v2493 = vpop.permute.xlu0 %2492
        %2494 = vrot.lane.b32.xlu0 %v1270, 64
        %v2495 = vpop.permute.xlu0 %2494
        %2496 = vrot.lane.b32.xlu0 %v1276, 64
        %v2497 = vpop.permute.xlu0 %2496
        %2498 = vrot.lane.b32.xlu0 %v1282, 64
        %v2499 = vpop.permute.xlu0 %2498
        %2500 = vrot.lane.b32.xlu0 %v1288, 64
        %v2501 = vpop.permute.xlu0 %2500
        %2502 = vrot.lane.b32.xlu0 %v1294, 64
        %v2503 = vpop.permute.xlu0 %2502
        %2504 = vrot.lane.b32.xlu0 %v1300, 64
        %v2505 = vpop.permute.xlu0 %2504
        %2506 = vrot.lane.b32.xlu0 %v1306, 64
        %v2507 = vpop.permute.xlu0 %2506
        %2508 = vrot.lane.b32.xlu0 %v1312, 64
        %v2509 = vpop.permute.xlu0 %2508
        %2510 = vrot.lane.b32.xlu0 %v1318, 64
        %v2511 = vpop.permute.xlu0 %2510
        %v2512 = vsel %vm1515, %v2449, 0
        %v2514 = vsel %vm1515, %v2451, 0
        %v2516 = vsel %vm1515, %v2453, 0
        %v2518 = vsel %vm1515, %v2455, 0
        %v2520 = vsel %vm1515, %v2457, 0
        %v2522 = vsel %vm1515, %v2459, 0
        %v2524 = vsel %vm1515, %v2461, 0
        %v2526 = vsel %vm1515, %v2463, 0
        %v2528 = vsel %vm1515, %v2465, 0
        %v2530 = vsel %vm1515, %v2467, 0
        %v2532 = vsel %vm1515, %v2469, 0
        %v2534 = vsel %vm1515, %v2471, 0
        %v2536 = vsel %vm1515, %v2473, 0
        %v2538 = vsel %vm1515, %v2475, 0
        %v2540 = vsel %vm1515, %v2477, 0
        %v2542 = vsel %vm1515, %v2479, 0
        %v2544 = vsel %vm1515, %v2481, 0
        %v2546 = vsel %vm1515, %v2483, 0
        %v2548 = vsel %vm1515, %v2485, 0
        %v2550 = vsel %vm1515, %v2487, 0
        %v2552 = vsel %vm1515, %v2489, 0
        %v2554 = vsel %vm1515, %v2491, 0
        %v2556 = vsel %vm1515, %v2493, 0
        %v2558 = vsel %vm1515, %v2495, 0
        %v2560 = vsel %vm1515, %v2497, 0
        %v2562 = vsel %vm1515, %v2499, 0
        %v2564 = vsel %vm1515, %v2501, 0
        %v2566 = vsel %vm1515, %v2503, 0
        %v2568 = vsel %vm1515, %v2505, 0
        %v2570 = vsel %vm1515, %v2507, 0
        %v2572 = vsel %vm1515, %v2509, 0
        %v2574 = vsel %vm1515, %v2511, 0
        %2576 = vmatprep.subr.mxu0 0.0
        %2577 = vmatpush1.xpose.msra.mxu0 %v2574
        %2578 = vmatprep.subr.mxu0 0.0
        %2579 = vmatpush1.xpose.msra.mxu0 %v2572
        %2580 = vmatprep.subr.mxu0 0.0
        %2581 = vmatpush1.xpose.msra.mxu0 %v2570
        %2582 = vmatprep.subr.mxu0 0.0
        %2583 = vmatpush1.xpose.msra.mxu0 %v2568
        %2584 = vmatprep.subr.mxu0 0.0
        %2585 = vmatpush1.xpose.msra.mxu0 %v2566
        %2586 = vmatprep.subr.mxu0 0.0
        %2587 = vmatpush1.xpose.msra.mxu0 %v2564
        %2588 = vmatprep.subr.mxu0 0.0
        %2589 = vmatpush1.xpose.msra.mxu0 %v2562
        %2590 = vmatprep.subr.mxu0 0.0
        %2591 = vmatpush1.xpose.msra.mxu0 %v2560
        %2592 = vmatprep.subr.mxu0 0.0
        %2593 = vmatpush1.xpose.msra.mxu0 %v2558
        %2594 = vmatprep.subr.mxu0 0.0
        %2595 = vmatpush1.xpose.msra.mxu0 %v2556
        %2596 = vmatprep.subr.mxu0 0.0
        %2597 = vmatpush1.xpose.msra.mxu0 %v2554
        %2598 = vmatprep.subr.mxu0 0.0
        %2599 = vmatpush1.xpose.msra.mxu0 %v2552
        %2600 = vmatprep.subr.mxu0 0.0
        %2601 = vmatpush1.xpose.msra.mxu0 %v2550
        %2602 = vmatprep.subr.mxu0 0.0
        %2603 = vmatpush1.xpose.msra.mxu0 %v2548
        %2604 = vmatprep.subr.mxu0 0.0
        %2605 = vmatpush1.xpose.msra.mxu0 %v2546
        %2606 = vmatprep.subr.mxu0 0.0
        %2607 = vmatpush1.xpose.msra.mxu0 %v2544
        %2608 = vmatprep.subr.mxu0 0.0
        %2609 = vmatpush2.xpose.msra.mxu0 0.0
        %2610 = vmatprep.subr.mxu0 0.0
        %2611 = vmatpush2.xpose.msra.mxu0 0.0
        %2612 = vmatprep.subr.mxu0 0.0
        %2613 = vmatpush2.xpose.msra.mxu0 0.0
        %2614 = vmatprep.subr.mxu0 0.0
        %2615 = vmatpush2.xpose.msra.mxu0 0.0
        %2616 = vmatprep.subr.mxu0 0.0
        %2617 = vmatpush2.xpose.msra.mxu0 0.0
        %2618 = vmatprep.subr.mxu0 0.0
        %2619 = vmatpush2.xpose.msra.mxu0 0.0
        %2620 = vmatprep.subr.mxu0 0.0
        %2621 = vmatpush2.xpose.msra.mxu0 0.0
        %2622 = vmatprep.subr.mxu0 0.0
        %2623 = vmatpush2.xpose.msra.mxu0 0.0
        %2624 = vmatprep.subr.mxu0 0.0
        %2625 = vmatpush2.xpose.msra.mxu0 0.0
        %2626 = vmatprep.subr.mxu0 0.0
        %2627 = vmatpush2.xpose.msra.mxu0 0.0
        %2628 = vmatprep.subr.mxu0 0.0
        %2629 = vmatpush2.xpose.msra.mxu0 0.0
        %2630 = vmatprep.subr.mxu0 0.0
        %2631 = vmatpush2.xpose.msra.mxu0 0.0
        %2632 = vmatprep.subr.mxu0 0.0
        %2633 = vmatpush2.xpose.msra.mxu0 0.0
        %2634 = vmatprep.subr.mxu0 0.0
        %2635 = vmatpush2.xpose.msra.mxu0 0.0
        %2636 = vmatprep.subr.mxu0 0.0
        %2637 = vmatpush2.xpose.msra.mxu0 0.0
        %2638 = vmatprep.subr.mxu0 0.0
        %2639 = vmatpush2.xpose.msra.mxu0 0.0
        %2640 = vmatprep.mubr.f32.mxu0 0.0
        %2641 = vmatmul.mubr.f32.gmra.mxu0 %v2512
        %v2642 = vpop.f32.mrf.mxu0
        %v2643 = vadd.f32 %v2416, %v2642
        %v2644 = vpop.f32.mrf.mxu0
        %2645 = vmatprep.mubr.f32.mxu0 0.0
        %2646 = vmatmul.mubr.f32.gmra.mxu0 %v2514
        %v2647 = vpop.f32.mrf.mxu0
        %v2648 = vadd.f32 %v2417, %v2647
        %v2649 = vpop.f32.mrf.mxu0
        %2650 = vmatprep.mubr.f32.mxu0 0.0
        %2651 = vmatmul.mubr.f32.gmra.mxu0 %v2516
        %v2652 = vpop.f32.mrf.mxu0
        %v2653 = vadd.f32 %v2418, %v2652
        %v2654 = vpop.f32.mrf.mxu0
        %2655 = vmatprep.mubr.f32.mxu0 0.0
        %2656 = vmatmul.mubr.f32.gmra.mxu0 %v2518
        %v2657 = vpop.f32.mrf.mxu0
        %v2658 = vadd.f32 %v2419, %v2657
        %v2659 = vpop.f32.mrf.mxu0
        %2660 = vmatprep.mubr.f32.mxu0 0.0
        %2661 = vmatmul.mubr.f32.gmra.mxu0 %v2520
        %v2662 = vpop.f32.mrf.mxu0
        %v2663 = vadd.f32 %v2420, %v2662
        %v2664 = vpop.f32.mrf.mxu0
        %2665 = vmatprep.mubr.f32.mxu0 0.0
        %2666 = vmatmul.mubr.f32.gmra.mxu0 %v2522
        %v2667 = vpop.f32.mrf.mxu0
        %v2668 = vadd.f32 %v2421, %v2667
        %v2669 = vpop.f32.mrf.mxu0
        %2670 = vmatprep.mubr.f32.mxu0 0.0
        %2671 = vmatmul.mubr.f32.gmra.mxu0 %v2524
        %v2672 = vpop.f32.mrf.mxu0
        %v2673 = vadd.f32 %v2422, %v2672
        %v2674 = vpop.f32.mrf.mxu0
        %2675 = vmatprep.mubr.f32.mxu0 0.0
        %2676 = vmatmul.mubr.f32.gmra.mxu0 %v2526
        %v2677 = vpop.f32.mrf.mxu0
        %v2678 = vadd.f32 %v2423, %v2677
        %v2679 = vpop.f32.mrf.mxu0
        %2680 = vmatprep.mubr.f32.mxu0 0.0
        %2681 = vmatmul.mubr.f32.gmra.mxu0 %v2528
        %v2682 = vpop.f32.mrf.mxu0
        %v2683 = vadd.f32 %v2424, %v2682
        %v2684 = vpop.f32.mrf.mxu0
        %2685 = vmatprep.mubr.f32.mxu0 0.0
        %2686 = vmatmul.mubr.f32.gmra.mxu0 %v2530
        %v2687 = vpop.f32.mrf.mxu0
        %v2688 = vadd.f32 %v2425, %v2687
        %v2689 = vpop.f32.mrf.mxu0
        %2690 = vmatprep.mubr.f32.mxu0 0.0
        %2691 = vmatmul.mubr.f32.gmra.mxu0 %v2532
        %v2692 = vpop.f32.mrf.mxu0
        %v2693 = vadd.f32 %v2426, %v2692
        %v2694 = vpop.f32.mrf.mxu0
        %2695 = vmatprep.mubr.f32.mxu0 0.0
        %2696 = vmatmul.mubr.f32.gmra.mxu0 %v2534
        %v2697 = vpop.f32.mrf.mxu0
        %v2698 = vadd.f32 %v2427, %v2697
        %v2699 = vpop.f32.mrf.mxu0
        %2700 = vmatprep.mubr.f32.mxu0 0.0
        %2701 = vmatmul.mubr.f32.gmra.mxu0 %v2536
        %v2702 = vpop.f32.mrf.mxu0
        %v2703 = vadd.f32 %v2428, %v2702
        %v2704 = vpop.f32.mrf.mxu0
        %2705 = vmatprep.mubr.f32.mxu0 0.0
        %2706 = vmatmul.mubr.f32.gmra.mxu0 %v2538
        %v2707 = vpop.f32.mrf.mxu0
        %v2708 = vadd.f32 %v2429, %v2707
        %v2709 = vpop.f32.mrf.mxu0
        %2710 = vmatprep.mubr.f32.mxu0 0.0
        %2711 = vmatmul.mubr.f32.gmra.mxu0 %v2540
        %v2712 = vpop.f32.mrf.mxu0
        %v2713 = vadd.f32 %v2430, %v2712
        %v2714 = vpop.f32.mrf.mxu0
        %2715 = vmatprep.mubr.f32.mxu0 0.0
        %2716 = vmatmul.mubr.f32.gmra.mxu0 %v2542
        %v2717 = vpop.f32.mrf.mxu0
        %v2718 = vadd.f32 %v2431, %v2717
        %v2719 = vpop.f32.mrf.mxu0
        %2720 = vdwg.mxu0
        %v2721 = vld [vmem:[#allocation3] sm:$0xff]
        %v2722 = vld [vmem:[#allocation3 + $0x8] sm:$0xff]
        %v2723 = vld [vmem:[#allocation3 + $0x10] sm:$0xff]
        %v2724 = vld [vmem:[#allocation3 + $0x18] sm:$0xff]
        %v2725 = vld [vmem:[#allocation3 + $0x20] sm:$0xff]
        %v2726 = vld [vmem:[#allocation3 + $0x28] sm:$0xff]
        %v2727 = vld [vmem:[#allocation3 + $0x30] sm:$0xff]
        %v2728 = vld [vmem:[#allocation3 + $0x38] sm:$0xff]
        %v2729 = vld [vmem:[#allocation3 + $0x40] sm:$0xff]
        %v2730 = vld [vmem:[#allocation3 + $0x48] sm:$0xff]
        %v2731 = vld [vmem:[#allocation3 + $0x50] sm:$0xff]
        %v2732 = vld [vmem:[#allocation3 + $0x58] sm:$0xff]
        %v2733 = vld [vmem:[#allocation3 + $0x60] sm:$0xff]
        %v2734 = vld [vmem:[#allocation3 + $0x68] sm:$0xff]
        %v2735 = vld [vmem:[#allocation3 + $0x70] sm:$0xff]
        %v2736 = vld [vmem:[#allocation3 + $0x78] sm:$0xff]
        %2737 = vmax.xlane.f32.xlu0 %v2643
        %v2738 = vpop.xlane.xlu0 %2737
        %2739 = vmax.xlane.f32.xlu0 %v2648
        %v2740 = vpop.xlane.xlu0 %2739
        %2741 = vmax.xlane.f32.xlu0 %v2653
        %v2742 = vpop.xlane.xlu0 %2741
        %2743 = vmax.xlane.f32.xlu0 %v2658
        %v2744 = vpop.xlane.xlu0 %2743
        %2745 = vmax.xlane.f32.xlu0 %v2663
        %v2746 = vpop.xlane.xlu0 %2745
        %2747 = vmax.xlane.f32.xlu0 %v2668
        %v2748 = vpop.xlane.xlu0 %2747
        %2749 = vmax.xlane.f32.xlu0 %v2673
        %v2750 = vpop.xlane.xlu0 %2749
        %2751 = vmax.xlane.f32.xlu0 %v2678
        %v2752 = vpop.xlane.xlu0 %2751
        %2753 = vmax.xlane.f32.xlu0 %v2683
        %v2754 = vpop.xlane.xlu0 %2753
        %2755 = vmax.xlane.f32.xlu0 %v2688
        %v2756 = vpop.xlane.xlu0 %2755
        %2757 = vmax.xlane.f32.xlu0 %v2693
        %v2758 = vpop.xlane.xlu0 %2757
        %2759 = vmax.xlane.f32.xlu0 %v2698
        %v2760 = vpop.xlane.xlu0 %2759
        %2761 = vmax.xlane.f32.xlu0 %v2703
        %v2762 = vpop.xlane.xlu0 %2761
        %2763 = vmax.xlane.f32.xlu0 %v2708
        %v2764 = vpop.xlane.xlu0 %2763
        %2765 = vmax.xlane.f32.xlu0 %v2713
        %v2766 = vpop.xlane.xlu0 %2765
        %2767 = vmax.xlane.f32.xlu0 %v2718
        %v2768 = vpop.xlane.xlu0 %2767
        %v2769 = vmax.f32 %v2721, %v2738
        %v2770 = vmax.f32 %v2722, %v2740
        %v2771 = vmax.f32 %v2723, %v2742
        %v2772 = vmax.f32 %v2724, %v2744
        %v2773 = vmax.f32 %v2725, %v2746
        %v2774 = vmax.f32 %v2726, %v2748
        %v2775 = vmax.f32 %v2727, %v2750
        %v2776 = vmax.f32 %v2728, %v2752
        %v2777 = vmax.f32 %v2729, %v2754
        %v2778 = vmax.f32 %v2730, %v2756
        %v2779 = vmax.f32 %v2731, %v2758
        %v2780 = vmax.f32 %v2732, %v2760
        %v2781 = vmax.f32 %v2733, %v2762
        %v2782 = vmax.f32 %v2734, %v2764
        %v2783 = vmax.f32 %v2735, %v2766
        %v2784 = vmax.f32 %v2736, %v2768
        %v2785 = vsub.f32 %v2721, %v2769
        %v2786 = vsub.f32 %v2722, %v2770
        %v2787 = vsub.f32 %v2723, %v2771
        %v2788 = vsub.f32 %v2724, %v2772
        %v2789 = vsub.f32 %v2725, %v2773
        %v2790 = vsub.f32 %v2726, %v2774
        %v2791 = vsub.f32 %v2727, %v2775
        %v2792 = vsub.f32 %v2728, %v2776
        %v2793 = vsub.f32 %v2729, %v2777
        %v2794 = vsub.f32 %v2730, %v2778
        %v2795 = vsub.f32 %v2731, %v2779
        %v2796 = vsub.f32 %v2732, %v2780
        %v2797 = vsub.f32 %v2733, %v2781
        %v2798 = vsub.f32 %v2734, %v2782
        %v2799 = vsub.f32 %v2735, %v2783
        %v2800 = vsub.f32 %v2736, %v2784
        %v2801 = vmul.f32 %v2785, 1.442695
        %v2802 = vpow.pop %v2801
        %v2803 = vmul.f32 %v2786, 1.442695
        %v2804 = vpow.pop %v2803
        %v2805 = vmul.f32 %v2787, 1.442695
        %v2806 = vpow.pop %v2805
        %v2807 = vmul.f32 %v2788, 1.442695
        %v2808 = vpow.pop %v2807
        %v2809 = vmul.f32 %v2789, 1.442695
        %v2810 = vpow.pop %v2809
        %v2811 = vmul.f32 %v2790, 1.442695
        %v2812 = vpow.pop %v2811
        %v2813 = vmul.f32 %v2791, 1.442695
        %v2814 = vpow.pop %v2813
        %v2815 = vmul.f32 %v2792, 1.442695
        %v2816 = vpow.pop %v2815
        %v2817 = vmul.f32 %v2793, 1.442695
        %v2818 = vpow.pop %v2817
        %v2819 = vmul.f32 %v2794, 1.442695
        %v2820 = vpow.pop %v2819
        %v2821 = vmul.f32 %v2795, 1.442695
        %v2822 = vpow.pop %v2821
        %v2823 = vmul.f32 %v2796, 1.442695
        %v2824 = vpow.pop %v2823
        %v2825 = vmul.f32 %v2797, 1.442695
        %v2826 = vpow.pop %v2825
        %v2827 = vmul.f32 %v2798, 1.442695
        %v2828 = vpow.pop %v2827
        %v2829 = vmul.f32 %v2799, 1.442695
        %v2830 = vpow.pop %v2829
        %v2831 = vmul.f32 %v2800, 1.442695
        %v2832 = vpow.pop %v2831
        %2834 = vset.pattern.permute.xlu0 1
        %2835 = vperm.xlu0 %2834, %v2769
        %v2836 = vpop.permute.xlu0 %2835
        %2839 = vset.pattern.permute.xlu0 1
        %2840 = vperm.xlu0 %2839, %v2770
        %v2841 = vpop.permute.xlu0 %2840
        %2844 = vset.pattern.permute.xlu0 1
        %2845 = vperm.xlu0 %2844, %v2771
        %v2846 = vpop.permute.xlu0 %2845
        %2849 = vset.pattern.permute.xlu0 1
        %2850 = vperm.xlu0 %2849, %v2772
        %v2851 = vpop.permute.xlu0 %2850
        %2854 = vset.pattern.permute.xlu0 1
        %2855 = vperm.xlu0 %2854, %v2773
        %v2856 = vpop.permute.xlu0 %2855
        %2859 = vset.pattern.permute.xlu0 1
        %2860 = vperm.xlu0 %2859, %v2774
        %v2861 = vpop.permute.xlu0 %2860
        %2864 = vset.pattern.permute.xlu0 1
        %2865 = vperm.xlu0 %2864, %v2775
        %v2866 = vpop.permute.xlu0 %2865
        %2869 = vset.pattern.permute.xlu0 1
        %2870 = vperm.xlu0 %2869, %v2776
        %v2871 = vpop.permute.xlu0 %2870
        %2874 = vset.pattern.permute.xlu0 1
        %2875 = vperm.xlu0 %2874, %v2777
        %v2876 = vpop.permute.xlu0 %2875
        %2879 = vset.pattern.permute.xlu0 1
        %2880 = vperm.xlu0 %2879, %v2778
        %v2881 = vpop.permute.xlu0 %2880
        %2884 = vset.pattern.permute.xlu0 1
        %2885 = vperm.xlu0 %2884, %v2779
        %v2886 = vpop.permute.xlu0 %2885
        %2889 = vset.pattern.permute.xlu0 1
        %2890 = vperm.xlu0 %2889, %v2780
        %v2891 = vpop.permute.xlu0 %2890
        %2894 = vset.pattern.permute.xlu0 1
        %2895 = vperm.xlu0 %2894, %v2781
        %v2896 = vpop.permute.xlu0 %2895
        %2899 = vset.pattern.permute.xlu0 1
        %2900 = vperm.xlu0 %2899, %v2782
        %v2901 = vpop.permute.xlu0 %2900
        %2904 = vset.pattern.permute.xlu0 1
        %2905 = vperm.xlu0 %2904, %v2783
        %v2906 = vpop.permute.xlu0 %2905
        %2909 = vset.pattern.permute.xlu0 1
        %2910 = vperm.xlu0 %2909, %v2784
        %v2911 = vpop.permute.xlu0 %2910
        %v2913 = vsub.f32 %v2643, %v2836
        %v2914 = vsub.f32 %v2648, %v2841
        %v2915 = vsub.f32 %v2653, %v2846
        %v2916 = vsub.f32 %v2658, %v2851
        %v2917 = vsub.f32 %v2663, %v2856
        %v2918 = vsub.f32 %v2668, %v2861
        %v2919 = vsub.f32 %v2673, %v2866
        %v2920 = vsub.f32 %v2678, %v2871
        %v2921 = vsub.f32 %v2683, %v2876
        %v2922 = vsub.f32 %v2688, %v2881
        %v2923 = vsub.f32 %v2693, %v2886
        %v2924 = vsub.f32 %v2698, %v2891
        %v2925 = vsub.f32 %v2703, %v2896
        %v2926 = vsub.f32 %v2708, %v2901
        %v2927 = vsub.f32 %v2713, %v2906
        %v2928 = vsub.f32 %v2718, %v2911
        %v2929 = vmul.f32 %v2913, 1.442695
        %v2930 = vpow.pop %v2929
        %v2931 = vmul.f32 %v2914, 1.442695
        %v2932 = vpow.pop %v2931
        %v2933 = vmul.f32 %v2915, 1.442695
        %v2934 = vpow.pop %v2933
        %v2935 = vmul.f32 %v2916, 1.442695
        %v2936 = vpow.pop %v2935
        %v2937 = vmul.f32 %v2917, 1.442695
        %v2938 = vpow.pop %v2937
        %v2939 = vmul.f32 %v2918, 1.442695
        %v2940 = vpow.pop %v2939
        %v2941 = vmul.f32 %v2919, 1.442695
        %v2942 = vpow.pop %v2941
        %v2943 = vmul.f32 %v2920, 1.442695
        %v2944 = vpow.pop %v2943
        %v2945 = vmul.f32 %v2921, 1.442695
        %v2946 = vpow.pop %v2945
        %v2947 = vmul.f32 %v2922, 1.442695
        %v2948 = vpow.pop %v2947
        %v2949 = vmul.f32 %v2923, 1.442695
        %v2950 = vpow.pop %v2949
        %v2951 = vmul.f32 %v2924, 1.442695
        %v2952 = vpow.pop %v2951
        %v2953 = vmul.f32 %v2925, 1.442695
        %v2954 = vpow.pop %v2953
        %v2955 = vmul.f32 %v2926, 1.442695
        %v2956 = vpow.pop %v2955
        %v2957 = vmul.f32 %v2927, 1.442695
        %v2958 = vpow.pop %v2957
        %v2959 = vmul.f32 %v2928, 1.442695
        %v2960 = vpow.pop %v2959
        %v2961 = vld [vmem:[#allocation4] sm:$0xff]
        %v2962 = vld [vmem:[#allocation4 + $0x8] sm:$0xff]
        %v2963 = vld [vmem:[#allocation4 + $0x10] sm:$0xff]
        %v2964 = vld [vmem:[#allocation4 + $0x18] sm:$0xff]
        %v2965 = vld [vmem:[#allocation4 + $0x20] sm:$0xff]
        %v2966 = vld [vmem:[#allocation4 + $0x28] sm:$0xff]
        %v2967 = vld [vmem:[#allocation4 + $0x30] sm:$0xff]
        %v2968 = vld [vmem:[#allocation4 + $0x38] sm:$0xff]
        %v2969 = vld [vmem:[#allocation4 + $0x40] sm:$0xff]
        %v2970 = vld [vmem:[#allocation4 + $0x48] sm:$0xff]
        %v2971 = vld [vmem:[#allocation4 + $0x50] sm:$0xff]
        %v2972 = vld [vmem:[#allocation4 + $0x58] sm:$0xff]
        %v2973 = vld [vmem:[#allocation4 + $0x60] sm:$0xff]
        %v2974 = vld [vmem:[#allocation4 + $0x68] sm:$0xff]
        %v2975 = vld [vmem:[#allocation4 + $0x70] sm:$0xff]
        %v2976 = vld [vmem:[#allocation4 + $0x78] sm:$0xff]
        %v2977 = vmul.f32 %v2802, %v2961
        %v2978 = vmul.f32 %v2804, %v2962
        %v2979 = vmul.f32 %v2806, %v2963
        %v2980 = vmul.f32 %v2808, %v2964
        %v2981 = vmul.f32 %v2810, %v2965
        %v2982 = vmul.f32 %v2812, %v2966
        %v2983 = vmul.f32 %v2814, %v2967
        %v2984 = vmul.f32 %v2816, %v2968
        %v2985 = vmul.f32 %v2818, %v2969
        %v2986 = vmul.f32 %v2820, %v2970
        %v2987 = vmul.f32 %v2822, %v2971
        %v2988 = vmul.f32 %v2824, %v2972
        %v2989 = vmul.f32 %v2826, %v2973
        %v2990 = vmul.f32 %v2828, %v2974
        %v2991 = vmul.f32 %v2830, %v2975
        %v2992 = vmul.f32 %v2832, %v2976
        %2993 = vadd.xlane.f32.xlu0 %v2930
        %v2994 = vpop.xlane.xlu0 %2993
        %2995 = vadd.xlane.f32.xlu0 %v2932
        %v2996 = vpop.xlane.xlu0 %2995
        %2997 = vadd.xlane.f32.xlu0 %v2934
        %v2998 = vpop.xlane.xlu0 %2997
        %2999 = vadd.xlane.f32.xlu0 %v2936
        %v3000 = vpop.xlane.xlu0 %2999
        %3001 = vadd.xlane.f32.xlu0 %v2938
        %v3002 = vpop.xlane.xlu0 %3001
        %3003 = vadd.xlane.f32.xlu0 %v2940
        %v3004 = vpop.xlane.xlu0 %3003
        %3005 = vadd.xlane.f32.xlu0 %v2942
        %v3006 = vpop.xlane.xlu0 %3005
        %3007 = vadd.xlane.f32.xlu0 %v2944
        %v3008 = vpop.xlane.xlu0 %3007
        %3009 = vadd.xlane.f32.xlu0 %v2946
        %v3010 = vpop.xlane.xlu0 %3009
        %3011 = vadd.xlane.f32.xlu0 %v2948
        %v3012 = vpop.xlane.xlu0 %3011
        %3013 = vadd.xlane.f32.xlu0 %v2950
        %v3014 = vpop.xlane.xlu0 %3013
        %3015 = vadd.xlane.f32.xlu0 %v2952
        %v3016 = vpop.xlane.xlu0 %3015
        %3017 = vadd.xlane.f32.xlu0 %v2954
        %v3018 = vpop.xlane.xlu0 %3017
        %3019 = vadd.xlane.f32.xlu0 %v2956
        %v3020 = vpop.xlane.xlu0 %3019
        %3021 = vadd.xlane.f32.xlu0 %v2958
        %v3022 = vpop.xlane.xlu0 %3021
        %3023 = vadd.xlane.f32.xlu0 %v2960
        %v3024 = vpop.xlane.xlu0 %3023
        %v3025 = vadd.f32 %v2977, %v2994
        %v3026 = vadd.f32 %v2978, %v2996
        %v3027 = vadd.f32 %v2979, %v2998
        %v3028 = vadd.f32 %v2980, %v3000
        %v3029 = vadd.f32 %v2981, %v3002
        %v3030 = vadd.f32 %v2982, %v3004
        %v3031 = vadd.f32 %v2983, %v3006
        %v3032 = vadd.f32 %v2984, %v3008
        %v3033 = vadd.f32 %v2985, %v3010
        %v3034 = vadd.f32 %v2986, %v3012
        %v3035 = vadd.f32 %v2987, %v3014
        %v3036 = vadd.f32 %v2988, %v3016
        %v3037 = vadd.f32 %v2989, %v3018
        %v3038 = vadd.f32 %v2990, %v3020
        %v3039 = vadd.f32 %v2991, %v3022
        %v3040 = vadd.f32 %v2992, %v3024
        %vm3041 = vcmask 15368
        %3042 = vst.msk [vmem:[#allocation4] sm:$0xff] %vm3041, %v3025
        %3043 = vst.msk [vmem:[#allocation4 + $0x8] sm:$0xff] %vm3041, %v3026
        %3044 = vst.msk [vmem:[#allocation4 + $0x10] sm:$0xff] %vm3041, %v3027
        %3045 = vst.msk [vmem:[#allocation4 + $0x18] sm:$0xff] %vm3041, %v3028
        %3046 = vst.msk [vmem:[#allocation4 + $0x20] sm:$0xff] %vm3041, %v3029
        %3047 = vst.msk [vmem:[#allocation4 + $0x28] sm:$0xff] %vm3041, %v3030
        %3048 = vst.msk [vmem:[#allocation4 + $0x30] sm:$0xff] %vm3041, %v3031
        %3049 = vst.msk [vmem:[#allocation4 + $0x38] sm:$0xff] %vm3041, %v3032
        %3050 = vst.msk [vmem:[#allocation4 + $0x40] sm:$0xff] %vm3041, %v3033
        %3051 = vst.msk [vmem:[#allocation4 + $0x48] sm:$0xff] %vm3041, %v3034
        %3052 = vst.msk [vmem:[#allocation4 + $0x50] sm:$0xff] %vm3041, %v3035
        %3053 = vst.msk [vmem:[#allocation4 + $0x58] sm:$0xff] %vm3041, %v3036
        %3054 = vst.msk [vmem:[#allocation4 + $0x60] sm:$0xff] %vm3041, %v3037
        %3055 = vst.msk [vmem:[#allocation4 + $0x68] sm:$0xff] %vm3041, %v3038
        %3056 = vst.msk [vmem:[#allocation4 + $0x70] sm:$0xff] %vm3041, %v3039
        %3057 = vst.msk [vmem:[#allocation4 + $0x78] sm:$0xff] %vm3041, %v3040
        %3074 = vrot.lane.b32.xlu0 %v1389, 64
        %v3075 = vpop.permute.xlu0 %3074
        %3076 = vrot.lane.b32.xlu0 %v1395, 64
        %v3077 = vpop.permute.xlu0 %3076
        %3078 = vrot.lane.b32.xlu0 %v1401, 64
        %v3079 = vpop.permute.xlu0 %3078
        %3080 = vrot.lane.b32.xlu0 %v1407, 64
        %v3081 = vpop.permute.xlu0 %3080
        %3082 = vrot.lane.b32.xlu0 %v1413, 64
        %v3083 = vpop.permute.xlu0 %3082
        %3084 = vrot.lane.b32.xlu0 %v1419, 64
        %v3085 = vpop.permute.xlu0 %3084
        %3086 = vrot.lane.b32.xlu0 %v1425, 64
        %v3087 = vpop.permute.xlu0 %3086
        %3088 = vrot.lane.b32.xlu0 %v1431, 64
        %v3089 = vpop.permute.xlu0 %3088
        %3090 = vrot.lane.b32.xlu0 %v1437, 64
        %v3091 = vpop.permute.xlu0 %3090
        %3092 = vrot.lane.b32.xlu0 %v1443, 64
        %v3093 = vpop.permute.xlu0 %3092
        %3094 = vrot.lane.b32.xlu0 %v1449, 64
        %v3095 = vpop.permute.xlu0 %3094
        %3096 = vrot.lane.b32.xlu0 %v1455, 64
        %v3097 = vpop.permute.xlu0 %3096
        %3098 = vrot.lane.b32.xlu0 %v1461, 64
        %v3099 = vpop.permute.xlu0 %3098
        %3100 = vrot.lane.b32.xlu0 %v1467, 64
        %v3101 = vpop.permute.xlu0 %3100
        %3102 = vrot.lane.b32.xlu0 %v1473, 64
        %v3103 = vpop.permute.xlu0 %3102
        %3104 = vrot.lane.b32.xlu0 %v1479, 64
        %v3105 = vpop.permute.xlu0 %3104
        %3122 = vmatprep.subr.mxu0 0.0
        %3123 = vmatpush1.msra.mxu0 %v3105
        %3124 = vmatprep.subr.mxu0 0.0
        %3125 = vmatpush1.msra.mxu0 %v3103
        %3126 = vmatprep.subr.mxu0 0.0
        %3127 = vmatpush1.msra.mxu0 %v3101
        %3128 = vmatprep.subr.mxu0 0.0
        %3129 = vmatpush1.msra.mxu0 %v3099
        %3130 = vmatprep.subr.mxu0 0.0
        %3131 = vmatpush1.msra.mxu0 %v3097
        %3132 = vmatprep.subr.mxu0 0.0
        %3133 = vmatpush1.msra.mxu0 %v3095
        %3134 = vmatprep.subr.mxu0 0.0
        %3135 = vmatpush1.msra.mxu0 %v3093
        %3136 = vmatprep.subr.mxu0 0.0
        %3137 = vmatpush1.msra.mxu0 %v3091
        %3138 = vmatprep.subr.mxu0 0.0
        %3139 = vmatpush1.msra.mxu0 %v3089
        %3140 = vmatprep.subr.mxu0 0.0
        %3141 = vmatpush1.msra.mxu0 %v3087
        %3142 = vmatprep.subr.mxu0 0.0
        %3143 = vmatpush1.msra.mxu0 %v3085
        %3144 = vmatprep.subr.mxu0 0.0
        %3145 = vmatpush1.msra.mxu0 %v3083
        %3146 = vmatprep.subr.mxu0 0.0
        %3147 = vmatpush1.msra.mxu0 %v3081
        %3148 = vmatprep.subr.mxu0 0.0
        %3149 = vmatpush1.msra.mxu0 %v3079
        %3150 = vmatprep.subr.mxu0 0.0
        %3151 = vmatpush1.msra.mxu0 %v3077
        %3152 = vmatprep.subr.mxu0 0.0
        %3153 = vmatpush1.msra.mxu0 %v3075
        %3154 = vmatprep.subr.mxu0 0.0
        %3155 = vmatpush2.msra.mxu0 0.0
        %3156 = vmatprep.subr.mxu0 0.0
        %3157 = vmatpush2.msra.mxu0 0.0
        %3158 = vmatprep.subr.mxu0 0.0
        %3159 = vmatpush2.msra.mxu0 0.0
        %3160 = vmatprep.subr.mxu0 0.0
        %3161 = vmatpush2.msra.mxu0 0.0
        %3162 = vmatprep.subr.mxu0 0.0
        %3163 = vmatpush2.msra.mxu0 0.0
        %3164 = vmatprep.subr.mxu0 0.0
        %3165 = vmatpush2.msra.mxu0 0.0
        %3166 = vmatprep.subr.mxu0 0.0
        %3167 = vmatpush2.msra.mxu0 0.0
        %3168 = vmatprep.subr.mxu0 0.0
        %3169 = vmatpush2.msra.mxu0 0.0
        %3170 = vmatprep.subr.mxu0 0.0
        %3171 = vmatpush2.msra.mxu0 0.0
        %3172 = vmatprep.subr.mxu0 0.0
        %3173 = vmatpush2.msra.mxu0 0.0
        %3174 = vmatprep.subr.mxu0 0.0
        %3175 = vmatpush2.msra.mxu0 0.0
        %3176 = vmatprep.subr.mxu0 0.0
        %3177 = vmatpush2.msra.mxu0 0.0
        %3178 = vmatprep.subr.mxu0 0.0
        %3179 = vmatpush2.msra.mxu0 0.0
        %3180 = vmatprep.subr.mxu0 0.0
        %3181 = vmatpush2.msra.mxu0 0.0
        %3182 = vmatprep.subr.mxu0 0.0
        %3183 = vmatpush2.msra.mxu0 0.0
        %3184 = vmatprep.subr.mxu0 0.0
        %3185 = vmatpush2.msra.mxu0 0.0
        %3186 = vmatprep.mubr.f32.mxu0 0.0
        %3187 = vmatmul.mubr.f32.gmra.mxu0 %v2930
        %v3188 = vpop.f32.mrf.mxu0
        %v3189 = vadd.f32 0.0, %v3188
        %v3190 = vpop.f32.mrf.mxu0
        %3191 = vmatprep.mubr.f32.mxu0 0.0
        %3192 = vmatmul.mubr.f32.gmra.mxu0 %v2932
        %v3193 = vpop.f32.mrf.mxu0
        %v3194 = vadd.f32 0.0, %v3193
        %v3195 = vpop.f32.mrf.mxu0
        %3196 = vmatprep.mubr.f32.mxu0 0.0
        %3197 = vmatmul.mubr.f32.gmra.mxu0 %v2934
        %v3198 = vpop.f32.mrf.mxu0
        %v3199 = vadd.f32 0.0, %v3198
        %v3200 = vpop.f32.mrf.mxu0
        %3201 = vmatprep.mubr.f32.mxu0 0.0
        %3202 = vmatmul.mubr.f32.gmra.mxu0 %v2936
        %v3203 = vpop.f32.mrf.mxu0
        %v3204 = vadd.f32 0.0, %v3203
        %v3205 = vpop.f32.mrf.mxu0
        %3206 = vmatprep.mubr.f32.mxu0 0.0
        %3207 = vmatmul.mubr.f32.gmra.mxu0 %v2938
        %v3208 = vpop.f32.mrf.mxu0
        %v3209 = vadd.f32 0.0, %v3208
        %v3210 = vpop.f32.mrf.mxu0
        %3211 = vmatprep.mubr.f32.mxu0 0.0
        %3212 = vmatmul.mubr.f32.gmra.mxu0 %v2940
        %v3213 = vpop.f32.mrf.mxu0
        %v3214 = vadd.f32 0.0, %v3213
        %v3215 = vpop.f32.mrf.mxu0
        %3216 = vmatprep.mubr.f32.mxu0 0.0
        %3217 = vmatmul.mubr.f32.gmra.mxu0 %v2942
        %v3218 = vpop.f32.mrf.mxu0
        %v3219 = vadd.f32 0.0, %v3218
        %v3220 = vpop.f32.mrf.mxu0
        %3221 = vmatprep.mubr.f32.mxu0 0.0
        %3222 = vmatmul.mubr.f32.gmra.mxu0 %v2944
        %v3223 = vpop.f32.mrf.mxu0
        %v3224 = vadd.f32 0.0, %v3223
        %v3225 = vpop.f32.mrf.mxu0
        %3226 = vmatprep.mubr.f32.mxu0 0.0
        %3227 = vmatmul.mubr.f32.gmra.mxu0 %v2946
        %v3228 = vpop.f32.mrf.mxu0
        %v3229 = vadd.f32 0.0, %v3228
        %v3230 = vpop.f32.mrf.mxu0
        %3231 = vmatprep.mubr.f32.mxu0 0.0
        %3232 = vmatmul.mubr.f32.gmra.mxu0 %v2948
        %v3233 = vpop.f32.mrf.mxu0
        %v3234 = vadd.f32 0.0, %v3233
        %v3235 = vpop.f32.mrf.mxu0
        %3236 = vmatprep.mubr.f32.mxu0 0.0
        %3237 = vmatmul.mubr.f32.gmra.mxu0 %v2950
        %v3238 = vpop.f32.mrf.mxu0
        %v3239 = vadd.f32 0.0, %v3238
        %v3240 = vpop.f32.mrf.mxu0
        %3241 = vmatprep.mubr.f32.mxu0 0.0
        %3242 = vmatmul.mubr.f32.gmra.mxu0 %v2952
        %v3243 = vpop.f32.mrf.mxu0
        %v3244 = vadd.f32 0.0, %v3243
        %v3245 = vpop.f32.mrf.mxu0
        %3246 = vmatprep.mubr.f32.mxu0 0.0
        %3247 = vmatmul.mubr.f32.gmra.mxu0 %v2954
        %v3248 = vpop.f32.mrf.mxu0
        %v3249 = vadd.f32 0.0, %v3248
        %v3250 = vpop.f32.mrf.mxu0
        %3251 = vmatprep.mubr.f32.mxu0 0.0
        %3252 = vmatmul.mubr.f32.gmra.mxu0 %v2956
        %v3253 = vpop.f32.mrf.mxu0
        %v3254 = vadd.f32 0.0, %v3253
        %v3255 = vpop.f32.mrf.mxu0
        %3256 = vmatprep.mubr.f32.mxu0 0.0
        %3257 = vmatmul.mubr.f32.gmra.mxu0 %v2958
        %v3258 = vpop.f32.mrf.mxu0
        %v3259 = vadd.f32 0.0, %v3258
        %v3260 = vpop.f32.mrf.mxu0
        %3261 = vmatprep.mubr.f32.mxu0 0.0
        %3262 = vmatmul.mubr.f32.gmra.mxu0 %v2960
        %v3263 = vpop.f32.mrf.mxu0
        %v3264 = vadd.f32 0.0, %v3263
        %v3265 = vpop.f32.mrf.mxu0
        %3266 = vdwg.mxu0
        %v3267 = vld [vmem:[#allocation5] sm:$0xff]
        %v3268 = vld [vmem:[#allocation5 + $0x10] sm:$0xff]
        %v3269 = vld [vmem:[#allocation5 + $0x20] sm:$0xff]
        %v3270 = vld [vmem:[#allocation5 + $0x30] sm:$0xff]
        %v3271 = vld [vmem:[#allocation5 + $0x40] sm:$0xff]
        %v3272 = vld [vmem:[#allocation5 + $0x50] sm:$0xff]
        %v3273 = vld [vmem:[#allocation5 + $0x60] sm:$0xff]
        %v3274 = vld [vmem:[#allocation5 + $0x70] sm:$0xff]
        %v3275 = vld [vmem:[#allocation5 + $0x80] sm:$0xff]
        %v3276 = vld [vmem:[#allocation5 + $0x90] sm:$0xff]
        %v3277 = vld [vmem:[#allocation5 + $0xa0] sm:$0xff]
        %v3278 = vld [vmem:[#allocation5 + $0xb0] sm:$0xff]
        %v3279 = vld [vmem:[#allocation5 + $0xc0] sm:$0xff]
        %v3280 = vld [vmem:[#allocation5 + $0xd0] sm:$0xff]
        %v3281 = vld [vmem:[#allocation5 + $0xe0] sm:$0xff]
        %v3282 = vld [vmem:[#allocation5 + $0xf0] sm:$0xff]
        %3284 = vset.pattern.permute.xlu0 1
        %3285 = vperm.xlu0 %3284, %v2802
        %v3286 = vpop.permute.xlu0 %3285
        %3289 = vset.pattern.permute.xlu0 1
        %3290 = vperm.xlu0 %3289, %v2804
        %v3291 = vpop.permute.xlu0 %3290
        %3294 = vset.pattern.permute.xlu0 1
        %3295 = vperm.xlu0 %3294, %v2806
        %v3296 = vpop.permute.xlu0 %3295
        %3299 = vset.pattern.permute.xlu0 1
        %3300 = vperm.xlu0 %3299, %v2808
        %v3301 = vpop.permute.xlu0 %3300
        %3304 = vset.pattern.permute.xlu0 1
        %3305 = vperm.xlu0 %3304, %v2810
        %v3306 = vpop.permute.xlu0 %3305
        %3309 = vset.pattern.permute.xlu0 1
        %3310 = vperm.xlu0 %3309, %v2812
        %v3311 = vpop.permute.xlu0 %3310
        %3314 = vset.pattern.permute.xlu0 1
        %3315 = vperm.xlu0 %3314, %v2814
        %v3316 = vpop.permute.xlu0 %3315
        %3319 = vset.pattern.permute.xlu0 1
        %3320 = vperm.xlu0 %3319, %v2816
        %v3321 = vpop.permute.xlu0 %3320
        %3324 = vset.pattern.permute.xlu0 1
        %3325 = vperm.xlu0 %3324, %v2818
        %v3326 = vpop.permute.xlu0 %3325
        %3329 = vset.pattern.permute.xlu0 1
        %3330 = vperm.xlu0 %3329, %v2820
        %v3331 = vpop.permute.xlu0 %3330
        %3334 = vset.pattern.permute.xlu0 1
        %3335 = vperm.xlu0 %3334, %v2822
        %v3336 = vpop.permute.xlu0 %3335
        %3339 = vset.pattern.permute.xlu0 1
        %3340 = vperm.xlu0 %3339, %v2824
        %v3341 = vpop.permute.xlu0 %3340
        %3344 = vset.pattern.permute.xlu0 1
        %3345 = vperm.xlu0 %3344, %v2826
        %v3346 = vpop.permute.xlu0 %3345
        %3349 = vset.pattern.permute.xlu0 1
        %3350 = vperm.xlu0 %3349, %v2828
        %v3351 = vpop.permute.xlu0 %3350
        %3354 = vset.pattern.permute.xlu0 1
        %3355 = vperm.xlu0 %3354, %v2830
        %v3356 = vpop.permute.xlu0 %3355
        %3359 = vset.pattern.permute.xlu0 1
        %3360 = vperm.xlu0 %3359, %v2832
        %v3361 = vpop.permute.xlu0 %3360
        %v3363 = vmul.f32 %v3286, %v3267
        %v3364 = vmul.f32 %v3291, %v3268
        %v3365 = vmul.f32 %v3296, %v3269
        %v3366 = vmul.f32 %v3301, %v3270
        %v3367 = vmul.f32 %v3306, %v3271
        %v3368 = vmul.f32 %v3311, %v3272
        %v3369 = vmul.f32 %v3316, %v3273
        %v3370 = vmul.f32 %v3321, %v3274
        %v3371 = vmul.f32 %v3326, %v3275
        %v3372 = vmul.f32 %v3331, %v3276
        %v3373 = vmul.f32 %v3336, %v3277
        %v3374 = vmul.f32 %v3341, %v3278
        %v3375 = vmul.f32 %v3346, %v3279
        %v3376 = vmul.f32 %v3351, %v3280
        %v3377 = vmul.f32 %v3356, %v3281
        %v3378 = vmul.f32 %v3361, %v3282
        %3395 = vrot.lane.b32.xlu0 %v3189, 64
        %v3396 = vpop.permute.xlu0 %3395
        %3397 = vrot.lane.b32.xlu0 %v3194, 64
        %v3398 = vpop.permute.xlu0 %3397
        %3399 = vrot.lane.b32.xlu0 %v3199, 64
        %v3400 = vpop.permute.xlu0 %3399
        %3401 = vrot.lane.b32.xlu0 %v3204, 64
        %v3402 = vpop.permute.xlu0 %3401
        %3403 = vrot.lane.b32.xlu0 %v3209, 64
        %v3404 = vpop.permute.xlu0 %3403
        %3405 = vrot.lane.b32.xlu0 %v3214, 64
        %v3406 = vpop.permute.xlu0 %3405
        %3407 = vrot.lane.b32.xlu0 %v3219, 64
        %v3408 = vpop.permute.xlu0 %3407
        %3409 = vrot.lane.b32.xlu0 %v3224, 64
        %v3410 = vpop.permute.xlu0 %3409
        %3411 = vrot.lane.b32.xlu0 %v3229, 64
        %v3412 = vpop.permute.xlu0 %3411
        %3413 = vrot.lane.b32.xlu0 %v3234, 64
        %v3414 = vpop.permute.xlu0 %3413
        %3415 = vrot.lane.b32.xlu0 %v3239, 64
        %v3416 = vpop.permute.xlu0 %3415
        %3417 = vrot.lane.b32.xlu0 %v3244, 64
        %v3418 = vpop.permute.xlu0 %3417
        %3419 = vrot.lane.b32.xlu0 %v3249, 64
        %v3420 = vpop.permute.xlu0 %3419
        %3421 = vrot.lane.b32.xlu0 %v3254, 64
        %v3422 = vpop.permute.xlu0 %3421
        %3423 = vrot.lane.b32.xlu0 %v3259, 64
        %v3424 = vpop.permute.xlu0 %3423
        %3425 = vrot.lane.b32.xlu0 %v3264, 64
        %v3426 = vpop.permute.xlu0 %3425
        %v3443 = vadd.f32 %v3363, %v3396
        %v3444 = vadd.f32 %v3364, %v3398
        %v3445 = vadd.f32 %v3365, %v3400
        %v3446 = vadd.f32 %v3366, %v3402
        %v3447 = vadd.f32 %v3367, %v3404
        %v3448 = vadd.f32 %v3368, %v3406
        %v3449 = vadd.f32 %v3369, %v3408
        %v3450 = vadd.f32 %v3370, %v3410
        %v3451 = vadd.f32 %v3371, %v3412
        %v3452 = vadd.f32 %v3372, %v3414
        %v3453 = vadd.f32 %v3373, %v3416
        %v3454 = vadd.f32 %v3374, %v3418
        %v3455 = vadd.f32 %v3375, %v3420
        %v3456 = vadd.f32 %v3376, %v3422
        %v3457 = vadd.f32 %v3377, %v3424
        %v3458 = vadd.f32 %v3378, %v3426
        %vm3459 = vcmask 1048064
        %3460 = vst.msk [vmem:[#allocation5] sm:$0xff] %vm3459, %v3443
        %3461 = vst.msk [vmem:[#allocation5 + $0x10] sm:$0xff] %vm3459, %v3444
        %3462 = vst.msk [vmem:[#allocation5 + $0x20] sm:$0xff] %vm3459, %v3445
        %3463 = vst.msk [vmem:[#allocation5 + $0x30] sm:$0xff] %vm3459, %v3446
        %3464 = vst.msk [vmem:[#allocation5 + $0x40] sm:$0xff] %vm3459, %v3447
        %3465 = vst.msk [vmem:[#allocation5 + $0x50] sm:$0xff] %vm3459, %v3448
        %3466 = vst.msk [vmem:[#allocation5 + $0x60] sm:$0xff] %vm3459, %v3449
        %3467 = vst.msk [vmem:[#allocation5 + $0x70] sm:$0xff] %vm3459, %v3450
        %3468 = vst.msk [vmem:[#allocation5 + $0x80] sm:$0xff] %vm3459, %v3451
        %3469 = vst.msk [vmem:[#allocation5 + $0x90] sm:$0xff] %vm3459, %v3452
        %3470 = vst.msk [vmem:[#allocation5 + $0xa0] sm:$0xff] %vm3459, %v3453
        %3471 = vst.msk [vmem:[#allocation5 + $0xb0] sm:$0xff] %vm3459, %v3454
        %3472 = vst.msk [vmem:[#allocation5 + $0xc0] sm:$0xff] %vm3459, %v3455
        %3473 = vst.msk [vmem:[#allocation5 + $0xd0] sm:$0xff] %vm3459, %v3456
        %3474 = vst.msk [vmem:[#allocation5 + $0xe0] sm:$0xff] %vm3459, %v3457
        %3475 = vst.msk [vmem:[#allocation5 + $0xf0] sm:$0xff] %vm3459, %v3458
        %3476 = vst.msk [vmem:[#allocation3] sm:$0xff] %vm3041, %v2769
        %3477 = vst.msk [vmem:[#allocation3 + $0x8] sm:$0xff] %vm3041, %v2770
        %3478 = vst.msk [vmem:[#allocation3 + $0x10] sm:$0xff] %vm3041, %v2771
        %3479 = vst.msk [vmem:[#allocation3 + $0x18] sm:$0xff] %vm3041, %v2772
        %3480 = vst.msk [vmem:[#allocation3 + $0x20] sm:$0xff] %vm3041, %v2773
        %3481 = vst.msk [vmem:[#allocation3 + $0x28] sm:$0xff] %vm3041, %v2774
        %3482 = vst.msk [vmem:[#allocation3 + $0x30] sm:$0xff] %vm3041, %v2775
        %3483 = vst.msk [vmem:[#allocation3 + $0x38] sm:$0xff] %vm3041, %v2776
        %3484 = vst.msk [vmem:[#allocation3 + $0x40] sm:$0xff] %vm3041, %v2777
        %3485 = vst.msk [vmem:[#allocation3 + $0x48] sm:$0xff] %vm3041, %v2778
        %3486 = vst.msk [vmem:[#allocation3 + $0x50] sm:$0xff] %vm3041, %v2779
        %3487 = vst.msk [vmem:[#allocation3 + $0x58] sm:$0xff] %vm3041, %v2780
        %3488 = vst.msk [vmem:[#allocation3 + $0x60] sm:$0xff] %vm3041, %v2781
        %3489 = vst.msk [vmem:[#allocation3 + $0x68] sm:$0xff] %vm3041, %v2782
        %3490 = vst.msk [vmem:[#allocation3 + $0x70] sm:$0xff] %vm3041, %v2783
        %3491 = vst.msk [vmem:[#allocation3 + $0x78] sm:$0xff] %vm3041, %v2784
        %v3492 = vld [vmem:[#allocation2 + $0x8] sm:$0xff]
        %v3493 = vld [vmem:[#allocation2 + $0x18] sm:$0xff]
        %v3494 = vld [vmem:[#allocation2 + $0x28] sm:$0xff]
        %v3495 = vld [vmem:[#allocation2 + $0x38] sm:$0xff]
        %v3496 = vld [vmem:[#allocation2 + $0x48] sm:$0xff]
        %v3497 = vld [vmem:[#allocation2 + $0x58] sm:$0xff]
        %v3498 = vld [vmem:[#allocation2 + $0x68] sm:$0xff]
        %v3499 = vld [vmem:[#allocation2 + $0x78] sm:$0xff]
        %v3500 = vld [vmem:[#allocation2 + $0x88] sm:$0xff]
        %v3501 = vld [vmem:[#allocation2 + $0x98] sm:$0xff]
        %v3502 = vld [vmem:[#allocation2 + $0xa8] sm:$0xff]
        %v3503 = vld [vmem:[#allocation2 + $0xb8] sm:$0xff]
        %v3504 = vld [vmem:[#allocation2 + $0xc8] sm:$0xff]
        %v3505 = vld [vmem:[#allocation2 + $0xd8] sm:$0xff]
        %v3506 = vld [vmem:[#allocation2 + $0xe8] sm:$0xff]
        %v3507 = vld [vmem:[#allocation2 + $0xf8] sm:$0xff]
        %s3508 = scalar_lea.vmem %s528, 256 [#allocation20]
        %v3509 = vld [vmem:[%s3508] sm:$0xff]
        %v3510 = vld [vmem:[%s3508 + $0x8] sm:$0xff]
        %v3511 = vld [vmem:[%s3508 + $0x10] sm:$0xff]
        %v3512 = vld [vmem:[%s3508 + $0x18] sm:$0xff]
        %v3513 = vld [vmem:[%s3508 + $0x20] sm:$0xff]
        %v3514 = vld [vmem:[%s3508 + $0x28] sm:$0xff]
        %v3515 = vld [vmem:[%s3508 + $0x30] sm:$0xff]
        %v3516 = vld [vmem:[%s3508 + $0x38] sm:$0xff]
        %v3517 = vld [vmem:[%s3508 + $0x40] sm:$0xff]
        %v3518 = vld [vmem:[%s3508 + $0x48] sm:$0xff]
        %v3519 = vld [vmem:[%s3508 + $0x50] sm:$0xff]
        %v3520 = vld [vmem:[%s3508 + $0x58] sm:$0xff]
        %v3521 = vld [vmem:[%s3508 + $0x60] sm:$0xff]
        %v3522 = vld [vmem:[%s3508 + $0x68] sm:$0xff]
        %v3523 = vld [vmem:[%s3508 + $0x70] sm:$0xff]
        %v3524 = vld [vmem:[%s3508 + $0x78] sm:$0xff]
        %v3526 = vsel %vm1515, %v3492, 0
        %v3529 = vsel %vm1515, %v3493, 0
        %v3532 = vsel %vm1515, %v3494, 0
        %v3535 = vsel %vm1515, %v3495, 0
        %v3538 = vsel %vm1515, %v3496, 0
        %v3541 = vsel %vm1515, %v3497, 0
        %v3544 = vsel %vm1515, %v3498, 0
        %v3547 = vsel %vm1515, %v3499, 0
        %v3550 = vsel %vm1515, %v3500, 0
        %v3553 = vsel %vm1515, %v3501, 0
        %v3556 = vsel %vm1515, %v3502, 0
        %v3559 = vsel %vm1515, %v3503, 0
        %v3562 = vsel %vm1515, %v3504, 0
        %v3565 = vsel %vm1515, %v3505, 0
        %v3568 = vsel %vm1515, %v3506, 0
        %v3571 = vsel %vm1515, %v3507, 0
        %v3574 = vsel %vm1515, %v1230, 0
        %v3577 = vsel %vm1515, %v1236, 0
        %v3580 = vsel %vm1515, %v1242, 0
        %v3583 = vsel %vm1515, %v1248, 0
        %v3586 = vsel %vm1515, %v1254, 0
        %v3589 = vsel %vm1515, %v1260, 0
        %v3592 = vsel %vm1515, %v1266, 0
        %v3595 = vsel %vm1515, %v1272, 0
        %v3598 = vsel %vm1515, %v1278, 0
        %v3601 = vsel %vm1515, %v1284, 0
        %v3604 = vsel %vm1515, %v1290, 0
        %v3607 = vsel %vm1515, %v1296, 0
        %v3610 = vsel %vm1515, %v1302, 0
        %v3613 = vsel %vm1515, %v1308, 0
        %v3616 = vsel %vm1515, %v1314, 0
        %v3619 = vsel %vm1515, %v1320, 0
        %3621 = vmatprep.subr.mxu0 0.0
        %3622 = vmatpush1.xpose.msra.mxu0 %v3619
        %3623 = vmatprep.subr.mxu0 0.0
        %3624 = vmatpush1.xpose.msra.mxu0 %v3616
        %3625 = vmatprep.subr.mxu0 0.0
        %3626 = vmatpush1.xpose.msra.mxu0 %v3613
        %3627 = vmatprep.subr.mxu0 0.0
        %3628 = vmatpush1.xpose.msra.mxu0 %v3610
        %3629 = vmatprep.subr.mxu0 0.0
        %3630 = vmatpush1.xpose.msra.mxu0 %v3607
        %3631 = vmatprep.subr.mxu0 0.0
        %3632 = vmatpush1.xpose.msra.mxu0 %v3604
        %3633 = vmatprep.subr.mxu0 0.0
        %3634 = vmatpush1.xpose.msra.mxu0 %v3601
        %3635 = vmatprep.subr.mxu0 0.0
        %3636 = vmatpush1.xpose.msra.mxu0 %v3598
        %3637 = vmatprep.subr.mxu0 0.0
        %3638 = vmatpush1.xpose.msra.mxu0 %v3595
        %3639 = vmatprep.subr.mxu0 0.0
        %3640 = vmatpush1.xpose.msra.mxu0 %v3592
        %3641 = vmatprep.subr.mxu0 0.0
        %3642 = vmatpush1.xpose.msra.mxu0 %v3589
        %3643 = vmatprep.subr.mxu0 0.0
        %3644 = vmatpush1.xpose.msra.mxu0 %v3586
        %3645 = vmatprep.subr.mxu0 0.0
        %3646 = vmatpush1.xpose.msra.mxu0 %v3583
        %3647 = vmatprep.subr.mxu0 0.0
        %3648 = vmatpush1.xpose.msra.mxu0 %v3580
        %3649 = vmatprep.subr.mxu0 0.0
        %3650 = vmatpush1.xpose.msra.mxu0 %v3577
        %3651 = vmatprep.subr.mxu0 0.0
        %3652 = vmatpush1.xpose.msra.mxu0 %v3574
        %3653 = vmatprep.subr.mxu0 0.0
        %3654 = vmatpush2.xpose.msra.mxu0 0.0
        %3655 = vmatprep.subr.mxu0 0.0
        %3656 = vmatpush2.xpose.msra.mxu0 0.0
        %3657 = vmatprep.subr.mxu0 0.0
        %3658 = vmatpush2.xpose.msra.mxu0 0.0
        %3659 = vmatprep.subr.mxu0 0.0
        %3660 = vmatpush2.xpose.msra.mxu0 0.0
        %3661 = vmatprep.subr.mxu0 0.0
        %3662 = vmatpush2.xpose.msra.mxu0 0.0
        %3663 = vmatprep.subr.mxu0 0.0
        %3664 = vmatpush2.xpose.msra.mxu0 0.0
        %3665 = vmatprep.subr.mxu0 0.0
        %3666 = vmatpush2.xpose.msra.mxu0 0.0
        %3667 = vmatprep.subr.mxu0 0.0
        %3668 = vmatpush2.xpose.msra.mxu0 0.0
        %3669 = vmatprep.subr.mxu0 0.0
        %3670 = vmatpush2.xpose.msra.mxu0 0.0
        %3671 = vmatprep.subr.mxu0 0.0
        %3672 = vmatpush2.xpose.msra.mxu0 0.0
        %3673 = vmatprep.subr.mxu0 0.0
        %3674 = vmatpush2.xpose.msra.mxu0 0.0
        %3675 = vmatprep.subr.mxu0 0.0
        %3676 = vmatpush2.xpose.msra.mxu0 0.0
        %3677 = vmatprep.subr.mxu0 0.0
        %3678 = vmatpush2.xpose.msra.mxu0 0.0
        %3679 = vmatprep.subr.mxu0 0.0
        %3680 = vmatpush2.xpose.msra.mxu0 0.0
        %3681 = vmatprep.subr.mxu0 0.0
        %3682 = vmatpush2.xpose.msra.mxu0 0.0
        %3683 = vmatprep.subr.mxu0 0.0
        %3684 = vmatpush2.xpose.msra.mxu0 0.0
        %3685 = vmatprep.mubr.f32.mxu0 0.0
        %3686 = vmatmul.mubr.f32.gmra.mxu0 %v3526
        %v3687 = vpop.f32.mrf.mxu0
        %v3688 = vadd.f32 %v3509, %v3687
        %v3689 = vpop.f32.mrf.mxu0
        %3690 = vmatprep.mubr.f32.mxu0 0.0
        %3691 = vmatmul.mubr.f32.gmra.mxu0 %v3529
        %v3692 = vpop.f32.mrf.mxu0
        %v3693 = vadd.f32 %v3510, %v3692
        %v3694 = vpop.f32.mrf.mxu0
        %3695 = vmatprep.mubr.f32.mxu0 0.0
        %3696 = vmatmul.mubr.f32.gmra.mxu0 %v3532
        %v3697 = vpop.f32.mrf.mxu0
        %v3698 = vadd.f32 %v3511, %v3697
        %v3699 = vpop.f32.mrf.mxu0
        %3700 = vmatprep.mubr.f32.mxu0 0.0
        %3701 = vmatmul.mubr.f32.gmra.mxu0 %v3535
        %v3702 = vpop.f32.mrf.mxu0
        %v3703 = vadd.f32 %v3512, %v3702
        %v3704 = vpop.f32.mrf.mxu0
        %3705 = vmatprep.mubr.f32.mxu0 0.0
        %3706 = vmatmul.mubr.f32.gmra.mxu0 %v3538
        %v3707 = vpop.f32.mrf.mxu0
        %v3708 = vadd.f32 %v3513, %v3707
        %v3709 = vpop.f32.mrf.mxu0
        %3710 = vmatprep.mubr.f32.mxu0 0.0
        %3711 = vmatmul.mubr.f32.gmra.mxu0 %v3541
        %v3712 = vpop.f32.mrf.mxu0
        %v3713 = vadd.f32 %v3514, %v3712
        %v3714 = vpop.f32.mrf.mxu0
        %3715 = vmatprep.mubr.f32.mxu0 0.0
        %3716 = vmatmul.mubr.f32.gmra.mxu0 %v3544
        %v3717 = vpop.f32.mrf.mxu0
        %v3718 = vadd.f32 %v3515, %v3717
        %v3719 = vpop.f32.mrf.mxu0
        %3720 = vmatprep.mubr.f32.mxu0 0.0
        %3721 = vmatmul.mubr.f32.gmra.mxu0 %v3547
        %v3722 = vpop.f32.mrf.mxu0
        %v3723 = vadd.f32 %v3516, %v3722
        %v3724 = vpop.f32.mrf.mxu0
        %3725 = vmatprep.mubr.f32.mxu0 0.0
        %3726 = vmatmul.mubr.f32.gmra.mxu0 %v3550
        %v3727 = vpop.f32.mrf.mxu0
        %v3728 = vadd.f32 %v3517, %v3727
        %v3729 = vpop.f32.mrf.mxu0
        %3730 = vmatprep.mubr.f32.mxu0 0.0
        %3731 = vmatmul.mubr.f32.gmra.mxu0 %v3553
        %v3732 = vpop.f32.mrf.mxu0
        %v3733 = vadd.f32 %v3518, %v3732
        %v3734 = vpop.f32.mrf.mxu0
        %3735 = vmatprep.mubr.f32.mxu0 0.0
        %3736 = vmatmul.mubr.f32.gmra.mxu0 %v3556
        %v3737 = vpop.f32.mrf.mxu0
        %v3738 = vadd.f32 %v3519, %v3737
        %v3739 = vpop.f32.mrf.mxu0
        %3740 = vmatprep.mubr.f32.mxu0 0.0
        %3741 = vmatmul.mubr.f32.gmra.mxu0 %v3559
        %v3742 = vpop.f32.mrf.mxu0
        %v3743 = vadd.f32 %v3520, %v3742
        %v3744 = vpop.f32.mrf.mxu0
        %3745 = vmatprep.mubr.f32.mxu0 0.0
        %3746 = vmatmul.mubr.f32.gmra.mxu0 %v3562
        %v3747 = vpop.f32.mrf.mxu0
        %v3748 = vadd.f32 %v3521, %v3747
        %v3749 = vpop.f32.mrf.mxu0
        %3750 = vmatprep.mubr.f32.mxu0 0.0
        %3751 = vmatmul.mubr.f32.gmra.mxu0 %v3565
        %v3752 = vpop.f32.mrf.mxu0
        %v3753 = vadd.f32 %v3522, %v3752
        %v3754 = vpop.f32.mrf.mxu0
        %3755 = vmatprep.mubr.f32.mxu0 0.0
        %3756 = vmatmul.mubr.f32.gmra.mxu0 %v3568
        %v3757 = vpop.f32.mrf.mxu0
        %v3758 = vadd.f32 %v3523, %v3757
        %v3759 = vpop.f32.mrf.mxu0
        %3760 = vmatprep.mubr.f32.mxu0 0.0
        %3761 = vmatmul.mubr.f32.gmra.mxu0 %v3571
        %v3762 = vpop.f32.mrf.mxu0
        %v3763 = vadd.f32 %v3524, %v3762
        %v3764 = vpop.f32.mrf.mxu0
        %3765 = vdwg.mxu0
        %v3766 = vld [vmem:[#allocation3] sm:$0xff]
        %v3767 = vld [vmem:[#allocation3 + $0x8] sm:$0xff]
        %v3768 = vld [vmem:[#allocation3 + $0x10] sm:$0xff]
        %v3769 = vld [vmem:[#allocation3 + $0x18] sm:$0xff]
        %v3770 = vld [vmem:[#allocation3 + $0x20] sm:$0xff]
        %v3771 = vld [vmem:[#allocation3 + $0x28] sm:$0xff]
        %v3772 = vld [vmem:[#allocation3 + $0x30] sm:$0xff]
        %v3773 = vld [vmem:[#allocation3 + $0x38] sm:$0xff]
        %v3774 = vld [vmem:[#allocation3 + $0x40] sm:$0xff]
        %v3775 = vld [vmem:[#allocation3 + $0x48] sm:$0xff]
        %v3776 = vld [vmem:[#allocation3 + $0x50] sm:$0xff]
        %v3777 = vld [vmem:[#allocation3 + $0x58] sm:$0xff]
        %v3778 = vld [vmem:[#allocation3 + $0x60] sm:$0xff]
        %v3779 = vld [vmem:[#allocation3 + $0x68] sm:$0xff]
        %v3780 = vld [vmem:[#allocation3 + $0x70] sm:$0xff]
        %v3781 = vld [vmem:[#allocation3 + $0x78] sm:$0xff]
        %3782 = vmax.xlane.f32.xlu0 %v3688
        %v3783 = vpop.xlane.xlu0 %3782
        %3784 = vmax.xlane.f32.xlu0 %v3693
        %v3785 = vpop.xlane.xlu0 %3784
        %3786 = vmax.xlane.f32.xlu0 %v3698
        %v3787 = vpop.xlane.xlu0 %3786
        %3788 = vmax.xlane.f32.xlu0 %v3703
        %v3789 = vpop.xlane.xlu0 %3788
        %3790 = vmax.xlane.f32.xlu0 %v3708
        %v3791 = vpop.xlane.xlu0 %3790
        %3792 = vmax.xlane.f32.xlu0 %v3713
        %v3793 = vpop.xlane.xlu0 %3792
        %3794 = vmax.xlane.f32.xlu0 %v3718
        %v3795 = vpop.xlane.xlu0 %3794
        %3796 = vmax.xlane.f32.xlu0 %v3723
        %v3797 = vpop.xlane.xlu0 %3796
        %3798 = vmax.xlane.f32.xlu0 %v3728
        %v3799 = vpop.xlane.xlu0 %3798
        %3800 = vmax.xlane.f32.xlu0 %v3733
        %v3801 = vpop.xlane.xlu0 %3800
        %3802 = vmax.xlane.f32.xlu0 %v3738
        %v3803 = vpop.xlane.xlu0 %3802
        %3804 = vmax.xlane.f32.xlu0 %v3743
        %v3805 = vpop.xlane.xlu0 %3804
        %3806 = vmax.xlane.f32.xlu0 %v3748
        %v3807 = vpop.xlane.xlu0 %3806
        %3808 = vmax.xlane.f32.xlu0 %v3753
        %v3809 = vpop.xlane.xlu0 %3808
        %3810 = vmax.xlane.f32.xlu0 %v3758
        %v3811 = vpop.xlane.xlu0 %3810
        %3812 = vmax.xlane.f32.xlu0 %v3763
        %v3813 = vpop.xlane.xlu0 %3812
        %v3814 = vmax.f32 %v3766, %v3783
        %v3815 = vmax.f32 %v3767, %v3785
        %v3816 = vmax.f32 %v3768, %v3787
        %v3817 = vmax.f32 %v3769, %v3789
        %v3818 = vmax.f32 %v3770, %v3791
        %v3819 = vmax.f32 %v3771, %v3793
        %v3820 = vmax.f32 %v3772, %v3795
        %v3821 = vmax.f32 %v3773, %v3797
        %v3822 = vmax.f32 %v3774, %v3799
        %v3823 = vmax.f32 %v3775, %v3801
        %v3824 = vmax.f32 %v3776, %v3803
        %v3825 = vmax.f32 %v3777, %v3805
        %v3826 = vmax.f32 %v3778, %v3807
        %v3827 = vmax.f32 %v3779, %v3809
        %v3828 = vmax.f32 %v3780, %v3811
        %v3829 = vmax.f32 %v3781, %v3813
        %v3830 = vsub.f32 %v3766, %v3814
        %v3831 = vsub.f32 %v3767, %v3815
        %v3832 = vsub.f32 %v3768, %v3816
        %v3833 = vsub.f32 %v3769, %v3817
        %v3834 = vsub.f32 %v3770, %v3818
        %v3835 = vsub.f32 %v3771, %v3819
        %v3836 = vsub.f32 %v3772, %v3820
        %v3837 = vsub.f32 %v3773, %v3821
        %v3838 = vsub.f32 %v3774, %v3822
        %v3839 = vsub.f32 %v3775, %v3823
        %v3840 = vsub.f32 %v3776, %v3824
        %v3841 = vsub.f32 %v3777, %v3825
        %v3842 = vsub.f32 %v3778, %v3826
        %v3843 = vsub.f32 %v3779, %v3827
        %v3844 = vsub.f32 %v3780, %v3828
        %v3845 = vsub.f32 %v3781, %v3829
        %v3846 = vmul.f32 %v3830, 1.442695
        %v3847 = vpow.pop %v3846
        %v3848 = vmul.f32 %v3831, 1.442695
        %v3849 = vpow.pop %v3848
        %v3850 = vmul.f32 %v3832, 1.442695
        %v3851 = vpow.pop %v3850
        %v3852 = vmul.f32 %v3833, 1.442695
        %v3853 = vpow.pop %v3852
        %v3854 = vmul.f32 %v3834, 1.442695
        %v3855 = vpow.pop %v3854
        %v3856 = vmul.f32 %v3835, 1.442695
        %v3857 = vpow.pop %v3856
        %v3858 = vmul.f32 %v3836, 1.442695
        %v3859 = vpow.pop %v3858
        %v3860 = vmul.f32 %v3837, 1.442695
        %v3861 = vpow.pop %v3860
        %v3862 = vmul.f32 %v3838, 1.442695
        %v3863 = vpow.pop %v3862
        %v3864 = vmul.f32 %v3839, 1.442695
        %v3865 = vpow.pop %v3864
        %v3866 = vmul.f32 %v3840, 1.442695
        %v3867 = vpow.pop %v3866
        %v3868 = vmul.f32 %v3841, 1.442695
        %v3869 = vpow.pop %v3868
        %v3870 = vmul.f32 %v3842, 1.442695
        %v3871 = vpow.pop %v3870
        %v3872 = vmul.f32 %v3843, 1.442695
        %v3873 = vpow.pop %v3872
        %v3874 = vmul.f32 %v3844, 1.442695
        %v3875 = vpow.pop %v3874
        %v3876 = vmul.f32 %v3845, 1.442695
        %v3877 = vpow.pop %v3876
        %3879 = vset.pattern.permute.xlu0 2
        %3880 = vperm.xlu0 %3879, %v3814
        %v3881 = vpop.permute.xlu0 %3880
        %3884 = vset.pattern.permute.xlu0 2
        %3885 = vperm.xlu0 %3884, %v3815
        %v3886 = vpop.permute.xlu0 %3885
        %3889 = vset.pattern.permute.xlu0 2
        %3890 = vperm.xlu0 %3889, %v3816
        %v3891 = vpop.permute.xlu0 %3890
        %3894 = vset.pattern.permute.xlu0 2
        %3895 = vperm.xlu0 %3894, %v3817
        %v3896 = vpop.permute.xlu0 %3895
        %3899 = vset.pattern.permute.xlu0 2
        %3900 = vperm.xlu0 %3899, %v3818
        %v3901 = vpop.permute.xlu0 %3900
        %3904 = vset.pattern.permute.xlu0 2
        %3905 = vperm.xlu0 %3904, %v3819
        %v3906 = vpop.permute.xlu0 %3905
        %3909 = vset.pattern.permute.xlu0 2
        %3910 = vperm.xlu0 %3909, %v3820
        %v3911 = vpop.permute.xlu0 %3910
        %3914 = vset.pattern.permute.xlu0 2
        %3915 = vperm.xlu0 %3914, %v3821
        %v3916 = vpop.permute.xlu0 %3915
        %3919 = vset.pattern.permute.xlu0 2
        %3920 = vperm.xlu0 %3919, %v3822
        %v3921 = vpop.permute.xlu0 %3920
        %3924 = vset.pattern.permute.xlu0 2
        %3925 = vperm.xlu0 %3924, %v3823
        %v3926 = vpop.permute.xlu0 %3925
        %3929 = vset.pattern.permute.xlu0 2
        %3930 = vperm.xlu0 %3929, %v3824
        %v3931 = vpop.permute.xlu0 %3930
        %3934 = vset.pattern.permute.xlu0 2
        %3935 = vperm.xlu0 %3934, %v3825
        %v3936 = vpop.permute.xlu0 %3935
        %3939 = vset.pattern.permute.xlu0 2
        %3940 = vperm.xlu0 %3939, %v3826
        %v3941 = vpop.permute.xlu0 %3940
        %3944 = vset.pattern.permute.xlu0 2
        %3945 = vperm.xlu0 %3944, %v3827
        %v3946 = vpop.permute.xlu0 %3945
        %3949 = vset.pattern.permute.xlu0 2
        %3950 = vperm.xlu0 %3949, %v3828
        %v3951 = vpop.permute.xlu0 %3950
        %3954 = vset.pattern.permute.xlu0 2
        %3955 = vperm.xlu0 %3954, %v3829
        %v3956 = vpop.permute.xlu0 %3955
        %v3958 = vsub.f32 %v3688, %v3881
        %v3959 = vsub.f32 %v3693, %v3886
        %v3960 = vsub.f32 %v3698, %v3891
        %v3961 = vsub.f32 %v3703, %v3896
        %v3962 = vsub.f32 %v3708, %v3901
        %v3963 = vsub.f32 %v3713, %v3906
        %v3964 = vsub.f32 %v3718, %v3911
        %v3965 = vsub.f32 %v3723, %v3916
        %v3966 = vsub.f32 %v3728, %v3921
        %v3967 = vsub.f32 %v3733, %v3926
        %v3968 = vsub.f32 %v3738, %v3931
        %v3969 = vsub.f32 %v3743, %v3936
        %v3970 = vsub.f32 %v3748, %v3941
        %v3971 = vsub.f32 %v3753, %v3946
        %v3972 = vsub.f32 %v3758, %v3951
        %v3973 = vsub.f32 %v3763, %v3956
        %v3974 = vmul.f32 %v3958, 1.442695
        %v3975 = vpow.pop %v3974
        %v3976 = vmul.f32 %v3959, 1.442695
        %v3977 = vpow.pop %v3976
        %v3978 = vmul.f32 %v3960, 1.442695
        %v3979 = vpow.pop %v3978
        %v3980 = vmul.f32 %v3961, 1.442695
        %v3981 = vpow.pop %v3980
        %v3982 = vmul.f32 %v3962, 1.442695
        %v3983 = vpow.pop %v3982
        %v3984 = vmul.f32 %v3963, 1.442695
        %v3985 = vpow.pop %v3984
        %v3986 = vmul.f32 %v3964, 1.442695
        %v3987 = vpow.pop %v3986
        %v3988 = vmul.f32 %v3965, 1.442695
        %v3989 = vpow.pop %v3988
        %v3990 = vmul.f32 %v3966, 1.442695
        %v3991 = vpow.pop %v3990
        %v3992 = vmul.f32 %v3967, 1.442695
        %v3993 = vpow.pop %v3992
        %v3994 = vmul.f32 %v3968, 1.442695
        %v3995 = vpow.pop %v3994
        %v3996 = vmul.f32 %v3969, 1.442695
        %v3997 = vpow.pop %v3996
        %v3998 = vmul.f32 %v3970, 1.442695
        %v3999 = vpow.pop %v3998
        %v4000 = vmul.f32 %v3971, 1.442695
        %v4001 = vpow.pop %v4000
        %v4002 = vmul.f32 %v3972, 1.442695
        %v4003 = vpow.pop %v4002
        %v4004 = vmul.f32 %v3973, 1.442695
        %v4005 = vpow.pop %v4004
        %v4006 = vld [vmem:[#allocation4] sm:$0xff]
        %v4007 = vld [vmem:[#allocation4 + $0x8] sm:$0xff]
        %v4008 = vld [vmem:[#allocation4 + $0x10] sm:$0xff]
        %v4009 = vld [vmem:[#allocation4 + $0x18] sm:$0xff]
        %v4010 = vld [vmem:[#allocation4 + $0x20] sm:$0xff]
        %v4011 = vld [vmem:[#allocation4 + $0x28] sm:$0xff]
        %v4012 = vld [vmem:[#allocation4 + $0x30] sm:$0xff]
        %v4013 = vld [vmem:[#allocation4 + $0x38] sm:$0xff]
        %v4014 = vld [vmem:[#allocation4 + $0x40] sm:$0xff]
        %v4015 = vld [vmem:[#allocation4 + $0x48] sm:$0xff]
        %v4016 = vld [vmem:[#allocation4 + $0x50] sm:$0xff]
        %v4017 = vld [vmem:[#allocation4 + $0x58] sm:$0xff]
        %v4018 = vld [vmem:[#allocation4 + $0x60] sm:$0xff]
        %v4019 = vld [vmem:[#allocation4 + $0x68] sm:$0xff]
        %v4020 = vld [vmem:[#allocation4 + $0x70] sm:$0xff]
        %v4021 = vld [vmem:[#allocation4 + $0x78] sm:$0xff]
        %v4022 = vmul.f32 %v3847, %v4006
        %v4023 = vmul.f32 %v3849, %v4007
        %v4024 = vmul.f32 %v3851, %v4008
        %v4025 = vmul.f32 %v3853, %v4009
        %v4026 = vmul.f32 %v3855, %v4010
        %v4027 = vmul.f32 %v3857, %v4011
        %v4028 = vmul.f32 %v3859, %v4012
        %v4029 = vmul.f32 %v3861, %v4013
        %v4030 = vmul.f32 %v3863, %v4014
        %v4031 = vmul.f32 %v3865, %v4015
        %v4032 = vmul.f32 %v3867, %v4016
        %v4033 = vmul.f32 %v3869, %v4017
        %v4034 = vmul.f32 %v3871, %v4018
        %v4035 = vmul.f32 %v3873, %v4019
        %v4036 = vmul.f32 %v3875, %v4020
        %v4037 = vmul.f32 %v3877, %v4021
        %4038 = vadd.xlane.f32.xlu0 %v3975
        %v4039 = vpop.xlane.xlu0 %4038
        %4040 = vadd.xlane.f32.xlu0 %v3977
        %v4041 = vpop.xlane.xlu0 %4040
        %4042 = vadd.xlane.f32.xlu0 %v3979
        %v4043 = vpop.xlane.xlu0 %4042
        %4044 = vadd.xlane.f32.xlu0 %v3981
        %v4045 = vpop.xlane.xlu0 %4044
        %4046 = vadd.xlane.f32.xlu0 %v3983
        %v4047 = vpop.xlane.xlu0 %4046
        %4048 = vadd.xlane.f32.xlu0 %v3985
        %v4049 = vpop.xlane.xlu0 %4048
        %4050 = vadd.xlane.f32.xlu0 %v3987
        %v4051 = vpop.xlane.xlu0 %4050
        %4052 = vadd.xlane.f32.xlu0 %v3989
        %v4053 = vpop.xlane.xlu0 %4052
        %4054 = vadd.xlane.f32.xlu0 %v3991
        %v4055 = vpop.xlane.xlu0 %4054
        %4056 = vadd.xlane.f32.xlu0 %v3993
        %v4057 = vpop.xlane.xlu0 %4056
        %4058 = vadd.xlane.f32.xlu0 %v3995
        %v4059 = vpop.xlane.xlu0 %4058
        %4060 = vadd.xlane.f32.xlu0 %v3997
        %v4061 = vpop.xlane.xlu0 %4060
        %4062 = vadd.xlane.f32.xlu0 %v3999
        %v4063 = vpop.xlane.xlu0 %4062
        %4064 = vadd.xlane.f32.xlu0 %v4001
        %v4065 = vpop.xlane.xlu0 %4064
        %4066 = vadd.xlane.f32.xlu0 %v4003
        %v4067 = vpop.xlane.xlu0 %4066
        %4068 = vadd.xlane.f32.xlu0 %v4005
        %v4069 = vpop.xlane.xlu0 %4068
        %v4070 = vadd.f32 %v4022, %v4039
        %v4071 = vadd.f32 %v4023, %v4041
        %v4072 = vadd.f32 %v4024, %v4043
        %v4073 = vadd.f32 %v4025, %v4045
        %v4074 = vadd.f32 %v4026, %v4047
        %v4075 = vadd.f32 %v4027, %v4049
        %v4076 = vadd.f32 %v4028, %v4051
        %v4077 = vadd.f32 %v4029, %v4053
        %v4078 = vadd.f32 %v4030, %v4055
        %v4079 = vadd.f32 %v4031, %v4057
        %v4080 = vadd.f32 %v4032, %v4059
        %v4081 = vadd.f32 %v4033, %v4061
        %v4082 = vadd.f32 %v4034, %v4063
        %v4083 = vadd.f32 %v4035, %v4065
        %v4084 = vadd.f32 %v4036, %v4067
        %v4085 = vadd.f32 %v4037, %v4069
        %vm4086 = vcmask 23568
        %4087 = vst.msk [vmem:[#allocation4] sm:$0xff] %vm4086, %v4070
        %4088 = vst.msk [vmem:[#allocation4 + $0x8] sm:$0xff] %vm4086, %v4071
        %4089 = vst.msk [vmem:[#allocation4 + $0x10] sm:$0xff] %vm4086, %v4072
        %4090 = vst.msk [vmem:[#allocation4 + $0x18] sm:$0xff] %vm4086, %v4073
        %4091 = vst.msk [vmem:[#allocation4 + $0x20] sm:$0xff] %vm4086, %v4074
        %4092 = vst.msk [vmem:[#allocation4 + $0x28] sm:$0xff] %vm4086, %v4075
        %4093 = vst.msk [vmem:[#allocation4 + $0x30] sm:$0xff] %vm4086, %v4076
        %4094 = vst.msk [vmem:[#allocation4 + $0x38] sm:$0xff] %vm4086, %v4077
        %4095 = vst.msk [vmem:[#allocation4 + $0x40] sm:$0xff] %vm4086, %v4078
        %4096 = vst.msk [vmem:[#allocation4 + $0x48] sm:$0xff] %vm4086, %v4079
        %4097 = vst.msk [vmem:[#allocation4 + $0x50] sm:$0xff] %vm4086, %v4080
        %4098 = vst.msk [vmem:[#allocation4 + $0x58] sm:$0xff] %vm4086, %v4081
        %4099 = vst.msk [vmem:[#allocation4 + $0x60] sm:$0xff] %vm4086, %v4082
        %4100 = vst.msk [vmem:[#allocation4 + $0x68] sm:$0xff] %vm4086, %v4083
        %4101 = vst.msk [vmem:[#allocation4 + $0x70] sm:$0xff] %vm4086, %v4084
        %4102 = vst.msk [vmem:[#allocation4 + $0x78] sm:$0xff] %vm4086, %v4085
        %4103 = vmatprep.subr.mxu0 0.0
        %4104 = vmatpush1.msra.mxu0 %v1481
        %4105 = vmatprep.subr.mxu0 0.0
        %4106 = vmatpush1.msra.mxu0 %v1475
        %4107 = vmatprep.subr.mxu0 0.0
        %4108 = vmatpush1.msra.mxu0 %v1469
        %4109 = vmatprep.subr.mxu0 0.0
        %4110 = vmatpush1.msra.mxu0 %v1463
        %4111 = vmatprep.subr.mxu0 0.0
        %4112 = vmatpush1.msra.mxu0 %v1457
        %4113 = vmatprep.subr.mxu0 0.0
        %4114 = vmatpush1.msra.mxu0 %v1451
        %4115 = vmatprep.subr.mxu0 0.0
        %4116 = vmatpush1.msra.mxu0 %v1445
        %4117 = vmatprep.subr.mxu0 0.0
        %4118 = vmatpush1.msra.mxu0 %v1439
        %4119 = vmatprep.subr.mxu0 0.0
        %4120 = vmatpush1.msra.mxu0 %v1433
        %4121 = vmatprep.subr.mxu0 0.0
        %4122 = vmatpush1.msra.mxu0 %v1427
        %4123 = vmatprep.subr.mxu0 0.0
        %4124 = vmatpush1.msra.mxu0 %v1421
        %4125 = vmatprep.subr.mxu0 0.0
        %4126 = vmatpush1.msra.mxu0 %v1415
        %4127 = vmatprep.subr.mxu0 0.0
        %4128 = vmatpush1.msra.mxu0 %v1409
        %4129 = vmatprep.subr.mxu0 0.0
        %4130 = vmatpush1.msra.mxu0 %v1403
        %4131 = vmatprep.subr.mxu0 0.0
        %4132 = vmatpush1.msra.mxu0 %v1397
        %4133 = vmatprep.subr.mxu0 0.0
        %4134 = vmatpush1.msra.mxu0 %v1391
        %4135 = vmatprep.subr.mxu0 0.0
        %4136 = vmatpush2.msra.mxu0 0.0
        %4137 = vmatprep.subr.mxu0 0.0
        %4138 = vmatpush2.msra.mxu0 0.0
        %4139 = vmatprep.subr.mxu0 0.0
        %4140 = vmatpush2.msra.mxu0 0.0
        %4141 = vmatprep.subr.mxu0 0.0
        %4142 = vmatpush2.msra.mxu0 0.0
        %4143 = vmatprep.subr.mxu0 0.0
        %4144 = vmatpush2.msra.mxu0 0.0
        %4145 = vmatprep.subr.mxu0 0.0
        %4146 = vmatpush2.msra.mxu0 0.0
        %4147 = vmatprep.subr.mxu0 0.0
        %4148 = vmatpush2.msra.mxu0 0.0
        %4149 = vmatprep.subr.mxu0 0.0
        %4150 = vmatpush2.msra.mxu0 0.0
        %4151 = vmatprep.subr.mxu0 0.0
        %4152 = vmatpush2.msra.mxu0 0.0
        %4153 = vmatprep.subr.mxu0 0.0
        %4154 = vmatpush2.msra.mxu0 0.0
        %4155 = vmatprep.subr.mxu0 0.0
        %4156 = vmatpush2.msra.mxu0 0.0
        %4157 = vmatprep.subr.mxu0 0.0
        %4158 = vmatpush2.msra.mxu0 0.0
        %4159 = vmatprep.subr.mxu0 0.0
        %4160 = vmatpush2.msra.mxu0 0.0
        %4161 = vmatprep.subr.mxu0 0.0
        %4162 = vmatpush2.msra.mxu0 0.0
        %4163 = vmatprep.subr.mxu0 0.0
        %4164 = vmatpush2.msra.mxu0 0.0
        %4165 = vmatprep.subr.mxu0 0.0
        %4166 = vmatpush2.msra.mxu0 0.0
        %4167 = vmatprep.mubr.f32.mxu0 0.0
        %4168 = vmatmul.mubr.f32.gmra.mxu0 %v3975
        %v4169 = vpop.f32.mrf.mxu0
        %v4170 = vadd.f32 0.0, %v4169
        %v4171 = vpop.f32.mrf.mxu0
        %4172 = vmatprep.mubr.f32.mxu0 0.0
        %4173 = vmatmul.mubr.f32.gmra.mxu0 %v3977
        %v4174 = vpop.f32.mrf.mxu0
        %v4175 = vadd.f32 0.0, %v4174
        %v4176 = vpop.f32.mrf.mxu0
        %4177 = vmatprep.mubr.f32.mxu0 0.0
        %4178 = vmatmul.mubr.f32.gmra.mxu0 %v3979
        %v4179 = vpop.f32.mrf.mxu0
        %v4180 = vadd.f32 0.0, %v4179
        %v4181 = vpop.f32.mrf.mxu0
        %4182 = vmatprep.mubr.f32.mxu0 0.0
        %4183 = vmatmul.mubr.f32.gmra.mxu0 %v3981
        %v4184 = vpop.f32.mrf.mxu0
        %v4185 = vadd.f32 0.0, %v4184
        %v4186 = vpop.f32.mrf.mxu0
        %4187 = vmatprep.mubr.f32.mxu0 0.0
        %4188 = vmatmul.mubr.f32.gmra.mxu0 %v3983
        %v4189 = vpop.f32.mrf.mxu0
        %v4190 = vadd.f32 0.0, %v4189
        %v4191 = vpop.f32.mrf.mxu0
        %4192 = vmatprep.mubr.f32.mxu0 0.0
        %4193 = vmatmul.mubr.f32.gmra.mxu0 %v3985
        %v4194 = vpop.f32.mrf.mxu0
        %v4195 = vadd.f32 0.0, %v4194
        %v4196 = vpop.f32.mrf.mxu0
        %4197 = vmatprep.mubr.f32.mxu0 0.0
        %4198 = vmatmul.mubr.f32.gmra.mxu0 %v3987
        %v4199 = vpop.f32.mrf.mxu0
        %v4200 = vadd.f32 0.0, %v4199
        %v4201 = vpop.f32.mrf.mxu0
        %4202 = vmatprep.mubr.f32.mxu0 0.0
        %4203 = vmatmul.mubr.f32.gmra.mxu0 %v3989
        %v4204 = vpop.f32.mrf.mxu0
        %v4205 = vadd.f32 0.0, %v4204
        %v4206 = vpop.f32.mrf.mxu0
        %4207 = vmatprep.mubr.f32.mxu0 0.0
        %4208 = vmatmul.mubr.f32.gmra.mxu0 %v3991
        %v4209 = vpop.f32.mrf.mxu0
        %v4210 = vadd.f32 0.0, %v4209
        %v4211 = vpop.f32.mrf.mxu0
        %4212 = vmatprep.mubr.f32.mxu0 0.0
        %4213 = vmatmul.mubr.f32.gmra.mxu0 %v3993
        %v4214 = vpop.f32.mrf.mxu0
        %v4215 = vadd.f32 0.0, %v4214
        %v4216 = vpop.f32.mrf.mxu0
        %4217 = vmatprep.mubr.f32.mxu0 0.0
        %4218 = vmatmul.mubr.f32.gmra.mxu0 %v3995
        %v4219 = vpop.f32.mrf.mxu0
        %v4220 = vadd.f32 0.0, %v4219
        %v4221 = vpop.f32.mrf.mxu0
        %4222 = vmatprep.mubr.f32.mxu0 0.0
        %4223 = vmatmul.mubr.f32.gmra.mxu0 %v3997
        %v4224 = vpop.f32.mrf.mxu0
        %v4225 = vadd.f32 0.0, %v4224
        %v4226 = vpop.f32.mrf.mxu0
        %4227 = vmatprep.mubr.f32.mxu0 0.0
        %4228 = vmatmul.mubr.f32.gmra.mxu0 %v3999
        %v4229 = vpop.f32.mrf.mxu0
        %v4230 = vadd.f32 0.0, %v4229
        %v4231 = vpop.f32.mrf.mxu0
        %4232 = vmatprep.mubr.f32.mxu0 0.0
        %4233 = vmatmul.mubr.f32.gmra.mxu0 %v4001
        %v4234 = vpop.f32.mrf.mxu0
        %v4235 = vadd.f32 0.0, %v4234
        %v4236 = vpop.f32.mrf.mxu0
        %4237 = vmatprep.mubr.f32.mxu0 0.0
        %4238 = vmatmul.mubr.f32.gmra.mxu0 %v4003
        %v4239 = vpop.f32.mrf.mxu0
        %v4240 = vadd.f32 0.0, %v4239
        %v4241 = vpop.f32.mrf.mxu0
        %4242 = vmatprep.mubr.f32.mxu0 0.0
        %4243 = vmatmul.mubr.f32.gmra.mxu0 %v4005
        %v4244 = vpop.f32.mrf.mxu0
        %v4245 = vadd.f32 0.0, %v4244
        %v4246 = vpop.f32.mrf.mxu0
        %4247 = vdwg.mxu0
        %v4248 = vld [vmem:[#allocation5 + $0x8] sm:$0xff]
        %v4249 = vld [vmem:[#allocation5 + $0x18] sm:$0xff]
        %v4250 = vld [vmem:[#allocation5 + $0x28] sm:$0xff]
        %v4251 = vld [vmem:[#allocation5 + $0x38] sm:$0xff]
        %v4252 = vld [vmem:[#allocation5 + $0x48] sm:$0xff]
        %v4253 = vld [vmem:[#allocation5 + $0x58] sm:$0xff]
        %v4254 = vld [vmem:[#allocation5 + $0x68] sm:$0xff]
        %v4255 = vld [vmem:[#allocation5 + $0x78] sm:$0xff]
        %v4256 = vld [vmem:[#allocation5 + $0x88] sm:$0xff]
        %v4257 = vld [vmem:[#allocation5 + $0x98] sm:$0xff]
        %v4258 = vld [vmem:[#allocation5 + $0xa8] sm:$0xff]
        %v4259 = vld [vmem:[#allocation5 + $0xb8] sm:$0xff]
        %v4260 = vld [vmem:[#allocation5 + $0xc8] sm:$0xff]
        %v4261 = vld [vmem:[#allocation5 + $0xd8] sm:$0xff]
        %v4262 = vld [vmem:[#allocation5 + $0xe8] sm:$0xff]
        %v4263 = vld [vmem:[#allocation5 + $0xf8] sm:$0xff]
        %4265 = vset.pattern.permute.xlu0 2
        %4266 = vperm.xlu0 %4265, %v3847
        %v4267 = vpop.permute.xlu0 %4266
        %4270 = vset.pattern.permute.xlu0 2
        %4271 = vperm.xlu0 %4270, %v3849
        %v4272 = vpop.permute.xlu0 %4271
        %4275 = vset.pattern.permute.xlu0 2
        %4276 = vperm.xlu0 %4275, %v3851
        %v4277 = vpop.permute.xlu0 %4276
        %4280 = vset.pattern.permute.xlu0 2
        %4281 = vperm.xlu0 %4280, %v3853
        %v4282 = vpop.permute.xlu0 %4281
        %4285 = vset.pattern.permute.xlu0 2
        %4286 = vperm.xlu0 %4285, %v3855
        %v4287 = vpop.permute.xlu0 %4286
        %4290 = vset.pattern.permute.xlu0 2
        %4291 = vperm.xlu0 %4290, %v3857
        %v4292 = vpop.permute.xlu0 %4291
        %4295 = vset.pattern.permute.xlu0 2
        %4296 = vperm.xlu0 %4295, %v3859
        %v4297 = vpop.permute.xlu0 %4296
        %4300 = vset.pattern.permute.xlu0 2
        %4301 = vperm.xlu0 %4300, %v3861
        %v4302 = vpop.permute.xlu0 %4301
        %4305 = vset.pattern.permute.xlu0 2
        %4306 = vperm.xlu0 %4305, %v3863
        %v4307 = vpop.permute.xlu0 %4306
        %4310 = vset.pattern.permute.xlu0 2
        %4311 = vperm.xlu0 %4310, %v3865
        %v4312 = vpop.permute.xlu0 %4311
        %4315 = vset.pattern.permute.xlu0 2
        %4316 = vperm.xlu0 %4315, %v3867
        %v4317 = vpop.permute.xlu0 %4316
        %4320 = vset.pattern.permute.xlu0 2
        %4321 = vperm.xlu0 %4320, %v3869
        %v4322 = vpop.permute.xlu0 %4321
        %4325 = vset.pattern.permute.xlu0 2
        %4326 = vperm.xlu0 %4325, %v3871
        %v4327 = vpop.permute.xlu0 %4326
        %4330 = vset.pattern.permute.xlu0 2
        %4331 = vperm.xlu0 %4330, %v3873
        %v4332 = vpop.permute.xlu0 %4331
        %4335 = vset.pattern.permute.xlu0 2
        %4336 = vperm.xlu0 %4335, %v3875
        %v4337 = vpop.permute.xlu0 %4336
        %4340 = vset.pattern.permute.xlu0 2
        %4341 = vperm.xlu0 %4340, %v3877
        %v4342 = vpop.permute.xlu0 %4341
        %v4344 = vmul.f32 %v4267, %v4248
        %v4345 = vmul.f32 %v4272, %v4249
        %v4346 = vmul.f32 %v4277, %v4250
        %v4347 = vmul.f32 %v4282, %v4251
        %v4348 = vmul.f32 %v4287, %v4252
        %v4349 = vmul.f32 %v4292, %v4253
        %v4350 = vmul.f32 %v4297, %v4254
        %v4351 = vmul.f32 %v4302, %v4255
        %v4352 = vmul.f32 %v4307, %v4256
        %v4353 = vmul.f32 %v4312, %v4257
        %v4354 = vmul.f32 %v4317, %v4258
        %v4355 = vmul.f32 %v4322, %v4259
        %v4356 = vmul.f32 %v4327, %v4260
        %v4357 = vmul.f32 %v4332, %v4261
        %v4358 = vmul.f32 %v4337, %v4262
        %v4359 = vmul.f32 %v4342, %v4263
        %v4360 = vadd.f32 %v4344, %v4170
        %v4361 = vadd.f32 %v4345, %v4175
        %v4362 = vadd.f32 %v4346, %v4180
        %v4363 = vadd.f32 %v4347, %v4185
        %v4364 = vadd.f32 %v4348, %v4190
        %v4365 = vadd.f32 %v4349, %v4195
        %v4366 = vadd.f32 %v4350, %v4200
        %v4367 = vadd.f32 %v4351, %v4205
        %v4368 = vadd.f32 %v4352, %v4210
        %v4369 = vadd.f32 %v4353, %v4215
        %v4370 = vadd.f32 %v4354, %v4220
        %v4371 = vadd.f32 %v4355, %v4225
        %v4372 = vadd.f32 %v4356, %v4230
        %v4373 = vadd.f32 %v4357, %v4235
        %v4374 = vadd.f32 %v4358, %v4240
        %v4375 = vadd.f32 %v4359, %v4245
        %4376 = vst.msk [vmem:[#allocation5 + $0x8] sm:$0xff] %vm1515, %v4360
        %4377 = vst.msk [vmem:[#allocation5 + $0x18] sm:$0xff] %vm1515, %v4361
        %4378 = vst.msk [vmem:[#allocation5 + $0x28] sm:$0xff] %vm1515, %v4362
        %4379 = vst.msk [vmem:[#allocation5 + $0x38] sm:$0xff] %vm1515, %v4363
        %4380 = vst.msk [vmem:[#allocation5 + $0x48] sm:$0xff] %vm1515, %v4364
        %4381 = vst.msk [vmem:[#allocation5 + $0x58] sm:$0xff] %vm1515, %v4365
        %4382 = vst.msk [vmem:[#allocation5 + $0x68] sm:$0xff] %vm1515, %v4366
        %4383 = vst.msk [vmem:[#allocation5 + $0x78] sm:$0xff] %vm1515, %v4367
        %4384 = vst.msk [vmem:[#allocation5 + $0x88] sm:$0xff] %vm1515, %v4368
        %4385 = vst.msk [vmem:[#allocation5 + $0x98] sm:$0xff] %vm1515, %v4369
        %4386 = vst.msk [vmem:[#allocation5 + $0xa8] sm:$0xff] %vm1515, %v4370
        %4387 = vst.msk [vmem:[#allocation5 + $0xb8] sm:$0xff] %vm1515, %v4371
        %4388 = vst.msk [vmem:[#allocation5 + $0xc8] sm:$0xff] %vm1515, %v4372
        %4389 = vst.msk [vmem:[#allocation5 + $0xd8] sm:$0xff] %vm1515, %v4373
        %4390 = vst.msk [vmem:[#allocation5 + $0xe8] sm:$0xff] %vm1515, %v4374
        %4391 = vst.msk [vmem:[#allocation5 + $0xf8] sm:$0xff] %vm1515, %v4375
        %4392 = vst.msk [vmem:[#allocation3] sm:$0xff] %vm4086, %v3814
        %4393 = vst.msk [vmem:[#allocation3 + $0x8] sm:$0xff] %vm4086, %v3815
        %4394 = vst.msk [vmem:[#allocation3 + $0x10] sm:$0xff] %vm4086, %v3816
        %4395 = vst.msk [vmem:[#allocation3 + $0x18] sm:$0xff] %vm4086, %v3817
        %4396 = vst.msk [vmem:[#allocation3 + $0x20] sm:$0xff] %vm4086, %v3818
        %4397 = vst.msk [vmem:[#allocation3 + $0x28] sm:$0xff] %vm4086, %v3819
        %4398 = vst.msk [vmem:[#allocation3 + $0x30] sm:$0xff] %vm4086, %v3820
        %4399 = vst.msk [vmem:[#allocation3 + $0x38] sm:$0xff] %vm4086, %v3821
        %4400 = vst.msk [vmem:[#allocation3 + $0x40] sm:$0xff] %vm4086, %v3822
        %4401 = vst.msk [vmem:[#allocation3 + $0x48] sm:$0xff] %vm4086, %v3823
        %4402 = vst.msk [vmem:[#allocation3 + $0x50] sm:$0xff] %vm4086, %v3824
        %4403 = vst.msk [vmem:[#allocation3 + $0x58] sm:$0xff] %vm4086, %v3825
        %4404 = vst.msk [vmem:[#allocation3 + $0x60] sm:$0xff] %vm4086, %v3826
        %4405 = vst.msk [vmem:[#allocation3 + $0x68] sm:$0xff] %vm4086, %v3827
        %4406 = vst.msk [vmem:[#allocation3 + $0x70] sm:$0xff] %vm4086, %v3828
        %4407 = vst.msk [vmem:[#allocation3 + $0x78] sm:$0xff] %vm4086, %v3829
        %v4408 = vld [vmem:[#allocation2 + $0x8] sm:$0xff]
        %v4409 = vld [vmem:[#allocation2 + $0x18] sm:$0xff]
        %v4410 = vld [vmem:[#allocation2 + $0x28] sm:$0xff]
        %v4411 = vld [vmem:[#allocation2 + $0x38] sm:$0xff]
        %v4412 = vld [vmem:[#allocation2 + $0x48] sm:$0xff]
        %v4413 = vld [vmem:[#allocation2 + $0x58] sm:$0xff]
        %v4414 = vld [vmem:[#allocation2 + $0x68] sm:$0xff]
        %v4415 = vld [vmem:[#allocation2 + $0x78] sm:$0xff]
        %v4416 = vld [vmem:[#allocation2 + $0x88] sm:$0xff]
        %v4417 = vld [vmem:[#allocation2 + $0x98] sm:$0xff]
        %v4418 = vld [vmem:[#allocation2 + $0xa8] sm:$0xff]
        %v4419 = vld [vmem:[#allocation2 + $0xb8] sm:$0xff]
        %v4420 = vld [vmem:[#allocation2 + $0xc8] sm:$0xff]
        %v4421 = vld [vmem:[#allocation2 + $0xd8] sm:$0xff]
        %v4422 = vld [vmem:[#allocation2 + $0xe8] sm:$0xff]
        %v4423 = vld [vmem:[#allocation2 + $0xf8] sm:$0xff]
        %s4424 = scalar_lea.vmem %s528, 384 [#allocation20]
        %v4425 = vld [vmem:[%s4424] sm:$0xff]
        %v4426 = vld [vmem:[%s4424 + $0x8] sm:$0xff]
        %v4427 = vld [vmem:[%s4424 + $0x10] sm:$0xff]
        %v4428 = vld [vmem:[%s4424 + $0x18] sm:$0xff]
        %v4429 = vld [vmem:[%s4424 + $0x20] sm:$0xff]
        %v4430 = vld [vmem:[%s4424 + $0x28] sm:$0xff]
        %v4431 = vld [vmem:[%s4424 + $0x30] sm:$0xff]
        %v4432 = vld [vmem:[%s4424 + $0x38] sm:$0xff]
        %v4433 = vld [vmem:[%s4424 + $0x40] sm:$0xff]
        %v4434 = vld [vmem:[%s4424 + $0x48] sm:$0xff]
        %v4435 = vld [vmem:[%s4424 + $0x50] sm:$0xff]
        %v4436 = vld [vmem:[%s4424 + $0x58] sm:$0xff]
        %v4437 = vld [vmem:[%s4424 + $0x60] sm:$0xff]
        %v4438 = vld [vmem:[%s4424 + $0x68] sm:$0xff]
        %v4439 = vld [vmem:[%s4424 + $0x70] sm:$0xff]
        %v4440 = vld [vmem:[%s4424 + $0x78] sm:$0xff]
        %4457 = vrot.lane.b32.xlu0 %v4408, 64
        %v4458 = vpop.permute.xlu0 %4457
        %4459 = vrot.lane.b32.xlu0 %v4409, 64
        %v4460 = vpop.permute.xlu0 %4459
        %4461 = vrot.lane.b32.xlu0 %v4410, 64
        %v4462 = vpop.permute.xlu0 %4461
        %4463 = vrot.lane.b32.xlu0 %v4411, 64
        %v4464 = vpop.permute.xlu0 %4463
        %4465 = vrot.lane.b32.xlu0 %v4412, 64
        %v4466 = vpop.permute.xlu0 %4465
        %4467 = vrot.lane.b32.xlu0 %v4413, 64
        %v4468 = vpop.permute.xlu0 %4467
        %4469 = vrot.lane.b32.xlu0 %v4414, 64
        %v4470 = vpop.permute.xlu0 %4469
        %4471 = vrot.lane.b32.xlu0 %v4415, 64
        %v4472 = vpop.permute.xlu0 %4471
        %4473 = vrot.lane.b32.xlu0 %v4416, 64
        %v4474 = vpop.permute.xlu0 %4473
        %4475 = vrot.lane.b32.xlu0 %v4417, 64
        %v4476 = vpop.permute.xlu0 %4475
        %4477 = vrot.lane.b32.xlu0 %v4418, 64
        %v4478 = vpop.permute.xlu0 %4477
        %4479 = vrot.lane.b32.xlu0 %v4419, 64
        %v4480 = vpop.permute.xlu0 %4479
        %4481 = vrot.lane.b32.xlu0 %v4420, 64
        %v4482 = vpop.permute.xlu0 %4481
        %4483 = vrot.lane.b32.xlu0 %v4421, 64
        %v4484 = vpop.permute.xlu0 %4483
        %4485 = vrot.lane.b32.xlu0 %v4422, 64
        %v4486 = vpop.permute.xlu0 %4485
        %4487 = vrot.lane.b32.xlu0 %v4423, 64
        %v4488 = vpop.permute.xlu0 %4487
        %4489 = vrot.lane.b32.xlu0 %v1230, 64
        %v4490 = vpop.permute.xlu0 %4489
        %4491 = vrot.lane.b32.xlu0 %v1236, 64
        %v4492 = vpop.permute.xlu0 %4491
        %4493 = vrot.lane.b32.xlu0 %v1242, 64
        %v4494 = vpop.permute.xlu0 %4493
        %4495 = vrot.lane.b32.xlu0 %v1248, 64
        %v4496 = vpop.permute.xlu0 %4495
        %4497 = vrot.lane.b32.xlu0 %v1254, 64
        %v4498 = vpop.permute.xlu0 %4497
        %4499 = vrot.lane.b32.xlu0 %v1260, 64
        %v4500 = vpop.permute.xlu0 %4499
        %4501 = vrot.lane.b32.xlu0 %v1266, 64
        %v4502 = vpop.permute.xlu0 %4501
        %4503 = vrot.lane.b32.xlu0 %v1272, 64
        %v4504 = vpop.permute.xlu0 %4503
        %4505 = vrot.lane.b32.xlu0 %v1278, 64
        %v4506 = vpop.permute.xlu0 %4505
        %4507 = vrot.lane.b32.xlu0 %v1284, 64
        %v4508 = vpop.permute.xlu0 %4507
        %4509 = vrot.lane.b32.xlu0 %v1290, 64
        %v4510 = vpop.permute.xlu0 %4509
        %4511 = vrot.lane.b32.xlu0 %v1296, 64
        %v4512 = vpop.permute.xlu0 %4511
        %4513 = vrot.lane.b32.xlu0 %v1302, 64
        %v4514 = vpop.permute.xlu0 %4513
        %4515 = vrot.lane.b32.xlu0 %v1308, 64
        %v4516 = vpop.permute.xlu0 %4515
        %4517 = vrot.lane.b32.xlu0 %v1314, 64
        %v4518 = vpop.permute.xlu0 %4517
        %4519 = vrot.lane.b32.xlu0 %v1320, 64
        %v4520 = vpop.permute.xlu0 %4519
        %v4521 = vsel %vm1515, %v4458, 0
        %v4523 = vsel %vm1515, %v4460, 0
        %v4525 = vsel %vm1515, %v4462, 0
        %v4527 = vsel %vm1515, %v4464, 0
        %v4529 = vsel %vm1515, %v4466, 0
        %v4531 = vsel %vm1515, %v4468, 0
        %v4533 = vsel %vm1515, %v4470, 0
        %v4535 = vsel %vm1515, %v4472, 0
        %v4537 = vsel %vm1515, %v4474, 0
        %v4539 = vsel %vm1515, %v4476, 0
        %v4541 = vsel %vm1515, %v4478, 0
        %v4543 = vsel %vm1515, %v4480, 0
        %v4545 = vsel %vm1515, %v4482, 0
        %v4547 = vsel %vm1515, %v4484, 0
        %v4549 = vsel %vm1515, %v4486, 0
        %v4551 = vsel %vm1515, %v4488, 0
        %v4553 = vsel %vm1515, %v4490, 0
        %v4555 = vsel %vm1515, %v4492, 0
        %v4557 = vsel %vm1515, %v4494, 0
        %v4559 = vsel %vm1515, %v4496, 0
        %v4561 = vsel %vm1515, %v4498, 0
        %v4563 = vsel %vm1515, %v4500, 0
        %v4565 = vsel %vm1515, %v4502, 0
        %v4567 = vsel %vm1515, %v4504, 0
        %v4569 = vsel %vm1515, %v4506, 0
        %v4571 = vsel %vm1515, %v4508, 0
        %v4573 = vsel %vm1515, %v4510, 0
        %v4575 = vsel %vm1515, %v4512, 0
        %v4577 = vsel %vm1515, %v4514, 0
        %v4579 = vsel %vm1515, %v4516, 0
        %v4581 = vsel %vm1515, %v4518, 0
        %v4583 = vsel %vm1515, %v4520, 0
        %4585 = vmatprep.subr.mxu0 0.0
        %4586 = vmatpush1.xpose.msra.mxu0 %v4583
        %4587 = vmatprep.subr.mxu0 0.0
        %4588 = vmatpush1.xpose.msra.mxu0 %v4581
        %4589 = vmatprep.subr.mxu0 0.0
        %4590 = vmatpush1.xpose.msra.mxu0 %v4579
        %4591 = vmatprep.subr.mxu0 0.0
        %4592 = vmatpush1.xpose.msra.mxu0 %v4577
        %4593 = vmatprep.subr.mxu0 0.0
        %4594 = vmatpush1.xpose.msra.mxu0 %v4575
        %4595 = vmatprep.subr.mxu0 0.0
        %4596 = vmatpush1.xpose.msra.mxu0 %v4573
        %4597 = vmatprep.subr.mxu0 0.0
        %4598 = vmatpush1.xpose.msra.mxu0 %v4571
        %4599 = vmatprep.subr.mxu0 0.0
        %4600 = vmatpush1.xpose.msra.mxu0 %v4569
        %4601 = vmatprep.subr.mxu0 0.0
        %4602 = vmatpush1.xpose.msra.mxu0 %v4567
        %4603 = vmatprep.subr.mxu0 0.0
        %4604 = vmatpush1.xpose.msra.mxu0 %v4565
        %4605 = vmatprep.subr.mxu0 0.0
        %4606 = vmatpush1.xpose.msra.mxu0 %v4563
        %4607 = vmatprep.subr.mxu0 0.0
        %4608 = vmatpush1.xpose.msra.mxu0 %v4561
        %4609 = vmatprep.subr.mxu0 0.0
        %4610 = vmatpush1.xpose.msra.mxu0 %v4559
        %4611 = vmatprep.subr.mxu0 0.0
        %4612 = vmatpush1.xpose.msra.mxu0 %v4557
        %4613 = vmatprep.subr.mxu0 0.0
        %4614 = vmatpush1.xpose.msra.mxu0 %v4555
        %4615 = vmatprep.subr.mxu0 0.0
        %4616 = vmatpush1.xpose.msra.mxu0 %v4553
        %4617 = vmatprep.subr.mxu0 0.0
        %4618 = vmatpush2.xpose.msra.mxu0 0.0
        %4619 = vmatprep.subr.mxu0 0.0
        %4620 = vmatpush2.xpose.msra.mxu0 0.0
        %4621 = vmatprep.subr.mxu0 0.0
        %4622 = vmatpush2.xpose.msra.mxu0 0.0
        %4623 = vmatprep.subr.mxu0 0.0
        %4624 = vmatpush2.xpose.msra.mxu0 0.0
        %4625 = vmatprep.subr.mxu0 0.0
        %4626 = vmatpush2.xpose.msra.mxu0 0.0
        %4627 = vmatprep.subr.mxu0 0.0
        %4628 = vmatpush2.xpose.msra.mxu0 0.0
        %4629 = vmatprep.subr.mxu0 0.0
        %4630 = vmatpush2.xpose.msra.mxu0 0.0
        %4631 = vmatprep.subr.mxu0 0.0
        %4632 = vmatpush2.xpose.msra.mxu0 0.0
        %4633 = vmatprep.subr.mxu0 0.0
        %4634 = vmatpush2.xpose.msra.mxu0 0.0
        %4635 = vmatprep.subr.mxu0 0.0
        %4636 = vmatpush2.xpose.msra.mxu0 0.0
        %4637 = vmatprep.subr.mxu0 0.0
        %4638 = vmatpush2.xpose.msra.mxu0 0.0
        %4639 = vmatprep.subr.mxu0 0.0
        %4640 = vmatpush2.xpose.msra.mxu0 0.0
        %4641 = vmatprep.subr.mxu0 0.0
        %4642 = vmatpush2.xpose.msra.mxu0 0.0
        %4643 = vmatprep.subr.mxu0 0.0
        %4644 = vmatpush2.xpose.msra.mxu0 0.0
        %4645 = vmatprep.subr.mxu0 0.0
        %4646 = vmatpush2.xpose.msra.mxu0 0.0
        %4647 = vmatprep.subr.mxu0 0.0
        %4648 = vmatpush2.xpose.msra.mxu0 0.0
        %4649 = vmatprep.mubr.f32.mxu0 0.0
        %4650 = vmatmul.mubr.f32.gmra.mxu0 %v4521
        %v4651 = vpop.f32.mrf.mxu0
        %v4652 = vadd.f32 %v4425, %v4651
        %v4653 = vpop.f32.mrf.mxu0
        %4654 = vmatprep.mubr.f32.mxu0 0.0
        %4655 = vmatmul.mubr.f32.gmra.mxu0 %v4523
        %v4656 = vpop.f32.mrf.mxu0
        %v4657 = vadd.f32 %v4426, %v4656
        %v4658 = vpop.f32.mrf.mxu0
        %4659 = vmatprep.mubr.f32.mxu0 0.0
        %4660 = vmatmul.mubr.f32.gmra.mxu0 %v4525
        %v4661 = vpop.f32.mrf.mxu0
        %v4662 = vadd.f32 %v4427, %v4661
        %v4663 = vpop.f32.mrf.mxu0
        %4664 = vmatprep.mubr.f32.mxu0 0.0
        %4665 = vmatmul.mubr.f32.gmra.mxu0 %v4527
        %v4666 = vpop.f32.mrf.mxu0
        %v4667 = vadd.f32 %v4428, %v4666
        %v4668 = vpop.f32.mrf.mxu0
        %4669 = vmatprep.mubr.f32.mxu0 0.0
        %4670 = vmatmul.mubr.f32.gmra.mxu0 %v4529
        %v4671 = vpop.f32.mrf.mxu0
        %v4672 = vadd.f32 %v4429, %v4671
        %v4673 = vpop.f32.mrf.mxu0
        %4674 = vmatprep.mubr.f32.mxu0 0.0
        %4675 = vmatmul.mubr.f32.gmra.mxu0 %v4531
        %v4676 = vpop.f32.mrf.mxu0
        %v4677 = vadd.f32 %v4430, %v4676
        %v4678 = vpop.f32.mrf.mxu0
        %4679 = vmatprep.mubr.f32.mxu0 0.0
        %4680 = vmatmul.mubr.f32.gmra.mxu0 %v4533
        %v4681 = vpop.f32.mrf.mxu0
        %v4682 = vadd.f32 %v4431, %v4681
        %v4683 = vpop.f32.mrf.mxu0
        %4684 = vmatprep.mubr.f32.mxu0 0.0
        %4685 = vmatmul.mubr.f32.gmra.mxu0 %v4535
        %v4686 = vpop.f32.mrf.mxu0
        %v4687 = vadd.f32 %v4432, %v4686
        %v4688 = vpop.f32.mrf.mxu0
        %4689 = vmatprep.mubr.f32.mxu0 0.0
        %4690 = vmatmul.mubr.f32.gmra.mxu0 %v4537
        %v4691 = vpop.f32.mrf.mxu0
        %v4692 = vadd.f32 %v4433, %v4691
        %v4693 = vpop.f32.mrf.mxu0
        %4694 = vmatprep.mubr.f32.mxu0 0.0
        %4695 = vmatmul.mubr.f32.gmra.mxu0 %v4539
        %v4696 = vpop.f32.mrf.mxu0
        %v4697 = vadd.f32 %v4434, %v4696
        %v4698 = vpop.f32.mrf.mxu0
        %4699 = vmatprep.mubr.f32.mxu0 0.0
        %4700 = vmatmul.mubr.f32.gmra.mxu0 %v4541
        %v4701 = vpop.f32.mrf.mxu0
        %v4702 = vadd.f32 %v4435, %v4701
        %v4703 = vpop.f32.mrf.mxu0
        %4704 = vmatprep.mubr.f32.mxu0 0.0
        %4705 = vmatmul.mubr.f32.gmra.mxu0 %v4543
        %v4706 = vpop.f32.mrf.mxu0
        %v4707 = vadd.f32 %v4436, %v4706
        %v4708 = vpop.f32.mrf.mxu0
        %4709 = vmatprep.mubr.f32.mxu0 0.0
        %4710 = vmatmul.mubr.f32.gmra.mxu0 %v4545
        %v4711 = vpop.f32.mrf.mxu0
        %v4712 = vadd.f32 %v4437, %v4711
        %v4713 = vpop.f32.mrf.mxu0
        %4714 = vmatprep.mubr.f32.mxu0 0.0
        %4715 = vmatmul.mubr.f32.gmra.mxu0 %v4547
        %v4716 = vpop.f32.mrf.mxu0
        %v4717 = vadd.f32 %v4438, %v4716
        %v4718 = vpop.f32.mrf.mxu0
        %4719 = vmatprep.mubr.f32.mxu0 0.0
        %4720 = vmatmul.mubr.f32.gmra.mxu0 %v4549
        %v4721 = vpop.f32.mrf.mxu0
        %v4722 = vadd.f32 %v4439, %v4721
        %v4723 = vpop.f32.mrf.mxu0
        %4724 = vmatprep.mubr.f32.mxu0 0.0
        %4725 = vmatmul.mubr.f32.gmra.mxu0 %v4551
        %v4726 = vpop.f32.mrf.mxu0
        %v4727 = vadd.f32 %v4440, %v4726
        %v4728 = vpop.f32.mrf.mxu0
        %4729 = vdwg.mxu0
        %v4730 = vld [vmem:[#allocation3] sm:$0xff]
        %v4731 = vld [vmem:[#allocation3 + $0x8] sm:$0xff]
        %v4732 = vld [vmem:[#allocation3 + $0x10] sm:$0xff]
        %v4733 = vld [vmem:[#allocation3 + $0x18] sm:$0xff]
        %v4734 = vld [vmem:[#allocation3 + $0x20] sm:$0xff]
        %v4735 = vld [vmem:[#allocation3 + $0x28] sm:$0xff]
        %v4736 = vld [vmem:[#allocation3 + $0x30] sm:$0xff]
        %v4737 = vld [vmem:[#allocation3 + $0x38] sm:$0xff]
        %v4738 = vld [vmem:[#allocation3 + $0x40] sm:$0xff]
        %v4739 = vld [vmem:[#allocation3 + $0x48] sm:$0xff]
        %v4740 = vld [vmem:[#allocation3 + $0x50] sm:$0xff]
        %v4741 = vld [vmem:[#allocation3 + $0x58] sm:$0xff]
        %v4742 = vld [vmem:[#allocation3 + $0x60] sm:$0xff]
        %v4743 = vld [vmem:[#allocation3 + $0x68] sm:$0xff]
        %v4744 = vld [vmem:[#allocation3 + $0x70] sm:$0xff]
        %v4745 = vld [vmem:[#allocation3 + $0x78] sm:$0xff]
        %4746 = vmax.xlane.f32.xlu0 %v4652
        %v4747 = vpop.xlane.xlu0 %4746
        %4748 = vmax.xlane.f32.xlu0 %v4657
        %v4749 = vpop.xlane.xlu0 %4748
        %4750 = vmax.xlane.f32.xlu0 %v4662
        %v4751 = vpop.xlane.xlu0 %4750
        %4752 = vmax.xlane.f32.xlu0 %v4667
        %v4753 = vpop.xlane.xlu0 %4752
        %4754 = vmax.xlane.f32.xlu0 %v4672
        %v4755 = vpop.xlane.xlu0 %4754
        %4756 = vmax.xlane.f32.xlu0 %v4677
        %v4757 = vpop.xlane.xlu0 %4756
        %4758 = vmax.xlane.f32.xlu0 %v4682
        %v4759 = vpop.xlane.xlu0 %4758
        %4760 = vmax.xlane.f32.xlu0 %v4687
        %v4761 = vpop.xlane.xlu0 %4760
        %4762 = vmax.xlane.f32.xlu0 %v4692
        %v4763 = vpop.xlane.xlu0 %4762
        %4764 = vmax.xlane.f32.xlu0 %v4697
        %v4765 = vpop.xlane.xlu0 %4764
        %4766 = vmax.xlane.f32.xlu0 %v4702
        %v4767 = vpop.xlane.xlu0 %4766
        %4768 = vmax.xlane.f32.xlu0 %v4707
        %v4769 = vpop.xlane.xlu0 %4768
        %4770 = vmax.xlane.f32.xlu0 %v4712
        %v4771 = vpop.xlane.xlu0 %4770
        %4772 = vmax.xlane.f32.xlu0 %v4717
        %v4773 = vpop.xlane.xlu0 %4772
        %4774 = vmax.xlane.f32.xlu0 %v4722
        %v4775 = vpop.xlane.xlu0 %4774
        %4776 = vmax.xlane.f32.xlu0 %v4727
        %v4777 = vpop.xlane.xlu0 %4776
        %v4778 = vmax.f32 %v4730, %v4747
        %v4779 = vmax.f32 %v4731, %v4749
        %v4780 = vmax.f32 %v4732, %v4751
        %v4781 = vmax.f32 %v4733, %v4753
        %v4782 = vmax.f32 %v4734, %v4755
        %v4783 = vmax.f32 %v4735, %v4757
        %v4784 = vmax.f32 %v4736, %v4759
        %v4785 = vmax.f32 %v4737, %v4761
        %v4786 = vmax.f32 %v4738, %v4763
        %v4787 = vmax.f32 %v4739, %v4765
        %v4788 = vmax.f32 %v4740, %v4767
        %v4789 = vmax.f32 %v4741, %v4769
        %v4790 = vmax.f32 %v4742, %v4771
        %v4791 = vmax.f32 %v4743, %v4773
        %v4792 = vmax.f32 %v4744, %v4775
        %v4793 = vmax.f32 %v4745, %v4777
        %v4794 = vsub.f32 %v4730, %v4778
        %v4795 = vsub.f32 %v4731, %v4779
        %v4796 = vsub.f32 %v4732, %v4780
        %v4797 = vsub.f32 %v4733, %v4781
        %v4798 = vsub.f32 %v4734, %v4782
        %v4799 = vsub.f32 %v4735, %v4783
        %v4800 = vsub.f32 %v4736, %v4784
        %v4801 = vsub.f32 %v4737, %v4785
        %v4802 = vsub.f32 %v4738, %v4786
        %v4803 = vsub.f32 %v4739, %v4787
        %v4804 = vsub.f32 %v4740, %v4788
        %v4805 = vsub.f32 %v4741, %v4789
        %v4806 = vsub.f32 %v4742, %v4790
        %v4807 = vsub.f32 %v4743, %v4791
        %v4808 = vsub.f32 %v4744, %v4792
        %v4809 = vsub.f32 %v4745, %v4793
        %v4810 = vmul.f32 %v4794, 1.442695
        %v4811 = vpow.pop %v4810
        %v4812 = vmul.f32 %v4795, 1.442695
        %v4813 = vpow.pop %v4812
        %v4814 = vmul.f32 %v4796, 1.442695
        %v4815 = vpow.pop %v4814
        %v4816 = vmul.f32 %v4797, 1.442695
        %v4817 = vpow.pop %v4816
        %v4818 = vmul.f32 %v4798, 1.442695
        %v4819 = vpow.pop %v4818
        %v4820 = vmul.f32 %v4799, 1.442695
        %v4821 = vpow.pop %v4820
        %v4822 = vmul.f32 %v4800, 1.442695
        %v4823 = vpow.pop %v4822
        %v4824 = vmul.f32 %v4801, 1.442695
        %v4825 = vpow.pop %v4824
        %v4826 = vmul.f32 %v4802, 1.442695
        %v4827 = vpow.pop %v4826
        %v4828 = vmul.f32 %v4803, 1.442695
        %v4829 = vpow.pop %v4828
        %v4830 = vmul.f32 %v4804, 1.442695
        %v4831 = vpow.pop %v4830
        %v4832 = vmul.f32 %v4805, 1.442695
        %v4833 = vpow.pop %v4832
        %v4834 = vmul.f32 %v4806, 1.442695
        %v4835 = vpow.pop %v4834
        %v4836 = vmul.f32 %v4807, 1.442695
        %v4837 = vpow.pop %v4836
        %v4838 = vmul.f32 %v4808, 1.442695
        %v4839 = vpow.pop %v4838
        %v4840 = vmul.f32 %v4809, 1.442695
        %v4841 = vpow.pop %v4840
        %4843 = vset.pattern.permute.xlu0 3
        %4844 = vperm.xlu0 %4843, %v4778
        %v4845 = vpop.permute.xlu0 %4844
        %4848 = vset.pattern.permute.xlu0 3
        %4849 = vperm.xlu0 %4848, %v4779
        %v4850 = vpop.permute.xlu0 %4849
        %4853 = vset.pattern.permute.xlu0 3
        %4854 = vperm.xlu0 %4853, %v4780
        %v4855 = vpop.permute.xlu0 %4854
        %4858 = vset.pattern.permute.xlu0 3
        %4859 = vperm.xlu0 %4858, %v4781
        %v4860 = vpop.permute.xlu0 %4859
        %4863 = vset.pattern.permute.xlu0 3
        %4864 = vperm.xlu0 %4863, %v4782
        %v4865 = vpop.permute.xlu0 %4864
        %4868 = vset.pattern.permute.xlu0 3
        %4869 = vperm.xlu0 %4868, %v4783
        %v4870 = vpop.permute.xlu0 %4869
        %4873 = vset.pattern.permute.xlu0 3
        %4874 = vperm.xlu0 %4873, %v4784
        %v4875 = vpop.permute.xlu0 %4874
        %4878 = vset.pattern.permute.xlu0 3
        %4879 = vperm.xlu0 %4878, %v4785
        %v4880 = vpop.permute.xlu0 %4879
        %4883 = vset.pattern.permute.xlu0 3
        %4884 = vperm.xlu0 %4883, %v4786
        %v4885 = vpop.permute.xlu0 %4884
        %4888 = vset.pattern.permute.xlu0 3
        %4889 = vperm.xlu0 %4888, %v4787
        %v4890 = vpop.permute.xlu0 %4889
        %4893 = vset.pattern.permute.xlu0 3
        %4894 = vperm.xlu0 %4893, %v4788
        %v4895 = vpop.permute.xlu0 %4894
        %4898 = vset.pattern.permute.xlu0 3
        %4899 = vperm.xlu0 %4898, %v4789
        %v4900 = vpop.permute.xlu0 %4899
        %4903 = vset.pattern.permute.xlu0 3
        %4904 = vperm.xlu0 %4903, %v4790
        %v4905 = vpop.permute.xlu0 %4904
        %4908 = vset.pattern.permute.xlu0 3
        %4909 = vperm.xlu0 %4908, %v4791
        %v4910 = vpop.permute.xlu0 %4909
        %4913 = vset.pattern.permute.xlu0 3
        %4914 = vperm.xlu0 %4913, %v4792
        %v4915 = vpop.permute.xlu0 %4914
        %4918 = vset.pattern.permute.xlu0 3
        %4919 = vperm.xlu0 %4918, %v4793
        %v4920 = vpop.permute.xlu0 %4919
        %v4922 = vsub.f32 %v4652, %v4845
        %v4923 = vsub.f32 %v4657, %v4850
        %v4924 = vsub.f32 %v4662, %v4855
        %v4925 = vsub.f32 %v4667, %v4860
        %v4926 = vsub.f32 %v4672, %v4865
        %v4927 = vsub.f32 %v4677, %v4870
        %v4928 = vsub.f32 %v4682, %v4875
        %v4929 = vsub.f32 %v4687, %v4880
        %v4930 = vsub.f32 %v4692, %v4885
        %v4931 = vsub.f32 %v4697, %v4890
        %v4932 = vsub.f32 %v4702, %v4895
        %v4933 = vsub.f32 %v4707, %v4900
        %v4934 = vsub.f32 %v4712, %v4905
        %v4935 = vsub.f32 %v4717, %v4910
        %v4936 = vsub.f32 %v4722, %v4915
        %v4937 = vsub.f32 %v4727, %v4920
        %v4938 = vmul.f32 %v4922, 1.442695
        %v4939 = vpow.pop %v4938
        %v4940 = vmul.f32 %v4923, 1.442695
        %v4941 = vpow.pop %v4940
        %v4942 = vmul.f32 %v4924, 1.442695
        %v4943 = vpow.pop %v4942
        %v4944 = vmul.f32 %v4925, 1.442695
        %v4945 = vpow.pop %v4944
        %v4946 = vmul.f32 %v4926, 1.442695
        %v4947 = vpow.pop %v4946
        %v4948 = vmul.f32 %v4927, 1.442695
        %v4949 = vpow.pop %v4948
        %v4950 = vmul.f32 %v4928, 1.442695
        %v4951 = vpow.pop %v4950
        %v4952 = vmul.f32 %v4929, 1.442695
        %v4953 = vpow.pop %v4952
        %v4954 = vmul.f32 %v4930, 1.442695
        %v4955 = vpow.pop %v4954
        %v4956 = vmul.f32 %v4931, 1.442695
        %v4957 = vpow.pop %v4956
        %v4958 = vmul.f32 %v4932, 1.442695
        %v4959 = vpow.pop %v4958
        %v4960 = vmul.f32 %v4933, 1.442695
        %v4961 = vpow.pop %v4960
        %v4962 = vmul.f32 %v4934, 1.442695
        %v4963 = vpow.pop %v4962
        %v4964 = vmul.f32 %v4935, 1.442695
        %v4965 = vpow.pop %v4964
        %v4966 = vmul.f32 %v4936, 1.442695
        %v4967 = vpow.pop %v4966
        %v4968 = vmul.f32 %v4937, 1.442695
        %v4969 = vpow.pop %v4968
        %v4970 = vld [vmem:[#allocation4] sm:$0xff]
        %v4971 = vld [vmem:[#allocation4 + $0x8] sm:$0xff]
        %v4972 = vld [vmem:[#allocation4 + $0x10] sm:$0xff]
        %v4973 = vld [vmem:[#allocation4 + $0x18] sm:$0xff]
        %v4974 = vld [vmem:[#allocation4 + $0x20] sm:$0xff]
        %v4975 = vld [vmem:[#allocation4 + $0x28] sm:$0xff]
        %v4976 = vld [vmem:[#allocation4 + $0x30] sm:$0xff]
        %v4977 = vld [vmem:[#allocation4 + $0x38] sm:$0xff]
        %v4978 = vld [vmem:[#allocation4 + $0x40] sm:$0xff]
        %v4979 = vld [vmem:[#allocation4 + $0x48] sm:$0xff]
        %v4980 = vld [vmem:[#allocation4 + $0x50] sm:$0xff]
        %v4981 = vld [vmem:[#allocation4 + $0x58] sm:$0xff]
        %v4982 = vld [vmem:[#allocation4 + $0x60] sm:$0xff]
        %v4983 = vld [vmem:[#allocation4 + $0x68] sm:$0xff]
        %v4984 = vld [vmem:[#allocation4 + $0x70] sm:$0xff]
        %v4985 = vld [vmem:[#allocation4 + $0x78] sm:$0xff]
        %v4986 = vmul.f32 %v4811, %v4970
        %v4987 = vmul.f32 %v4813, %v4971
        %v4988 = vmul.f32 %v4815, %v4972
        %v4989 = vmul.f32 %v4817, %v4973
        %v4990 = vmul.f32 %v4819, %v4974
        %v4991 = vmul.f32 %v4821, %v4975
        %v4992 = vmul.f32 %v4823, %v4976
        %v4993 = vmul.f32 %v4825, %v4977
        %v4994 = vmul.f32 %v4827, %v4978
        %v4995 = vmul.f32 %v4829, %v4979
        %v4996 = vmul.f32 %v4831, %v4980
        %v4997 = vmul.f32 %v4833, %v4981
        %v4998 = vmul.f32 %v4835, %v4982
        %v4999 = vmul.f32 %v4837, %v4983
        %v5000 = vmul.f32 %v4839, %v4984
        %v5001 = vmul.f32 %v4841, %v4985
        %5002 = vadd.xlane.f32.xlu0 %v4939
        %v5003 = vpop.xlane.xlu0 %5002
        %5004 = vadd.xlane.f32.xlu0 %v4941
        %v5005 = vpop.xlane.xlu0 %5004
        %5006 = vadd.xlane.f32.xlu0 %v4943
        %v5007 = vpop.xlane.xlu0 %5006
        %5008 = vadd.xlane.f32.xlu0 %v4945
        %v5009 = vpop.xlane.xlu0 %5008
        %5010 = vadd.xlane.f32.xlu0 %v4947
        %v5011 = vpop.xlane.xlu0 %5010
        %5012 = vadd.xlane.f32.xlu0 %v4949
        %v5013 = vpop.xlane.xlu0 %5012
        %5014 = vadd.xlane.f32.xlu0 %v4951
        %v5015 = vpop.xlane.xlu0 %5014
        %5016 = vadd.xlane.f32.xlu0 %v4953
        %v5017 = vpop.xlane.xlu0 %5016
        %5018 = vadd.xlane.f32.xlu0 %v4955
        %v5019 = vpop.xlane.xlu0 %5018
        %5020 = vadd.xlane.f32.xlu0 %v4957
        %v5021 = vpop.xlane.xlu0 %5020
        %5022 = vadd.xlane.f32.xlu0 %v4959
        %v5023 = vpop.xlane.xlu0 %5022
        %5024 = vadd.xlane.f32.xlu0 %v4961
        %v5025 = vpop.xlane.xlu0 %5024
        %5026 = vadd.xlane.f32.xlu0 %v4963
        %v5027 = vpop.xlane.xlu0 %5026
        %5028 = vadd.xlane.f32.xlu0 %v4965
        %v5029 = vpop.xlane.xlu0 %5028
        %5030 = vadd.xlane.f32.xlu0 %v4967
        %v5031 = vpop.xlane.xlu0 %5030
        %5032 = vadd.xlane.f32.xlu0 %v4969
        %v5033 = vpop.xlane.xlu0 %5032
        %v5034 = vadd.f32 %v4986, %v5003
        %v5035 = vadd.f32 %v4987, %v5005
        %v5036 = vadd.f32 %v4988, %v5007
        %v5037 = vadd.f32 %v4989, %v5009
        %v5038 = vadd.f32 %v4990, %v5011
        %v5039 = vadd.f32 %v4991, %v5013
        %v5040 = vadd.f32 %v4992, %v5015
        %v5041 = vadd.f32 %v4993, %v5017
        %v5042 = vadd.f32 %v4994, %v5019
        %v5043 = vadd.f32 %v4995, %v5021
        %v5044 = vadd.f32 %v4996, %v5023
        %v5045 = vadd.f32 %v4997, %v5025
        %v5046 = vadd.f32 %v4998, %v5027
        %v5047 = vadd.f32 %v4999, %v5029
        %v5048 = vadd.f32 %v5000, %v5031
        %v5049 = vadd.f32 %v5001, %v5033
        %vm5050 = vcmask 31768
        %5051 = vst.msk [vmem:[#allocation4] sm:$0xff] %vm5050, %v5034
        %5052 = vst.msk [vmem:[#allocation4 + $0x8] sm:$0xff] %vm5050, %v5035
        %5053 = vst.msk [vmem:[#allocation4 + $0x10] sm:$0xff] %vm5050, %v5036
        %5054 = vst.msk [vmem:[#allocation4 + $0x18] sm:$0xff] %vm5050, %v5037
        %5055 = vst.msk [vmem:[#allocation4 + $0x20] sm:$0xff] %vm5050, %v5038
        %5056 = vst.msk [vmem:[#allocation4 + $0x28] sm:$0xff] %vm5050, %v5039
        %5057 = vst.msk [vmem:[#allocation4 + $0x30] sm:$0xff] %vm5050, %v5040
        %5058 = vst.msk [vmem:[#allocation4 + $0x38] sm:$0xff] %vm5050, %v5041
        %5059 = vst.msk [vmem:[#allocation4 + $0x40] sm:$0xff] %vm5050, %v5042
        %5060 = vst.msk [vmem:[#allocation4 + $0x48] sm:$0xff] %vm5050, %v5043
        %5061 = vst.msk [vmem:[#allocation4 + $0x50] sm:$0xff] %vm5050, %v5044
        %5062 = vst.msk [vmem:[#allocation4 + $0x58] sm:$0xff] %vm5050, %v5045
        %5063 = vst.msk [vmem:[#allocation4 + $0x60] sm:$0xff] %vm5050, %v5046
        %5064 = vst.msk [vmem:[#allocation4 + $0x68] sm:$0xff] %vm5050, %v5047
        %5065 = vst.msk [vmem:[#allocation4 + $0x70] sm:$0xff] %vm5050, %v5048
        %5066 = vst.msk [vmem:[#allocation4 + $0x78] sm:$0xff] %vm5050, %v5049
        %5083 = vrot.lane.b32.xlu0 %v1391, 64
        %v5084 = vpop.permute.xlu0 %5083
        %5085 = vrot.lane.b32.xlu0 %v1397, 64
        %v5086 = vpop.permute.xlu0 %5085
        %5087 = vrot.lane.b32.xlu0 %v1403, 64
        %v5088 = vpop.permute.xlu0 %5087
        %5089 = vrot.lane.b32.xlu0 %v1409, 64
        %v5090 = vpop.permute.xlu0 %5089
        %5091 = vrot.lane.b32.xlu0 %v1415, 64
        %v5092 = vpop.permute.xlu0 %5091
        %5093 = vrot.lane.b32.xlu0 %v1421, 64
        %v5094 = vpop.permute.xlu0 %5093
        %5095 = vrot.lane.b32.xlu0 %v1427, 64
        %v5096 = vpop.permute.xlu0 %5095
        %5097 = vrot.lane.b32.xlu0 %v1433, 64
        %v5098 = vpop.permute.xlu0 %5097
        %5099 = vrot.lane.b32.xlu0 %v1439, 64
        %v5100 = vpop.permute.xlu0 %5099
        %5101 = vrot.lane.b32.xlu0 %v1445, 64
        %v5102 = vpop.permute.xlu0 %5101
        %5103 = vrot.lane.b32.xlu0 %v1451, 64
        %v5104 = vpop.permute.xlu0 %5103
        %5105 = vrot.lane.b32.xlu0 %v1457, 64
        %v5106 = vpop.permute.xlu0 %5105
        %5107 = vrot.lane.b32.xlu0 %v1463, 64
        %v5108 = vpop.permute.xlu0 %5107
        %5109 = vrot.lane.b32.xlu0 %v1469, 64
        %v5110 = vpop.permute.xlu0 %5109
        %5111 = vrot.lane.b32.xlu0 %v1475, 64
        %v5112 = vpop.permute.xlu0 %5111
        %5113 = vrot.lane.b32.xlu0 %v1481, 64
        %v5114 = vpop.permute.xlu0 %5113
        %5131 = vmatprep.subr.mxu0 0.0
        %5132 = vmatpush1.msra.mxu0 %v5114
        %5133 = vmatprep.subr.mxu0 0.0
        %5134 = vmatpush1.msra.mxu0 %v5112
        %5135 = vmatprep.subr.mxu0 0.0
        %5136 = vmatpush1.msra.mxu0 %v5110
        %5137 = vmatprep.subr.mxu0 0.0
        %5138 = vmatpush1.msra.mxu0 %v5108
        %5139 = vmatprep.subr.mxu0 0.0
        %5140 = vmatpush1.msra.mxu0 %v5106
        %5141 = vmatprep.subr.mxu0 0.0
        %5142 = vmatpush1.msra.mxu0 %v5104
        %5143 = vmatprep.subr.mxu0 0.0
        %5144 = vmatpush1.msra.mxu0 %v5102
        %5145 = vmatprep.subr.mxu0 0.0
        %5146 = vmatpush1.msra.mxu0 %v5100
        %5147 = vmatprep.subr.mxu0 0.0
        %5148 = vmatpush1.msra.mxu0 %v5098
        %5149 = vmatprep.subr.mxu0 0.0
        %5150 = vmatpush1.msra.mxu0 %v5096
        %5151 = vmatprep.subr.mxu0 0.0
        %5152 = vmatpush1.msra.mxu0 %v5094
        %5153 = vmatprep.subr.mxu0 0.0
        %5154 = vmatpush1.msra.mxu0 %v5092
        %5155 = vmatprep.subr.mxu0 0.0
        %5156 = vmatpush1.msra.mxu0 %v5090
        %5157 = vmatprep.subr.mxu0 0.0
        %5158 = vmatpush1.msra.mxu0 %v5088
        %5159 = vmatprep.subr.mxu0 0.0
        %5160 = vmatpush1.msra.mxu0 %v5086
        %5161 = vmatprep.subr.mxu0 0.0
        %5162 = vmatpush1.msra.mxu0 %v5084
        %5163 = vmatprep.subr.mxu0 0.0
        %5164 = vmatpush2.msra.mxu0 0.0
        %5165 = vmatprep.subr.mxu0 0.0
        %5166 = vmatpush2.msra.mxu0 0.0
        %5167 = vmatprep.subr.mxu0 0.0
        %5168 = vmatpush2.msra.mxu0 0.0
        %5169 = vmatprep.subr.mxu0 0.0
        %5170 = vmatpush2.msra.mxu0 0.0
        %5171 = vmatprep.subr.mxu0 0.0
        %5172 = vmatpush2.msra.mxu0 0.0
        %5173 = vmatprep.subr.mxu0 0.0
        %5174 = vmatpush2.msra.mxu0 0.0
        %5175 = vmatprep.subr.mxu0 0.0
        %5176 = vmatpush2.msra.mxu0 0.0
        %5177 = vmatprep.subr.mxu0 0.0
        %5178 = vmatpush2.msra.mxu0 0.0
        %5179 = vmatprep.subr.mxu0 0.0
        %5180 = vmatpush2.msra.mxu0 0.0
        %5181 = vmatprep.subr.mxu0 0.0
        %5182 = vmatpush2.msra.mxu0 0.0
        %5183 = vmatprep.subr.mxu0 0.0
        %5184 = vmatpush2.msra.mxu0 0.0
        %5185 = vmatprep.subr.mxu0 0.0
        %5186 = vmatpush2.msra.mxu0 0.0
        %5187 = vmatprep.subr.mxu0 0.0
        %5188 = vmatpush2.msra.mxu0 0.0
        %5189 = vmatprep.subr.mxu0 0.0
        %5190 = vmatpush2.msra.mxu0 0.0
        %5191 = vmatprep.subr.mxu0 0.0
        %5192 = vmatpush2.msra.mxu0 0.0
        %5193 = vmatprep.subr.mxu0 0.0
        %5194 = vmatpush2.msra.mxu0 0.0
        %5195 = vmatprep.mubr.f32.mxu0 0.0
        %5196 = vmatmul.mubr.f32.gmra.mxu0 %v4939
        %v5197 = vpop.f32.mrf.mxu0
        %v5198 = vadd.f32 0.0, %v5197
        %v5199 = vpop.f32.mrf.mxu0
        %5200 = vmatprep.mubr.f32.mxu0 0.0
        %5201 = vmatmul.mubr.f32.gmra.mxu0 %v4941
        %v5202 = vpop.f32.mrf.mxu0
        %v5203 = vadd.f32 0.0, %v5202
        %v5204 = vpop.f32.mrf.mxu0
        %5205 = vmatprep.mubr.f32.mxu0 0.0
        %5206 = vmatmul.mubr.f32.gmra.mxu0 %v4943
        %v5207 = vpop.f32.mrf.mxu0
        %v5208 = vadd.f32 0.0, %v5207
        %v5209 = vpop.f32.mrf.mxu0
        %5210 = vmatprep.mubr.f32.mxu0 0.0
        %5211 = vmatmul.mubr.f32.gmra.mxu0 %v4945
        %v5212 = vpop.f32.mrf.mxu0
        %v5213 = vadd.f32 0.0, %v5212
        %v5214 = vpop.f32.mrf.mxu0
        %5215 = vmatprep.mubr.f32.mxu0 0.0
        %5216 = vmatmul.mubr.f32.gmra.mxu0 %v4947
        %v5217 = vpop.f32.mrf.mxu0
        %v5218 = vadd.f32 0.0, %v5217
        %v5219 = vpop.f32.mrf.mxu0
        %5220 = vmatprep.mubr.f32.mxu0 0.0
        %5221 = vmatmul.mubr.f32.gmra.mxu0 %v4949
        %v5222 = vpop.f32.mrf.mxu0
        %v5223 = vadd.f32 0.0, %v5222
        %v5224 = vpop.f32.mrf.mxu0
        %5225 = vmatprep.mubr.f32.mxu0 0.0
        %5226 = vmatmul.mubr.f32.gmra.mxu0 %v4951
        %v5227 = vpop.f32.mrf.mxu0
        %v5228 = vadd.f32 0.0, %v5227
        %v5229 = vpop.f32.mrf.mxu0
        %5230 = vmatprep.mubr.f32.mxu0 0.0
        %5231 = vmatmul.mubr.f32.gmra.mxu0 %v4953
        %v5232 = vpop.f32.mrf.mxu0
        %v5233 = vadd.f32 0.0, %v5232
        %v5234 = vpop.f32.mrf.mxu0
        %5235 = vmatprep.mubr.f32.mxu0 0.0
        %5236 = vmatmul.mubr.f32.gmra.mxu0 %v4955
        %v5237 = vpop.f32.mrf.mxu0
        %v5238 = vadd.f32 0.0, %v5237
        %v5239 = vpop.f32.mrf.mxu0
        %5240 = vmatprep.mubr.f32.mxu0 0.0
        %5241 = vmatmul.mubr.f32.gmra.mxu0 %v4957
        %v5242 = vpop.f32.mrf.mxu0
        %v5243 = vadd.f32 0.0, %v5242
        %v5244 = vpop.f32.mrf.mxu0
        %5245 = vmatprep.mubr.f32.mxu0 0.0
        %5246 = vmatmul.mubr.f32.gmra.mxu0 %v4959
        %v5247 = vpop.f32.mrf.mxu0
        %v5248 = vadd.f32 0.0, %v5247
        %v5249 = vpop.f32.mrf.mxu0
        %5250 = vmatprep.mubr.f32.mxu0 0.0
        %5251 = vmatmul.mubr.f32.gmra.mxu0 %v4961
        %v5252 = vpop.f32.mrf.mxu0
        %v5253 = vadd.f32 0.0, %v5252
        %v5254 = vpop.f32.mrf.mxu0
        %5255 = vmatprep.mubr.f32.mxu0 0.0
        %5256 = vmatmul.mubr.f32.gmra.mxu0 %v4963
        %v5257 = vpop.f32.mrf.mxu0
        %v5258 = vadd.f32 0.0, %v5257
        %v5259 = vpop.f32.mrf.mxu0
        %5260 = vmatprep.mubr.f32.mxu0 0.0
        %5261 = vmatmul.mubr.f32.gmra.mxu0 %v4965
        %v5262 = vpop.f32.mrf.mxu0
        %v5263 = vadd.f32 0.0, %v5262
        %v5264 = vpop.f32.mrf.mxu0
        %5265 = vmatprep.mubr.f32.mxu0 0.0
        %5266 = vmatmul.mubr.f32.gmra.mxu0 %v4967
        %v5267 = vpop.f32.mrf.mxu0
        %v5268 = vadd.f32 0.0, %v5267
        %v5269 = vpop.f32.mrf.mxu0
        %5270 = vmatprep.mubr.f32.mxu0 0.0
        %5271 = vmatmul.mubr.f32.gmra.mxu0 %v4969
        %v5272 = vpop.f32.mrf.mxu0
        %v5273 = vadd.f32 0.0, %v5272
        %v5274 = vpop.f32.mrf.mxu0
        %5275 = vdwg.mxu0
        %v5276 = vld [vmem:[#allocation5 + $0x8] sm:$0xff]
        %v5277 = vld [vmem:[#allocation5 + $0x18] sm:$0xff]
        %v5278 = vld [vmem:[#allocation5 + $0x28] sm:$0xff]
        %v5279 = vld [vmem:[#allocation5 + $0x38] sm:$0xff]
        %v5280 = vld [vmem:[#allocation5 + $0x48] sm:$0xff]
        %v5281 = vld [vmem:[#allocation5 + $0x58] sm:$0xff]
        %v5282 = vld [vmem:[#allocation5 + $0x68] sm:$0xff]
        %v5283 = vld [vmem:[#allocation5 + $0x78] sm:$0xff]
        %v5284 = vld [vmem:[#allocation5 + $0x88] sm:$0xff]
        %v5285 = vld [vmem:[#allocation5 + $0x98] sm:$0xff]
        %v5286 = vld [vmem:[#allocation5 + $0xa8] sm:$0xff]
        %v5287 = vld [vmem:[#allocation5 + $0xb8] sm:$0xff]
        %v5288 = vld [vmem:[#allocation5 + $0xc8] sm:$0xff]
        %v5289 = vld [vmem:[#allocation5 + $0xd8] sm:$0xff]
        %v5290 = vld [vmem:[#allocation5 + $0xe8] sm:$0xff]
        %v5291 = vld [vmem:[#allocation5 + $0xf8] sm:$0xff]
        %5293 = vset.pattern.permute.xlu0 3
        %5294 = vperm.xlu0 %5293, %v4811
        %v5295 = vpop.permute.xlu0 %5294
        %5298 = vset.pattern.permute.xlu0 3
        %5299 = vperm.xlu0 %5298, %v4813
        %v5300 = vpop.permute.xlu0 %5299
        %5303 = vset.pattern.permute.xlu0 3
        %5304 = vperm.xlu0 %5303, %v4815
        %v5305 = vpop.permute.xlu0 %5304
        %5308 = vset.pattern.permute.xlu0 3
        %5309 = vperm.xlu0 %5308, %v4817
        %v5310 = vpop.permute.xlu0 %5309
        %5313 = vset.pattern.permute.xlu0 3
        %5314 = vperm.xlu0 %5313, %v4819
        %v5315 = vpop.permute.xlu0 %5314
        %5318 = vset.pattern.permute.xlu0 3
        %5319 = vperm.xlu0 %5318, %v4821
        %v5320 = vpop.permute.xlu0 %5319
        %5323 = vset.pattern.permute.xlu0 3
        %5324 = vperm.xlu0 %5323, %v4823
        %v5325 = vpop.permute.xlu0 %5324
        %5328 = vset.pattern.permute.xlu0 3
        %5329 = vperm.xlu0 %5328, %v4825
        %v5330 = vpop.permute.xlu0 %5329
        %5333 = vset.pattern.permute.xlu0 3
        %5334 = vperm.xlu0 %5333, %v4827
        %v5335 = vpop.permute.xlu0 %5334
        %5338 = vset.pattern.permute.xlu0 3
        %5339 = vperm.xlu0 %5338, %v4829
        %v5340 = vpop.permute.xlu0 %5339
        %5343 = vset.pattern.permute.xlu0 3
        %5344 = vperm.xlu0 %5343, %v4831
        %v5345 = vpop.permute.xlu0 %5344
        %5348 = vset.pattern.permute.xlu0 3
        %5349 = vperm.xlu0 %5348, %v4833
        %v5350 = vpop.permute.xlu0 %5349
        %5353 = vset.pattern.permute.xlu0 3
        %5354 = vperm.xlu0 %5353, %v4835
        %v5355 = vpop.permute.xlu0 %5354
        %5358 = vset.pattern.permute.xlu0 3
        %5359 = vperm.xlu0 %5358, %v4837
        %v5360 = vpop.permute.xlu0 %5359
        %5363 = vset.pattern.permute.xlu0 3
        %5364 = vperm.xlu0 %5363, %v4839
        %v5365 = vpop.permute.xlu0 %5364
        %5368 = vset.pattern.permute.xlu0 3
        %5369 = vperm.xlu0 %5368, %v4841
        %v5370 = vpop.permute.xlu0 %5369
        %v5372 = vmul.f32 %v5295, %v5276
        %v5373 = vmul.f32 %v5300, %v5277
        %v5374 = vmul.f32 %v5305, %v5278
        %v5375 = vmul.f32 %v5310, %v5279
        %v5376 = vmul.f32 %v5315, %v5280
        %v5377 = vmul.f32 %v5320, %v5281
        %v5378 = vmul.f32 %v5325, %v5282
        %v5379 = vmul.f32 %v5330, %v5283
        %v5380 = vmul.f32 %v5335, %v5284
        %v5381 = vmul.f32 %v5340, %v5285
        %v5382 = vmul.f32 %v5345, %v5286
        %v5383 = vmul.f32 %v5350, %v5287
        %v5384 = vmul.f32 %v5355, %v5288
        %v5385 = vmul.f32 %v5360, %v5289
        %v5386 = vmul.f32 %v5365, %v5290
        %v5387 = vmul.f32 %v5370, %v5291
        %5404 = vrot.lane.b32.xlu0 %v5198, 64
        %v5405 = vpop.permute.xlu0 %5404
        %5406 = vrot.lane.b32.xlu0 %v5203, 64
        %v5407 = vpop.permute.xlu0 %5406
        %5408 = vrot.lane.b32.xlu0 %v5208, 64
        %v5409 = vpop.permute.xlu0 %5408
        %5410 = vrot.lane.b32.xlu0 %v5213, 64
        %v5411 = vpop.permute.xlu0 %5410
        %5412 = vrot.lane.b32.xlu0 %v5218, 64
        %v5413 = vpop.permute.xlu0 %5412
        %5414 = vrot.lane.b32.xlu0 %v5223, 64
        %v5415 = vpop.permute.xlu0 %5414
        %5416 = vrot.lane.b32.xlu0 %v5228, 64
        %v5417 = vpop.permute.xlu0 %5416
        %5418 = vrot.lane.b32.xlu0 %v5233, 64
        %v5419 = vpop.permute.xlu0 %5418
        %5420 = vrot.lane.b32.xlu0 %v5238, 64
        %v5421 = vpop.permute.xlu0 %5420
        %5422 = vrot.lane.b32.xlu0 %v5243, 64
        %v5423 = vpop.permute.xlu0 %5422
        %5424 = vrot.lane.b32.xlu0 %v5248, 64
        %v5425 = vpop.permute.xlu0 %5424
        %5426 = vrot.lane.b32.xlu0 %v5253, 64
        %v5427 = vpop.permute.xlu0 %5426
        %5428 = vrot.lane.b32.xlu0 %v5258, 64
        %v5429 = vpop.permute.xlu0 %5428
        %5430 = vrot.lane.b32.xlu0 %v5263, 64
        %v5431 = vpop.permute.xlu0 %5430
        %5432 = vrot.lane.b32.xlu0 %v5268, 64
        %v5433 = vpop.permute.xlu0 %5432
        %5434 = vrot.lane.b32.xlu0 %v5273, 64
        %v5435 = vpop.permute.xlu0 %5434
        %v5452 = vadd.f32 %v5372, %v5405
        %v5453 = vadd.f32 %v5373, %v5407
        %v5454 = vadd.f32 %v5374, %v5409
        %v5455 = vadd.f32 %v5375, %v5411
        %v5456 = vadd.f32 %v5376, %v5413
        %v5457 = vadd.f32 %v5377, %v5415
        %v5458 = vadd.f32 %v5378, %v5417
        %v5459 = vadd.f32 %v5379, %v5419
        %v5460 = vadd.f32 %v5380, %v5421
        %v5461 = vadd.f32 %v5381, %v5423
        %v5462 = vadd.f32 %v5382, %v5425
        %v5463 = vadd.f32 %v5383, %v5427
        %v5464 = vadd.f32 %v5384, %v5429
        %v5465 = vadd.f32 %v5385, %v5431
        %v5466 = vadd.f32 %v5386, %v5433
        %v5467 = vadd.f32 %v5387, %v5435
        %5468 = vst.msk [vmem:[#allocation5 + $0x8] sm:$0xff] %vm3459, %v5452
        %5469 = vst.msk [vmem:[#allocation5 + $0x18] sm:$0xff] %vm3459, %v5453
        %5470 = vst.msk [vmem:[#allocation5 + $0x28] sm:$0xff] %vm3459, %v5454
        %5471 = vst.msk [vmem:[#allocation5 + $0x38] sm:$0xff] %vm3459, %v5455
        %5472 = vst.msk [vmem:[#allocation5 + $0x48] sm:$0xff] %vm3459, %v5456
        %5473 = vst.msk [vmem:[#allocation5 + $0x58] sm:$0xff] %vm3459, %v5457
        %5474 = vst.msk [vmem:[#allocation5 + $0x68] sm:$0xff] %vm3459, %v5458
        %5475 = vst.msk [vmem:[#allocation5 + $0x78] sm:$0xff] %vm3459, %v5459
        %5476 = vst.msk [vmem:[#allocation5 + $0x88] sm:$0xff] %vm3459, %v5460
        %5477 = vst.msk [vmem:[#allocation5 + $0x98] sm:$0xff] %vm3459, %v5461
        %5478 = vst.msk [vmem:[#allocation5 + $0xa8] sm:$0xff] %vm3459, %v5462
        %5479 = vst.msk [vmem:[#allocation5 + $0xb8] sm:$0xff] %vm3459, %v5463
        %5480 = vst.msk [vmem:[#allocation5 + $0xc8] sm:$0xff] %vm3459, %v5464
        %5481 = vst.msk [vmem:[#allocation5 + $0xd8] sm:$0xff] %vm3459, %v5465
        %5482 = vst.msk [vmem:[#allocation5 + $0xe8] sm:$0xff] %vm3459, %v5466
        %5483 = vst.msk [vmem:[#allocation5 + $0xf8] sm:$0xff] %vm3459, %v5467
        %5484 = vst.msk [vmem:[#allocation3] sm:$0xff] %vm5050, %v4778
        %5485 = vst.msk [vmem:[#allocation3 + $0x8] sm:$0xff] %vm5050, %v4779
        %5486 = vst.msk [vmem:[#allocation3 + $0x10] sm:$0xff] %vm5050, %v4780
        %5487 = vst.msk [vmem:[#allocation3 + $0x18] sm:$0xff] %vm5050, %v4781
        %5488 = vst.msk [vmem:[#allocation3 + $0x20] sm:$0xff] %vm5050, %v4782
        %5489 = vst.msk [vmem:[#allocation3 + $0x28] sm:$0xff] %vm5050, %v4783
        %5490 = vst.msk [vmem:[#allocation3 + $0x30] sm:$0xff] %vm5050, %v4784
        %5491 = vst.msk [vmem:[#allocation3 + $0x38] sm:$0xff] %vm5050, %v4785
        %5492 = vst.msk [vmem:[#allocation3 + $0x40] sm:$0xff] %vm5050, %v4786
        %5493 = vst.msk [vmem:[#allocation3 + $0x48] sm:$0xff] %vm5050, %v4787
        %5494 = vst.msk [vmem:[#allocation3 + $0x50] sm:$0xff] %vm5050, %v4788
        %5495 = vst.msk [vmem:[#allocation3 + $0x58] sm:$0xff] %vm5050, %v4789
        %5496 = vst.msk [vmem:[#allocation3 + $0x60] sm:$0xff] %vm5050, %v4790
        %5497 = vst.msk [vmem:[#allocation3 + $0x68] sm:$0xff] %vm5050, %v4791
        %5498 = vst.msk [vmem:[#allocation3 + $0x70] sm:$0xff] %vm5050, %v4792
        %5499 = vst.msk [vmem:[#allocation3 + $0x78] sm:$0xff] %vm5050, %v4793
        %p5500 = scmp.eq.s32.totalorder %s39, 1
        // Predicated region
        $region97: #{tpu_custom_call.1} parent=55 // pred_check
          %p5501 = pneg %p5500
        $region98: #{tpu_custom_call.1} parent=55 // pred_check_branch
          %5503 = sbr.rel (%p5501) target = $region100
        $region99: #{tpu_custom_call.1} parent=55 // pred_region
          %v5504 = vld [vmem:[#allocation4] sm:$0xff]
          %v5505 = vld [vmem:[#allocation4 + $0x8] sm:$0xff]
          %v5506 = vld [vmem:[#allocation4 + $0x10] sm:$0xff]
          %v5507 = vld [vmem:[#allocation4 + $0x18] sm:$0xff]
          %v5508 = vld [vmem:[#allocation4 + $0x20] sm:$0xff]
          %v5509 = vld [vmem:[#allocation4 + $0x28] sm:$0xff]
          %v5510 = vld [vmem:[#allocation4 + $0x30] sm:$0xff]
          %v5511 = vld [vmem:[#allocation4 + $0x38] sm:$0xff]
          %v5512 = vld [vmem:[#allocation4 + $0x40] sm:$0xff]
          %v5513 = vld [vmem:[#allocation4 + $0x48] sm:$0xff]
          %v5514 = vld [vmem:[#allocation4 + $0x50] sm:$0xff]
          %v5515 = vld [vmem:[#allocation4 + $0x58] sm:$0xff]
          %v5516 = vld [vmem:[#allocation4 + $0x60] sm:$0xff]
          %v5517 = vld [vmem:[#allocation4 + $0x68] sm:$0xff]
          %v5518 = vld [vmem:[#allocation4 + $0x70] sm:$0xff]
          %v5519 = vld [vmem:[#allocation4 + $0x78] sm:$0xff]
          %v5520 = vrcp.pop %v5504
          %v5521 = vrcp.pop %v5505
          %v5522 = vrcp.pop %v5506
          %v5523 = vrcp.pop %v5507
          %v5524 = vrcp.pop %v5508
          %v5525 = vrcp.pop %v5509
          %v5526 = vrcp.pop %v5510
          %v5527 = vrcp.pop %v5511
          %v5528 = vrcp.pop %v5512
          %v5529 = vrcp.pop %v5513
          %v5530 = vrcp.pop %v5514
          %v5531 = vrcp.pop %v5515
          %v5532 = vrcp.pop %v5516
          %v5533 = vrcp.pop %v5517
          %v5534 = vrcp.pop %v5518
          %v5535 = vrcp.pop %v5519
          %v5536 = vld [vmem:[#allocation5] sm:$0xff]
          %v5537 = vld [vmem:[#allocation5 + $0x10] sm:$0xff]
          %v5538 = vld [vmem:[#allocation5 + $0x20] sm:$0xff]
          %v5539 = vld [vmem:[#allocation5 + $0x30] sm:$0xff]
          %v5540 = vld [vmem:[#allocation5 + $0x40] sm:$0xff]
          %v5541 = vld [vmem:[#allocation5 + $0x50] sm:$0xff]
          %v5542 = vld [vmem:[#allocation5 + $0x60] sm:$0xff]
          %v5543 = vld [vmem:[#allocation5 + $0x70] sm:$0xff]
          %v5544 = vld [vmem:[#allocation5 + $0x80] sm:$0xff]
          %v5545 = vld [vmem:[#allocation5 + $0x90] sm:$0xff]
          %v5546 = vld [vmem:[#allocation5 + $0xa0] sm:$0xff]
          %v5547 = vld [vmem:[#allocation5 + $0xb0] sm:$0xff]
          %v5548 = vld [vmem:[#allocation5 + $0xc0] sm:$0xff]
          %v5549 = vld [vmem:[#allocation5 + $0xd0] sm:$0xff]
          %v5550 = vld [vmem:[#allocation5 + $0xe0] sm:$0xff]
          %v5551 = vld [vmem:[#allocation5 + $0xf0] sm:$0xff]
          %5553 = vset.pattern.permute.xlu0 0
          %5554 = vperm.xlu0 %5553, %v5520
          %v5555 = vpop.permute.xlu0 %5554
          %5558 = vset.pattern.permute.xlu0 0
          %5559 = vperm.xlu0 %5558, %v5521
          %v5560 = vpop.permute.xlu0 %5559
          %5563 = vset.pattern.permute.xlu0 0
          %5564 = vperm.xlu0 %5563, %v5522
          %v5565 = vpop.permute.xlu0 %5564
          %5568 = vset.pattern.permute.xlu0 0
          %5569 = vperm.xlu0 %5568, %v5523
          %v5570 = vpop.permute.xlu0 %5569
          %5573 = vset.pattern.permute.xlu0 0
          %5574 = vperm.xlu0 %5573, %v5524
          %v5575 = vpop.permute.xlu0 %5574
          %5578 = vset.pattern.permute.xlu0 0
          %5579 = vperm.xlu0 %5578, %v5525
          %v5580 = vpop.permute.xlu0 %5579
          %5583 = vset.pattern.permute.xlu0 0
          %5584 = vperm.xlu0 %5583, %v5526
          %v5585 = vpop.permute.xlu0 %5584
          %5588 = vset.pattern.permute.xlu0 0
          %5589 = vperm.xlu0 %5588, %v5527
          %v5590 = vpop.permute.xlu0 %5589
          %5593 = vset.pattern.permute.xlu0 0
          %5594 = vperm.xlu0 %5593, %v5528
          %v5595 = vpop.permute.xlu0 %5594
          %5598 = vset.pattern.permute.xlu0 0
          %5599 = vperm.xlu0 %5598, %v5529
          %v5600 = vpop.permute.xlu0 %5599
          %5603 = vset.pattern.permute.xlu0 0
          %5604 = vperm.xlu0 %5603, %v5530
          %v5605 = vpop.permute.xlu0 %5604
          %5608 = vset.pattern.permute.xlu0 0
          %5609 = vperm.xlu0 %5608, %v5531
          %v5610 = vpop.permute.xlu0 %5609
          %5613 = vset.pattern.permute.xlu0 0
          %5614 = vperm.xlu0 %5613, %v5532
          %v5615 = vpop.permute.xlu0 %5614
          %5618 = vset.pattern.permute.xlu0 0
          %5619 = vperm.xlu0 %5618, %v5533
          %v5620 = vpop.permute.xlu0 %5619
          %5623 = vset.pattern.permute.xlu0 0
          %5624 = vperm.xlu0 %5623, %v5534
          %v5625 = vpop.permute.xlu0 %5624
          %5628 = vset.pattern.permute.xlu0 0
          %5629 = vperm.xlu0 %5628, %v5535
          %v5630 = vpop.permute.xlu0 %5629
          %v5632 = vmul.f32 %v5536, %v5555
          %v5633 = vmul.f32 %v5537, %v5560
          %v5634 = vmul.f32 %v5538, %v5565
          %v5635 = vmul.f32 %v5539, %v5570
          %v5636 = vmul.f32 %v5540, %v5575
          %v5637 = vmul.f32 %v5541, %v5580
          %v5638 = vmul.f32 %v5542, %v5585
          %v5639 = vmul.f32 %v5543, %v5590
          %v5640 = vmul.f32 %v5544, %v5595
          %v5641 = vmul.f32 %v5545, %v5600
          %v5642 = vmul.f32 %v5546, %v5605
          %v5643 = vmul.f32 %v5547, %v5610
          %v5644 = vmul.f32 %v5548, %v5615
          %v5645 = vmul.f32 %v5549, %v5620
          %v5646 = vmul.f32 %v5550, %v5625
          %v5647 = vmul.f32 %v5551, %v5630
          %5648 = vst.msk [vmem:[#allocation5] sm:$0xff] %vm1515, %v5632
          %5649 = vst.msk [vmem:[#allocation5 + $0x10] sm:$0xff] %vm1515, %v5633
          %5650 = vst.msk [vmem:[#allocation5 + $0x20] sm:$0xff] %vm1515, %v5634
          %5651 = vst.msk [vmem:[#allocation5 + $0x30] sm:$0xff] %vm1515, %v5635
          %5652 = vst.msk [vmem:[#allocation5 + $0x40] sm:$0xff] %vm1515, %v5636
          %5653 = vst.msk [vmem:[#allocation5 + $0x50] sm:$0xff] %vm1515, %v5637
          %5654 = vst.msk [vmem:[#allocation5 + $0x60] sm:$0xff] %vm1515, %v5638
          %5655 = vst.msk [vmem:[#allocation5 + $0x70] sm:$0xff] %vm1515, %v5639
          %5656 = vst.msk [vmem:[#allocation5 + $0x80] sm:$0xff] %vm1515, %v5640
          %5657 = vst.msk [vmem:[#allocation5 + $0x90] sm:$0xff] %vm1515, %v5641
          %5658 = vst.msk [vmem:[#allocation5 + $0xa0] sm:$0xff] %vm1515, %v5642
          %5659 = vst.msk [vmem:[#allocation5 + $0xb0] sm:$0xff] %vm1515, %v5643
          %5660 = vst.msk [vmem:[#allocation5 + $0xc0] sm:$0xff] %vm1515, %v5644
          %5661 = vst.msk [vmem:[#allocation5 + $0xd0] sm:$0xff] %vm1515, %v5645
          %5662 = vst.msk [vmem:[#allocation5 + $0xe0] sm:$0xff] %vm1515, %v5646
          %5663 = vst.msk [vmem:[#allocation5 + $0xf0] sm:$0xff] %vm1515, %v5647
          %v5664 = vld [vmem:[#allocation4] sm:$0xff]
          %v5665 = vld [vmem:[#allocation4 + $0x8] sm:$0xff]
          %v5666 = vld [vmem:[#allocation4 + $0x10] sm:$0xff]
          %v5667 = vld [vmem:[#allocation4 + $0x18] sm:$0xff]
          %v5668 = vld [vmem:[#allocation4 + $0x20] sm:$0xff]
          %v5669 = vld [vmem:[#allocation4 + $0x28] sm:$0xff]
          %v5670 = vld [vmem:[#allocation4 + $0x30] sm:$0xff]
          %v5671 = vld [vmem:[#allocation4 + $0x38] sm:$0xff]
          %v5672 = vld [vmem:[#allocation4 + $0x40] sm:$0xff]
          %v5673 = vld [vmem:[#allocation4 + $0x48] sm:$0xff]
          %v5674 = vld [vmem:[#allocation4 + $0x50] sm:$0xff]
          %v5675 = vld [vmem:[#allocation4 + $0x58] sm:$0xff]
          %v5676 = vld [vmem:[#allocation4 + $0x60] sm:$0xff]
          %v5677 = vld [vmem:[#allocation4 + $0x68] sm:$0xff]
          %v5678 = vld [vmem:[#allocation4 + $0x70] sm:$0xff]
          %v5679 = vld [vmem:[#allocation4 + $0x78] sm:$0xff]
          %v5680 = vrcp.pop %v5664
          %v5681 = vrcp.pop %v5665
          %v5682 = vrcp.pop %v5666
          %v5683 = vrcp.pop %v5667
          %v5684 = vrcp.pop %v5668
          %v5685 = vrcp.pop %v5669
          %v5686 = vrcp.pop %v5670
          %v5687 = vrcp.pop %v5671
          %v5688 = vrcp.pop %v5672
          %v5689 = vrcp.pop %v5673
          %v5690 = vrcp.pop %v5674
          %v5691 = vrcp.pop %v5675
          %v5692 = vrcp.pop %v5676
          %v5693 = vrcp.pop %v5677
          %v5694 = vrcp.pop %v5678
          %v5695 = vrcp.pop %v5679
          %v5696 = vld [vmem:[#allocation5] sm:$0xff]
          %v5697 = vld [vmem:[#allocation5 + $0x10] sm:$0xff]
          %v5698 = vld [vmem:[#allocation5 + $0x20] sm:$0xff]
          %v5699 = vld [vmem:[#allocation5 + $0x30] sm:$0xff]
          %v5700 = vld [vmem:[#allocation5 + $0x40] sm:$0xff]
          %v5701 = vld [vmem:[#allocation5 + $0x50] sm:$0xff]
          %v5702 = vld [vmem:[#allocation5 + $0x60] sm:$0xff]
          %v5703 = vld [vmem:[#allocation5 + $0x70] sm:$0xff]
          %v5704 = vld [vmem:[#allocation5 + $0x80] sm:$0xff]
          %v5705 = vld [vmem:[#allocation5 + $0x90] sm:$0xff]
          %v5706 = vld [vmem:[#allocation5 + $0xa0] sm:$0xff]
          %v5707 = vld [vmem:[#allocation5 + $0xb0] sm:$0xff]
          %v5708 = vld [vmem:[#allocation5 + $0xc0] sm:$0xff]
          %v5709 = vld [vmem:[#allocation5 + $0xd0] sm:$0xff]
          %v5710 = vld [vmem:[#allocation5 + $0xe0] sm:$0xff]
          %v5711 = vld [vmem:[#allocation5 + $0xf0] sm:$0xff]
          %5713 = vset.pattern.permute.xlu0 1
          %5714 = vperm.xlu0 %5713, %v5680
          %v5715 = vpop.permute.xlu0 %5714
          %5718 = vset.pattern.permute.xlu0 1
          %5719 = vperm.xlu0 %5718, %v5681
          %v5720 = vpop.permute.xlu0 %5719
          %5723 = vset.pattern.permute.xlu0 1
          %5724 = vperm.xlu0 %5723, %v5682
          %v5725 = vpop.permute.xlu0 %5724
          %5728 = vset.pattern.permute.xlu0 1
          %5729 = vperm.xlu0 %5728, %v5683
          %v5730 = vpop.permute.xlu0 %5729
          %5733 = vset.pattern.permute.xlu0 1
          %5734 = vperm.xlu0 %5733, %v5684
          %v5735 = vpop.permute.xlu0 %5734
          %5738 = vset.pattern.permute.xlu0 1
          %5739 = vperm.xlu0 %5738, %v5685
          %v5740 = vpop.permute.xlu0 %5739
          %5743 = vset.pattern.permute.xlu0 1
          %5744 = vperm.xlu0 %5743, %v5686
          %v5745 = vpop.permute.xlu0 %5744
          %5748 = vset.pattern.permute.xlu0 1
          %5749 = vperm.xlu0 %5748, %v5687
          %v5750 = vpop.permute.xlu0 %5749
          %5753 = vset.pattern.permute.xlu0 1
          %5754 = vperm.xlu0 %5753, %v5688
          %v5755 = vpop.permute.xlu0 %5754
          %5758 = vset.pattern.permute.xlu0 1
          %5759 = vperm.xlu0 %5758, %v5689
          %v5760 = vpop.permute.xlu0 %5759
          %5763 = vset.pattern.permute.xlu0 1
          %5764 = vperm.xlu0 %5763, %v5690
          %v5765 = vpop.permute.xlu0 %5764
          %5768 = vset.pattern.permute.xlu0 1
          %5769 = vperm.xlu0 %5768, %v5691
          %v5770 = vpop.permute.xlu0 %5769
          %5773 = vset.pattern.permute.xlu0 1
          %5774 = vperm.xlu0 %5773, %v5692
          %v5775 = vpop.permute.xlu0 %5774
          %5778 = vset.pattern.permute.xlu0 1
          %5779 = vperm.xlu0 %5778, %v5693
          %v5780 = vpop.permute.xlu0 %5779
          %5783 = vset.pattern.permute.xlu0 1
          %5784 = vperm.xlu0 %5783, %v5694
          %v5785 = vpop.permute.xlu0 %5784
          %5788 = vset.pattern.permute.xlu0 1
          %5789 = vperm.xlu0 %5788, %v5695
          %v5790 = vpop.permute.xlu0 %5789
          %v5792 = vmul.f32 %v5696, %v5715
          %v5793 = vmul.f32 %v5697, %v5720
          %v5794 = vmul.f32 %v5698, %v5725
          %v5795 = vmul.f32 %v5699, %v5730
          %v5796 = vmul.f32 %v5700, %v5735
          %v5797 = vmul.f32 %v5701, %v5740
          %v5798 = vmul.f32 %v5702, %v5745
          %v5799 = vmul.f32 %v5703, %v5750
          %v5800 = vmul.f32 %v5704, %v5755
          %v5801 = vmul.f32 %v5705, %v5760
          %v5802 = vmul.f32 %v5706, %v5765
          %v5803 = vmul.f32 %v5707, %v5770
          %v5804 = vmul.f32 %v5708, %v5775
          %v5805 = vmul.f32 %v5709, %v5780
          %v5806 = vmul.f32 %v5710, %v5785
          %v5807 = vmul.f32 %v5711, %v5790
          %5808 = vst.msk [vmem:[#allocation5] sm:$0xff] %vm3459, %v5792
          %5809 = vst.msk [vmem:[#allocation5 + $0x10] sm:$0xff] %vm3459, %v5793
          %5810 = vst.msk [vmem:[#allocation5 + $0x20] sm:$0xff] %vm3459, %v5794
          %5811 = vst.msk [vmem:[#allocation5 + $0x30] sm:$0xff] %vm3459, %v5795
          %5812 = vst.msk [vmem:[#allocation5 + $0x40] sm:$0xff] %vm3459, %v5796
          %5813 = vst.msk [vmem:[#allocation5 + $0x50] sm:$0xff] %vm3459, %v5797
          %5814 = vst.msk [vmem:[#allocation5 + $0x60] sm:$0xff] %vm3459, %v5798
          %5815 = vst.msk [vmem:[#allocation5 + $0x70] sm:$0xff] %vm3459, %v5799
          %5816 = vst.msk [vmem:[#allocation5 + $0x80] sm:$0xff] %vm3459, %v5800
          %5817 = vst.msk [vmem:[#allocation5 + $0x90] sm:$0xff] %vm3459, %v5801
          %5818 = vst.msk [vmem:[#allocation5 + $0xa0] sm:$0xff] %vm3459, %v5802
          %5819 = vst.msk [vmem:[#allocation5 + $0xb0] sm:$0xff] %vm3459, %v5803
          %5820 = vst.msk [vmem:[#allocation5 + $0xc0] sm:$0xff] %vm3459, %v5804
          %5821 = vst.msk [vmem:[#allocation5 + $0xd0] sm:$0xff] %vm3459, %v5805
          %5822 = vst.msk [vmem:[#allocation5 + $0xe0] sm:$0xff] %vm3459, %v5806
          %5823 = vst.msk [vmem:[#allocation5 + $0xf0] sm:$0xff] %vm3459, %v5807
          %v5824 = vld [vmem:[#allocation4] sm:$0xff]
          %v5825 = vld [vmem:[#allocation4 + $0x8] sm:$0xff]
          %v5826 = vld [vmem:[#allocation4 + $0x10] sm:$0xff]
          %v5827 = vld [vmem:[#allocation4 + $0x18] sm:$0xff]
          %v5828 = vld [vmem:[#allocation4 + $0x20] sm:$0xff]
          %v5829 = vld [vmem:[#allocation4 + $0x28] sm:$0xff]
          %v5830 = vld [vmem:[#allocation4 + $0x30] sm:$0xff]
          %v5831 = vld [vmem:[#allocation4 + $0x38] sm:$0xff]
          %v5832 = vld [vmem:[#allocation4 + $0x40] sm:$0xff]
          %v5833 = vld [vmem:[#allocation4 + $0x48] sm:$0xff]
          %v5834 = vld [vmem:[#allocation4 + $0x50] sm:$0xff]
          %v5835 = vld [vmem:[#allocation4 + $0x58] sm:$0xff]
          %v5836 = vld [vmem:[#allocation4 + $0x60] sm:$0xff]
          %v5837 = vld [vmem:[#allocation4 + $0x68] sm:$0xff]
          %v5838 = vld [vmem:[#allocation4 + $0x70] sm:$0xff]
          %v5839 = vld [vmem:[#allocation4 + $0x78] sm:$0xff]
          %v5840 = vrcp.pop %v5824
          %v5841 = vrcp.pop %v5825
          %v5842 = vrcp.pop %v5826
          %v5843 = vrcp.pop %v5827
          %v5844 = vrcp.pop %v5828
          %v5845 = vrcp.pop %v5829
          %v5846 = vrcp.pop %v5830
          %v5847 = vrcp.pop %v5831
          %v5848 = vrcp.pop %v5832
          %v5849 = vrcp.pop %v5833
          %v5850 = vrcp.pop %v5834
          %v5851 = vrcp.pop %v5835
          %v5852 = vrcp.pop %v5836
          %v5853 = vrcp.pop %v5837
          %v5854 = vrcp.pop %v5838
          %v5855 = vrcp.pop %v5839
          %v5856 = vld [vmem:[#allocation5 + $0x8] sm:$0xff]
          %v5857 = vld [vmem:[#allocation5 + $0x18] sm:$0xff]
          %v5858 = vld [vmem:[#allocation5 + $0x28] sm:$0xff]
          %v5859 = vld [vmem:[#allocation5 + $0x38] sm:$0xff]
          %v5860 = vld [vmem:[#allocation5 + $0x48] sm:$0xff]
          %v5861 = vld [vmem:[#allocation5 + $0x58] sm:$0xff]
          %v5862 = vld [vmem:[#allocation5 + $0x68] sm:$0xff]
          %v5863 = vld [vmem:[#allocation5 + $0x78] sm:$0xff]
          %v5864 = vld [vmem:[#allocation5 + $0x88] sm:$0xff]
          %v5865 = vld [vmem:[#allocation5 + $0x98] sm:$0xff]
          %v5866 = vld [vmem:[#allocation5 + $0xa8] sm:$0xff]
          %v5867 = vld [vmem:[#allocation5 + $0xb8] sm:$0xff]
          %v5868 = vld [vmem:[#allocation5 + $0xc8] sm:$0xff]
          %v5869 = vld [vmem:[#allocation5 + $0xd8] sm:$0xff]
          %v5870 = vld [vmem:[#allocation5 + $0xe8] sm:$0xff]
          %v5871 = vld [vmem:[#allocation5 + $0xf8] sm:$0xff]
          %5873 = vset.pattern.permute.xlu0 2
          %5874 = vperm.xlu0 %5873, %v5840
          %v5875 = vpop.permute.xlu0 %5874
          %5878 = vset.pattern.permute.xlu0 2
          %5879 = vperm.xlu0 %5878, %v5841
          %v5880 = vpop.permute.xlu0 %5879
          %5883 = vset.pattern.permute.xlu0 2
          %5884 = vperm.xlu0 %5883, %v5842
          %v5885 = vpop.permute.xlu0 %5884
          %5888 = vset.pattern.permute.xlu0 2
          %5889 = vperm.xlu0 %5888, %v5843
          %v5890 = vpop.permute.xlu0 %5889
          %5893 = vset.pattern.permute.xlu0 2
          %5894 = vperm.xlu0 %5893, %v5844
          %v5895 = vpop.permute.xlu0 %5894
          %5898 = vset.pattern.permute.xlu0 2
          %5899 = vperm.xlu0 %5898, %v5845
          %v5900 = vpop.permute.xlu0 %5899
          %5903 = vset.pattern.permute.xlu0 2
          %5904 = vperm.xlu0 %5903, %v5846
          %v5905 = vpop.permute.xlu0 %5904
          %5908 = vset.pattern.permute.xlu0 2
          %5909 = vperm.xlu0 %5908, %v5847
          %v5910 = vpop.permute.xlu0 %5909
          %5913 = vset.pattern.permute.xlu0 2
          %5914 = vperm.xlu0 %5913, %v5848
          %v5915 = vpop.permute.xlu0 %5914
          %5918 = vset.pattern.permute.xlu0 2
          %5919 = vperm.xlu0 %5918, %v5849
          %v5920 = vpop.permute.xlu0 %5919
          %5923 = vset.pattern.permute.xlu0 2
          %5924 = vperm.xlu0 %5923, %v5850
          %v5925 = vpop.permute.xlu0 %5924
          %5928 = vset.pattern.permute.xlu0 2
          %5929 = vperm.xlu0 %5928, %v5851
          %v5930 = vpop.permute.xlu0 %5929
          %5933 = vset.pattern.permute.xlu0 2
          %5934 = vperm.xlu0 %5933, %v5852
          %v5935 = vpop.permute.xlu0 %5934
          %5938 = vset.pattern.permute.xlu0 2
          %5939 = vperm.xlu0 %5938, %v5853
          %v5940 = vpop.permute.xlu0 %5939
          %5943 = vset.pattern.permute.xlu0 2
          %5944 = vperm.xlu0 %5943, %v5854
          %v5945 = vpop.permute.xlu0 %5944
          %5948 = vset.pattern.permute.xlu0 2
          %5949 = vperm.xlu0 %5948, %v5855
          %v5950 = vpop.permute.xlu0 %5949
          %v5952 = vmul.f32 %v5856, %v5875
          %v5953 = vmul.f32 %v5857, %v5880
          %v5954 = vmul.f32 %v5858, %v5885
          %v5955 = vmul.f32 %v5859, %v5890
          %v5956 = vmul.f32 %v5860, %v5895
          %v5957 = vmul.f32 %v5861, %v5900
          %v5958 = vmul.f32 %v5862, %v5905
          %v5959 = vmul.f32 %v5863, %v5910
          %v5960 = vmul.f32 %v5864, %v5915
          %v5961 = vmul.f32 %v5865, %v5920
          %v5962 = vmul.f32 %v5866, %v5925
          %v5963 = vmul.f32 %v5867, %v5930
          %v5964 = vmul.f32 %v5868, %v5935
          %v5965 = vmul.f32 %v5869, %v5940
          %v5966 = vmul.f32 %v5870, %v5945
          %v5967 = vmul.f32 %v5871, %v5950
          %5968 = vst.msk [vmem:[#allocation5 + $0x8] sm:$0xff] %vm1515, %v5952
          %5969 = vst.msk [vmem:[#allocation5 + $0x18] sm:$0xff] %vm1515, %v5953
          %5970 = vst.msk [vmem:[#allocation5 + $0x28] sm:$0xff] %vm1515, %v5954
          %5971 = vst.msk [vmem:[#allocation5 + $0x38] sm:$0xff] %vm1515, %v5955
          %5972 = vst.msk [vmem:[#allocation5 + $0x48] sm:$0xff] %vm1515, %v5956
          %5973 = vst.msk [vmem:[#allocation5 + $0x58] sm:$0xff] %vm1515, %v5957
          %5974 = vst.msk [vmem:[#allocation5 + $0x68] sm:$0xff] %vm1515, %v5958
          %5975 = vst.msk [vmem:[#allocation5 + $0x78] sm:$0xff] %vm1515, %v5959
          %5976 = vst.msk [vmem:[#allocation5 + $0x88] sm:$0xff] %vm1515, %v5960
          %5977 = vst.msk [vmem:[#allocation5 + $0x98] sm:$0xff] %vm1515, %v5961
          %5978 = vst.msk [vmem:[#allocation5 + $0xa8] sm:$0xff] %vm1515, %v5962
          %5979 = vst.msk [vmem:[#allocation5 + $0xb8] sm:$0xff] %vm1515, %v5963
          %5980 = vst.msk [vmem:[#allocation5 + $0xc8] sm:$0xff] %vm1515, %v5964
          %5981 = vst.msk [vmem:[#allocation5 + $0xd8] sm:$0xff] %vm1515, %v5965
          %5982 = vst.msk [vmem:[#allocation5 + $0xe8] sm:$0xff] %vm1515, %v5966
          %5983 = vst.msk [vmem:[#allocation5 + $0xf8] sm:$0xff] %vm1515, %v5967
          %v5984 = vld [vmem:[#allocation4] sm:$0xff]
          %v5985 = vld [vmem:[#allocation4 + $0x8] sm:$0xff]
          %v5986 = vld [vmem:[#allocation4 + $0x10] sm:$0xff]
          %v5987 = vld [vmem:[#allocation4 + $0x18] sm:$0xff]
          %v5988 = vld [vmem:[#allocation4 + $0x20] sm:$0xff]
          %v5989 = vld [vmem:[#allocation4 + $0x28] sm:$0xff]
          %v5990 = vld [vmem:[#allocation4 + $0x30] sm:$0xff]
          %v5991 = vld [vmem:[#allocation4 + $0x38] sm:$0xff]
          %v5992 = vld [vmem:[#allocation4 + $0x40] sm:$0xff]
          %v5993 = vld [vmem:[#allocation4 + $0x48] sm:$0xff]
          %v5994 = vld [vmem:[#allocation4 + $0x50] sm:$0xff]
          %v5995 = vld [vmem:[#allocation4 + $0x58] sm:$0xff]
          %v5996 = vld [vmem:[#allocation4 + $0x60] sm:$0xff]
          %v5997 = vld [vmem:[#allocation4 + $0x68] sm:$0xff]
          %v5998 = vld [vmem:[#allocation4 + $0x70] sm:$0xff]
          %v5999 = vld [vmem:[#allocation4 + $0x78] sm:$0xff]
          %v6000 = vrcp.pop %v5984
          %v6001 = vrcp.pop %v5985
          %v6002 = vrcp.pop %v5986
          %v6003 = vrcp.pop %v5987
          %v6004 = vrcp.pop %v5988
          %v6005 = vrcp.pop %v5989
          %v6006 = vrcp.pop %v5990
          %v6007 = vrcp.pop %v5991
          %v6008 = vrcp.pop %v5992
          %v6009 = vrcp.pop %v5993
          %v6010 = vrcp.pop %v5994
          %v6011 = vrcp.pop %v5995
          %v6012 = vrcp.pop %v5996
          %v6013 = vrcp.pop %v5997
          %v6014 = vrcp.pop %v5998
          %v6015 = vrcp.pop %v5999
          %v6016 = vld [vmem:[#allocation5 + $0x8] sm:$0xff]
          %v6017 = vld [vmem:[#allocation5 + $0x18] sm:$0xff]
          %v6018 = vld [vmem:[#allocation5 + $0x28] sm:$0xff]
          %v6019 = vld [vmem:[#allocation5 + $0x38] sm:$0xff]
          %v6020 = vld [vmem:[#allocation5 + $0x48] sm:$0xff]
          %v6021 = vld [vmem:[#allocation5 + $0x58] sm:$0xff]
          %v6022 = vld [vmem:[#allocation5 + $0x68] sm:$0xff]
          %v6023 = vld [vmem:[#allocation5 + $0x78] sm:$0xff]
          %v6024 = vld [vmem:[#allocation5 + $0x88] sm:$0xff]
          %v6025 = vld [vmem:[#allocation5 + $0x98] sm:$0xff]
          %v6026 = vld [vmem:[#allocation5 + $0xa8] sm:$0xff]
          %v6027 = vld [vmem:[#allocation5 + $0xb8] sm:$0xff]
          %v6028 = vld [vmem:[#allocation5 + $0xc8] sm:$0xff]
          %v6029 = vld [vmem:[#allocation5 + $0xd8] sm:$0xff]
          %v6030 = vld [vmem:[#allocation5 + $0xe8] sm:$0xff]
          %v6031 = vld [vmem:[#allocation5 + $0xf8] sm:$0xff]
          %6033 = vset.pattern.permute.xlu0 3
          %6034 = vperm.xlu0 %6033, %v6000
          %v6035 = vpop.permute.xlu0 %6034
          %6038 = vset.pattern.permute.xlu0 3
          %6039 = vperm.xlu0 %6038, %v6001
          %v6040 = vpop.permute.xlu0 %6039
          %6043 = vset.pattern.permute.xlu0 3
          %6044 = vperm.xlu0 %6043, %v6002
          %v6045 = vpop.permute.xlu0 %6044
          %6048 = vset.pattern.permute.xlu0 3
          %6049 = vperm.xlu0 %6048, %v6003
          %v6050 = vpop.permute.xlu0 %6049
          %6053 = vset.pattern.permute.xlu0 3
          %6054 = vperm.xlu0 %6053, %v6004
          %v6055 = vpop.permute.xlu0 %6054
          %6058 = vset.pattern.permute.xlu0 3
          %6059 = vperm.xlu0 %6058, %v6005
          %v6060 = vpop.permute.xlu0 %6059
          %6063 = vset.pattern.permute.xlu0 3
          %6064 = vperm.xlu0 %6063, %v6006
          %v6065 = vpop.permute.xlu0 %6064
          %6068 = vset.pattern.permute.xlu0 3
          %6069 = vperm.xlu0 %6068, %v6007
          %v6070 = vpop.permute.xlu0 %6069
          %6073 = vset.pattern.permute.xlu0 3
          %6074 = vperm.xlu0 %6073, %v6008
          %v6075 = vpop.permute.xlu0 %6074
          %6078 = vset.pattern.permute.xlu0 3
          %6079 = vperm.xlu0 %6078, %v6009
          %v6080 = vpop.permute.xlu0 %6079
          %6083 = vset.pattern.permute.xlu0 3
          %6084 = vperm.xlu0 %6083, %v6010
          %v6085 = vpop.permute.xlu0 %6084
          %6088 = vset.pattern.permute.xlu0 3
          %6089 = vperm.xlu0 %6088, %v6011
          %v6090 = vpop.permute.xlu0 %6089
          %6093 = vset.pattern.permute.xlu0 3
          %6094 = vperm.xlu0 %6093, %v6012
          %v6095 = vpop.permute.xlu0 %6094
          %6098 = vset.pattern.permute.xlu0 3
          %6099 = vperm.xlu0 %6098, %v6013
          %v6100 = vpop.permute.xlu0 %6099
          %6103 = vset.pattern.permute.xlu0 3
          %6104 = vperm.xlu0 %6103, %v6014
          %v6105 = vpop.permute.xlu0 %6104
          %6108 = vset.pattern.permute.xlu0 3
          %6109 = vperm.xlu0 %6108, %v6015
          %v6110 = vpop.permute.xlu0 %6109
          %v6112 = vmul.f32 %v6016, %v6035
          %v6113 = vmul.f32 %v6017, %v6040
          %v6114 = vmul.f32 %v6018, %v6045
          %v6115 = vmul.f32 %v6019, %v6050
          %v6116 = vmul.f32 %v6020, %v6055
          %v6117 = vmul.f32 %v6021, %v6060
          %v6118 = vmul.f32 %v6022, %v6065
          %v6119 = vmul.f32 %v6023, %v6070
          %v6120 = vmul.f32 %v6024, %v6075
          %v6121 = vmul.f32 %v6025, %v6080
          %v6122 = vmul.f32 %v6026, %v6085
          %v6123 = vmul.f32 %v6027, %v6090
          %v6124 = vmul.f32 %v6028, %v6095
          %v6125 = vmul.f32 %v6029, %v6100
          %v6126 = vmul.f32 %v6030, %v6105
          %v6127 = vmul.f32 %v6031, %v6110
          %6128 = vst.msk [vmem:[#allocation5 + $0x8] sm:$0xff] %vm3459, %v6112
          %6129 = vst.msk [vmem:[#allocation5 + $0x18] sm:$0xff] %vm3459, %v6113
          %6130 = vst.msk [vmem:[#allocation5 + $0x28] sm:$0xff] %vm3459, %v6114
          %6131 = vst.msk [vmem:[#allocation5 + $0x38] sm:$0xff] %vm3459, %v6115
          %6132 = vst.msk [vmem:[#allocation5 + $0x48] sm:$0xff] %vm3459, %v6116
          %6133 = vst.msk [vmem:[#allocation5 + $0x58] sm:$0xff] %vm3459, %v6117
          %6134 = vst.msk [vmem:[#allocation5 + $0x68] sm:$0xff] %vm3459, %v6118
          %6135 = vst.msk [vmem:[#allocation5 + $0x78] sm:$0xff] %vm3459, %v6119
          %6136 = vst.msk [vmem:[#allocation5 + $0x88] sm:$0xff] %vm3459, %v6120
          %6137 = vst.msk [vmem:[#allocation5 + $0x98] sm:$0xff] %vm3459, %v6121
          %6138 = vst.msk [vmem:[#allocation5 + $0xa8] sm:$0xff] %vm3459, %v6122
          %6139 = vst.msk [vmem:[#allocation5 + $0xb8] sm:$0xff] %vm3459, %v6123
          %6140 = vst.msk [vmem:[#allocation5 + $0xc8] sm:$0xff] %vm3459, %v6124
          %6141 = vst.msk [vmem:[#allocation5 + $0xd8] sm:$0xff] %vm3459, %v6125
          %6142 = vst.msk [vmem:[#allocation5 + $0xe8] sm:$0xff] %vm3459, %v6126
          %6143 = vst.msk [vmem:[#allocation5 + $0xf8] sm:$0xff] %vm3459, %v6127
          %v6144 = vld [vmem:[#allocation5] sm:$0xff]
          %v6145 = vld [vmem:[#allocation5 + $0x8] sm:$0xff]
          %v6146 = vld [vmem:[#allocation5 + $0x10] sm:$0xff]
          %v6147 = vld [vmem:[#allocation5 + $0x18] sm:$0xff]
          %v6148 = vld [vmem:[#allocation5 + $0x20] sm:$0xff]
          %v6149 = vld [vmem:[#allocation5 + $0x28] sm:$0xff]
          %v6150 = vld [vmem:[#allocation5 + $0x30] sm:$0xff]
          %v6151 = vld [vmem:[#allocation5 + $0x38] sm:$0xff]
          %v6152 = vld [vmem:[#allocation5 + $0x40] sm:$0xff]
          %v6153 = vld [vmem:[#allocation5 + $0x48] sm:$0xff]
          %v6154 = vld [vmem:[#allocation5 + $0x50] sm:$0xff]
          %v6155 = vld [vmem:[#allocation5 + $0x58] sm:$0xff]
          %v6156 = vld [vmem:[#allocation5 + $0x60] sm:$0xff]
          %v6157 = vld [vmem:[#allocation5 + $0x68] sm:$0xff]
          %v6158 = vld [vmem:[#allocation5 + $0x70] sm:$0xff]
          %v6159 = vld [vmem:[#allocation5 + $0x78] sm:$0xff]
          %v6160 = vld [vmem:[#allocation5 + $0x80] sm:$0xff]
          %v6161 = vld [vmem:[#allocation5 + $0x88] sm:$0xff]
          %v6162 = vld [vmem:[#allocation5 + $0x90] sm:$0xff]
          %v6163 = vld [vmem:[#allocation5 + $0x98] sm:$0xff]
          %v6164 = vld [vmem:[#allocation5 + $0xa0] sm:$0xff]
          %v6165 = vld [vmem:[#allocation5 + $0xa8] sm:$0xff]
          %v6166 = vld [vmem:[#allocation5 + $0xb0] sm:$0xff]
          %v6167 = vld [vmem:[#allocation5 + $0xb8] sm:$0xff]
          %v6168 = vld [vmem:[#allocation5 + $0xc0] sm:$0xff]
          %v6169 = vld [vmem:[#allocation5 + $0xc8] sm:$0xff]
          %v6170 = vld [vmem:[#allocation5 + $0xd0] sm:$0xff]
          %v6171 = vld [vmem:[#allocation5 + $0xd8] sm:$0xff]
          %v6172 = vld [vmem:[#allocation5 + $0xe0] sm:$0xff]
          %v6173 = vld [vmem:[#allocation5 + $0xe8] sm:$0xff]
          %v6174 = vld [vmem:[#allocation5 + $0xf0] sm:$0xff]
          %v6175 = vld [vmem:[#allocation5 + $0xf8] sm:$0xff]
          %v6176 = vld [vmem:[#allocation17] sm:$0xff]
          %v6177 = vld [vmem:[#allocation17 + $0x8] sm:$0xff]
          %v6178 = vld [vmem:[#allocation17 + $0x10] sm:$0xff]
          %v6179 = vld [vmem:[#allocation17 + $0x18] sm:$0xff]
          %v6180 = vld [vmem:[#allocation17 + $0x20] sm:$0xff]
          %v6181 = vld [vmem:[#allocation17 + $0x28] sm:$0xff]
          %v6182 = vld [vmem:[#allocation17 + $0x30] sm:$0xff]
          %v6183 = vld [vmem:[#allocation17 + $0x38] sm:$0xff]
          %v6184 = vld [vmem:[#allocation17 + $0x40] sm:$0xff]
          %v6185 = vld [vmem:[#allocation17 + $0x48] sm:$0xff]
          %v6186 = vld [vmem:[#allocation17 + $0x50] sm:$0xff]
          %v6187 = vld [vmem:[#allocation17 + $0x58] sm:$0xff]
          %v6188 = vld [vmem:[#allocation17 + $0x60] sm:$0xff]
          %v6189 = vld [vmem:[#allocation17 + $0x68] sm:$0xff]
          %v6190 = vld [vmem:[#allocation17 + $0x70] sm:$0xff]
          %v6191 = vld [vmem:[#allocation17 + $0x78] sm:$0xff]
          %v6192 = vld [vmem:[#allocation17 + $0x80] sm:$0xff]
          %v6193 = vld [vmem:[#allocation17 + $0x88] sm:$0xff]
          %v6194 = vld [vmem:[#allocation17 + $0x90] sm:$0xff]
          %v6195 = vld [vmem:[#allocation17 + $0x98] sm:$0xff]
          %v6196 = vld [vmem:[#allocation17 + $0xa0] sm:$0xff]
          %v6197 = vld [vmem:[#allocation17 + $0xa8] sm:$0xff]
          %v6198 = vld [vmem:[#allocation17 + $0xb0] sm:$0xff]
          %v6199 = vld [vmem:[#allocation17 + $0xb8] sm:$0xff]
          %v6200 = vld [vmem:[#allocation17 + $0xc0] sm:$0xff]
          %v6201 = vld [vmem:[#allocation17 + $0xc8] sm:$0xff]
          %v6202 = vld [vmem:[#allocation17 + $0xd0] sm:$0xff]
          %v6203 = vld [vmem:[#allocation17 + $0xd8] sm:$0xff]
          %v6204 = vld [vmem:[#allocation17 + $0xe0] sm:$0xff]
          %v6205 = vld [vmem:[#allocation17 + $0xe8] sm:$0xff]
          %v6206 = vld [vmem:[#allocation17 + $0xf0] sm:$0xff]
          %v6207 = vld [vmem:[#allocation17 + $0xf8] sm:$0xff]
          %v6208 = vld [vmem:[#allocation17 + $0x100] sm:$0xff]
          %v6209 = vld [vmem:[#allocation17 + $0x108] sm:$0xff]
          %v6210 = vld [vmem:[#allocation17 + $0x110] sm:$0xff]
          %v6211 = vld [vmem:[#allocation17 + $0x118] sm:$0xff]
          %v6212 = vld [vmem:[#allocation17 + $0x120] sm:$0xff]
          %v6213 = vld [vmem:[#allocation17 + $0x128] sm:$0xff]
          %v6214 = vld [vmem:[#allocation17 + $0x130] sm:$0xff]
          %v6215 = vld [vmem:[#allocation17 + $0x138] sm:$0xff]
          %v6216 = vld [vmem:[#allocation17 + $0x140] sm:$0xff]
          %v6217 = vld [vmem:[#allocation17 + $0x148] sm:$0xff]
          %v6218 = vld [vmem:[#allocation17 + $0x150] sm:$0xff]
          %v6219 = vld [vmem:[#allocation17 + $0x158] sm:$0xff]
          %v6220 = vld [vmem:[#allocation17 + $0x160] sm:$0xff]
          %v6221 = vld [vmem:[#allocation17 + $0x168] sm:$0xff]
          %v6222 = vld [vmem:[#allocation17 + $0x170] sm:$0xff]
          %v6223 = vld [vmem:[#allocation17 + $0x178] sm:$0xff]
          %v6224 = vld [vmem:[#allocation17 + $0x180] sm:$0xff]
          %v6225 = vld [vmem:[#allocation17 + $0x188] sm:$0xff]
          %v6226 = vld [vmem:[#allocation17 + $0x190] sm:$0xff]
          %v6227 = vld [vmem:[#allocation17 + $0x198] sm:$0xff]
          %v6228 = vld [vmem:[#allocation17 + $0x1a0] sm:$0xff]
          %v6229 = vld [vmem:[#allocation17 + $0x1a8] sm:$0xff]
          %v6230 = vld [vmem:[#allocation17 + $0x1b0] sm:$0xff]
          %v6231 = vld [vmem:[#allocation17 + $0x1b8] sm:$0xff]
          %v6232 = vld [vmem:[#allocation17 + $0x1c0] sm:$0xff]
          %v6233 = vld [vmem:[#allocation17 + $0x1c8] sm:$0xff]
          %v6234 = vld [vmem:[#allocation17 + $0x1d0] sm:$0xff]
          %v6235 = vld [vmem:[#allocation17 + $0x1d8] sm:$0xff]
          %v6236 = vld [vmem:[#allocation17 + $0x1e0] sm:$0xff]
          %v6237 = vld [vmem:[#allocation17 + $0x1e8] sm:$0xff]
          %v6238 = vld [vmem:[#allocation17 + $0x1f0] sm:$0xff]
          %v6239 = vld [vmem:[#allocation17 + $0x1f8] sm:$0xff]
          %v6240 = vld [vmem:[#allocation18] sm:$0x3]
          %v6242 = vlaneseq
          %v6243 = vshrl.u32 %v6242, 7
          %v6244 = vsub.s32 0, %v6243
          %v6245 = vrot.slane %v6240, %v6244
          %v6246 = vlaneseq
          %v6247 = vshrl.u32 %v6246, 7
          %v6248 = vsub.s32 1, %v6247
          %v6249 = vrot.slane %v6240, %v6248
          %6252 = vmatprep.subr.mxu0 %v6207
          %6253 = vmatpush1.msra.mxu0 %v6206
          %6254 = vmatprep.subr.mxu0 %v6205
          %6255 = vmatpush1.msra.mxu0 %v6204
          %6256 = vmatprep.subr.mxu0 %v6203
          %6257 = vmatpush1.msra.mxu0 %v6202
          %6258 = vmatprep.subr.mxu0 %v6201
          %6259 = vmatpush1.msra.mxu0 %v6200
          %6260 = vmatprep.subr.mxu0 %v6199
          %6261 = vmatpush1.msra.mxu0 %v6198
          %6262 = vmatprep.subr.mxu0 %v6197
          %6263 = vmatpush1.msra.mxu0 %v6196
          %6264 = vmatprep.subr.mxu0 %v6195
          %6265 = vmatpush1.msra.mxu0 %v6194
          %6266 = vmatprep.subr.mxu0 %v6193
          %6267 = vmatpush1.msra.mxu0 %v6192
          %6268 = vmatprep.subr.mxu0 %v6191
          %6269 = vmatpush1.msra.mxu0 %v6190
          %6270 = vmatprep.subr.mxu0 %v6189
          %6271 = vmatpush1.msra.mxu0 %v6188
          %6272 = vmatprep.subr.mxu0 %v6187
          %6273 = vmatpush1.msra.mxu0 %v6186
          %6274 = vmatprep.subr.mxu0 %v6185
          %6275 = vmatpush1.msra.mxu0 %v6184
          %6276 = vmatprep.subr.mxu0 %v6183
          %6277 = vmatpush1.msra.mxu0 %v6182
          %6278 = vmatprep.subr.mxu0 %v6181
          %6279 = vmatpush1.msra.mxu0 %v6180
          %6280 = vmatprep.subr.mxu0 %v6179
          %6281 = vmatpush1.msra.mxu0 %v6178
          %6282 = vmatprep.subr.mxu0 %v6177
          %6283 = vmatpush1.msra.mxu0 %v6176
          %6284 = vmatprep.subr.mxu0 %v6239
          %6285 = vmatpush2.msra.mxu0 %v6238
          %6286 = vmatprep.subr.mxu0 %v6237
          %6287 = vmatpush2.msra.mxu0 %v6236
          %6288 = vmatprep.subr.mxu0 %v6235
          %6289 = vmatpush2.msra.mxu0 %v6234
          %6290 = vmatprep.subr.mxu0 %v6233
          %6291 = vmatpush2.msra.mxu0 %v6232
          %6292 = vmatprep.subr.mxu0 %v6231
          %6293 = vmatpush2.msra.mxu0 %v6230
          %6294 = vmatprep.subr.mxu0 %v6229
          %6295 = vmatpush2.msra.mxu0 %v6228
          %6296 = vmatprep.subr.mxu0 %v6227
          %6297 = vmatpush2.msra.mxu0 %v6226
          %6298 = vmatprep.subr.mxu0 %v6225
          %6299 = vmatpush2.msra.mxu0 %v6224
          %6300 = vmatprep.subr.mxu0 %v6223
          %6301 = vmatpush2.msra.mxu0 %v6222
          %6302 = vmatprep.subr.mxu0 %v6221
          %6303 = vmatpush2.msra.mxu0 %v6220
          %6304 = vmatprep.subr.mxu0 %v6219
          %6305 = vmatpush2.msra.mxu0 %v6218
          %6306 = vmatprep.subr.mxu0 %v6217
          %6307 = vmatpush2.msra.mxu0 %v6216
          %6308 = vmatprep.subr.mxu0 %v6215
          %6309 = vmatpush2.msra.mxu0 %v6214
          %6310 = vmatprep.subr.mxu0 %v6213
          %6311 = vmatpush2.msra.mxu0 %v6212
          %6312 = vmatprep.subr.mxu0 %v6211
          %6313 = vmatpush2.msra.mxu0 %v6210
          %6314 = vmatprep.subr.mxu0 %v6209
          %6315 = vmatpush2.msra.mxu0 %v6208
          %6316 = vmatprep.mubr.f32.mxu0 %v6145
          %6317 = vmatmul.mubr.f32.gmra.mxu0 %v6144
          %v6318 = vpop.f32.mrf.mxu0
          %v6319 = vadd.f32 %v6245, %v6318
          %v6320 = vpop.f32.mrf.mxu0
          %v6321 = vadd.f32 %v6249, %v6320
          %6322 = vmatprep.mubr.f32.mxu0 %v6147
          %6323 = vmatmul.mubr.f32.gmra.mxu0 %v6146
          %v6324 = vpop.f32.mrf.mxu0
          %v6325 = vadd.f32 %v6245, %v6324
          %v6326 = vpop.f32.mrf.mxu0
          %v6327 = vadd.f32 %v6249, %v6326
          %6328 = vmatprep.mubr.f32.mxu0 %v6149
          %6329 = vmatmul.mubr.f32.gmra.mxu0 %v6148
          %v6330 = vpop.f32.mrf.mxu0
          %v6331 = vadd.f32 %v6245, %v6330
          %v6332 = vpop.f32.mrf.mxu0
          %v6333 = vadd.f32 %v6249, %v6332
          %6334 = vmatprep.mubr.f32.mxu0 %v6151
          %6335 = vmatmul.mubr.f32.gmra.mxu0 %v6150
          %v6336 = vpop.f32.mrf.mxu0
          %v6337 = vadd.f32 %v6245, %v6336
          %v6338 = vpop.f32.mrf.mxu0
          %v6339 = vadd.f32 %v6249, %v6338
          %6340 = vmatprep.mubr.f32.mxu0 %v6153
          %6341 = vmatmul.mubr.f32.gmra.mxu0 %v6152
          %v6342 = vpop.f32.mrf.mxu0
          %v6343 = vadd.f32 %v6245, %v6342
          %v6344 = vpop.f32.mrf.mxu0
          %v6345 = vadd.f32 %v6249, %v6344
          %6346 = vmatprep.mubr.f32.mxu0 %v6155
          %6347 = vmatmul.mubr.f32.gmra.mxu0 %v6154
          %v6348 = vpop.f32.mrf.mxu0
          %v6349 = vadd.f32 %v6245, %v6348
          %v6350 = vpop.f32.mrf.mxu0
          %v6351 = vadd.f32 %v6249, %v6350
          %6352 = vmatprep.mubr.f32.mxu0 %v6157
          %6353 = vmatmul.mubr.f32.gmra.mxu0 %v6156
          %v6354 = vpop.f32.mrf.mxu0
          %v6355 = vadd.f32 %v6245, %v6354
          %v6356 = vpop.f32.mrf.mxu0
          %v6357 = vadd.f32 %v6249, %v6356
          %6358 = vmatprep.mubr.f32.mxu0 %v6159
          %6359 = vmatmul.mubr.f32.gmra.mxu0 %v6158
          %v6360 = vpop.f32.mrf.mxu0
          %v6361 = vadd.f32 %v6245, %v6360
          %v6362 = vpop.f32.mrf.mxu0
          %v6363 = vadd.f32 %v6249, %v6362
          %6364 = vmatprep.mubr.f32.mxu0 %v6161
          %6365 = vmatmul.mubr.f32.gmra.mxu0 %v6160
          %v6366 = vpop.f32.mrf.mxu0
          %v6367 = vadd.f32 %v6245, %v6366
          %v6368 = vpop.f32.mrf.mxu0
          %v6369 = vadd.f32 %v6249, %v6368
          %6370 = vmatprep.mubr.f32.mxu0 %v6163
          %6371 = vmatmul.mubr.f32.gmra.mxu0 %v6162
          %v6372 = vpop.f32.mrf.mxu0
          %v6373 = vadd.f32 %v6245, %v6372
          %v6374 = vpop.f32.mrf.mxu0
          %v6375 = vadd.f32 %v6249, %v6374
          %6376 = vmatprep.mubr.f32.mxu0 %v6165
          %6377 = vmatmul.mubr.f32.gmra.mxu0 %v6164
          %v6378 = vpop.f32.mrf.mxu0
          %v6379 = vadd.f32 %v6245, %v6378
          %v6380 = vpop.f32.mrf.mxu0
          %v6381 = vadd.f32 %v6249, %v6380
          %6382 = vmatprep.mubr.f32.mxu0 %v6167
          %6383 = vmatmul.mubr.f32.gmra.mxu0 %v6166
          %v6384 = vpop.f32.mrf.mxu0
          %v6385 = vadd.f32 %v6245, %v6384
          %v6386 = vpop.f32.mrf.mxu0
          %v6387 = vadd.f32 %v6249, %v6386
          %6388 = vmatprep.mubr.f32.mxu0 %v6169
          %6389 = vmatmul.mubr.f32.gmra.mxu0 %v6168
          %v6390 = vpop.f32.mrf.mxu0
          %v6391 = vadd.f32 %v6245, %v6390
          %v6392 = vpop.f32.mrf.mxu0
          %v6393 = vadd.f32 %v6249, %v6392
          %6394 = vmatprep.mubr.f32.mxu0 %v6171
          %6395 = vmatmul.mubr.f32.gmra.mxu0 %v6170
          %v6396 = vpop.f32.mrf.mxu0
          %v6397 = vadd.f32 %v6245, %v6396
          %v6398 = vpop.f32.mrf.mxu0
          %v6399 = vadd.f32 %v6249, %v6398
          %6400 = vmatprep.mubr.f32.mxu0 %v6173
          %6401 = vmatmul.mubr.f32.gmra.mxu0 %v6172
          %v6402 = vpop.f32.mrf.mxu0
          %v6403 = vadd.f32 %v6245, %v6402
          %v6404 = vpop.f32.mrf.mxu0
          %v6405 = vadd.f32 %v6249, %v6404
          %6406 = vmatprep.mubr.f32.mxu0 %v6175
          %6407 = vmatmul.mubr.f32.gmra.mxu0 %v6174
          %v6408 = vpop.f32.mrf.mxu0
          %v6409 = vadd.f32 %v6245, %v6408
          %v6410 = vpop.f32.mrf.mxu0
          %v6411 = vadd.f32 %v6249, %v6410
          %6412 = vdwg.mxu0
          %6413 = vst [vmem:[%s572] sm:$0xff] %v6319
          %6414 = vst [vmem:[%s572 + $0x8] sm:$0xff] %v6321
          %6415 = vst [vmem:[%s572 + $0x10] sm:$0xff] %v6325
          %6416 = vst [vmem:[%s572 + $0x18] sm:$0xff] %v6327
          %6417 = vst [vmem:[%s572 + $0x20] sm:$0xff] %v6331
          %6418 = vst [vmem:[%s572 + $0x28] sm:$0xff] %v6333
          %6419 = vst [vmem:[%s572 + $0x30] sm:$0xff] %v6337
          %6420 = vst [vmem:[%s572 + $0x38] sm:$0xff] %v6339
          %6421 = vst [vmem:[%s572 + $0x40] sm:$0xff] %v6343
          %6422 = vst [vmem:[%s572 + $0x48] sm:$0xff] %v6345
          %6423 = vst [vmem:[%s572 + $0x50] sm:$0xff] %v6349
          %6424 = vst [vmem:[%s572 + $0x58] sm:$0xff] %v6351
          %6425 = vst [vmem:[%s572 + $0x60] sm:$0xff] %v6355
          %6426 = vst [vmem:[%s572 + $0x68] sm:$0xff] %v6357
          %6427 = vst [vmem:[%s572 + $0x70] sm:$0xff] %v6361
          %6428 = vst [vmem:[%s572 + $0x78] sm:$0xff] %v6363
          %6429 = vst [vmem:[%s572 + $0x80] sm:$0xff] %v6367
          %6430 = vst [vmem:[%s572 + $0x88] sm:$0xff] %v6369
          %6431 = vst [vmem:[%s572 + $0x90] sm:$0xff] %v6373
          %6432 = vst [vmem:[%s572 + $0x98] sm:$0xff] %v6375
          %6433 = vst [vmem:[%s572 + $0xa0] sm:$0xff] %v6379
          %6434 = vst [vmem:[%s572 + $0xa8] sm:$0xff] %v6381
          %6435 = vst [vmem:[%s572 + $0xb0] sm:$0xff] %v6385
          %6436 = vst [vmem:[%s572 + $0xb8] sm:$0xff] %v6387
          %6437 = vst [vmem:[%s572 + $0xc0] sm:$0xff] %v6391
          %6438 = vst [vmem:[%s572 + $0xc8] sm:$0xff] %v6393
          %6439 = vst [vmem:[%s572 + $0xd0] sm:$0xff] %v6397
          %6440 = vst [vmem:[%s572 + $0xd8] sm:$0xff] %v6399
          %6441 = vst [vmem:[%s572 + $0xe0] sm:$0xff] %v6403
          %6442 = vst [vmem:[%s572 + $0xe8] sm:$0xff] %v6405
          %6443 = vst [vmem:[%s572 + $0xf0] sm:$0xff] %v6409
          %6444 = vst [vmem:[%s572 + $0xf8] sm:$0xff] %v6411
        $region100: #{tpu_custom_call.1} parent=55 // pred_fallthru
          _
        %s6445 = sand.u32 %s273, 1
        %s6446 = scalar_lea.sflag [#allocation8], %s6445
        %s6447 = sand.u32 %s273, 1
        %s6448 = smul.addr %s6447, 256
        %s6449 = scalar_lea.vmem [#allocation21], %s6448
        // Predicated region
        $region101: #{tpu_custom_call.1} parent=55 // pred_check
          %p6450 = pneg %p283
        $region102: #{tpu_custom_call.1} parent=55 // pred_check_branch
          %6452 = sbr.rel (%p6450) target = $region104
        $region103: #{tpu_custom_call.1} parent=55 // pred_region
          %s6453 = smul.u32 16, %s38
          %s6455 = ssub.s32 4096, 4096
          %6456 = vsyncadd %s6446, %s6455
          %s6457 = smul.addr %s6453, 2
          %s6458 = smul.addr %s37, 64
          %s6459 = sadd.s32 %s6457, %s6458
          %s6460 = smul.addr %s6459, 128
          %s6461 = scalar_lea.hbm %s9, %s6460
          %s6462 = sshll.u32 %s6449, 4
          %s6463 = int_to_ptr.vmem [resolvable:$true] %s6462
          %6468 = dma.vmem_to_hbm [thread:$0]  %s6463, 4096, %s6461, %s6446, 256, 256, 16
        $region104: #{tpu_custom_call.1} parent=55 // pred_fallthru
          _
      $region56: #{tpu_custom_call.1} parent=5 // pred_fallthru
        _
      %p6469 = scmp.le.s32.totalorder 2, %s27
      // Predicated region
      $region105: #{tpu_custom_call.1} parent=5 // pred_check
        %p6470 = pneg %p6469
      $region106: #{tpu_custom_call.1} parent=5 // pred_check_branch
        %6472 = sbr.rel (%p6470) target = $region108
      $region107: #{tpu_custom_call.1} parent=5 // pred_region
        %s6473 = ssub.s32 %s27, 2
        // Predicated region
        $region109: #{tpu_custom_call.1} parent=107 // pred_check
          %p6474 = pneg %p289
        $region110: #{tpu_custom_call.1} parent=107 // pred_check_branch
          %6476 = sbr.rel (%p6474) target = $region112
        $region111: #{tpu_custom_call.1} parent=107 // pred_region
          %s6477 = sand.u32 %s274, 1
          %s6478 = scalar_lea.sflag [#allocation8], %s6477
          %s6479 = sand.u32 %s274, 1
          %s6480 = smul.addr %s6479, 256
          %s6481 = scalar_lea.vmem [#allocation21], %s6480
          %6482 = dma.done %s6478, 4096
        $region112: #{tpu_custom_call.1} parent=107 // pred_fallthru
          _
      $region108: #{tpu_custom_call.1} parent=5 // pred_fallthru
        _
    $region6: #{tpu_custom_call.1} parent=1 // loop_footer
      %s31 = sadd.s32 1, %s27
    $region7: #{tpu_custom_call.1} parent=1 // loop_footer_branch
      %26 = sbr.rel target = $region3
    $region8: #{tpu_custom_call.1} parent=1 // loop_exit
      _
    %6483 = vsyncpa [#allocation7], 1
    %s6484 = scalar_lea.sflag [#allocation7], 1
    %6485 = vsyncpa %s6484, 1
    %6486 = vsyncpa [#allocation10], 1
    %s6487 = scalar_lea.sflag [#allocation10], 1
    %6488 = vsyncpa %s6487, 1
    %6489 = vsyncpa [#allocation13], 1
    %6490 = vsyncpa [#allocation16], 1
    %6491 = vsyncpa [#allocation19], 1
    %6492 = vsyncpa [#allocation8], 1
    %s6493 = scalar_lea.sflag [#allocation8], 1
    %6494 = vsyncpa %s6493, 1

</llo_original>
